<compile_context>
chip_gen: v6e
topology: v6e:2x2x1
jax: 0.10.0
libtpu: 0.0.40
codegen_flags: <defaults>
</compile_context>

<pallas_src>
import functools

import jax
import jax.numpy as jnp
from jax.experimental import pallas as pl
from jax.experimental.pallas import tpu as pltpu

F32 = jnp.float32
BF16 = jnp.bfloat16

# Model dimensions
H = 128            # temporal-encoder hidden == GGN hidden_channels
HEADS = 4
FH = H // HEADS    # 32 features per GAT head
CNN_H = 64
D_TEMP = 65        # raw temporal feature width
D_PAD = 128        # lane-padded temporal feature width


def _spec(shape):
    n = len(shape)
    return pl.BlockSpec(shape, lambda i, _n=n: (0,) * _n)


# ---------------------------------------------------------------------------
# Fused kernel: LSTM -> connectivity -> GAT -> TemporalCNN -> classifier
# ---------------------------------------------------------------------------
def ggn_fused_kernel(
    xt_ref, xtopo_ref,
    wih0_ref, whh0_ref, b0_ref, wih1_ref, whh1_ref, b1_ref,
    wtopo_ref, btopo_ref, wtemp_ref,
    wgat_ref, asrc_ref, adst_ref, wout_ref, bout_ref,
    wc1_ref, bc1_ref, wc2_ref, bc2_ref,
    wclst_ref, wclss_ref, bcls_ref,
    o_ref,
):
    x = xt_ref[...]                        # [B, S, 128] f32 (features zero-padded 65->128)
    B, S, DP = x.shape
    xtopo = xtopo_ref[...]                 # [B, N, N] f32
    N = xtopo.shape[1]
    OUT = bout_ref.shape[1]

    # ---------------- TemporalEncoder: 2-layer LSTM -> final hidden [B, H] ----------------
    whh0 = whh0_ref[...]                   # bf16 [H, 4H]
    wih1 = wih1_ref[...]                   # bf16 [H, 4H]
    whh1 = whh1_ref[...]                   # bf16 [H, 4H]
    b1 = b1_ref[...]                       # f32  [1, 4H]

    # Hoisted layer-0 input projection: one [B*S,128] x [128,512] bf16 MXU matmul.
    gates0 = (jnp.dot(x.reshape(B * S, DP).astype(BF16), wih0_ref[...],
                      preferred_element_type=F32).reshape(B, S, 4 * H)
              + b0_ref[...])

    def lstm_cell(g_in, h, c, whh):
        # g_in already contains input projection + bias; add recurrent term.
        g = g_in + jnp.dot(h.astype(BF16), whh, preferred_element_type=F32)
        i = jax.nn.sigmoid(g[:, 0:H])
        f = jax.nn.sigmoid(g[:, H:2 * H])
        gg = jnp.tanh(g[:, 2 * H:3 * H])
        o = jax.nn.sigmoid(g[:, 3 * H:4 * H])
        c_new = f * c + i * gg
        h_new = o * jnp.tanh(c_new)
        return h_new, c_new

    h0 = jnp.zeros((B, H), F32)
    c0 = jnp.zeros((B, H), F32)
    h1 = jnp.zeros((B, H), F32)
    c1 = jnp.zeros((B, H), F32)
    for t in range(S):                     # S small & static -> unrolled
        h0, c0 = lstm_cell(gates0[:, t, :], h0, c0, whh0)
        g1_in = jnp.dot(h0.astype(BF16), wih1, preferred_element_type=F32) + b1
        h1, c1 = lstm_cell(g1_in, h1, c1, whh1)
    temporal_feat = h1                     # [B, H]

    # .unsqueeze(1).repeat(1, num_nodes, 1)  -> [B, N, H]  (kept in VMEM/vregs)
    rep = jnp.broadcast_to(temporal_feat[:, None, :], (B, N, H))

    # ---------------- ConnectivityGraphGenerator: soft adjacency [B, N, N] ----------------
    hc = jnp.einsum('bnm,mh->bnh', xtopo.astype(BF16), wtopo_ref[...],
                    preferred_element_type=F32) + btopo_ref[...]
    tsum = jnp.mean(x, axis=1)             # [B, 128] (padded cols are zero)
    tproj = jnp.dot(tsum.astype(BF16), wtemp_ref[...], preferred_element_type=F32)
    hc = jnp.maximum(hc + tproj[:, None, :], 0.0)
    scale = 1.0 / (float(H) ** 0.5)
    hcb = hc.astype(BF16)
    logits = jnp.einsum('bnh,bmh->bnm', hcb, hcb,
                        preferred_element_type=F32) * scale
    adj = jax.nn.sigmoid(logits)           # soft adjacency mask

    # ---------------- SpatialDecoder: 4-head GAT + linear head + mean pool ----------------
    # Head-batched projection: one lane-dense [B,N,128] x [128,128] matmul for all heads.
    z_all = jnp.einsum('bnd,df->bnf', rep.astype(BF16), wgat_ref[...],
                       preferred_element_type=F32)                 # [B, N, HEADS*FH]
    a_src = asrc_ref[...]                                          # [HEADS, FH] f32
    a_dst = adst_ref[...]
    wout = wout_ref[...]                                           # [HEADS*FH, OUT] bf16

    node_acc = jnp.zeros((B, N, OUT), F32)
    for hh in range(HEADS):
        z_h = z_all[:, :, hh * FH:(hh + 1) * FH]                   # [B, N, FH]
        a_s = a_src[hh:hh + 1, :][:, None, :]                      # [1, 1, FH]
        a_d = a_dst[hh:hh + 1, :][:, None, :]
        es = jnp.sum(z_h * a_s, axis=-1)                           # [B, N]
        ed = jnp.sum(z_h * a_d, axis=-1)                           # [B, N]
        e = es[:, :, None] + ed[:, None, :]                        # [B, N, N]
        e = jnp.where(e > 0, e, 0.2 * e)                           # LeakyReLU(0.2)
        e = e - jnp.max(e, axis=-1, keepdims=True)
        p = jnp.exp(e) * adj                                       # mask by soft adjacency
        inv = pl.reciprocal(jnp.sum(p, axis=-1) + 1e-9, approx=True)
        alpha = p * inv[:, :, None]
        out_h = jnp.einsum('bnm,bmf->bnf', alpha.astype(BF16), z_h.astype(BF16),
                           preferred_element_type=F32)             # [B, N, FH]
        # ELU (negative branch only inside exp -> no overflow)
        hcat_h = jnp.where(out_h > 0, out_h,
                           jnp.exp(jnp.minimum(out_h, 0.0)) - 1.0)
        node_acc = node_acc + jnp.einsum(
            'bnf,fo->bno', hcat_h.astype(BF16), wout[hh * FH:(hh + 1) * FH, :],
            preferred_element_type=F32)
    spatial = jnp.mean(node_acc, axis=1) + bout_ref[...]           # [B, OUT]
    spatial_scalar = jnp.mean(spatial, axis=-1, keepdims=True)     # [B, 1]

    # ---------------- TemporalCNN: two k=3 'same' convs + ReLU + mean pool ------------------
    # Tap-wise formulation: out[l] = x[l-1]@W0 + x[l]@W1 + x[l+1]@W2 + b
    # (three matmuls + sublane shifts; avoids a wide lane-axis im2col concatenate).
    def conv1d_same_relu(xin, w_ref, b):
        xb = xin.astype(BF16)
        y0 = jnp.einsum('blc,cf->blf', xb, w_ref[0], preferred_element_type=F32)
        y1 = jnp.einsum('blc,cf->blf', xb, w_ref[1], preferred_element_type=F32)
        y2 = jnp.einsum('blc,cf->blf', xb, w_ref[2], preferred_element_type=F32)
        Cout = y1.shape[-1]
        zrow = jnp.zeros((B, 1, Cout), F32)
        h = (jnp.concatenate([zrow, y0[:, :-1, :]], axis=1)        # x[l-1]@W0 -> position l
             + y1
             + jnp.concatenate([y2[:, 1:, :], zrow], axis=1)       # x[l+1]@W2 -> position l
             + b)
        return jnp.maximum(h, 0.0)

    conv_a = conv1d_same_relu(rep, wc1_ref, bc1_ref[...])          # [B, N, 64]
    conv_b = conv1d_same_relu(conv_a, wc2_ref, bc2_ref[...])       # [B, N, 64]
    cnn_feat = jnp.mean(conv_b, axis=1)                            # [B, 64]

    # ---------------- GGNClassifier: Linear(64 + 1 -> OUT), folded in ----------------------
    logits_out = (jnp.dot(cnn_feat.astype(BF16), wclst_ref[...],
                          preferred_element_type=F32)
                  + spatial_scalar * wclss_ref[...]
                  + bcls_ref[...])
    o_ref[...] = logits_out


# ---------------------------------------------------------------------------
# Parameter initialization (deterministic, synthetic) + kernel-ready packing
# ---------------------------------------------------------------------------
def init_params(key, num_nodes, out_channels):
    ks = jax.random.split(key, 20)
    s = 0.1

    def nrm(k, shape):
        return s * jax.random.normal(k, shape, F32)

    return dict(
        # LSTM (2 layers, gate order i,f,g,o)
        wih0=nrm(ks[0], (D_TEMP, 4 * H)), whh0=nrm(ks[1], (H, 4 * H)), b0=nrm(ks[2], (1, 4 * H)),
        wih1=nrm(ks[3], (H, 4 * H)), whh1=nrm(ks[4], (H, 4 * H)), b1=nrm(ks[5], (1, 4 * H)),
        # connectivity graph generator
        wtopo=nrm(ks[6], (num_nodes, H)), btopo=nrm(ks[7], (1, H)), wtemp=nrm(ks[8], (D_TEMP, H)),
        # spatial decoder (4-head GAT + output head)
        wgat=nrm(ks[9], (HEADS, H, FH)), asrc=nrm(ks[10], (HEADS, FH)), adst=nrm(ks[11], (HEADS, FH)),
        wout=nrm(ks[12], (HEADS * FH, out_channels)), bout=nrm(ks[13], (1, out_channels)),
        # temporal CNN (tap-major conv weights: [k, Cin, Cout])
        wc1=nrm(ks[14], (3, H, CNN_H)), bc1=nrm(ks[15], (1, CNN_H)),
        wc2=nrm(ks[16], (3, CNN_H, CNN_H)), bc2=nrm(ks[17], (1, CNN_H)),
        # classifier (64 + 1 -> out)
        wcls=nrm(ks[18], (CNN_H + 1, out_channels)), bcls=nrm(ks[19], (1, out_channels)),
    )


def prepare_params(p):
    """Pad / reshape / cast weights into the kernel-friendly (lane-dense, bf16) layout."""
    def bf(x):
        return x.astype(BF16)

    wih0_p = jnp.zeros((D_PAD, 4 * H), F32).at[:D_TEMP].set(p["wih0"])
    wtemp_p = jnp.zeros((D_PAD, H), F32).at[:D_TEMP].set(p["wtemp"])
    wgat_flat = jnp.transpose(p["wgat"], (1, 0, 2)).reshape(H, HEADS * FH)
    return dict(
        wih0=bf(wih0_p), whh0=bf(p["whh0"]), b0=p["b0"],
        wih1=bf(p["wih1"]), whh1=bf(p["whh1"]), b1=p["b1"],
        wtopo=bf(p["wtopo"]), btopo=p["btopo"], wtemp=bf(wtemp_p),
        wgat=bf(wgat_flat), asrc=p["asrc"], adst=p["adst"],
        wout=bf(p["wout"]), bout=p["bout"],
        wc1=bf(p["wc1"]), bc1=p["bc1"],
        wc2=bf(p["wc2"]), bc2=p["bc2"],
        wcls_t=bf(p["wcls"][:CNN_H]), wcls_s=p["wcls"][CNN_H:CNN_H + 1], bcls=p["bcls"],
    )


# ---------------------------------------------------------------------------
# Forward pass: single fused pallas_call, everything VMEM-resident
# ---------------------------------------------------------------------------
@functools.partial(jax.jit, static_argnames=("out_channels",))
def ggn_forward(prep, x_temporal, x_topology, out_channels=4):
    B, S, din = x_temporal.shape
    x_pad = jnp.pad(x_temporal.astype(F32), ((0, 0), (0, 0), (0, D_PAD - din)))

    inputs = [
        x_pad, x_topology.astype(F32),
        prep["wih0"], prep["whh0"], prep["b0"],
        prep["wih1"], prep["whh1"], prep["b1"],
        prep["wtopo"], prep["btopo"], prep["wtemp"],
        prep["wgat"], prep["asrc"], prep["adst"], prep["wout"], prep["bout"],
        prep["wc1"], prep["bc1"], prep["wc2"], prep["bc2"],
        prep["wcls_t"], prep["wcls_s"], prep["bcls"],
    ]
    out_shape = jax.ShapeDtypeStruct((B, out_channels), F32)

    return pl.pallas_call(
        ggn_fused_kernel,
        grid=(1,),
        in_specs=[_spec(a.shape) for a in inputs],
        out_specs=_spec(out_shape.shape),
        out_shape=out_shape,
        compiler_params=pltpu.CompilerParams(
            dimension_semantics=("arbitrary",),
            vmem_limit_bytes=64 << 20,
        ),
    )(*inputs)


# ---------------------------------------------------------------------------
# Demo
# ---------------------------------------------------------------------------
if __name__ == "__main__":
    key = jax.random.PRNGKey(0)
    k_par, k_temp, k_topo = jax.random.split(key, 3)

    B, N, S, OUT = 2, 8, 16, 4

    raw_params = init_params(k_par, num_nodes=N, out_channels=OUT)
    prep = prepare_params(raw_params)

    x_temporal = jax.random.normal(k_temp, (B, S, D_TEMP), F32)
    x_topology = jax.random.uniform(k_topo, (B, N, N), F32)

    out = ggn_forward(prep, x_temporal, x_topology, out_channels=OUT)
    out = jax.block_until_ready(out)

    assert out.shape == (B, OUT) and out.dtype == jnp.float32
    assert bool(jnp.all(jnp.isfinite(out)))
    print("KERNEL_OK")
</pallas_src>

<mosaic_0001>
module attributes {stable_mosaic.version = 11 : i64} {
  func.func @ggn_fused_kernel(%arg0: i32, %arg1: memref<2x16x128xf32, #tpu.memory_space<vmem>>, %arg2: memref<2x8x8xf32, #tpu.memory_space<vmem>>, %arg3: memref<128x512xbf16, #tpu.memory_space<vmem>>, %arg4: memref<128x512xbf16, #tpu.memory_space<vmem>>, %arg5: memref<1x512xf32, #tpu.memory_space<vmem>>, %arg6: memref<128x512xbf16, #tpu.memory_space<vmem>>, %arg7: memref<128x512xbf16, #tpu.memory_space<vmem>>, %arg8: memref<1x512xf32, #tpu.memory_space<vmem>>, %arg9: memref<8x128xbf16, #tpu.memory_space<vmem>>, %arg10: memref<1x128xf32, #tpu.memory_space<vmem>>, %arg11: memref<128x128xbf16, #tpu.memory_space<vmem>>, %arg12: memref<128x128xbf16, #tpu.memory_space<vmem>>, %arg13: memref<4x32xf32, #tpu.memory_space<vmem>>, %arg14: memref<4x32xf32, #tpu.memory_space<vmem>>, %arg15: memref<128x4xbf16, #tpu.memory_space<vmem>>, %arg16: memref<1x4xf32, #tpu.memory_space<vmem>>, %arg17: memref<3x128x64xbf16, #tpu.memory_space<vmem>>, %arg18: memref<1x64xf32, #tpu.memory_space<vmem>>, %arg19: memref<3x64x64xbf16, #tpu.memory_space<vmem>>, %arg20: memref<1x64xf32, #tpu.memory_space<vmem>>, %arg21: memref<64x4xbf16, #tpu.memory_space<vmem>>, %arg22: memref<1x4xf32, #tpu.memory_space<vmem>>, %arg23: memref<1x4xf32, #tpu.memory_space<vmem>>, %arg24: memref<2x4xf32, #tpu.memory_space<vmem>>) attributes {dimension_semantics = [#tpu.dimension_semantics<arbitrary>], iteration_bounds = array<i64: 1>, scalar_prefetch = 0 : i64, scratch_operands = 0 : i64, tpu.core_type = #tpu.core_type<tc>, window_params = [{pipeline_mode = #tpu.pipeline_mode<synchronous>, transform_indices = @transform_0, window_bounds = array<i64: 2, 16, 128>}, {pipeline_mode = #tpu.pipeline_mode<synchronous>, transform_indices = @transform_1, window_bounds = array<i64: 2, 8, 8>}, {pipeline_mode = #tpu.pipeline_mode<synchronous>, transform_indices = @transform_2, window_bounds = array<i64: 128, 512>}, {pipeline_mode = #tpu.pipeline_mode<synchronous>, transform_indices = @transform_3, window_bounds = array<i64: 128, 512>}, {pipeline_mode = #tpu.pipeline_mode<synchronous>, transform_indices = @transform_4, window_bounds = array<i64: 1, 512>}, {pipeline_mode = #tpu.pipeline_mode<synchronous>, transform_indices = @transform_5, window_bounds = array<i64: 128, 512>}, {pipeline_mode = #tpu.pipeline_mode<synchronous>, transform_indices = @transform_6, window_bounds = array<i64: 128, 512>}, {pipeline_mode = #tpu.pipeline_mode<synchronous>, transform_indices = @transform_7, window_bounds = array<i64: 1, 512>}, {pipeline_mode = #tpu.pipeline_mode<synchronous>, transform_indices = @transform_8, window_bounds = array<i64: 8, 128>}, {pipeline_mode = #tpu.pipeline_mode<synchronous>, transform_indices = @transform_9, window_bounds = array<i64: 1, 128>}, {pipeline_mode = #tpu.pipeline_mode<synchronous>, transform_indices = @transform_10, window_bounds = array<i64: 128, 128>}, {pipeline_mode = #tpu.pipeline_mode<synchronous>, transform_indices = @transform_11, window_bounds = array<i64: 128, 128>}, {pipeline_mode = #tpu.pipeline_mode<synchronous>, transform_indices = @transform_12, window_bounds = array<i64: 4, 32>}, {pipeline_mode = #tpu.pipeline_mode<synchronous>, transform_indices = @transform_13, window_bounds = array<i64: 4, 32>}, {pipeline_mode = #tpu.pipeline_mode<synchronous>, transform_indices = @transform_14, window_bounds = array<i64: 128, 4>}, {pipeline_mode = #tpu.pipeline_mode<synchronous>, transform_indices = @transform_15, window_bounds = array<i64: 1, 4>}, {pipeline_mode = #tpu.pipeline_mode<synchronous>, transform_indices = @transform_16, window_bounds = array<i64: 3, 128, 64>}, {pipeline_mode = #tpu.pipeline_mode<synchronous>, transform_indices = @transform_17, window_bounds = array<i64: 1, 64>}, {pipeline_mode = #tpu.pipeline_mode<synchronous>, transform_indices = @transform_18, window_bounds = array<i64: 3, 64, 64>}, {pipeline_mode = #tpu.pipeline_mode<synchronous>, transform_indices = @transform_19, window_bounds = array<i64: 1, 64>}, {pipeline_mode = #tpu.pipeline_mode<synchronous>, transform_indices = @transform_20, window_bounds = array<i64: 64, 4>}, {pipeline_mode = #tpu.pipeline_mode<synchronous>, transform_indices = @transform_21, window_bounds = array<i64: 1, 4>}, {pipeline_mode = #tpu.pipeline_mode<synchronous>, transform_indices = @transform_22, window_bounds = array<i64: 1, 4>}, {pipeline_mode = #tpu.pipeline_mode<synchronous>, transform_indices = @transform_23, window_bounds = array<i64: 2, 4>}]} {
    %c0 = arith.constant 0 : index
    %c0_0 = arith.constant 0 : index
    %c0_1 = arith.constant 0 : index
    %0 = vector.load %arg1[%c0, %c0_0, %c0_1] : memref<2x16x128xf32, #tpu.memory_space<vmem>>, vector<2x16x128xf32>
    %c0_2 = arith.constant 0 : index
    %c0_3 = arith.constant 0 : index
    %c0_4 = arith.constant 0 : index
    %1 = vector.load %arg2[%c0_2, %c0_3, %c0_4] : memref<2x8x8xf32, #tpu.memory_space<vmem>>, vector<2x8x8xf32>
    %c0_5 = arith.constant 0 : index
    %c0_6 = arith.constant 0 : index
    %2 = vector.load %arg4[%c0_5, %c0_6] : memref<128x512xbf16, #tpu.memory_space<vmem>>, vector<128x512xbf16>
    %c0_7 = arith.constant 0 : index
    %c0_8 = arith.constant 0 : index
    %3 = vector.load %arg6[%c0_7, %c0_8] : memref<128x512xbf16, #tpu.memory_space<vmem>>, vector<128x512xbf16>
    %c0_9 = arith.constant 0 : index
    %c0_10 = arith.constant 0 : index
    %4 = vector.load %arg7[%c0_9, %c0_10] : memref<128x512xbf16, #tpu.memory_space<vmem>>, vector<128x512xbf16>
    %c0_11 = arith.constant 0 : index
    %c0_12 = arith.constant 0 : index
    %5 = vector.load %arg8[%c0_11, %c0_12] : memref<1x512xf32, #tpu.memory_space<vmem>>, vector<1x512xf32>
    %6 = vector.shape_cast %0 : vector<2x16x128xf32> to vector<32x128xf32>
    %7 = arith.truncf %6 : vector<32x128xf32> to vector<32x128xbf16>
    %c0_13 = arith.constant 0 : index
    %c0_14 = arith.constant 0 : index
    %8 = vector.load %arg3[%c0_13, %c0_14] : memref<128x512xbf16, #tpu.memory_space<vmem>>, vector<128x512xbf16>
    %cst = arith.constant dense<0.000000e+00> : vector<32x512xf32>
    %9 = tpu.matmul %7, %8, %cst {dimension_numbers = #tpu.dot_dimension_numbers<[1], [0], [0], [1], [0, 0, 1, 1], [], []>} : vector<32x128xbf16>, vector<128x512xbf16>, vector<32x512xf32> -> vector<32x512xf32>
    %10 = vector.shape_cast %9 : vector<32x512xf32> to vector<2x16x512xf32>
    %c0_15 = arith.constant 0 : index
    %c0_16 = arith.constant 0 : index
    %11 = vector.load %arg5[%c0_15, %c0_16] : memref<1x512xf32, #tpu.memory_space<vmem>>, vector<1x512xf32>
    %12 = vector.shape_cast %11 : vector<1x512xf32> to vector<1x1x512xf32>
    %13 = vector.broadcast %12 : vector<1x1x512xf32> to vector<2x16x512xf32>
    %14 = arith.addf %10, %13 : vector<2x16x512xf32>
    %cst_17 = arith.constant 0.000000e+00 : f32
    %15 = vector.broadcast %cst_17 : f32 to vector<2x128xf32>
    %cst_18 = arith.constant 0.000000e+00 : f32
    %16 = vector.broadcast %cst_18 : f32 to vector<2x128xf32>
    %cst_19 = arith.constant 0.000000e+00 : f32
    %17 = vector.broadcast %cst_19 : f32 to vector<2x128xf32>
    %cst_20 = arith.constant 0.000000e+00 : f32
    %18 = vector.broadcast %cst_20 : f32 to vector<2x128xf32>
    %19 = vector.extract_strided_slice %14 {offsets = [0, 0, 0], sizes = [2, 1, 512], strides = [1, 1, 1]} : vector<2x16x512xf32> to vector<2x1x512xf32>
    %20 = vector.shape_cast %19 : vector<2x1x512xf32> to vector<2x512xf32>
    %21 = arith.truncf %15 : vector<2x128xf32> to vector<2x128xbf16>
    %cst_21 = arith.constant dense<0.000000e+00> : vector<2x512xf32>
    %22 = tpu.matmul %21, %2, %cst_21 {dimension_numbers = #tpu.dot_dimension_numbers<[1], [0], [0], [1], [0, 0, 1, 1], [], []>} : vector<2x128xbf16>, vector<128x512xbf16>, vector<2x512xf32> -> vector<2x512xf32>
    %23 = arith.addf %20, %22 : vector<2x512xf32>
    %24 = vector.extract_strided_slice %23 {offsets = [0, 0], sizes = [2, 128], strides = [1, 1]} : vector<2x512xf32> to vector<2x128xf32>
    %25 = arith.negf %24 : vector<2x128xf32>
    %26 = math.exp %25 : vector<2x128xf32>
    %cst_22 = arith.constant 1.000000e+00 : f32
    %27 = vector.broadcast %cst_22 : f32 to vector<2x128xf32>
    %28 = arith.addf %27, %26 : vector<2x128xf32>
    %29 = arith.divf %27, %28 : vector<2x128xf32>
    %30 = vector.extract_strided_slice %23 {offsets = [0, 128], sizes = [2, 128], strides = [1, 1]} : vector<2x512xf32> to vector<2x128xf32>
    %31 = arith.negf %30 : vector<2x128xf32>
    %32 = math.exp %31 : vector<2x128xf32>
    %cst_23 = arith.constant 1.000000e+00 : f32
    %33 = vector.broadcast %cst_23 : f32 to vector<2x128xf32>
    %34 = arith.addf %33, %32 : vector<2x128xf32>
    %35 = arith.divf %33, %34 : vector<2x128xf32>
    %36 = vector.extract_strided_slice %23 {offsets = [0, 256], sizes = [2, 128], strides = [1, 1]} : vector<2x512xf32> to vector<2x128xf32>
    %37 = math.tanh %36 : vector<2x128xf32>
    %38 = vector.extract_strided_slice %23 {offsets = [0, 384], sizes = [2, 128], strides = [1, 1]} : vector<2x512xf32> to vector<2x128xf32>
    %39 = arith.negf %38 : vector<2x128xf32>
    %40 = math.exp %39 : vector<2x128xf32>
    %cst_24 = arith.constant 1.000000e+00 : f32
    %41 = vector.broadcast %cst_24 : f32 to vector<2x128xf32>
    %42 = arith.addf %41, %40 : vector<2x128xf32>
    %43 = arith.divf %41, %42 : vector<2x128xf32>
    %44 = arith.mulf %35, %16 : vector<2x128xf32>
    %45 = arith.mulf %29, %37 : vector<2x128xf32>
    %46 = arith.addf %44, %45 : vector<2x128xf32>
    %47 = math.tanh %46 : vector<2x128xf32>
    %48 = arith.mulf %43, %47 : vector<2x128xf32>
    %49 = arith.truncf %48 : vector<2x128xf32> to vector<2x128xbf16>
    %cst_25 = arith.constant dense<0.000000e+00> : vector<2x512xf32>
    %50 = tpu.matmul %49, %3, %cst_25 {dimension_numbers = #tpu.dot_dimension_numbers<[1], [0], [0], [1], [0, 0, 1, 1], [], []>} : vector<2x128xbf16>, vector<128x512xbf16>, vector<2x512xf32> -> vector<2x512xf32>
    %51 = vector.broadcast %5 : vector<1x512xf32> to vector<2x512xf32>
    %52 = arith.addf %50, %51 : vector<2x512xf32>
    %53 = arith.truncf %17 : vector<2x128xf32> to vector<2x128xbf16>
    %cst_26 = arith.constant dense<0.000000e+00> : vector<2x512xf32>
    %54 = tpu.matmul %53, %4, %cst_26 {dimension_numbers = #tpu.dot_dimension_numbers<[1], [0], [0], [1], [0, 0, 1, 1], [], []>} : vector<2x128xbf16>, vector<128x512xbf16>, vector<2x512xf32> -> vector<2x512xf32>
    %55 = arith.addf %52, %54 : vector<2x512xf32>
    %56 = vector.extract_strided_slice %55 {offsets = [0, 0], sizes = [2, 128], strides = [1, 1]} : vector<2x512xf32> to vector<2x128xf32>
    %57 = arith.negf %56 : vector<2x128xf32>
    %58 = math.exp %57 : vector<2x128xf32>
    %cst_27 = arith.constant 1.000000e+00 : f32
    %59 = vector.broadcast %cst_27 : f32 to vector<2x128xf32>
    %60 = arith.addf %59, %58 : vector<2x128xf32>
    %61 = arith.divf %59, %60 : vector<2x128xf32>
    %62 = vector.extract_strided_slice %55 {offsets = [0, 128], sizes = [2, 128], strides = [1, 1]} : vector<2x512xf32> to vector<2x128xf32>
    %63 = arith.negf %62 : vector<2x128xf32>
    %64 = math.exp %63 : vector<2x128xf32>
    %cst_28 = arith.constant 1.000000e+00 : f32
    %65 = vector.broadcast %cst_28 : f32 to vector<2x128xf32>
    %66 = arith.addf %65, %64 : vector<2x128xf32>
    %67 = arith.divf %65, %66 : vector<2x128xf32>
    %68 = vector.extract_strided_slice %55 {offsets = [0, 256], sizes = [2, 128], strides = [1, 1]} : vector<2x512xf32> to vector<2x128xf32>
    %69 = math.tanh %68 : vector<2x128xf32>
    %70 = vector.extract_strided_slice %55 {offsets = [0, 384], sizes = [2, 128], strides = [1, 1]} : vector<2x512xf32> to vector<2x128xf32>
    %71 = arith.negf %70 : vector<2x128xf32>
    %72 = math.exp %71 : vector<2x128xf32>
    %cst_29 = arith.constant 1.000000e+00 : f32
    %73 = vector.broadcast %cst_29 : f32 to vector<2x128xf32>
    %74 = arith.addf %73, %72 : vector<2x128xf32>
    %75 = arith.divf %73, %74 : vector<2x128xf32>
    %76 = arith.mulf %67, %18 : vector<2x128xf32>
    %77 = arith.mulf %61, %69 : vector<2x128xf32>
    %78 = arith.addf %76, %77 : vector<2x128xf32>
    %79 = math.tanh %78 : vector<2x128xf32>
    %80 = arith.mulf %75, %79 : vector<2x128xf32>
    %81 = vector.extract_strided_slice %14 {offsets = [0, 1, 0], sizes = [2, 1, 512], strides = [1, 1, 1]} : vector<2x16x512xf32> to vector<2x1x512xf32>
    %82 = vector.shape_cast %81 : vector<2x1x512xf32> to vector<2x512xf32>
    %83 = arith.truncf %48 : vector<2x128xf32> to vector<2x128xbf16>
    %cst_30 = arith.constant dense<0.000000e+00> : vector<2x512xf32>
    %84 = tpu.matmul %83, %2, %cst_30 {dimension_numbers = #tpu.dot_dimension_numbers<[1], [0], [0], [1], [0, 0, 1, 1], [], []>} : vector<2x128xbf16>, vector<128x512xbf16>, vector<2x512xf32> -> vector<2x512xf32>
    %85 = arith.addf %82, %84 : vector<2x512xf32>
    %86 = vector.extract_strided_slice %85 {offsets = [0, 0], sizes = [2, 128], strides = [1, 1]} : vector<2x512xf32> to vector<2x128xf32>
    %87 = arith.negf %86 : vector<2x128xf32>
    %88 = math.exp %87 : vector<2x128xf32>
    %cst_31 = arith.constant 1.000000e+00 : f32
    %89 = vector.broadcast %cst_31 : f32 to vector<2x128xf32>
    %90 = arith.addf %89, %88 : vector<2x128xf32>
    %91 = arith.divf %89, %90 : vector<2x128xf32>
    %92 = vector.extract_strided_slice %85 {offsets = [0, 128], sizes = [2, 128], strides = [1, 1]} : vector<2x512xf32> to vector<2x128xf32>
    %93 = arith.negf %92 : vector<2x128xf32>
    %94 = math.exp %93 : vector<2x128xf32>
    %cst_32 = arith.constant 1.000000e+00 : f32
    %95 = vector.broadcast %cst_32 : f32 to vector<2x128xf32>
    %96 = arith.addf %95, %94 : vector<2x128xf32>
    %97 = arith.divf %95, %96 : vector<2x128xf32>
    %98 = vector.extract_strided_slice %85 {offsets = [0, 256], sizes = [2, 128], strides = [1, 1]} : vector<2x512xf32> to vector<2x128xf32>
    %99 = math.tanh %98 : vector<2x128xf32>
    %100 = vector.extract_strided_slice %85 {offsets = [0, 384], sizes = [2, 128], strides = [1, 1]} : vector<2x512xf32> to vector<2x128xf32>
    %101 = arith.negf %100 : vector<2x128xf32>
    %102 = math.exp %101 : vector<2x128xf32>
    %cst_33 = arith.constant 1.000000e+00 : f32
    %103 = vector.broadcast %cst_33 : f32 to vector<2x128xf32>
    %104 = arith.addf %103, %102 : vector<2x128xf32>
    %105 = arith.divf %103, %104 : vector<2x128xf32>
    %106 = arith.mulf %97, %46 : vector<2x128xf32>
    %107 = arith.mulf %91, %99 : vector<2x128xf32>
    %108 = arith.addf %106, %107 : vector<2x128xf32>
    %109 = math.tanh %108 : vector<2x128xf32>
    %110 = arith.mulf %105, %109 : vector<2x128xf32>
    %111 = arith.truncf %110 : vector<2x128xf32> to vector<2x128xbf16>
    %cst_34 = arith.constant dense<0.000000e+00> : vector<2x512xf32>
    %112 = tpu.matmul %111, %3, %cst_34 {dimension_numbers = #tpu.dot_dimension_numbers<[1], [0], [0], [1], [0, 0, 1, 1], [], []>} : vector<2x128xbf16>, vector<128x512xbf16>, vector<2x512xf32> -> vector<2x512xf32>
    %113 = vector.broadcast %5 : vector<1x512xf32> to vector<2x512xf32>
    %114 = arith.addf %112, %113 : vector<2x512xf32>
    %115 = arith.truncf %80 : vector<2x128xf32> to vector<2x128xbf16>
    %cst_35 = arith.constant dense<0.000000e+00> : vector<2x512xf32>
    %116 = tpu.matmul %115, %4, %cst_35 {dimension_numbers = #tpu.dot_dimension_numbers<[1], [0], [0], [1], [0, 0, 1, 1], [], []>} : vector<2x128xbf16>, vector<128x512xbf16>, vector<2x512xf32> -> vector<2x512xf32>
    %117 = arith.addf %114, %116 : vector<2x512xf32>
    %118 = vector.extract_strided_slice %117 {offsets = [0, 0], sizes = [2, 128], strides = [1, 1]} : vector<2x512xf32> to vector<2x128xf32>
    %119 = arith.negf %118 : vector<2x128xf32>
    %120 = math.exp %119 : vector<2x128xf32>
    %cst_36 = arith.constant 1.000000e+00 : f32
    %121 = vector.broadcast %cst_36 : f32 to vector<2x128xf32>
    %122 = arith.addf %121, %120 : vector<2x128xf32>
    %123 = arith.divf %121, %122 : vector<2x128xf32>
    %124 = vector.extract_strided_slice %117 {offsets = [0, 128], sizes = [2, 128], strides = [1, 1]} : vector<2x512xf32> to vector<2x128xf32>
    %125 = arith.negf %124 : vector<2x128xf32>
    %126 = math.exp %125 : vector<2x128xf32>
    %cst_37 = arith.constant 1.000000e+00 : f32
    %127 = vector.broadcast %cst_37 : f32 to vector<2x128xf32>
    %128 = arith.addf %127, %126 : vector<2x128xf32>
    %129 = arith.divf %127, %128 : vector<2x128xf32>
    %130 = vector.extract_strided_slice %117 {offsets = [0, 256], sizes = [2, 128], strides = [1, 1]} : vector<2x512xf32> to vector<2x128xf32>
    %131 = math.tanh %130 : vector<2x128xf32>
    %132 = vector.extract_strided_slice %117 {offsets = [0, 384], sizes = [2, 128], strides = [1, 1]} : vector<2x512xf32> to vector<2x128xf32>
    %133 = arith.negf %132 : vector<2x128xf32>
    %134 = math.exp %133 : vector<2x128xf32>
    %cst_38 = arith.constant 1.000000e+00 : f32
    %135 = vector.broadcast %cst_38 : f32 to vector<2x128xf32>
    %136 = arith.addf %135, %134 : vector<2x128xf32>
    %137 = arith.divf %135, %136 : vector<2x128xf32>
    %138 = arith.mulf %129, %78 : vector<2x128xf32>
    %139 = arith.mulf %123, %131 : vector<2x128xf32>
    %140 = arith.addf %138, %139 : vector<2x128xf32>
    %141 = math.tanh %140 : vector<2x128xf32>
    %142 = arith.mulf %137, %141 : vector<2x128xf32>
    %143 = vector.extract_strided_slice %14 {offsets = [0, 2, 0], sizes = [2, 1, 512], strides = [1, 1, 1]} : vector<2x16x512xf32> to vector<2x1x512xf32>
    %144 = vector.shape_cast %143 : vector<2x1x512xf32> to vector<2x512xf32>
    %145 = arith.truncf %110 : vector<2x128xf32> to vector<2x128xbf16>
    %cst_39 = arith.constant dense<0.000000e+00> : vector<2x512xf32>
    %146 = tpu.matmul %145, %2, %cst_39 {dimension_numbers = #tpu.dot_dimension_numbers<[1], [0], [0], [1], [0, 0, 1, 1], [], []>} : vector<2x128xbf16>, vector<128x512xbf16>, vector<2x512xf32> -> vector<2x512xf32>
    %147 = arith.addf %144, %146 : vector<2x512xf32>
    %148 = vector.extract_strided_slice %147 {offsets = [0, 0], sizes = [2, 128], strides = [1, 1]} : vector<2x512xf32> to vector<2x128xf32>
    %149 = arith.negf %148 : vector<2x128xf32>
    %150 = math.exp %149 : vector<2x128xf32>
    %cst_40 = arith.constant 1.000000e+00 : f32
    %151 = vector.broadcast %cst_40 : f32 to vector<2x128xf32>
    %152 = arith.addf %151, %150 : vector<2x128xf32>
    %153 = arith.divf %151, %152 : vector<2x128xf32>
    %154 = vector.extract_strided_slice %147 {offsets = [0, 128], sizes = [2, 128], strides = [1, 1]} : vector<2x512xf32> to vector<2x128xf32>
    %155 = arith.negf %154 : vector<2x128xf32>
    %156 = math.exp %155 : vector<2x128xf32>
    %cst_41 = arith.constant 1.000000e+00 : f32
    %157 = vector.broadcast %cst_41 : f32 to vector<2x128xf32>
    %158 = arith.addf %157, %156 : vector<2x128xf32>
    %159 = arith.divf %157, %158 : vector<2x128xf32>
    %160 = vector.extract_strided_slice %147 {offsets = [0, 256], sizes = [2, 128], strides = [1, 1]} : vector<2x512xf32> to vector<2x128xf32>
    %161 = math.tanh %160 : vector<2x128xf32>
    %162 = vector.extract_strided_slice %147 {offsets = [0, 384], sizes = [2, 128], strides = [1, 1]} : vector<2x512xf32> to vector<2x128xf32>
    %163 = arith.negf %162 : vector<2x128xf32>
    %164 = math.exp %163 : vector<2x128xf32>
    %cst_42 = arith.constant 1.000000e+00 : f32
    %165 = vector.broadcast %cst_42 : f32 to vector<2x128xf32>
    %166 = arith.addf %165, %164 : vector<2x128xf32>
    %167 = arith.divf %165, %166 : vector<2x128xf32>
    %168 = arith.mulf %159, %108 : vector<2x128xf32>
    %169 = arith.mulf %153, %161 : vector<2x128xf32>
    %170 = arith.addf %168, %169 : vector<2x128xf32>
    %171 = math.tanh %170 : vector<2x128xf32>
    %172 = arith.mulf %167, %171 : vector<2x128xf32>
    %173 = arith.truncf %172 : vector<2x128xf32> to vector<2x128xbf16>
    %cst_43 = arith.constant dense<0.000000e+00> : vector<2x512xf32>
    %174 = tpu.matmul %173, %3, %cst_43 {dimension_numbers = #tpu.dot_dimension_numbers<[1], [0], [0], [1], [0, 0, 1, 1], [], []>} : vector<2x128xbf16>, vector<128x512xbf16>, vector<2x512xf32> -> vector<2x512xf32>
    %175 = vector.broadcast %5 : vector<1x512xf32> to vector<2x512xf32>
    %176 = arith.addf %174, %175 : vector<2x512xf32>
    %177 = arith.truncf %142 : vector<2x128xf32> to vector<2x128xbf16>
    %cst_44 = arith.constant dense<0.000000e+00> : vector<2x512xf32>
    %178 = tpu.matmul %177, %4, %cst_44 {dimension_numbers = #tpu.dot_dimension_numbers<[1], [0], [0], [1], [0, 0, 1, 1], [], []>} : vector<2x128xbf16>, vector<128x512xbf16>, vector<2x512xf32> -> vector<2x512xf32>
    %179 = arith.addf %176, %178 : vector<2x512xf32>
    %180 = vector.extract_strided_slice %179 {offsets = [0, 0], sizes = [2, 128], strides = [1, 1]} : vector<2x512xf32> to vector<2x128xf32>
    %181 = arith.negf %180 : vector<2x128xf32>
    %182 = math.exp %181 : vector<2x128xf32>
    %cst_45 = arith.constant 1.000000e+00 : f32
    %183 = vector.broadcast %cst_45 : f32 to vector<2x128xf32>
    %184 = arith.addf %183, %182 : vector<2x128xf32>
    %185 = arith.divf %183, %184 : vector<2x128xf32>
    %186 = vector.extract_strided_slice %179 {offsets = [0, 128], sizes = [2, 128], strides = [1, 1]} : vector<2x512xf32> to vector<2x128xf32>
    %187 = arith.negf %186 : vector<2x128xf32>
    %188 = math.exp %187 : vector<2x128xf32>
    %cst_46 = arith.constant 1.000000e+00 : f32
    %189 = vector.broadcast %cst_46 : f32 to vector<2x128xf32>
    %190 = arith.addf %189, %188 : vector<2x128xf32>
    %191 = arith.divf %189, %190 : vector<2x128xf32>
    %192 = vector.extract_strided_slice %179 {offsets = [0, 256], sizes = [2, 128], strides = [1, 1]} : vector<2x512xf32> to vector<2x128xf32>
    %193 = math.tanh %192 : vector<2x128xf32>
    %194 = vector.extract_strided_slice %179 {offsets = [0, 384], sizes = [2, 128], strides = [1, 1]} : vector<2x512xf32> to vector<2x128xf32>
    %195 = arith.negf %194 : vector<2x128xf32>
    %196 = math.exp %195 : vector<2x128xf32>
    %cst_47 = arith.constant 1.000000e+00 : f32
    %197 = vector.broadcast %cst_47 : f32 to vector<2x128xf32>
    %198 = arith.addf %197, %196 : vector<2x128xf32>
    %199 = arith.divf %197, %198 : vector<2x128xf32>
    %200 = arith.mulf %191, %140 : vector<2x128xf32>
    %201 = arith.mulf %185, %193 : vector<2x128xf32>
    %202 = arith.addf %200, %201 : vector<2x128xf32>
    %203 = math.tanh %202 : vector<2x128xf32>
    %204 = arith.mulf %199, %203 : vector<2x128xf32>
    %205 = vector.extract_strided_slice %14 {offsets = [0, 3, 0], sizes = [2, 1, 512], strides = [1, 1, 1]} : vector<2x16x512xf32> to vector<2x1x512xf32>
    %206 = vector.shape_cast %205 : vector<2x1x512xf32> to vector<2x512xf32>
    %207 = arith.truncf %172 : vector<2x128xf32> to vector<2x128xbf16>
    %cst_48 = arith.constant dense<0.000000e+00> : vector<2x512xf32>
    %208 = tpu.matmul %207, %2, %cst_48 {dimension_numbers = #tpu.dot_dimension_numbers<[1], [0], [0], [1], [0, 0, 1, 1], [], []>} : vector<2x128xbf16>, vector<128x512xbf16>, vector<2x512xf32> -> vector<2x512xf32>
    %209 = arith.addf %206, %208 : vector<2x512xf32>
    %210 = vector.extract_strided_slice %209 {offsets = [0, 0], sizes = [2, 128], strides = [1, 1]} : vector<2x512xf32> to vector<2x128xf32>
    %211 = arith.negf %210 : vector<2x128xf32>
    %212 = math.exp %211 : vector<2x128xf32>
    %cst_49 = arith.constant 1.000000e+00 : f32
    %213 = vector.broadcast %cst_49 : f32 to vector<2x128xf32>
    %214 = arith.addf %213, %212 : vector<2x128xf32>
    %215 = arith.divf %213, %214 : vector<2x128xf32>
    %216 = vector.extract_strided_slice %209 {offsets = [0, 128], sizes = [2, 128], strides = [1, 1]} : vector<2x512xf32> to vector<2x128xf32>
    %217 = arith.negf %216 : vector<2x128xf32>
    %218 = math.exp %217 : vector<2x128xf32>
    %cst_50 = arith.constant 1.000000e+00 : f32
    %219 = vector.broadcast %cst_50 : f32 to vector<2x128xf32>
    %220 = arith.addf %219, %218 : vector<2x128xf32>
    %221 = arith.divf %219, %220 : vector<2x128xf32>
    %222 = vector.extract_strided_slice %209 {offsets = [0, 256], sizes = [2, 128], strides = [1, 1]} : vector<2x512xf32> to vector<2x128xf32>
    %223 = math.tanh %222 : vector<2x128xf32>
    %224 = vector.extract_strided_slice %209 {offsets = [0, 384], sizes = [2, 128], strides = [1, 1]} : vector<2x512xf32> to vector<2x128xf32>
    %225 = arith.negf %224 : vector<2x128xf32>
    %226 = math.exp %225 : vector<2x128xf32>
    %cst_51 = arith.constant 1.000000e+00 : f32
    %227 = vector.broadcast %cst_51 : f32 to vector<2x128xf32>
    %228 = arith.addf %227, %226 : vector<2x128xf32>
    %229 = arith.divf %227, %228 : vector<2x128xf32>
    %230 = arith.mulf %221, %170 : vector<2x128xf32>
    %231 = arith.mulf %215, %223 : vector<2x128xf32>
    %232 = arith.addf %230, %231 : vector<2x128xf32>
    %233 = math.tanh %232 : vector<2x128xf32>
    %234 = arith.mulf %229, %233 : vector<2x128xf32>
    %235 = arith.truncf %234 : vector<2x128xf32> to vector<2x128xbf16>
    %cst_52 = arith.constant dense<0.000000e+00> : vector<2x512xf32>
    %236 = tpu.matmul %235, %3, %cst_52 {dimension_numbers = #tpu.dot_dimension_numbers<[1], [0], [0], [1], [0, 0, 1, 1], [], []>} : vector<2x128xbf16>, vector<128x512xbf16>, vector<2x512xf32> -> vector<2x512xf32>
    %237 = vector.broadcast %5 : vector<1x512xf32> to vector<2x512xf32>
    %238 = arith.addf %236, %237 : vector<2x512xf32>
    %239 = arith.truncf %204 : vector<2x128xf32> to vector<2x128xbf16>
    %cst_53 = arith.constant dense<0.000000e+00> : vector<2x512xf32>
    %240 = tpu.matmul %239, %4, %cst_53 {dimension_numbers = #tpu.dot_dimension_numbers<[1], [0], [0], [1], [0, 0, 1, 1], [], []>} : vector<2x128xbf16>, vector<128x512xbf16>, vector<2x512xf32> -> vector<2x512xf32>
    %241 = arith.addf %238, %240 : vector<2x512xf32>
    %242 = vector.extract_strided_slice %241 {offsets = [0, 0], sizes = [2, 128], strides = [1, 1]} : vector<2x512xf32> to vector<2x128xf32>
    %243 = arith.negf %242 : vector<2x128xf32>
    %244 = math.exp %243 : vector<2x128xf32>
    %cst_54 = arith.constant 1.000000e+00 : f32
    %245 = vector.broadcast %cst_54 : f32 to vector<2x128xf32>
    %246 = arith.addf %245, %244 : vector<2x128xf32>
    %247 = arith.divf %245, %246 : vector<2x128xf32>
    %248 = vector.extract_strided_slice %241 {offsets = [0, 128], sizes = [2, 128], strides = [1, 1]} : vector<2x512xf32> to vector<2x128xf32>
    %249 = arith.negf %248 : vector<2x128xf32>
    %250 = math.exp %249 : vector<2x128xf32>
    %cst_55 = arith.constant 1.000000e+00 : f32
    %251 = vector.broadcast %cst_55 : f32 to vector<2x128xf32>
    %252 = arith.addf %251, %250 : vector<2x128xf32>
    %253 = arith.divf %251, %252 : vector<2x128xf32>
    %254 = vector.extract_strided_slice %241 {offsets = [0, 256], sizes = [2, 128], strides = [1, 1]} : vector<2x512xf32> to vector<2x128xf32>
    %255 = math.tanh %254 : vector<2x128xf32>
    %256 = vector.extract_strided_slice %241 {offsets = [0, 384], sizes = [2, 128], strides = [1, 1]} : vector<2x512xf32> to vector<2x128xf32>
    %257 = arith.negf %256 : vector<2x128xf32>
    %258 = math.exp %257 : vector<2x128xf32>
    %cst_56 = arith.constant 1.000000e+00 : f32
    %259 = vector.broadcast %cst_56 : f32 to vector<2x128xf32>
    %260 = arith.addf %259, %258 : vector<2x128xf32>
    %261 = arith.divf %259, %260 : vector<2x128xf32>
    %262 = arith.mulf %253, %202 : vector<2x128xf32>
    %263 = arith.mulf %247, %255 : vector<2x128xf32>
    %264 = arith.addf %262, %263 : vector<2x128xf32>
    %265 = math.tanh %264 : vector<2x128xf32>
    %266 = arith.mulf %261, %265 : vector<2x128xf32>
    %267 = vector.extract_strided_slice %14 {offsets = [0, 4, 0], sizes = [2, 1, 512], strides = [1, 1, 1]} : vector<2x16x512xf32> to vector<2x1x512xf32>
    %268 = vector.shape_cast %267 : vector<2x1x512xf32> to vector<2x512xf32>
    %269 = arith.truncf %234 : vector<2x128xf32> to vector<2x128xbf16>
    %cst_57 = arith.constant dense<0.000000e+00> : vector<2x512xf32>
    %270 = tpu.matmul %269, %2, %cst_57 {dimension_numbers = #tpu.dot_dimension_numbers<[1], [0], [0], [1], [0, 0, 1, 1], [], []>} : vector<2x128xbf16>, vector<128x512xbf16>, vector<2x512xf32> -> vector<2x512xf32>
    %271 = arith.addf %268, %270 : vector<2x512xf32>
    %272 = vector.extract_strided_slice %271 {offsets = [0, 0], sizes = [2, 128], strides = [1, 1]} : vector<2x512xf32> to vector<2x128xf32>
    %273 = arith.negf %272 : vector<2x128xf32>
    %274 = math.exp %273 : vector<2x128xf32>
    %cst_58 = arith.constant 1.000000e+00 : f32
    %275 = vector.broadcast %cst_58 : f32 to vector<2x128xf32>
    %276 = arith.addf %275, %274 : vector<2x128xf32>
    %277 = arith.divf %275, %276 : vector<2x128xf32>
    %278 = vector.extract_strided_slice %271 {offsets = [0, 128], sizes = [2, 128], strides = [1, 1]} : vector<2x512xf32> to vector<2x128xf32>
    %279 = arith.negf %278 : vector<2x128xf32>
    %280 = math.exp %279 : vector<2x128xf32>
    %cst_59 = arith.constant 1.000000e+00 : f32
    %281 = vector.broadcast %cst_59 : f32 to vector<2x128xf32>
    %282 = arith.addf %281, %280 : vector<2x128xf32>
    %283 = arith.divf %281, %282 : vector<2x128xf32>
    %284 = vector.extract_strided_slice %271 {offsets = [0, 256], sizes = [2, 128], strides = [1, 1]} : vector<2x512xf32> to vector<2x128xf32>
    %285 = math.tanh %284 : vector<2x128xf32>
    %286 = vector.extract_strided_slice %271 {offsets = [0, 384], sizes = [2, 128], strides = [1, 1]} : vector<2x512xf32> to vector<2x128xf32>
    %287 = arith.negf %286 : vector<2x128xf32>
    %288 = math.exp %287 : vector<2x128xf32>
    %cst_60 = arith.constant 1.000000e+00 : f32
    %289 = vector.broadcast %cst_60 : f32 to vector<2x128xf32>
    %290 = arith.addf %289, %288 : vector<2x128xf32>
    %291 = arith.divf %289, %290 : vector<2x128xf32>
    %292 = arith.mulf %283, %232 : vector<2x128xf32>
    %293 = arith.mulf %277, %285 : vector<2x128xf32>
    %294 = arith.addf %292, %293 : vector<2x128xf32>
    %295 = math.tanh %294 : vector<2x128xf32>
    %296 = arith.mulf %291, %295 : vector<2x128xf32>
    %297 = arith.truncf %296 : vector<2x128xf32> to vector<2x128xbf16>
    %cst_61 = arith.constant dense<0.000000e+00> : vector<2x512xf32>
    %298 = tpu.matmul %297, %3, %cst_61 {dimension_numbers = #tpu.dot_dimension_numbers<[1], [0], [0], [1], [0, 0, 1, 1], [], []>} : vector<2x128xbf16>, vector<128x512xbf16>, vector<2x512xf32> -> vector<2x512xf32>
    %299 = vector.broadcast %5 : vector<1x512xf32> to vector<2x512xf32>
    %300 = arith.addf %298, %299 : vector<2x512xf32>
    %301 = arith.truncf %266 : vector<2x128xf32> to vector<2x128xbf16>
    %cst_62 = arith.constant dense<0.000000e+00> : vector<2x512xf32>
    %302 = tpu.matmul %301, %4, %cst_62 {dimension_numbers = #tpu.dot_dimension_numbers<[1], [0], [0], [1], [0, 0, 1, 1], [], []>} : vector<2x128xbf16>, vector<128x512xbf16>, vector<2x512xf32> -> vector<2x512xf32>
    %303 = arith.addf %300, %302 : vector<2x512xf32>
    %304 = vector.extract_strided_slice %303 {offsets = [0, 0], sizes = [2, 128], strides = [1, 1]} : vector<2x512xf32> to vector<2x128xf32>
    %305 = arith.negf %304 : vector<2x128xf32>
    %306 = math.exp %305 : vector<2x128xf32>
    %cst_63 = arith.constant 1.000000e+00 : f32
    %307 = vector.broadcast %cst_63 : f32 to vector<2x128xf32>
    %308 = arith.addf %307, %306 : vector<2x128xf32>
    %309 = arith.divf %307, %308 : vector<2x128xf32>
    %310 = vector.extract_strided_slice %303 {offsets = [0, 128], sizes = [2, 128], strides = [1, 1]} : vector<2x512xf32> to vector<2x128xf32>
    %311 = arith.negf %310 : vector<2x128xf32>
    %312 = math.exp %311 : vector<2x128xf32>
    %cst_64 = arith.constant 1.000000e+00 : f32
    %313 = vector.broadcast %cst_64 : f32 to vector<2x128xf32>
    %314 = arith.addf %313, %312 : vector<2x128xf32>
    %315 = arith.divf %313, %314 : vector<2x128xf32>
    %316 = vector.extract_strided_slice %303 {offsets = [0, 256], sizes = [2, 128], strides = [1, 1]} : vector<2x512xf32> to vector<2x128xf32>
    %317 = math.tanh %316 : vector<2x128xf32>
    %318 = vector.extract_strided_slice %303 {offsets = [0, 384], sizes = [2, 128], strides = [1, 1]} : vector<2x512xf32> to vector<2x128xf32>
    %319 = arith.negf %318 : vector<2x128xf32>
    %320 = math.exp %319 : vector<2x128xf32>
    %cst_65 = arith.constant 1.000000e+00 : f32
    %321 = vector.broadcast %cst_65 : f32 to vector<2x128xf32>
    %322 = arith.addf %321, %320 : vector<2x128xf32>
    %323 = arith.divf %321, %322 : vector<2x128xf32>
    %324 = arith.mulf %315, %264 : vector<2x128xf32>
    %325 = arith.mulf %309, %317 : vector<2x128xf32>
    %326 = arith.addf %324, %325 : vector<2x128xf32>
    %327 = math.tanh %326 : vector<2x128xf32>
    %328 = arith.mulf %323, %327 : vector<2x128xf32>
    %329 = vector.extract_strided_slice %14 {offsets = [0, 5, 0], sizes = [2, 1, 512], strides = [1, 1, 1]} : vector<2x16x512xf32> to vector<2x1x512xf32>
    %330 = vector.shape_cast %329 : vector<2x1x512xf32> to vector<2x512xf32>
    %331 = arith.truncf %296 : vector<2x128xf32> to vector<2x128xbf16>
    %cst_66 = arith.constant dense<0.000000e+00> : vector<2x512xf32>
    %332 = tpu.matmul %331, %2, %cst_66 {dimension_numbers = #tpu.dot_dimension_numbers<[1], [0], [0], [1], [0, 0, 1, 1], [], []>} : vector<2x128xbf16>, vector<128x512xbf16>, vector<2x512xf32> -> vector<2x512xf32>
    %333 = arith.addf %330, %332 : vector<2x512xf32>
    %334 = vector.extract_strided_slice %333 {offsets = [0, 0], sizes = [2, 128], strides = [1, 1]} : vector<2x512xf32> to vector<2x128xf32>
    %335 = arith.negf %334 : vector<2x128xf32>
    %336 = math.exp %335 : vector<2x128xf32>
    %cst_67 = arith.constant 1.000000e+00 : f32
    %337 = vector.broadcast %cst_67 : f32 to vector<2x128xf32>
    %338 = arith.addf %337, %336 : vector<2x128xf32>
    %339 = arith.divf %337, %338 : vector<2x128xf32>
    %340 = vector.extract_strided_slice %333 {offsets = [0, 128], sizes = [2, 128], strides = [1, 1]} : vector<2x512xf32> to vector<2x128xf32>
    %341 = arith.negf %340 : vector<2x128xf32>
    %342 = math.exp %341 : vector<2x128xf32>
    %cst_68 = arith.constant 1.000000e+00 : f32
    %343 = vector.broadcast %cst_68 : f32 to vector<2x128xf32>
    %344 = arith.addf %343, %342 : vector<2x128xf32>
    %345 = arith.divf %343, %344 : vector<2x128xf32>
    %346 = vector.extract_strided_slice %333 {offsets = [0, 256], sizes = [2, 128], strides = [1, 1]} : vector<2x512xf32> to vector<2x128xf32>
    %347 = math.tanh %346 : vector<2x128xf32>
    %348 = vector.extract_strided_slice %333 {offsets = [0, 384], sizes = [2, 128], strides = [1, 1]} : vector<2x512xf32> to vector<2x128xf32>
    %349 = arith.negf %348 : vector<2x128xf32>
    %350 = math.exp %349 : vector<2x128xf32>
    %cst_69 = arith.constant 1.000000e+00 : f32
    %351 = vector.broadcast %cst_69 : f32 to vector<2x128xf32>
    %352 = arith.addf %351, %350 : vector<2x128xf32>
    %353 = arith.divf %351, %352 : vector<2x128xf32>
    %354 = arith.mulf %345, %294 : vector<2x128xf32>
    %355 = arith.mulf %339, %347 : vector<2x128xf32>
    %356 = arith.addf %354, %355 : vector<2x128xf32>
    %357 = math.tanh %356 : vector<2x128xf32>
    %358 = arith.mulf %353, %357 : vector<2x128xf32>
    %359 = arith.truncf %358 : vector<2x128xf32> to vector<2x128xbf16>
    %cst_70 = arith.constant dense<0.000000e+00> : vector<2x512xf32>
    %360 = tpu.matmul %359, %3, %cst_70 {dimension_numbers = #tpu.dot_dimension_numbers<[1], [0], [0], [1], [0, 0, 1, 1], [], []>} : vector<2x128xbf16>, vector<128x512xbf16>, vector<2x512xf32> -> vector<2x512xf32>
    %361 = vector.broadcast %5 : vector<1x512xf32> to vector<2x512xf32>
    %362 = arith.addf %360, %361 : vector<2x512xf32>
    %363 = arith.truncf %328 : vector<2x128xf32> to vector<2x128xbf16>
    %cst_71 = arith.constant dense<0.000000e+00> : vector<2x512xf32>
    %364 = tpu.matmul %363, %4, %cst_71 {dimension_numbers = #tpu.dot_dimension_numbers<[1], [0], [0], [1], [0, 0, 1, 1], [], []>} : vector<2x128xbf16>, vector<128x512xbf16>, vector<2x512xf32> -> vector<2x512xf32>
    %365 = arith.addf %362, %364 : vector<2x512xf32>
    %366 = vector.extract_strided_slice %365 {offsets = [0, 0], sizes = [2, 128], strides = [1, 1]} : vector<2x512xf32> to vector<2x128xf32>
    %367 = arith.negf %366 : vector<2x128xf32>
    %368 = math.exp %367 : vector<2x128xf32>
    %cst_72 = arith.constant 1.000000e+00 : f32
    %369 = vector.broadcast %cst_72 : f32 to vector<2x128xf32>
    %370 = arith.addf %369, %368 : vector<2x128xf32>
    %371 = arith.divf %369, %370 : vector<2x128xf32>
    %372 = vector.extract_strided_slice %365 {offsets = [0, 128], sizes = [2, 128], strides = [1, 1]} : vector<2x512xf32> to vector<2x128xf32>
    %373 = arith.negf %372 : vector<2x128xf32>
    %374 = math.exp %373 : vector<2x128xf32>
    %cst_73 = arith.constant 1.000000e+00 : f32
    %375 = vector.broadcast %cst_73 : f32 to vector<2x128xf32>
    %376 = arith.addf %375, %374 : vector<2x128xf32>
    %377 = arith.divf %375, %376 : vector<2x128xf32>
    %378 = vector.extract_strided_slice %365 {offsets = [0, 256], sizes = [2, 128], strides = [1, 1]} : vector<2x512xf32> to vector<2x128xf32>
    %379 = math.tanh %378 : vector<2x128xf32>
    %380 = vector.extract_strided_slice %365 {offsets = [0, 384], sizes = [2, 128], strides = [1, 1]} : vector<2x512xf32> to vector<2x128xf32>
    %381 = arith.negf %380 : vector<2x128xf32>
    %382 = math.exp %381 : vector<2x128xf32>
    %cst_74 = arith.constant 1.000000e+00 : f32
    %383 = vector.broadcast %cst_74 : f32 to vector<2x128xf32>
    %384 = arith.addf %383, %382 : vector<2x128xf32>
    %385 = arith.divf %383, %384 : vector<2x128xf32>
    %386 = arith.mulf %377, %326 : vector<2x128xf32>
    %387 = arith.mulf %371, %379 : vector<2x128xf32>
    %388 = arith.addf %386, %387 : vector<2x128xf32>
    %389 = math.tanh %388 : vector<2x128xf32>
    %390 = arith.mulf %385, %389 : vector<2x128xf32>
    %391 = vector.extract_strided_slice %14 {offsets = [0, 6, 0], sizes = [2, 1, 512], strides = [1, 1, 1]} : vector<2x16x512xf32> to vector<2x1x512xf32>
    %392 = vector.shape_cast %391 : vector<2x1x512xf32> to vector<2x512xf32>
    %393 = arith.truncf %358 : vector<2x128xf32> to vector<2x128xbf16>
    %cst_75 = arith.constant dense<0.000000e+00> : vector<2x512xf32>
    %394 = tpu.matmul %393, %2, %cst_75 {dimension_numbers = #tpu.dot_dimension_numbers<[1], [0], [0], [1], [0, 0, 1, 1], [], []>} : vector<2x128xbf16>, vector<128x512xbf16>, vector<2x512xf32> -> vector<2x512xf32>
    %395 = arith.addf %392, %394 : vector<2x512xf32>
    %396 = vector.extract_strided_slice %395 {offsets = [0, 0], sizes = [2, 128], strides = [1, 1]} : vector<2x512xf32> to vector<2x128xf32>
    %397 = arith.negf %396 : vector<2x128xf32>
    %398 = math.exp %397 : vector<2x128xf32>
    %cst_76 = arith.constant 1.000000e+00 : f32
    %399 = vector.broadcast %cst_76 : f32 to vector<2x128xf32>
    %400 = arith.addf %399, %398 : vector<2x128xf32>
    %401 = arith.divf %399, %400 : vector<2x128xf32>
    %402 = vector.extract_strided_slice %395 {offsets = [0, 128], sizes = [2, 128], strides = [1, 1]} : vector<2x512xf32> to vector<2x128xf32>
    %403 = arith.negf %402 : vector<2x128xf32>
    %404 = math.exp %403 : vector<2x128xf32>
    %cst_77 = arith.constant 1.000000e+00 : f32
    %405 = vector.broadcast %cst_77 : f32 to vector<2x128xf32>
    %406 = arith.addf %405, %404 : vector<2x128xf32>
    %407 = arith.divf %405, %406 : vector<2x128xf32>
    %408 = vector.extract_strided_slice %395 {offsets = [0, 256], sizes = [2, 128], strides = [1, 1]} : vector<2x512xf32> to vector<2x128xf32>
    %409 = math.tanh %408 : vector<2x128xf32>
    %410 = vector.extract_strided_slice %395 {offsets = [0, 384], sizes = [2, 128], strides = [1, 1]} : vector<2x512xf32> to vector<2x128xf32>
    %411 = arith.negf %410 : vector<2x128xf32>
    %412 = math.exp %411 : vector<2x128xf32>
    %cst_78 = arith.constant 1.000000e+00 : f32
    %413 = vector.broadcast %cst_78 : f32 to vector<2x128xf32>
    %414 = arith.addf %413, %412 : vector<2x128xf32>
    %415 = arith.divf %413, %414 : vector<2x128xf32>
    %416 = arith.mulf %407, %356 : vector<2x128xf32>
    %417 = arith.mulf %401, %409 : vector<2x128xf32>
    %418 = arith.addf %416, %417 : vector<2x128xf32>
    %419 = math.tanh %418 : vector<2x128xf32>
    %420 = arith.mulf %415, %419 : vector<2x128xf32>
    %421 = arith.truncf %420 : vector<2x128xf32> to vector<2x128xbf16>
    %cst_79 = arith.constant dense<0.000000e+00> : vector<2x512xf32>
    %422 = tpu.matmul %421, %3, %cst_79 {dimension_numbers = #tpu.dot_dimension_numbers<[1], [0], [0], [1], [0, 0, 1, 1], [], []>} : vector<2x128xbf16>, vector<128x512xbf16>, vector<2x512xf32> -> vector<2x512xf32>
    %423 = vector.broadcast %5 : vector<1x512xf32> to vector<2x512xf32>
    %424 = arith.addf %422, %423 : vector<2x512xf32>
    %425 = arith.truncf %390 : vector<2x128xf32> to vector<2x128xbf16>
    %cst_80 = arith.constant dense<0.000000e+00> : vector<2x512xf32>
    %426 = tpu.matmul %425, %4, %cst_80 {dimension_numbers = #tpu.dot_dimension_numbers<[1], [0], [0], [1], [0, 0, 1, 1], [], []>} : vector<2x128xbf16>, vector<128x512xbf16>, vector<2x512xf32> -> vector<2x512xf32>
    %427 = arith.addf %424, %426 : vector<2x512xf32>
    %428 = vector.extract_strided_slice %427 {offsets = [0, 0], sizes = [2, 128], strides = [1, 1]} : vector<2x512xf32> to vector<2x128xf32>
    %429 = arith.negf %428 : vector<2x128xf32>
    %430 = math.exp %429 : vector<2x128xf32>
    %cst_81 = arith.constant 1.000000e+00 : f32
    %431 = vector.broadcast %cst_81 : f32 to vector<2x128xf32>
    %432 = arith.addf %431, %430 : vector<2x128xf32>
    %433 = arith.divf %431, %432 : vector<2x128xf32>
    %434 = vector.extract_strided_slice %427 {offsets = [0, 128], sizes = [2, 128], strides = [1, 1]} : vector<2x512xf32> to vector<2x128xf32>
    %435 = arith.negf %434 : vector<2x128xf32>
    %436 = math.exp %435 : vector<2x128xf32>
    %cst_82 = arith.constant 1.000000e+00 : f32
    %437 = vector.broadcast %cst_82 : f32 to vector<2x128xf32>
    %438 = arith.addf %437, %436 : vector<2x128xf32>
    %439 = arith.divf %437, %438 : vector<2x128xf32>
    %440 = vector.extract_strided_slice %427 {offsets = [0, 256], sizes = [2, 128], strides = [1, 1]} : vector<2x512xf32> to vector<2x128xf32>
    %441 = math.tanh %440 : vector<2x128xf32>
    %442 = vector.extract_strided_slice %427 {offsets = [0, 384], sizes = [2, 128], strides = [1, 1]} : vector<2x512xf32> to vector<2x128xf32>
    %443 = arith.negf %442 : vector<2x128xf32>
    %444 = math.exp %443 : vector<2x128xf32>
    %cst_83 = arith.constant 1.000000e+00 : f32
    %445 = vector.broadcast %cst_83 : f32 to vector<2x128xf32>
    %446 = arith.addf %445, %444 : vector<2x128xf32>
    %447 = arith.divf %445, %446 : vector<2x128xf32>
    %448 = arith.mulf %439, %388 : vector<2x128xf32>
    %449 = arith.mulf %433, %441 : vector<2x128xf32>
    %450 = arith.addf %448, %449 : vector<2x128xf32>
    %451 = math.tanh %450 : vector<2x128xf32>
    %452 = arith.mulf %447, %451 : vector<2x128xf32>
    %453 = vector.extract_strided_slice %14 {offsets = [0, 7, 0], sizes = [2, 1, 512], strides = [1, 1, 1]} : vector<2x16x512xf32> to vector<2x1x512xf32>
    %454 = vector.shape_cast %453 : vector<2x1x512xf32> to vector<2x512xf32>
    %455 = arith.truncf %420 : vector<2x128xf32> to vector<2x128xbf16>
    %cst_84 = arith.constant dense<0.000000e+00> : vector<2x512xf32>
    %456 = tpu.matmul %455, %2, %cst_84 {dimension_numbers = #tpu.dot_dimension_numbers<[1], [0], [0], [1], [0, 0, 1, 1], [], []>} : vector<2x128xbf16>, vector<128x512xbf16>, vector<2x512xf32> -> vector<2x512xf32>
    %457 = arith.addf %454, %456 : vector<2x512xf32>
    %458 = vector.extract_strided_slice %457 {offsets = [0, 0], sizes = [2, 128], strides = [1, 1]} : vector<2x512xf32> to vector<2x128xf32>
    %459 = arith.negf %458 : vector<2x128xf32>
    %460 = math.exp %459 : vector<2x128xf32>
    %cst_85 = arith.constant 1.000000e+00 : f32
    %461 = vector.broadcast %cst_85 : f32 to vector<2x128xf32>
    %462 = arith.addf %461, %460 : vector<2x128xf32>
    %463 = arith.divf %461, %462 : vector<2x128xf32>
    %464 = vector.extract_strided_slice %457 {offsets = [0, 128], sizes = [2, 128], strides = [1, 1]} : vector<2x512xf32> to vector<2x128xf32>
    %465 = arith.negf %464 : vector<2x128xf32>
    %466 = math.exp %465 : vector<2x128xf32>
    %cst_86 = arith.constant 1.000000e+00 : f32
    %467 = vector.broadcast %cst_86 : f32 to vector<2x128xf32>
    %468 = arith.addf %467, %466 : vector<2x128xf32>
    %469 = arith.divf %467, %468 : vector<2x128xf32>
    %470 = vector.extract_strided_slice %457 {offsets = [0, 256], sizes = [2, 128], strides = [1, 1]} : vector<2x512xf32> to vector<2x128xf32>
    %471 = math.tanh %470 : vector<2x128xf32>
    %472 = vector.extract_strided_slice %457 {offsets = [0, 384], sizes = [2, 128], strides = [1, 1]} : vector<2x512xf32> to vector<2x128xf32>
    %473 = arith.negf %472 : vector<2x128xf32>
    %474 = math.exp %473 : vector<2x128xf32>
    %cst_87 = arith.constant 1.000000e+00 : f32
    %475 = vector.broadcast %cst_87 : f32 to vector<2x128xf32>
    %476 = arith.addf %475, %474 : vector<2x128xf32>
    %477 = arith.divf %475, %476 : vector<2x128xf32>
    %478 = arith.mulf %469, %418 : vector<2x128xf32>
    %479 = arith.mulf %463, %471 : vector<2x128xf32>
    %480 = arith.addf %478, %479 : vector<2x128xf32>
    %481 = math.tanh %480 : vector<2x128xf32>
    %482 = arith.mulf %477, %481 : vector<2x128xf32>
    %483 = arith.truncf %482 : vector<2x128xf32> to vector<2x128xbf16>
    %cst_88 = arith.constant dense<0.000000e+00> : vector<2x512xf32>
    %484 = tpu.matmul %483, %3, %cst_88 {dimension_numbers = #tpu.dot_dimension_numbers<[1], [0], [0], [1], [0, 0, 1, 1], [], []>} : vector<2x128xbf16>, vector<128x512xbf16>, vector<2x512xf32> -> vector<2x512xf32>
    %485 = vector.broadcast %5 : vector<1x512xf32> to vector<2x512xf32>
    %486 = arith.addf %484, %485 : vector<2x512xf32>
    %487 = arith.truncf %452 : vector<2x128xf32> to vector<2x128xbf16>
    %cst_89 = arith.constant dense<0.000000e+00> : vector<2x512xf32>
    %488 = tpu.matmul %487, %4, %cst_89 {dimension_numbers = #tpu.dot_dimension_numbers<[1], [0], [0], [1], [0, 0, 1, 1], [], []>} : vector<2x128xbf16>, vector<128x512xbf16>, vector<2x512xf32> -> vector<2x512xf32>
    %489 = arith.addf %486, %488 : vector<2x512xf32>
    %490 = vector.extract_strided_slice %489 {offsets = [0, 0], sizes = [2, 128], strides = [1, 1]} : vector<2x512xf32> to vector<2x128xf32>
    %491 = arith.negf %490 : vector<2x128xf32>
    %492 = math.exp %491 : vector<2x128xf32>
    %cst_90 = arith.constant 1.000000e+00 : f32
    %493 = vector.broadcast %cst_90 : f32 to vector<2x128xf32>
    %494 = arith.addf %493, %492 : vector<2x128xf32>
    %495 = arith.divf %493, %494 : vector<2x128xf32>
    %496 = vector.extract_strided_slice %489 {offsets = [0, 128], sizes = [2, 128], strides = [1, 1]} : vector<2x512xf32> to vector<2x128xf32>
    %497 = arith.negf %496 : vector<2x128xf32>
    %498 = math.exp %497 : vector<2x128xf32>
    %cst_91 = arith.constant 1.000000e+00 : f32
    %499 = vector.broadcast %cst_91 : f32 to vector<2x128xf32>
    %500 = arith.addf %499, %498 : vector<2x128xf32>
    %501 = arith.divf %499, %500 : vector<2x128xf32>
    %502 = vector.extract_strided_slice %489 {offsets = [0, 256], sizes = [2, 128], strides = [1, 1]} : vector<2x512xf32> to vector<2x128xf32>
    %503 = math.tanh %502 : vector<2x128xf32>
    %504 = vector.extract_strided_slice %489 {offsets = [0, 384], sizes = [2, 128], strides = [1, 1]} : vector<2x512xf32> to vector<2x128xf32>
    %505 = arith.negf %504 : vector<2x128xf32>
    %506 = math.exp %505 : vector<2x128xf32>
    %cst_92 = arith.constant 1.000000e+00 : f32
    %507 = vector.broadcast %cst_92 : f32 to vector<2x128xf32>
    %508 = arith.addf %507, %506 : vector<2x128xf32>
    %509 = arith.divf %507, %508 : vector<2x128xf32>
    %510 = arith.mulf %501, %450 : vector<2x128xf32>
    %511 = arith.mulf %495, %503 : vector<2x128xf32>
    %512 = arith.addf %510, %511 : vector<2x128xf32>
    %513 = math.tanh %512 : vector<2x128xf32>
    %514 = arith.mulf %509, %513 : vector<2x128xf32>
    %515 = vector.extract_strided_slice %14 {offsets = [0, 8, 0], sizes = [2, 1, 512], strides = [1, 1, 1]} : vector<2x16x512xf32> to vector<2x1x512xf32>
    %516 = vector.shape_cast %515 : vector<2x1x512xf32> to vector<2x512xf32>
    %517 = arith.truncf %482 : vector<2x128xf32> to vector<2x128xbf16>
    %cst_93 = arith.constant dense<0.000000e+00> : vector<2x512xf32>
    %518 = tpu.matmul %517, %2, %cst_93 {dimension_numbers = #tpu.dot_dimension_numbers<[1], [0], [0], [1], [0, 0, 1, 1], [], []>} : vector<2x128xbf16>, vector<128x512xbf16>, vector<2x512xf32> -> vector<2x512xf32>
    %519 = arith.addf %516, %518 : vector<2x512xf32>
    %520 = vector.extract_strided_slice %519 {offsets = [0, 0], sizes = [2, 128], strides = [1, 1]} : vector<2x512xf32> to vector<2x128xf32>
    %521 = arith.negf %520 : vector<2x128xf32>
    %522 = math.exp %521 : vector<2x128xf32>
    %cst_94 = arith.constant 1.000000e+00 : f32
    %523 = vector.broadcast %cst_94 : f32 to vector<2x128xf32>
    %524 = arith.addf %523, %522 : vector<2x128xf32>
    %525 = arith.divf %523, %524 : vector<2x128xf32>
    %526 = vector.extract_strided_slice %519 {offsets = [0, 128], sizes = [2, 128], strides = [1, 1]} : vector<2x512xf32> to vector<2x128xf32>
    %527 = arith.negf %526 : vector<2x128xf32>
    %528 = math.exp %527 : vector<2x128xf32>
    %cst_95 = arith.constant 1.000000e+00 : f32
    %529 = vector.broadcast %cst_95 : f32 to vector<2x128xf32>
    %530 = arith.addf %529, %528 : vector<2x128xf32>
    %531 = arith.divf %529, %530 : vector<2x128xf32>
    %532 = vector.extract_strided_slice %519 {offsets = [0, 256], sizes = [2, 128], strides = [1, 1]} : vector<2x512xf32> to vector<2x128xf32>
    %533 = math.tanh %532 : vector<2x128xf32>
    %534 = vector.extract_strided_slice %519 {offsets = [0, 384], sizes = [2, 128], strides = [1, 1]} : vector<2x512xf32> to vector<2x128xf32>
    %535 = arith.negf %534 : vector<2x128xf32>
    %536 = math.exp %535 : vector<2x128xf32>
    %cst_96 = arith.constant 1.000000e+00 : f32
    %537 = vector.broadcast %cst_96 : f32 to vector<2x128xf32>
    %538 = arith.addf %537, %536 : vector<2x128xf32>
    %539 = arith.divf %537, %538 : vector<2x128xf32>
    %540 = arith.mulf %531, %480 : vector<2x128xf32>
    %541 = arith.mulf %525, %533 : vector<2x128xf32>
    %542 = arith.addf %540, %541 : vector<2x128xf32>
    %543 = math.tanh %542 : vector<2x128xf32>
    %544 = arith.mulf %539, %543 : vector<2x128xf32>
    %545 = arith.truncf %544 : vector<2x128xf32> to vector<2x128xbf16>
    %cst_97 = arith.constant dense<0.000000e+00> : vector<2x512xf32>
    %546 = tpu.matmul %545, %3, %cst_97 {dimension_numbers = #tpu.dot_dimension_numbers<[1], [0], [0], [1], [0, 0, 1, 1], [], []>} : vector<2x128xbf16>, vector<128x512xbf16>, vector<2x512xf32> -> vector<2x512xf32>
    %547 = vector.broadcast %5 : vector<1x512xf32> to vector<2x512xf32>
    %548 = arith.addf %546, %547 : vector<2x512xf32>
    %549 = arith.truncf %514 : vector<2x128xf32> to vector<2x128xbf16>
    %cst_98 = arith.constant dense<0.000000e+00> : vector<2x512xf32>
    %550 = tpu.matmul %549, %4, %cst_98 {dimension_numbers = #tpu.dot_dimension_numbers<[1], [0], [0], [1], [0, 0, 1, 1], [], []>} : vector<2x128xbf16>, vector<128x512xbf16>, vector<2x512xf32> -> vector<2x512xf32>
    %551 = arith.addf %548, %550 : vector<2x512xf32>
    %552 = vector.extract_strided_slice %551 {offsets = [0, 0], sizes = [2, 128], strides = [1, 1]} : vector<2x512xf32> to vector<2x128xf32>
    %553 = arith.negf %552 : vector<2x128xf32>
    %554 = math.exp %553 : vector<2x128xf32>
    %cst_99 = arith.constant 1.000000e+00 : f32
    %555 = vector.broadcast %cst_99 : f32 to vector<2x128xf32>
    %556 = arith.addf %555, %554 : vector<2x128xf32>
    %557 = arith.divf %555, %556 : vector<2x128xf32>
    %558 = vector.extract_strided_slice %551 {offsets = [0, 128], sizes = [2, 128], strides = [1, 1]} : vector<2x512xf32> to vector<2x128xf32>
    %559 = arith.negf %558 : vector<2x128xf32>
    %560 = math.exp %559 : vector<2x128xf32>
    %cst_100 = arith.constant 1.000000e+00 : f32
    %561 = vector.broadcast %cst_100 : f32 to vector<2x128xf32>
    %562 = arith.addf %561, %560 : vector<2x128xf32>
    %563 = arith.divf %561, %562 : vector<2x128xf32>
    %564 = vector.extract_strided_slice %551 {offsets = [0, 256], sizes = [2, 128], strides = [1, 1]} : vector<2x512xf32> to vector<2x128xf32>
    %565 = math.tanh %564 : vector<2x128xf32>
    %566 = vector.extract_strided_slice %551 {offsets = [0, 384], sizes = [2, 128], strides = [1, 1]} : vector<2x512xf32> to vector<2x128xf32>
    %567 = arith.negf %566 : vector<2x128xf32>
    %568 = math.exp %567 : vector<2x128xf32>
    %cst_101 = arith.constant 1.000000e+00 : f32
    %569 = vector.broadcast %cst_101 : f32 to vector<2x128xf32>
    %570 = arith.addf %569, %568 : vector<2x128xf32>
    %571 = arith.divf %569, %570 : vector<2x128xf32>
    %572 = arith.mulf %563, %512 : vector<2x128xf32>
    %573 = arith.mulf %557, %565 : vector<2x128xf32>
    %574 = arith.addf %572, %573 : vector<2x128xf32>
    %575 = math.tanh %574 : vector<2x128xf32>
    %576 = arith.mulf %571, %575 : vector<2x128xf32>
    %577 = vector.extract_strided_slice %14 {offsets = [0, 9, 0], sizes = [2, 1, 512], strides = [1, 1, 1]} : vector<2x16x512xf32> to vector<2x1x512xf32>
    %578 = vector.shape_cast %577 : vector<2x1x512xf32> to vector<2x512xf32>
    %579 = arith.truncf %544 : vector<2x128xf32> to vector<2x128xbf16>
    %cst_102 = arith.constant dense<0.000000e+00> : vector<2x512xf32>
    %580 = tpu.matmul %579, %2, %cst_102 {dimension_numbers = #tpu.dot_dimension_numbers<[1], [0], [0], [1], [0, 0, 1, 1], [], []>} : vector<2x128xbf16>, vector<128x512xbf16>, vector<2x512xf32> -> vector<2x512xf32>
    %581 = arith.addf %578, %580 : vector<2x512xf32>
    %582 = vector.extract_strided_slice %581 {offsets = [0, 0], sizes = [2, 128], strides = [1, 1]} : vector<2x512xf32> to vector<2x128xf32>
    %583 = arith.negf %582 : vector<2x128xf32>
    %584 = math.exp %583 : vector<2x128xf32>
    %cst_103 = arith.constant 1.000000e+00 : f32
    %585 = vector.broadcast %cst_103 : f32 to vector<2x128xf32>
    %586 = arith.addf %585, %584 : vector<2x128xf32>
    %587 = arith.divf %585, %586 : vector<2x128xf32>
    %588 = vector.extract_strided_slice %581 {offsets = [0, 128], sizes = [2, 128], strides = [1, 1]} : vector<2x512xf32> to vector<2x128xf32>
    %589 = arith.negf %588 : vector<2x128xf32>
    %590 = math.exp %589 : vector<2x128xf32>
    %cst_104 = arith.constant 1.000000e+00 : f32
    %591 = vector.broadcast %cst_104 : f32 to vector<2x128xf32>
    %592 = arith.addf %591, %590 : vector<2x128xf32>
    %593 = arith.divf %591, %592 : vector<2x128xf32>
    %594 = vector.extract_strided_slice %581 {offsets = [0, 256], sizes = [2, 128], strides = [1, 1]} : vector<2x512xf32> to vector<2x128xf32>
    %595 = math.tanh %594 : vector<2x128xf32>
    %596 = vector.extract_strided_slice %581 {offsets = [0, 384], sizes = [2, 128], strides = [1, 1]} : vector<2x512xf32> to vector<2x128xf32>
    %597 = arith.negf %596 : vector<2x128xf32>
    %598 = math.exp %597 : vector<2x128xf32>
    %cst_105 = arith.constant 1.000000e+00 : f32
    %599 = vector.broadcast %cst_105 : f32 to vector<2x128xf32>
    %600 = arith.addf %599, %598 : vector<2x128xf32>
    %601 = arith.divf %599, %600 : vector<2x128xf32>
    %602 = arith.mulf %593, %542 : vector<2x128xf32>
    %603 = arith.mulf %587, %595 : vector<2x128xf32>
    %604 = arith.addf %602, %603 : vector<2x128xf32>
    %605 = math.tanh %604 : vector<2x128xf32>
    %606 = arith.mulf %601, %605 : vector<2x128xf32>
    %607 = arith.truncf %606 : vector<2x128xf32> to vector<2x128xbf16>
    %cst_106 = arith.constant dense<0.000000e+00> : vector<2x512xf32>
    %608 = tpu.matmul %607, %3, %cst_106 {dimension_numbers = #tpu.dot_dimension_numbers<[1], [0], [0], [1], [0, 0, 1, 1], [], []>} : vector<2x128xbf16>, vector<128x512xbf16>, vector<2x512xf32> -> vector<2x512xf32>
    %609 = vector.broadcast %5 : vector<1x512xf32> to vector<2x512xf32>
    %610 = arith.addf %608, %609 : vector<2x512xf32>
    %611 = arith.truncf %576 : vector<2x128xf32> to vector<2x128xbf16>
    %cst_107 = arith.constant dense<0.000000e+00> : vector<2x512xf32>
    %612 = tpu.matmul %611, %4, %cst_107 {dimension_numbers = #tpu.dot_dimension_numbers<[1], [0], [0], [1], [0, 0, 1, 1], [], []>} : vector<2x128xbf16>, vector<128x512xbf16>, vector<2x512xf32> -> vector<2x512xf32>
    %613 = arith.addf %610, %612 : vector<2x512xf32>
    %614 = vector.extract_strided_slice %613 {offsets = [0, 0], sizes = [2, 128], strides = [1, 1]} : vector<2x512xf32> to vector<2x128xf32>
    %615 = arith.negf %614 : vector<2x128xf32>
    %616 = math.exp %615 : vector<2x128xf32>
    %cst_108 = arith.constant 1.000000e+00 : f32
    %617 = vector.broadcast %cst_108 : f32 to vector<2x128xf32>
    %618 = arith.addf %617, %616 : vector<2x128xf32>
    %619 = arith.divf %617, %618 : vector<2x128xf32>
    %620 = vector.extract_strided_slice %613 {offsets = [0, 128], sizes = [2, 128], strides = [1, 1]} : vector<2x512xf32> to vector<2x128xf32>
    %621 = arith.negf %620 : vector<2x128xf32>
    %622 = math.exp %621 : vector<2x128xf32>
    %cst_109 = arith.constant 1.000000e+00 : f32
    %623 = vector.broadcast %cst_109 : f32 to vector<2x128xf32>
    %624 = arith.addf %623, %622 : vector<2x128xf32>
    %625 = arith.divf %623, %624 : vector<2x128xf32>
    %626 = vector.extract_strided_slice %613 {offsets = [0, 256], sizes = [2, 128], strides = [1, 1]} : vector<2x512xf32> to vector<2x128xf32>
    %627 = math.tanh %626 : vector<2x128xf32>
    %628 = vector.extract_strided_slice %613 {offsets = [0, 384], sizes = [2, 128], strides = [1, 1]} : vector<2x512xf32> to vector<2x128xf32>
    %629 = arith.negf %628 : vector<2x128xf32>
    %630 = math.exp %629 : vector<2x128xf32>
    %cst_110 = arith.constant 1.000000e+00 : f32
    %631 = vector.broadcast %cst_110 : f32 to vector<2x128xf32>
    %632 = arith.addf %631, %630 : vector<2x128xf32>
    %633 = arith.divf %631, %632 : vector<2x128xf32>
    %634 = arith.mulf %625, %574 : vector<2x128xf32>
    %635 = arith.mulf %619, %627 : vector<2x128xf32>
    %636 = arith.addf %634, %635 : vector<2x128xf32>
    %637 = math.tanh %636 : vector<2x128xf32>
    %638 = arith.mulf %633, %637 : vector<2x128xf32>
    %639 = vector.extract_strided_slice %14 {offsets = [0, 10, 0], sizes = [2, 1, 512], strides = [1, 1, 1]} : vector<2x16x512xf32> to vector<2x1x512xf32>
    %640 = vector.shape_cast %639 : vector<2x1x512xf32> to vector<2x512xf32>
    %641 = arith.truncf %606 : vector<2x128xf32> to vector<2x128xbf16>
    %cst_111 = arith.constant dense<0.000000e+00> : vector<2x512xf32>
    %642 = tpu.matmul %641, %2, %cst_111 {dimension_numbers = #tpu.dot_dimension_numbers<[1], [0], [0], [1], [0, 0, 1, 1], [], []>} : vector<2x128xbf16>, vector<128x512xbf16>, vector<2x512xf32> -> vector<2x512xf32>
    %643 = arith.addf %640, %642 : vector<2x512xf32>
    %644 = vector.extract_strided_slice %643 {offsets = [0, 0], sizes = [2, 128], strides = [1, 1]} : vector<2x512xf32> to vector<2x128xf32>
    %645 = arith.negf %644 : vector<2x128xf32>
    %646 = math.exp %645 : vector<2x128xf32>
    %cst_112 = arith.constant 1.000000e+00 : f32
    %647 = vector.broadcast %cst_112 : f32 to vector<2x128xf32>
    %648 = arith.addf %647, %646 : vector<2x128xf32>
    %649 = arith.divf %647, %648 : vector<2x128xf32>
    %650 = vector.extract_strided_slice %643 {offsets = [0, 128], sizes = [2, 128], strides = [1, 1]} : vector<2x512xf32> to vector<2x128xf32>
    %651 = arith.negf %650 : vector<2x128xf32>
    %652 = math.exp %651 : vector<2x128xf32>
    %cst_113 = arith.constant 1.000000e+00 : f32
    %653 = vector.broadcast %cst_113 : f32 to vector<2x128xf32>
    %654 = arith.addf %653, %652 : vector<2x128xf32>
    %655 = arith.divf %653, %654 : vector<2x128xf32>
    %656 = vector.extract_strided_slice %643 {offsets = [0, 256], sizes = [2, 128], strides = [1, 1]} : vector<2x512xf32> to vector<2x128xf32>
    %657 = math.tanh %656 : vector<2x128xf32>
    %658 = vector.extract_strided_slice %643 {offsets = [0, 384], sizes = [2, 128], strides = [1, 1]} : vector<2x512xf32> to vector<2x128xf32>
    %659 = arith.negf %658 : vector<2x128xf32>
    %660 = math.exp %659 : vector<2x128xf32>
    %cst_114 = arith.constant 1.000000e+00 : f32
    %661 = vector.broadcast %cst_114 : f32 to vector<2x128xf32>
    %662 = arith.addf %661, %660 : vector<2x128xf32>
    %663 = arith.divf %661, %662 : vector<2x128xf32>
    %664 = arith.mulf %655, %604 : vector<2x128xf32>
    %665 = arith.mulf %649, %657 : vector<2x128xf32>
    %666 = arith.addf %664, %665 : vector<2x128xf32>
    %667 = math.tanh %666 : vector<2x128xf32>
    %668 = arith.mulf %663, %667 : vector<2x128xf32>
    %669 = arith.truncf %668 : vector<2x128xf32> to vector<2x128xbf16>
    %cst_115 = arith.constant dense<0.000000e+00> : vector<2x512xf32>
    %670 = tpu.matmul %669, %3, %cst_115 {dimension_numbers = #tpu.dot_dimension_numbers<[1], [0], [0], [1], [0, 0, 1, 1], [], []>} : vector<2x128xbf16>, vector<128x512xbf16>, vector<2x512xf32> -> vector<2x512xf32>
    %671 = vector.broadcast %5 : vector<1x512xf32> to vector<2x512xf32>
    %672 = arith.addf %670, %671 : vector<2x512xf32>
    %673 = arith.truncf %638 : vector<2x128xf32> to vector<2x128xbf16>
    %cst_116 = arith.constant dense<0.000000e+00> : vector<2x512xf32>
    %674 = tpu.matmul %673, %4, %cst_116 {dimension_numbers = #tpu.dot_dimension_numbers<[1], [0], [0], [1], [0, 0, 1, 1], [], []>} : vector<2x128xbf16>, vector<128x512xbf16>, vector<2x512xf32> -> vector<2x512xf32>
    %675 = arith.addf %672, %674 : vector<2x512xf32>
    %676 = vector.extract_strided_slice %675 {offsets = [0, 0], sizes = [2, 128], strides = [1, 1]} : vector<2x512xf32> to vector<2x128xf32>
    %677 = arith.negf %676 : vector<2x128xf32>
    %678 = math.exp %677 : vector<2x128xf32>
    %cst_117 = arith.constant 1.000000e+00 : f32
    %679 = vector.broadcast %cst_117 : f32 to vector<2x128xf32>
    %680 = arith.addf %679, %678 : vector<2x128xf32>
    %681 = arith.divf %679, %680 : vector<2x128xf32>
    %682 = vector.extract_strided_slice %675 {offsets = [0, 128], sizes = [2, 128], strides = [1, 1]} : vector<2x512xf32> to vector<2x128xf32>
    %683 = arith.negf %682 : vector<2x128xf32>
    %684 = math.exp %683 : vector<2x128xf32>
    %cst_118 = arith.constant 1.000000e+00 : f32
    %685 = vector.broadcast %cst_118 : f32 to vector<2x128xf32>
    %686 = arith.addf %685, %684 : vector<2x128xf32>
    %687 = arith.divf %685, %686 : vector<2x128xf32>
    %688 = vector.extract_strided_slice %675 {offsets = [0, 256], sizes = [2, 128], strides = [1, 1]} : vector<2x512xf32> to vector<2x128xf32>
    %689 = math.tanh %688 : vector<2x128xf32>
    %690 = vector.extract_strided_slice %675 {offsets = [0, 384], sizes = [2, 128], strides = [1, 1]} : vector<2x512xf32> to vector<2x128xf32>
    %691 = arith.negf %690 : vector<2x128xf32>
    %692 = math.exp %691 : vector<2x128xf32>
    %cst_119 = arith.constant 1.000000e+00 : f32
    %693 = vector.broadcast %cst_119 : f32 to vector<2x128xf32>
    %694 = arith.addf %693, %692 : vector<2x128xf32>
    %695 = arith.divf %693, %694 : vector<2x128xf32>
    %696 = arith.mulf %687, %636 : vector<2x128xf32>
    %697 = arith.mulf %681, %689 : vector<2x128xf32>
    %698 = arith.addf %696, %697 : vector<2x128xf32>
    %699 = math.tanh %698 : vector<2x128xf32>
    %700 = arith.mulf %695, %699 : vector<2x128xf32>
    %701 = vector.extract_strided_slice %14 {offsets = [0, 11, 0], sizes = [2, 1, 512], strides = [1, 1, 1]} : vector<2x16x512xf32> to vector<2x1x512xf32>
    %702 = vector.shape_cast %701 : vector<2x1x512xf32> to vector<2x512xf32>
    %703 = arith.truncf %668 : vector<2x128xf32> to vector<2x128xbf16>
    %cst_120 = arith.constant dense<0.000000e+00> : vector<2x512xf32>
    %704 = tpu.matmul %703, %2, %cst_120 {dimension_numbers = #tpu.dot_dimension_numbers<[1], [0], [0], [1], [0, 0, 1, 1], [], []>} : vector<2x128xbf16>, vector<128x512xbf16>, vector<2x512xf32> -> vector<2x512xf32>
    %705 = arith.addf %702, %704 : vector<2x512xf32>
    %706 = vector.extract_strided_slice %705 {offsets = [0, 0], sizes = [2, 128], strides = [1, 1]} : vector<2x512xf32> to vector<2x128xf32>
    %707 = arith.negf %706 : vector<2x128xf32>
    %708 = math.exp %707 : vector<2x128xf32>
    %cst_121 = arith.constant 1.000000e+00 : f32
    %709 = vector.broadcast %cst_121 : f32 to vector<2x128xf32>
    %710 = arith.addf %709, %708 : vector<2x128xf32>
    %711 = arith.divf %709, %710 : vector<2x128xf32>
    %712 = vector.extract_strided_slice %705 {offsets = [0, 128], sizes = [2, 128], strides = [1, 1]} : vector<2x512xf32> to vector<2x128xf32>
    %713 = arith.negf %712 : vector<2x128xf32>
    %714 = math.exp %713 : vector<2x128xf32>
    %cst_122 = arith.constant 1.000000e+00 : f32
    %715 = vector.broadcast %cst_122 : f32 to vector<2x128xf32>
    %716 = arith.addf %715, %714 : vector<2x128xf32>
    %717 = arith.divf %715, %716 : vector<2x128xf32>
    %718 = vector.extract_strided_slice %705 {offsets = [0, 256], sizes = [2, 128], strides = [1, 1]} : vector<2x512xf32> to vector<2x128xf32>
    %719 = math.tanh %718 : vector<2x128xf32>
    %720 = vector.extract_strided_slice %705 {offsets = [0, 384], sizes = [2, 128], strides = [1, 1]} : vector<2x512xf32> to vector<2x128xf32>
    %721 = arith.negf %720 : vector<2x128xf32>
    %722 = math.exp %721 : vector<2x128xf32>
    %cst_123 = arith.constant 1.000000e+00 : f32
    %723 = vector.broadcast %cst_123 : f32 to vector<2x128xf32>
    %724 = arith.addf %723, %722 : vector<2x128xf32>
    %725 = arith.divf %723, %724 : vector<2x128xf32>
    %726 = arith.mulf %717, %666 : vector<2x128xf32>
    %727 = arith.mulf %711, %719 : vector<2x128xf32>
    %728 = arith.addf %726, %727 : vector<2x128xf32>
    %729 = math.tanh %728 : vector<2x128xf32>
    %730 = arith.mulf %725, %729 : vector<2x128xf32>
    %731 = arith.truncf %730 : vector<2x128xf32> to vector<2x128xbf16>
    %cst_124 = arith.constant dense<0.000000e+00> : vector<2x512xf32>
    %732 = tpu.matmul %731, %3, %cst_124 {dimension_numbers = #tpu.dot_dimension_numbers<[1], [0], [0], [1], [0, 0, 1, 1], [], []>} : vector<2x128xbf16>, vector<128x512xbf16>, vector<2x512xf32> -> vector<2x512xf32>
    %733 = vector.broadcast %5 : vector<1x512xf32> to vector<2x512xf32>
    %734 = arith.addf %732, %733 : vector<2x512xf32>
    %735 = arith.truncf %700 : vector<2x128xf32> to vector<2x128xbf16>
    %cst_125 = arith.constant dense<0.000000e+00> : vector<2x512xf32>
    %736 = tpu.matmul %735, %4, %cst_125 {dimension_numbers = #tpu.dot_dimension_numbers<[1], [0], [0], [1], [0, 0, 1, 1], [], []>} : vector<2x128xbf16>, vector<128x512xbf16>, vector<2x512xf32> -> vector<2x512xf32>
    %737 = arith.addf %734, %736 : vector<2x512xf32>
    %738 = vector.extract_strided_slice %737 {offsets = [0, 0], sizes = [2, 128], strides = [1, 1]} : vector<2x512xf32> to vector<2x128xf32>
    %739 = arith.negf %738 : vector<2x128xf32>
    %740 = math.exp %739 : vector<2x128xf32>
    %cst_126 = arith.constant 1.000000e+00 : f32
    %741 = vector.broadcast %cst_126 : f32 to vector<2x128xf32>
    %742 = arith.addf %741, %740 : vector<2x128xf32>
    %743 = arith.divf %741, %742 : vector<2x128xf32>
    %744 = vector.extract_strided_slice %737 {offsets = [0, 128], sizes = [2, 128], strides = [1, 1]} : vector<2x512xf32> to vector<2x128xf32>
    %745 = arith.negf %744 : vector<2x128xf32>
    %746 = math.exp %745 : vector<2x128xf32>
    %cst_127 = arith.constant 1.000000e+00 : f32
    %747 = vector.broadcast %cst_127 : f32 to vector<2x128xf32>
    %748 = arith.addf %747, %746 : vector<2x128xf32>
    %749 = arith.divf %747, %748 : vector<2x128xf32>
    %750 = vector.extract_strided_slice %737 {offsets = [0, 256], sizes = [2, 128], strides = [1, 1]} : vector<2x512xf32> to vector<2x128xf32>
    %751 = math.tanh %750 : vector<2x128xf32>
    %752 = vector.extract_strided_slice %737 {offsets = [0, 384], sizes = [2, 128], strides = [1, 1]} : vector<2x512xf32> to vector<2x128xf32>
    %753 = arith.negf %752 : vector<2x128xf32>
    %754 = math.exp %753 : vector<2x128xf32>
    %cst_128 = arith.constant 1.000000e+00 : f32
    %755 = vector.broadcast %cst_128 : f32 to vector<2x128xf32>
    %756 = arith.addf %755, %754 : vector<2x128xf32>
    %757 = arith.divf %755, %756 : vector<2x128xf32>
    %758 = arith.mulf %749, %698 : vector<2x128xf32>
    %759 = arith.mulf %743, %751 : vector<2x128xf32>
    %760 = arith.addf %758, %759 : vector<2x128xf32>
    %761 = math.tanh %760 : vector<2x128xf32>
    %762 = arith.mulf %757, %761 : vector<2x128xf32>
    %763 = vector.extract_strided_slice %14 {offsets = [0, 12, 0], sizes = [2, 1, 512], strides = [1, 1, 1]} : vector<2x16x512xf32> to vector<2x1x512xf32>
    %764 = vector.shape_cast %763 : vector<2x1x512xf32> to vector<2x512xf32>
    %765 = arith.truncf %730 : vector<2x128xf32> to vector<2x128xbf16>
    %cst_129 = arith.constant dense<0.000000e+00> : vector<2x512xf32>
    %766 = tpu.matmul %765, %2, %cst_129 {dimension_numbers = #tpu.dot_dimension_numbers<[1], [0], [0], [1], [0, 0, 1, 1], [], []>} : vector<2x128xbf16>, vector<128x512xbf16>, vector<2x512xf32> -> vector<2x512xf32>
    %767 = arith.addf %764, %766 : vector<2x512xf32>
    %768 = vector.extract_strided_slice %767 {offsets = [0, 0], sizes = [2, 128], strides = [1, 1]} : vector<2x512xf32> to vector<2x128xf32>
    %769 = arith.negf %768 : vector<2x128xf32>
    %770 = math.exp %769 : vector<2x128xf32>
    %cst_130 = arith.constant 1.000000e+00 : f32
    %771 = vector.broadcast %cst_130 : f32 to vector<2x128xf32>
    %772 = arith.addf %771, %770 : vector<2x128xf32>
    %773 = arith.divf %771, %772 : vector<2x128xf32>
    %774 = vector.extract_strided_slice %767 {offsets = [0, 128], sizes = [2, 128], strides = [1, 1]} : vector<2x512xf32> to vector<2x128xf32>
    %775 = arith.negf %774 : vector<2x128xf32>
    %776 = math.exp %775 : vector<2x128xf32>
    %cst_131 = arith.constant 1.000000e+00 : f32
    %777 = vector.broadcast %cst_131 : f32 to vector<2x128xf32>
    %778 = arith.addf %777, %776 : vector<2x128xf32>
    %779 = arith.divf %777, %778 : vector<2x128xf32>
    %780 = vector.extract_strided_slice %767 {offsets = [0, 256], sizes = [2, 128], strides = [1, 1]} : vector<2x512xf32> to vector<2x128xf32>
    %781 = math.tanh %780 : vector<2x128xf32>
    %782 = vector.extract_strided_slice %767 {offsets = [0, 384], sizes = [2, 128], strides = [1, 1]} : vector<2x512xf32> to vector<2x128xf32>
    %783 = arith.negf %782 : vector<2x128xf32>
    %784 = math.exp %783 : vector<2x128xf32>
    %cst_132 = arith.constant 1.000000e+00 : f32
    %785 = vector.broadcast %cst_132 : f32 to vector<2x128xf32>
    %786 = arith.addf %785, %784 : vector<2x128xf32>
    %787 = arith.divf %785, %786 : vector<2x128xf32>
    %788 = arith.mulf %779, %728 : vector<2x128xf32>
    %789 = arith.mulf %773, %781 : vector<2x128xf32>
    %790 = arith.addf %788, %789 : vector<2x128xf32>
    %791 = math.tanh %790 : vector<2x128xf32>
    %792 = arith.mulf %787, %791 : vector<2x128xf32>
    %793 = arith.truncf %792 : vector<2x128xf32> to vector<2x128xbf16>
    %cst_133 = arith.constant dense<0.000000e+00> : vector<2x512xf32>
    %794 = tpu.matmul %793, %3, %cst_133 {dimension_numbers = #tpu.dot_dimension_numbers<[1], [0], [0], [1], [0, 0, 1, 1], [], []>} : vector<2x128xbf16>, vector<128x512xbf16>, vector<2x512xf32> -> vector<2x512xf32>
    %795 = vector.broadcast %5 : vector<1x512xf32> to vector<2x512xf32>
    %796 = arith.addf %794, %795 : vector<2x512xf32>
    %797 = arith.truncf %762 : vector<2x128xf32> to vector<2x128xbf16>
    %cst_134 = arith.constant dense<0.000000e+00> : vector<2x512xf32>
    %798 = tpu.matmul %797, %4, %cst_134 {dimension_numbers = #tpu.dot_dimension_numbers<[1], [0], [0], [1], [0, 0, 1, 1], [], []>} : vector<2x128xbf16>, vector<128x512xbf16>, vector<2x512xf32> -> vector<2x512xf32>
    %799 = arith.addf %796, %798 : vector<2x512xf32>
    %800 = vector.extract_strided_slice %799 {offsets = [0, 0], sizes = [2, 128], strides = [1, 1]} : vector<2x512xf32> to vector<2x128xf32>
    %801 = arith.negf %800 : vector<2x128xf32>
    %802 = math.exp %801 : vector<2x128xf32>
    %cst_135 = arith.constant 1.000000e+00 : f32
    %803 = vector.broadcast %cst_135 : f32 to vector<2x128xf32>
    %804 = arith.addf %803, %802 : vector<2x128xf32>
    %805 = arith.divf %803, %804 : vector<2x128xf32>
    %806 = vector.extract_strided_slice %799 {offsets = [0, 128], sizes = [2, 128], strides = [1, 1]} : vector<2x512xf32> to vector<2x128xf32>
    %807 = arith.negf %806 : vector<2x128xf32>
    %808 = math.exp %807 : vector<2x128xf32>
    %cst_136 = arith.constant 1.000000e+00 : f32
    %809 = vector.broadcast %cst_136 : f32 to vector<2x128xf32>
    %810 = arith.addf %809, %808 : vector<2x128xf32>
    %811 = arith.divf %809, %810 : vector<2x128xf32>
    %812 = vector.extract_strided_slice %799 {offsets = [0, 256], sizes = [2, 128], strides = [1, 1]} : vector<2x512xf32> to vector<2x128xf32>
    %813 = math.tanh %812 : vector<2x128xf32>
    %814 = vector.extract_strided_slice %799 {offsets = [0, 384], sizes = [2, 128], strides = [1, 1]} : vector<2x512xf32> to vector<2x128xf32>
    %815 = arith.negf %814 : vector<2x128xf32>
    %816 = math.exp %815 : vector<2x128xf32>
    %cst_137 = arith.constant 1.000000e+00 : f32
    %817 = vector.broadcast %cst_137 : f32 to vector<2x128xf32>
    %818 = arith.addf %817, %816 : vector<2x128xf32>
    %819 = arith.divf %817, %818 : vector<2x128xf32>
    %820 = arith.mulf %811, %760 : vector<2x128xf32>
    %821 = arith.mulf %805, %813 : vector<2x128xf32>
    %822 = arith.addf %820, %821 : vector<2x128xf32>
    %823 = math.tanh %822 : vector<2x128xf32>
    %824 = arith.mulf %819, %823 : vector<2x128xf32>
    %825 = vector.extract_strided_slice %14 {offsets = [0, 13, 0], sizes = [2, 1, 512], strides = [1, 1, 1]} : vector<2x16x512xf32> to vector<2x1x512xf32>
    %826 = vector.shape_cast %825 : vector<2x1x512xf32> to vector<2x512xf32>
    %827 = arith.truncf %792 : vector<2x128xf32> to vector<2x128xbf16>
    %cst_138 = arith.constant dense<0.000000e+00> : vector<2x512xf32>
    %828 = tpu.matmul %827, %2, %cst_138 {dimension_numbers = #tpu.dot_dimension_numbers<[1], [0], [0], [1], [0, 0, 1, 1], [], []>} : vector<2x128xbf16>, vector<128x512xbf16>, vector<2x512xf32> -> vector<2x512xf32>
    %829 = arith.addf %826, %828 : vector<2x512xf32>
    %830 = vector.extract_strided_slice %829 {offsets = [0, 0], sizes = [2, 128], strides = [1, 1]} : vector<2x512xf32> to vector<2x128xf32>
    %831 = arith.negf %830 : vector<2x128xf32>
    %832 = math.exp %831 : vector<2x128xf32>
    %cst_139 = arith.constant 1.000000e+00 : f32
    %833 = vector.broadcast %cst_139 : f32 to vector<2x128xf32>
    %834 = arith.addf %833, %832 : vector<2x128xf32>
    %835 = arith.divf %833, %834 : vector<2x128xf32>
    %836 = vector.extract_strided_slice %829 {offsets = [0, 128], sizes = [2, 128], strides = [1, 1]} : vector<2x512xf32> to vector<2x128xf32>
    %837 = arith.negf %836 : vector<2x128xf32>
    %838 = math.exp %837 : vector<2x128xf32>
    %cst_140 = arith.constant 1.000000e+00 : f32
    %839 = vector.broadcast %cst_140 : f32 to vector<2x128xf32>
    %840 = arith.addf %839, %838 : vector<2x128xf32>
    %841 = arith.divf %839, %840 : vector<2x128xf32>
    %842 = vector.extract_strided_slice %829 {offsets = [0, 256], sizes = [2, 128], strides = [1, 1]} : vector<2x512xf32> to vector<2x128xf32>
    %843 = math.tanh %842 : vector<2x128xf32>
    %844 = vector.extract_strided_slice %829 {offsets = [0, 384], sizes = [2, 128], strides = [1, 1]} : vector<2x512xf32> to vector<2x128xf32>
    %845 = arith.negf %844 : vector<2x128xf32>
    %846 = math.exp %845 : vector<2x128xf32>
    %cst_141 = arith.constant 1.000000e+00 : f32
    %847 = vector.broadcast %cst_141 : f32 to vector<2x128xf32>
    %848 = arith.addf %847, %846 : vector<2x128xf32>
    %849 = arith.divf %847, %848 : vector<2x128xf32>
    %850 = arith.mulf %841, %790 : vector<2x128xf32>
    %851 = arith.mulf %835, %843 : vector<2x128xf32>
    %852 = arith.addf %850, %851 : vector<2x128xf32>
    %853 = math.tanh %852 : vector<2x128xf32>
    %854 = arith.mulf %849, %853 : vector<2x128xf32>
    %855 = arith.truncf %854 : vector<2x128xf32> to vector<2x128xbf16>
    %cst_142 = arith.constant dense<0.000000e+00> : vector<2x512xf32>
    %856 = tpu.matmul %855, %3, %cst_142 {dimension_numbers = #tpu.dot_dimension_numbers<[1], [0], [0], [1], [0, 0, 1, 1], [], []>} : vector<2x128xbf16>, vector<128x512xbf16>, vector<2x512xf32> -> vector<2x512xf32>
    %857 = vector.broadcast %5 : vector<1x512xf32> to vector<2x512xf32>
    %858 = arith.addf %856, %857 : vector<2x512xf32>
    %859 = arith.truncf %824 : vector<2x128xf32> to vector<2x128xbf16>
    %cst_143 = arith.constant dense<0.000000e+00> : vector<2x512xf32>
    %860 = tpu.matmul %859, %4, %cst_143 {dimension_numbers = #tpu.dot_dimension_numbers<[1], [0], [0], [1], [0, 0, 1, 1], [], []>} : vector<2x128xbf16>, vector<128x512xbf16>, vector<2x512xf32> -> vector<2x512xf32>
    %861 = arith.addf %858, %860 : vector<2x512xf32>
    %862 = vector.extract_strided_slice %861 {offsets = [0, 0], sizes = [2, 128], strides = [1, 1]} : vector<2x512xf32> to vector<2x128xf32>
    %863 = arith.negf %862 : vector<2x128xf32>
    %864 = math.exp %863 : vector<2x128xf32>
    %cst_144 = arith.constant 1.000000e+00 : f32
    %865 = vector.broadcast %cst_144 : f32 to vector<2x128xf32>
    %866 = arith.addf %865, %864 : vector<2x128xf32>
    %867 = arith.divf %865, %866 : vector<2x128xf32>
    %868 = vector.extract_strided_slice %861 {offsets = [0, 128], sizes = [2, 128], strides = [1, 1]} : vector<2x512xf32> to vector<2x128xf32>
    %869 = arith.negf %868 : vector<2x128xf32>
    %870 = math.exp %869 : vector<2x128xf32>
    %cst_145 = arith.constant 1.000000e+00 : f32
    %871 = vector.broadcast %cst_145 : f32 to vector<2x128xf32>
    %872 = arith.addf %871, %870 : vector<2x128xf32>
    %873 = arith.divf %871, %872 : vector<2x128xf32>
    %874 = vector.extract_strided_slice %861 {offsets = [0, 256], sizes = [2, 128], strides = [1, 1]} : vector<2x512xf32> to vector<2x128xf32>
    %875 = math.tanh %874 : vector<2x128xf32>
    %876 = vector.extract_strided_slice %861 {offsets = [0, 384], sizes = [2, 128], strides = [1, 1]} : vector<2x512xf32> to vector<2x128xf32>
    %877 = arith.negf %876 : vector<2x128xf32>
    %878 = math.exp %877 : vector<2x128xf32>
    %cst_146 = arith.constant 1.000000e+00 : f32
    %879 = vector.broadcast %cst_146 : f32 to vector<2x128xf32>
    %880 = arith.addf %879, %878 : vector<2x128xf32>
    %881 = arith.divf %879, %880 : vector<2x128xf32>
    %882 = arith.mulf %873, %822 : vector<2x128xf32>
    %883 = arith.mulf %867, %875 : vector<2x128xf32>
    %884 = arith.addf %882, %883 : vector<2x128xf32>
    %885 = math.tanh %884 : vector<2x128xf32>
    %886 = arith.mulf %881, %885 : vector<2x128xf32>
    %887 = vector.extract_strided_slice %14 {offsets = [0, 14, 0], sizes = [2, 1, 512], strides = [1, 1, 1]} : vector<2x16x512xf32> to vector<2x1x512xf32>
    %888 = vector.shape_cast %887 : vector<2x1x512xf32> to vector<2x512xf32>
    %889 = arith.truncf %854 : vector<2x128xf32> to vector<2x128xbf16>
    %cst_147 = arith.constant dense<0.000000e+00> : vector<2x512xf32>
    %890 = tpu.matmul %889, %2, %cst_147 {dimension_numbers = #tpu.dot_dimension_numbers<[1], [0], [0], [1], [0, 0, 1, 1], [], []>} : vector<2x128xbf16>, vector<128x512xbf16>, vector<2x512xf32> -> vector<2x512xf32>
    %891 = arith.addf %888, %890 : vector<2x512xf32>
    %892 = vector.extract_strided_slice %891 {offsets = [0, 0], sizes = [2, 128], strides = [1, 1]} : vector<2x512xf32> to vector<2x128xf32>
    %893 = arith.negf %892 : vector<2x128xf32>
    %894 = math.exp %893 : vector<2x128xf32>
    %cst_148 = arith.constant 1.000000e+00 : f32
    %895 = vector.broadcast %cst_148 : f32 to vector<2x128xf32>
    %896 = arith.addf %895, %894 : vector<2x128xf32>
    %897 = arith.divf %895, %896 : vector<2x128xf32>
    %898 = vector.extract_strided_slice %891 {offsets = [0, 128], sizes = [2, 128], strides = [1, 1]} : vector<2x512xf32> to vector<2x128xf32>
    %899 = arith.negf %898 : vector<2x128xf32>
    %900 = math.exp %899 : vector<2x128xf32>
    %cst_149 = arith.constant 1.000000e+00 : f32
    %901 = vector.broadcast %cst_149 : f32 to vector<2x128xf32>
    %902 = arith.addf %901, %900 : vector<2x128xf32>
    %903 = arith.divf %901, %902 : vector<2x128xf32>
    %904 = vector.extract_strided_slice %891 {offsets = [0, 256], sizes = [2, 128], strides = [1, 1]} : vector<2x512xf32> to vector<2x128xf32>
    %905 = math.tanh %904 : vector<2x128xf32>
    %906 = vector.extract_strided_slice %891 {offsets = [0, 384], sizes = [2, 128], strides = [1, 1]} : vector<2x512xf32> to vector<2x128xf32>
    %907 = arith.negf %906 : vector<2x128xf32>
    %908 = math.exp %907 : vector<2x128xf32>
    %cst_150 = arith.constant 1.000000e+00 : f32
    %909 = vector.broadcast %cst_150 : f32 to vector<2x128xf32>
    %910 = arith.addf %909, %908 : vector<2x128xf32>
    %911 = arith.divf %909, %910 : vector<2x128xf32>
    %912 = arith.mulf %903, %852 : vector<2x128xf32>
    %913 = arith.mulf %897, %905 : vector<2x128xf32>
    %914 = arith.addf %912, %913 : vector<2x128xf32>
    %915 = math.tanh %914 : vector<2x128xf32>
    %916 = arith.mulf %911, %915 : vector<2x128xf32>
    %917 = arith.truncf %916 : vector<2x128xf32> to vector<2x128xbf16>
    %cst_151 = arith.constant dense<0.000000e+00> : vector<2x512xf32>
    %918 = tpu.matmul %917, %3, %cst_151 {dimension_numbers = #tpu.dot_dimension_numbers<[1], [0], [0], [1], [0, 0, 1, 1], [], []>} : vector<2x128xbf16>, vector<128x512xbf16>, vector<2x512xf32> -> vector<2x512xf32>
    %919 = vector.broadcast %5 : vector<1x512xf32> to vector<2x512xf32>
    %920 = arith.addf %918, %919 : vector<2x512xf32>
    %921 = arith.truncf %886 : vector<2x128xf32> to vector<2x128xbf16>
    %cst_152 = arith.constant dense<0.000000e+00> : vector<2x512xf32>
    %922 = tpu.matmul %921, %4, %cst_152 {dimension_numbers = #tpu.dot_dimension_numbers<[1], [0], [0], [1], [0, 0, 1, 1], [], []>} : vector<2x128xbf16>, vector<128x512xbf16>, vector<2x512xf32> -> vector<2x512xf32>
    %923 = arith.addf %920, %922 : vector<2x512xf32>
    %924 = vector.extract_strided_slice %923 {offsets = [0, 0], sizes = [2, 128], strides = [1, 1]} : vector<2x512xf32> to vector<2x128xf32>
    %925 = arith.negf %924 : vector<2x128xf32>
    %926 = math.exp %925 : vector<2x128xf32>
    %cst_153 = arith.constant 1.000000e+00 : f32
    %927 = vector.broadcast %cst_153 : f32 to vector<2x128xf32>
    %928 = arith.addf %927, %926 : vector<2x128xf32>
    %929 = arith.divf %927, %928 : vector<2x128xf32>
    %930 = vector.extract_strided_slice %923 {offsets = [0, 128], sizes = [2, 128], strides = [1, 1]} : vector<2x512xf32> to vector<2x128xf32>
    %931 = arith.negf %930 : vector<2x128xf32>
    %932 = math.exp %931 : vector<2x128xf32>
    %cst_154 = arith.constant 1.000000e+00 : f32
    %933 = vector.broadcast %cst_154 : f32 to vector<2x128xf32>
    %934 = arith.addf %933, %932 : vector<2x128xf32>
    %935 = arith.divf %933, %934 : vector<2x128xf32>
    %936 = vector.extract_strided_slice %923 {offsets = [0, 256], sizes = [2, 128], strides = [1, 1]} : vector<2x512xf32> to vector<2x128xf32>
    %937 = math.tanh %936 : vector<2x128xf32>
    %938 = vector.extract_strided_slice %923 {offsets = [0, 384], sizes = [2, 128], strides = [1, 1]} : vector<2x512xf32> to vector<2x128xf32>
    %939 = arith.negf %938 : vector<2x128xf32>
    %940 = math.exp %939 : vector<2x128xf32>
    %cst_155 = arith.constant 1.000000e+00 : f32
    %941 = vector.broadcast %cst_155 : f32 to vector<2x128xf32>
    %942 = arith.addf %941, %940 : vector<2x128xf32>
    %943 = arith.divf %941, %942 : vector<2x128xf32>
    %944 = arith.mulf %935, %884 : vector<2x128xf32>
    %945 = arith.mulf %929, %937 : vector<2x128xf32>
    %946 = arith.addf %944, %945 : vector<2x128xf32>
    %947 = math.tanh %946 : vector<2x128xf32>
    %948 = arith.mulf %943, %947 : vector<2x128xf32>
    %949 = vector.extract_strided_slice %14 {offsets = [0, 15, 0], sizes = [2, 1, 512], strides = [1, 1, 1]} : vector<2x16x512xf32> to vector<2x1x512xf32>
    %950 = vector.shape_cast %949 : vector<2x1x512xf32> to vector<2x512xf32>
    %951 = arith.truncf %916 : vector<2x128xf32> to vector<2x128xbf16>
    %cst_156 = arith.constant dense<0.000000e+00> : vector<2x512xf32>
    %952 = tpu.matmul %951, %2, %cst_156 {dimension_numbers = #tpu.dot_dimension_numbers<[1], [0], [0], [1], [0, 0, 1, 1], [], []>} : vector<2x128xbf16>, vector<128x512xbf16>, vector<2x512xf32> -> vector<2x512xf32>
    %953 = arith.addf %950, %952 : vector<2x512xf32>
    %954 = vector.extract_strided_slice %953 {offsets = [0, 0], sizes = [2, 128], strides = [1, 1]} : vector<2x512xf32> to vector<2x128xf32>
    %955 = arith.negf %954 : vector<2x128xf32>
    %956 = math.exp %955 : vector<2x128xf32>
    %cst_157 = arith.constant 1.000000e+00 : f32
    %957 = vector.broadcast %cst_157 : f32 to vector<2x128xf32>
    %958 = arith.addf %957, %956 : vector<2x128xf32>
    %959 = arith.divf %957, %958 : vector<2x128xf32>
    %960 = vector.extract_strided_slice %953 {offsets = [0, 128], sizes = [2, 128], strides = [1, 1]} : vector<2x512xf32> to vector<2x128xf32>
    %961 = arith.negf %960 : vector<2x128xf32>
    %962 = math.exp %961 : vector<2x128xf32>
    %cst_158 = arith.constant 1.000000e+00 : f32
    %963 = vector.broadcast %cst_158 : f32 to vector<2x128xf32>
    %964 = arith.addf %963, %962 : vector<2x128xf32>
    %965 = arith.divf %963, %964 : vector<2x128xf32>
    %966 = vector.extract_strided_slice %953 {offsets = [0, 256], sizes = [2, 128], strides = [1, 1]} : vector<2x512xf32> to vector<2x128xf32>
    %967 = math.tanh %966 : vector<2x128xf32>
    %968 = vector.extract_strided_slice %953 {offsets = [0, 384], sizes = [2, 128], strides = [1, 1]} : vector<2x512xf32> to vector<2x128xf32>
    %969 = arith.negf %968 : vector<2x128xf32>
    %970 = math.exp %969 : vector<2x128xf32>
    %cst_159 = arith.constant 1.000000e+00 : f32
    %971 = vector.broadcast %cst_159 : f32 to vector<2x128xf32>
    %972 = arith.addf %971, %970 : vector<2x128xf32>
    %973 = arith.divf %971, %972 : vector<2x128xf32>
    %974 = arith.mulf %965, %914 : vector<2x128xf32>
    %975 = arith.mulf %959, %967 : vector<2x128xf32>
    %976 = arith.addf %974, %975 : vector<2x128xf32>
    %977 = math.tanh %976 : vector<2x128xf32>
    %978 = arith.mulf %973, %977 : vector<2x128xf32>
    %979 = arith.truncf %978 : vector<2x128xf32> to vector<2x128xbf16>
    %cst_160 = arith.constant dense<0.000000e+00> : vector<2x512xf32>
    %980 = tpu.matmul %979, %3, %cst_160 {dimension_numbers = #tpu.dot_dimension_numbers<[1], [0], [0], [1], [0, 0, 1, 1], [], []>} : vector<2x128xbf16>, vector<128x512xbf16>, vector<2x512xf32> -> vector<2x512xf32>
    %981 = vector.broadcast %5 : vector<1x512xf32> to vector<2x512xf32>
    %982 = arith.addf %980, %981 : vector<2x512xf32>
    %983 = arith.truncf %948 : vector<2x128xf32> to vector<2x128xbf16>
    %cst_161 = arith.constant dense<0.000000e+00> : vector<2x512xf32>
    %984 = tpu.matmul %983, %4, %cst_161 {dimension_numbers = #tpu.dot_dimension_numbers<[1], [0], [0], [1], [0, 0, 1, 1], [], []>} : vector<2x128xbf16>, vector<128x512xbf16>, vector<2x512xf32> -> vector<2x512xf32>
    %985 = arith.addf %982, %984 : vector<2x512xf32>
    %986 = vector.extract_strided_slice %985 {offsets = [0, 0], sizes = [2, 128], strides = [1, 1]} : vector<2x512xf32> to vector<2x128xf32>
    %987 = arith.negf %986 : vector<2x128xf32>
    %988 = math.exp %987 : vector<2x128xf32>
    %cst_162 = arith.constant 1.000000e+00 : f32
    %989 = vector.broadcast %cst_162 : f32 to vector<2x128xf32>
    %990 = arith.addf %989, %988 : vector<2x128xf32>
    %991 = arith.divf %989, %990 : vector<2x128xf32>
    %992 = vector.extract_strided_slice %985 {offsets = [0, 128], sizes = [2, 128], strides = [1, 1]} : vector<2x512xf32> to vector<2x128xf32>
    %993 = arith.negf %992 : vector<2x128xf32>
    %994 = math.exp %993 : vector<2x128xf32>
    %cst_163 = arith.constant 1.000000e+00 : f32
    %995 = vector.broadcast %cst_163 : f32 to vector<2x128xf32>
    %996 = arith.addf %995, %994 : vector<2x128xf32>
    %997 = arith.divf %995, %996 : vector<2x128xf32>
    %998 = vector.extract_strided_slice %985 {offsets = [0, 256], sizes = [2, 128], strides = [1, 1]} : vector<2x512xf32> to vector<2x128xf32>
    %999 = math.tanh %998 : vector<2x128xf32>
    %1000 = vector.extract_strided_slice %985 {offsets = [0, 384], sizes = [2, 128], strides = [1, 1]} : vector<2x512xf32> to vector<2x128xf32>
    %1001 = arith.negf %1000 : vector<2x128xf32>
    %1002 = math.exp %1001 : vector<2x128xf32>
    %cst_164 = arith.constant 1.000000e+00 : f32
    %1003 = vector.broadcast %cst_164 : f32 to vector<2x128xf32>
    %1004 = arith.addf %1003, %1002 : vector<2x128xf32>
    %1005 = arith.divf %1003, %1004 : vector<2x128xf32>
    %1006 = arith.mulf %997, %946 : vector<2x128xf32>
    %1007 = arith.mulf %991, %999 : vector<2x128xf32>
    %1008 = arith.addf %1006, %1007 : vector<2x128xf32>
    %1009 = math.tanh %1008 : vector<2x128xf32>
    %1010 = arith.mulf %1005, %1009 : vector<2x128xf32>
    %1011 = vector.shape_cast %1010 : vector<2x128xf32> to vector<2x1x128xf32>
    %1012 = vector.shape_cast %1011 : vector<2x1x128xf32> to vector<2x1x128xf32>
    %1013 = vector.broadcast %1012 : vector<2x1x128xf32> to vector<2x8x128xf32>
    %1014 = arith.truncf %1 : vector<2x8x8xf32> to vector<2x8x8xbf16>
    %c0_165 = arith.constant 0 : index
    %c0_166 = arith.constant 0 : index
    %1015 = vector.load %arg9[%c0_165, %c0_166] : memref<8x128xbf16, #tpu.memory_space<vmem>>, vector<8x128xbf16>
    "tpu.trace_start"() <{level = 10 : i32, message = "bnm,mh->bnh"}> : () -> ()
    %cst_167 = arith.constant dense<0.000000e+00> : vector<2x8x128xf32>
    %1016 = tpu.matmul %1014, %1015, %cst_167 {dimension_numbers = #tpu.dot_dimension_numbers<[2], [0], [0, 1], [1], [0, 0, 0, 1, 1, 1], [], []>} : vector<2x8x8xbf16>, vector<8x128xbf16>, vector<2x8x128xf32> -> vector<2x8x128xf32>
    "tpu.trace_stop"() : () -> ()
    %c0_168 = arith.constant 0 : index
    %c0_169 = arith.constant 0 : index
    %1017 = vector.load %arg10[%c0_168, %c0_169] : memref<1x128xf32, #tpu.memory_space<vmem>>, vector<1x128xf32>
    %1018 = vector.shape_cast %1017 : vector<1x128xf32> to vector<1x1x128xf32>
    %1019 = vector.broadcast %1018 : vector<1x1x128xf32> to vector<2x8x128xf32>
    %1020 = arith.addf %1016, %1019 : vector<2x8x128xf32>
    %cst_170 = arith.constant dense<0.000000e+00> : vector<2x128xf32>
    %1021 = vector.multi_reduction <add>, %0, %cst_170 [1] : vector<2x16x128xf32> to vector<2x128xf32>
    %cst_171 = arith.constant 1.600000e+01 : f32
    %1022 = vector.broadcast %cst_171 : f32 to vector<2x128xf32>
    %1023 = arith.divf %1021, %1022 : vector<2x128xf32>
    %1024 = arith.truncf %1023 : vector<2x128xf32> to vector<2x128xbf16>
    %c0_172 = arith.constant 0 : index
    %c0_173 = arith.constant 0 : index
    %1025 = vector.load %arg11[%c0_172, %c0_173] : memref<128x128xbf16, #tpu.memory_space<vmem>>, vector<128x128xbf16>
    %cst_174 = arith.constant dense<0.000000e+00> : vector<2x128xf32>
    %1026 = tpu.matmul %1024, %1025, %cst_174 {dimension_numbers = #tpu.dot_dimension_numbers<[1], [0], [0], [1], [0, 0, 1, 1], [], []>} : vector<2x128xbf16>, vector<128x128xbf16>, vector<2x128xf32> -> vector<2x128xf32>
    %1027 = vector.shape_cast %1026 : vector<2x128xf32> to vector<2x1x128xf32>
    %1028 = vector.broadcast %1027 : vector<2x1x128xf32> to vector<2x8x128xf32>
    %1029 = arith.addf %1020, %1028 : vector<2x8x128xf32>
    %cst_175 = arith.constant 0.000000e+00 : f32
    %1030 = vector.broadcast %cst_175 : f32 to vector<2x8x128xf32>
    %1031 = arith.maximumf %1029, %1030 : vector<2x8x128xf32>
    %1032 = arith.truncf %1031 : vector<2x8x128xf32> to vector<2x8x128xbf16>
    "tpu.trace_start"() <{level = 10 : i32, message = "bnh,bmh->bnm"}> : () -> ()
    %cst_176 = arith.constant dense<0.000000e+00> : vector<2x8x8xf32>
    %1033 = tpu.matmul %1032, %1032, %cst_176 {dimension_numbers = #tpu.dot_dimension_numbers<[2], [2], [1], [1], [0, 0, 0, 1, 1, 1], [0], [0]>} : vector<2x8x128xbf16>, vector<2x8x128xbf16>, vector<2x8x8xf32> -> vector<2x8x8xf32>
    "tpu.trace_stop"() : () -> ()
    %cst_177 = arith.constant 0.0883883461 : f32
    %1034 = vector.broadcast %cst_177 : f32 to vector<2x8x8xf32>
    %1035 = arith.mulf %1033, %1034 : vector<2x8x8xf32>
    %1036 = arith.negf %1035 : vector<2x8x8xf32>
    %1037 = math.exp %1036 : vector<2x8x8xf32>
    %cst_178 = arith.constant 1.000000e+00 : f32
    %1038 = vector.broadcast %cst_178 : f32 to vector<2x8x8xf32>
    %1039 = arith.addf %1038, %1037 : vector<2x8x8xf32>
    %1040 = arith.divf %1038, %1039 : vector<2x8x8xf32>
    %1041 = arith.truncf %1013 : vector<2x8x128xf32> to vector<2x8x128xbf16>
    %c0_179 = arith.constant 0 : index
    %c0_180 = arith.constant 0 : index
    %1042 = vector.load %arg12[%c0_179, %c0_180] : memref<128x128xbf16, #tpu.memory_space<vmem>>, vector<128x128xbf16>
    "tpu.trace_start"() <{level = 10 : i32, message = "bnd,df->bnf"}> : () -> ()
    %cst_181 = arith.constant dense<0.000000e+00> : vector<2x8x128xf32>
    %1043 = tpu.matmul %1041, %1042, %cst_181 {dimension_numbers = #tpu.dot_dimension_numbers<[2], [0], [0, 1], [1], [0, 0, 0, 1, 1, 1], [], []>} : vector<2x8x128xbf16>, vector<128x128xbf16>, vector<2x8x128xf32> -> vector<2x8x128xf32>
    "tpu.trace_stop"() : () -> ()
    %c0_182 = arith.constant 0 : index
    %c0_183 = arith.constant 0 : index
    %1044 = vector.load %arg13[%c0_182, %c0_183] : memref<4x32xf32, #tpu.memory_space<vmem>>, vector<4x32xf32>
    %c0_184 = arith.constant 0 : index
    %c0_185 = arith.constant 0 : index
    %1045 = vector.load %arg14[%c0_184, %c0_185] : memref<4x32xf32, #tpu.memory_space<vmem>>, vector<4x32xf32>
    %c0_186 = arith.constant 0 : index
    %c0_187 = arith.constant 0 : index
    %1046 = vector.load %arg15[%c0_186, %c0_187] : memref<128x4xbf16, #tpu.memory_space<vmem>>, vector<128x4xbf16>
    %cst_188 = arith.constant 0.000000e+00 : f32
    %1047 = vector.broadcast %cst_188 : f32 to vector<2x8x4xf32>
    %1048 = vector.extract_strided_slice %1043 {offsets = [0, 0, 0], sizes = [2, 8, 32], strides = [1, 1, 1]} : vector<2x8x128xf32> to vector<2x8x32xf32>
    %1049 = vector.extract_strided_slice %1044 {offsets = [0, 0], sizes = [1, 32], strides = [1, 1]} : vector<4x32xf32> to vector<1x32xf32>
    %1050 = vector.shape_cast %1049 : vector<1x32xf32> to vector<1x1x32xf32>
    %1051 = vector.extract_strided_slice %1045 {offsets = [0, 0], sizes = [1, 32], strides = [1, 1]} : vector<4x32xf32> to vector<1x32xf32>
    %1052 = vector.shape_cast %1051 : vector<1x32xf32> to vector<1x1x32xf32>
    %1053 = vector.broadcast %1050 : vector<1x1x32xf32> to vector<2x8x32xf32>
    %1054 = arith.mulf %1048, %1053 : vector<2x8x32xf32>
    %cst_189 = arith.constant dense<0.000000e+00> : vector<2x8xf32>
    %1055 = vector.multi_reduction <add>, %1054, %cst_189 [2] : vector<2x8x32xf32> to vector<2x8xf32>
    %1056 = vector.broadcast %1052 : vector<1x1x32xf32> to vector<2x8x32xf32>
    %1057 = arith.mulf %1048, %1056 : vector<2x8x32xf32>
    %cst_190 = arith.constant dense<0.000000e+00> : vector<2x8xf32>
    %1058 = vector.multi_reduction <add>, %1057, %cst_190 [2] : vector<2x8x32xf32> to vector<2x8xf32>
    %1059 = vector.shape_cast %1055 : vector<2x8xf32> to vector<2x8x1xf32>
    %1060 = vector.shape_cast %1058 : vector<2x8xf32> to vector<2x1x8xf32>
    %1061 = vector.broadcast %1059 : vector<2x8x1xf32> to vector<2x8x8xf32>
    %1062 = vector.broadcast %1060 : vector<2x1x8xf32> to vector<2x8x8xf32>
    %1063 = arith.addf %1061, %1062 : vector<2x8x8xf32>
    %cst_191 = arith.constant 0.000000e+00 : f32
    %1064 = vector.broadcast %cst_191 : f32 to vector<2x8x8xf32>
    %1065 = arith.cmpf ogt, %1063, %1064 : vector<2x8x8xf32>
    %cst_192 = arith.constant 2.000000e-01 : f32
    %1066 = vector.broadcast %cst_192 : f32 to vector<2x8x8xf32>
    %1067 = arith.mulf %1066, %1063 : vector<2x8x8xf32>
    %1068 = arith.select %1065, %1063, %1067 : vector<2x8x8xi1>, vector<2x8x8xf32>
    %cst_193 = arith.constant dense<0xFF800000> : vector<2x8xf32>
    %1069 = vector.multi_reduction <maximumf>, %1068, %cst_193 [2] : vector<2x8x8xf32> to vector<2x8xf32>
    %1070 = vector.shape_cast %1069 : vector<2x8xf32> to vector<2x8x1xf32>
    %1071 = vector.broadcast %1070 : vector<2x8x1xf32> to vector<2x8x8xf32>
    %1072 = arith.subf %1068, %1071 : vector<2x8x8xf32>
    %1073 = math.exp %1072 : vector<2x8x8xf32>
    %1074 = arith.mulf %1073, %1040 : vector<2x8x8xf32>
    %cst_194 = arith.constant dense<0.000000e+00> : vector<2x8xf32>
    %1075 = vector.multi_reduction <add>, %1074, %cst_194 [2] : vector<2x8x8xf32> to vector<2x8xf32>
    %cst_195 = arith.constant 9.99999971E-10 : f32
    %1076 = vector.broadcast %cst_195 : f32 to vector<2x8xf32>
    %1077 = arith.addf %1075, %1076 : vector<2x8xf32>
    %1078 = tpu.reciprocal %1077 {approx = true} : vector<2x8xf32> -> vector<2x8xf32>
    %1079 = vector.shape_cast %1078 : vector<2x8xf32> to vector<2x8x1xf32>
    %1080 = vector.broadcast %1079 : vector<2x8x1xf32> to vector<2x8x8xf32>
    %1081 = arith.mulf %1074, %1080 : vector<2x8x8xf32>
    %1082 = arith.truncf %1081 : vector<2x8x8xf32> to vector<2x8x8xbf16>
    %1083 = arith.truncf %1048 : vector<2x8x32xf32> to vector<2x8x32xbf16>
    "tpu.trace_start"() <{level = 10 : i32, message = "bnm,bmf->bnf"}> : () -> ()
    %cst_196 = arith.constant dense<0.000000e+00> : vector<2x8x32xf32>
    %1084 = tpu.matmul %1082, %1083, %cst_196 {dimension_numbers = #tpu.dot_dimension_numbers<[2], [1], [1], [2], [0, 0, 0, 1, 1, 2], [0], [0]>} : vector<2x8x8xbf16>, vector<2x8x32xbf16>, vector<2x8x32xf32> -> vector<2x8x32xf32>
    %cst_197 = arith.constant 0.000000e+00 : f32
    "tpu.trace_stop"() : () -> ()
    %1085 = vector.broadcast %cst_197 : f32 to vector<2x8x32xf32>
    %1086 = arith.cmpf ogt, %1084, %1085 : vector<2x8x32xf32>
    %cst_198 = arith.constant 0.000000e+00 : f32
    %1087 = vector.broadcast %cst_198 : f32 to vector<2x8x32xf32>
    %1088 = arith.minimumf %1084, %1087 : vector<2x8x32xf32>
    %1089 = math.exp %1088 : vector<2x8x32xf32>
    %cst_199 = arith.constant 1.000000e+00 : f32
    %1090 = vector.broadcast %cst_199 : f32 to vector<2x8x32xf32>
    %1091 = arith.subf %1089, %1090 : vector<2x8x32xf32>
    %1092 = arith.select %1086, %1084, %1091 : vector<2x8x32xi1>, vector<2x8x32xf32>
    %1093 = arith.truncf %1092 : vector<2x8x32xf32> to vector<2x8x32xbf16>
    %1094 = vector.extract_strided_slice %1046 {offsets = [0, 0], sizes = [32, 4], strides = [1, 1]} : vector<128x4xbf16> to vector<32x4xbf16>
    "tpu.trace_start"() <{level = 10 : i32, message = "bnf,fo->bno"}> : () -> ()
    %cst_200 = arith.constant dense<0.000000e+00> : vector<2x8x4xf32>
    %1095 = tpu.matmul %1093, %1094, %cst_200 {dimension_numbers = #tpu.dot_dimension_numbers<[2], [0], [0, 1], [1], [0, 0, 0, 1, 1, 1], [], []>} : vector<2x8x32xbf16>, vector<32x4xbf16>, vector<2x8x4xf32> -> vector<2x8x4xf32>
    "tpu.trace_stop"() : () -> ()
    %1096 = arith.addf %1047, %1095 : vector<2x8x4xf32>
    %1097 = vector.extract_strided_slice %1043 {offsets = [0, 0, 32], sizes = [2, 8, 32], strides = [1, 1, 1]} : vector<2x8x128xf32> to vector<2x8x32xf32>
    %1098 = vector.extract_strided_slice %1044 {offsets = [1, 0], sizes = [1, 32], strides = [1, 1]} : vector<4x32xf32> to vector<1x32xf32>
    %1099 = vector.shape_cast %1098 : vector<1x32xf32> to vector<1x1x32xf32>
    %1100 = vector.extract_strided_slice %1045 {offsets = [1, 0], sizes = [1, 32], strides = [1, 1]} : vector<4x32xf32> to vector<1x32xf32>
    %1101 = vector.shape_cast %1100 : vector<1x32xf32> to vector<1x1x32xf32>
    %1102 = vector.broadcast %1099 : vector<1x1x32xf32> to vector<2x8x32xf32>
    %1103 = arith.mulf %1097, %1102 : vector<2x8x32xf32>
    %cst_201 = arith.constant dense<0.000000e+00> : vector<2x8xf32>
    %1104 = vector.multi_reduction <add>, %1103, %cst_201 [2] : vector<2x8x32xf32> to vector<2x8xf32>
    %1105 = vector.broadcast %1101 : vector<1x1x32xf32> to vector<2x8x32xf32>
    %1106 = arith.mulf %1097, %1105 : vector<2x8x32xf32>
    %cst_202 = arith.constant dense<0.000000e+00> : vector<2x8xf32>
    %1107 = vector.multi_reduction <add>, %1106, %cst_202 [2] : vector<2x8x32xf32> to vector<2x8xf32>
    %1108 = vector.shape_cast %1104 : vector<2x8xf32> to vector<2x8x1xf32>
    %1109 = vector.shape_cast %1107 : vector<2x8xf32> to vector<2x1x8xf32>
    %1110 = vector.broadcast %1108 : vector<2x8x1xf32> to vector<2x8x8xf32>
    %1111 = vector.broadcast %1109 : vector<2x1x8xf32> to vector<2x8x8xf32>
    %1112 = arith.addf %1110, %1111 : vector<2x8x8xf32>
    %cst_203 = arith.constant 0.000000e+00 : f32
    %1113 = vector.broadcast %cst_203 : f32 to vector<2x8x8xf32>
    %1114 = arith.cmpf ogt, %1112, %1113 : vector<2x8x8xf32>
    %cst_204 = arith.constant 2.000000e-01 : f32
    %1115 = vector.broadcast %cst_204 : f32 to vector<2x8x8xf32>
    %1116 = arith.mulf %1115, %1112 : vector<2x8x8xf32>
    %1117 = arith.select %1114, %1112, %1116 : vector<2x8x8xi1>, vector<2x8x8xf32>
    %cst_205 = arith.constant dense<0xFF800000> : vector<2x8xf32>
    %1118 = vector.multi_reduction <maximumf>, %1117, %cst_205 [2] : vector<2x8x8xf32> to vector<2x8xf32>
    %1119 = vector.shape_cast %1118 : vector<2x8xf32> to vector<2x8x1xf32>
    %1120 = vector.broadcast %1119 : vector<2x8x1xf32> to vector<2x8x8xf32>
    %1121 = arith.subf %1117, %1120 : vector<2x8x8xf32>
    %1122 = math.exp %1121 : vector<2x8x8xf32>
    %1123 = arith.mulf %1122, %1040 : vector<2x8x8xf32>
    %cst_206 = arith.constant dense<0.000000e+00> : vector<2x8xf32>
    %1124 = vector.multi_reduction <add>, %1123, %cst_206 [2] : vector<2x8x8xf32> to vector<2x8xf32>
    %cst_207 = arith.constant 9.99999971E-10 : f32
    %1125 = vector.broadcast %cst_207 : f32 to vector<2x8xf32>
    %1126 = arith.addf %1124, %1125 : vector<2x8xf32>
    %1127 = tpu.reciprocal %1126 {approx = true} : vector<2x8xf32> -> vector<2x8xf32>
    %1128 = vector.shape_cast %1127 : vector<2x8xf32> to vector<2x8x1xf32>
    %1129 = vector.broadcast %1128 : vector<2x8x1xf32> to vector<2x8x8xf32>
    %1130 = arith.mulf %1123, %1129 : vector<2x8x8xf32>
    %1131 = arith.truncf %1130 : vector<2x8x8xf32> to vector<2x8x8xbf16>
    %1132 = arith.truncf %1097 : vector<2x8x32xf32> to vector<2x8x32xbf16>
    "tpu.trace_start"() <{level = 10 : i32, message = "bnm,bmf->bnf"}> : () -> ()
    %cst_208 = arith.constant dense<0.000000e+00> : vector<2x8x32xf32>
    %1133 = tpu.matmul %1131, %1132, %cst_208 {dimension_numbers = #tpu.dot_dimension_numbers<[2], [1], [1], [2], [0, 0, 0, 1, 1, 2], [0], [0]>} : vector<2x8x8xbf16>, vector<2x8x32xbf16>, vector<2x8x32xf32> -> vector<2x8x32xf32>
    %cst_209 = arith.constant 0.000000e+00 : f32
    "tpu.trace_stop"() : () -> ()
    %1134 = vector.broadcast %cst_209 : f32 to vector<2x8x32xf32>
    %1135 = arith.cmpf ogt, %1133, %1134 : vector<2x8x32xf32>
    %cst_210 = arith.constant 0.000000e+00 : f32
    %1136 = vector.broadcast %cst_210 : f32 to vector<2x8x32xf32>
    %1137 = arith.minimumf %1133, %1136 : vector<2x8x32xf32>
    %1138 = math.exp %1137 : vector<2x8x32xf32>
    %cst_211 = arith.constant 1.000000e+00 : f32
    %1139 = vector.broadcast %cst_211 : f32 to vector<2x8x32xf32>
    %1140 = arith.subf %1138, %1139 : vector<2x8x32xf32>
    %1141 = arith.select %1135, %1133, %1140 : vector<2x8x32xi1>, vector<2x8x32xf32>
    %1142 = arith.truncf %1141 : vector<2x8x32xf32> to vector<2x8x32xbf16>
    %1143 = vector.extract_strided_slice %1046 {offsets = [32, 0], sizes = [32, 4], strides = [1, 1]} : vector<128x4xbf16> to vector<32x4xbf16>
    "tpu.trace_start"() <{level = 10 : i32, message = "bnf,fo->bno"}> : () -> ()
    %cst_212 = arith.constant dense<0.000000e+00> : vector<2x8x4xf32>
    %1144 = tpu.matmul %1142, %1143, %cst_212 {dimension_numbers = #tpu.dot_dimension_numbers<[2], [0], [0, 1], [1], [0, 0, 0, 1, 1, 1], [], []>} : vector<2x8x32xbf16>, vector<32x4xbf16>, vector<2x8x4xf32> -> vector<2x8x4xf32>
    "tpu.trace_stop"() : () -> ()
    %1145 = arith.addf %1096, %1144 : vector<2x8x4xf32>
    %1146 = vector.extract_strided_slice %1043 {offsets = [0, 0, 64], sizes = [2, 8, 32], strides = [1, 1, 1]} : vector<2x8x128xf32> to vector<2x8x32xf32>
    %1147 = vector.extract_strided_slice %1044 {offsets = [2, 0], sizes = [1, 32], strides = [1, 1]} : vector<4x32xf32> to vector<1x32xf32>
    %1148 = vector.shape_cast %1147 : vector<1x32xf32> to vector<1x1x32xf32>
    %1149 = vector.extract_strided_slice %1045 {offsets = [2, 0], sizes = [1, 32], strides = [1, 1]} : vector<4x32xf32> to vector<1x32xf32>
    %1150 = vector.shape_cast %1149 : vector<1x32xf32> to vector<1x1x32xf32>
    %1151 = vector.broadcast %1148 : vector<1x1x32xf32> to vector<2x8x32xf32>
    %1152 = arith.mulf %1146, %1151 : vector<2x8x32xf32>
    %cst_213 = arith.constant dense<0.000000e+00> : vector<2x8xf32>
    %1153 = vector.multi_reduction <add>, %1152, %cst_213 [2] : vector<2x8x32xf32> to vector<2x8xf32>
    %1154 = vector.broadcast %1150 : vector<1x1x32xf32> to vector<2x8x32xf32>
    %1155 = arith.mulf %1146, %1154 : vector<2x8x32xf32>
    %cst_214 = arith.constant dense<0.000000e+00> : vector<2x8xf32>
    %1156 = vector.multi_reduction <add>, %1155, %cst_214 [2] : vector<2x8x32xf32> to vector<2x8xf32>
    %1157 = vector.shape_cast %1153 : vector<2x8xf32> to vector<2x8x1xf32>
    %1158 = vector.shape_cast %1156 : vector<2x8xf32> to vector<2x1x8xf32>
    %1159 = vector.broadcast %1157 : vector<2x8x1xf32> to vector<2x8x8xf32>
    %1160 = vector.broadcast %1158 : vector<2x1x8xf32> to vector<2x8x8xf32>
    %1161 = arith.addf %1159, %1160 : vector<2x8x8xf32>
    %cst_215 = arith.constant 0.000000e+00 : f32
    %1162 = vector.broadcast %cst_215 : f32 to vector<2x8x8xf32>
    %1163 = arith.cmpf ogt, %1161, %1162 : vector<2x8x8xf32>
    %cst_216 = arith.constant 2.000000e-01 : f32
    %1164 = vector.broadcast %cst_216 : f32 to vector<2x8x8xf32>
    %1165 = arith.mulf %1164, %1161 : vector<2x8x8xf32>
    %1166 = arith.select %1163, %1161, %1165 : vector<2x8x8xi1>, vector<2x8x8xf32>
    %cst_217 = arith.constant dense<0xFF800000> : vector<2x8xf32>
    %1167 = vector.multi_reduction <maximumf>, %1166, %cst_217 [2] : vector<2x8x8xf32> to vector<2x8xf32>
    %1168 = vector.shape_cast %1167 : vector<2x8xf32> to vector<2x8x1xf32>
    %1169 = vector.broadcast %1168 : vector<2x8x1xf32> to vector<2x8x8xf32>
    %1170 = arith.subf %1166, %1169 : vector<2x8x8xf32>
    %1171 = math.exp %1170 : vector<2x8x8xf32>
    %1172 = arith.mulf %1171, %1040 : vector<2x8x8xf32>
    %cst_218 = arith.constant dense<0.000000e+00> : vector<2x8xf32>
    %1173 = vector.multi_reduction <add>, %1172, %cst_218 [2] : vector<2x8x8xf32> to vector<2x8xf32>
    %cst_219 = arith.constant 9.99999971E-10 : f32
    %1174 = vector.broadcast %cst_219 : f32 to vector<2x8xf32>
    %1175 = arith.addf %1173, %1174 : vector<2x8xf32>
    %1176 = tpu.reciprocal %1175 {approx = true} : vector<2x8xf32> -> vector<2x8xf32>
    %1177 = vector.shape_cast %1176 : vector<2x8xf32> to vector<2x8x1xf32>
    %1178 = vector.broadcast %1177 : vector<2x8x1xf32> to vector<2x8x8xf32>
    %1179 = arith.mulf %1172, %1178 : vector<2x8x8xf32>
    %1180 = arith.truncf %1179 : vector<2x8x8xf32> to vector<2x8x8xbf16>
    %1181 = arith.truncf %1146 : vector<2x8x32xf32> to vector<2x8x32xbf16>
    "tpu.trace_start"() <{level = 10 : i32, message = "bnm,bmf->bnf"}> : () -> ()
    %cst_220 = arith.constant dense<0.000000e+00> : vector<2x8x32xf32>
    %1182 = tpu.matmul %1180, %1181, %cst_220 {dimension_numbers = #tpu.dot_dimension_numbers<[2], [1], [1], [2], [0, 0, 0, 1, 1, 2], [0], [0]>} : vector<2x8x8xbf16>, vector<2x8x32xbf16>, vector<2x8x32xf32> -> vector<2x8x32xf32>
    %cst_221 = arith.constant 0.000000e+00 : f32
    "tpu.trace_stop"() : () -> ()
    %1183 = vector.broadcast %cst_221 : f32 to vector<2x8x32xf32>
    %1184 = arith.cmpf ogt, %1182, %1183 : vector<2x8x32xf32>
    %cst_222 = arith.constant 0.000000e+00 : f32
    %1185 = vector.broadcast %cst_222 : f32 to vector<2x8x32xf32>
    %1186 = arith.minimumf %1182, %1185 : vector<2x8x32xf32>
    %1187 = math.exp %1186 : vector<2x8x32xf32>
    %cst_223 = arith.constant 1.000000e+00 : f32
    %1188 = vector.broadcast %cst_223 : f32 to vector<2x8x32xf32>
    %1189 = arith.subf %1187, %1188 : vector<2x8x32xf32>
    %1190 = arith.select %1184, %1182, %1189 : vector<2x8x32xi1>, vector<2x8x32xf32>
    %1191 = arith.truncf %1190 : vector<2x8x32xf32> to vector<2x8x32xbf16>
    %1192 = vector.extract_strided_slice %1046 {offsets = [64, 0], sizes = [32, 4], strides = [1, 1]} : vector<128x4xbf16> to vector<32x4xbf16>
    "tpu.trace_start"() <{level = 10 : i32, message = "bnf,fo->bno"}> : () -> ()
    %cst_224 = arith.constant dense<0.000000e+00> : vector<2x8x4xf32>
    %1193 = tpu.matmul %1191, %1192, %cst_224 {dimension_numbers = #tpu.dot_dimension_numbers<[2], [0], [0, 1], [1], [0, 0, 0, 1, 1, 1], [], []>} : vector<2x8x32xbf16>, vector<32x4xbf16>, vector<2x8x4xf32> -> vector<2x8x4xf32>
    "tpu.trace_stop"() : () -> ()
    %1194 = arith.addf %1145, %1193 : vector<2x8x4xf32>
    %1195 = vector.extract_strided_slice %1043 {offsets = [0, 0, 96], sizes = [2, 8, 32], strides = [1, 1, 1]} : vector<2x8x128xf32> to vector<2x8x32xf32>
    %1196 = vector.extract_strided_slice %1044 {offsets = [3, 0], sizes = [1, 32], strides = [1, 1]} : vector<4x32xf32> to vector<1x32xf32>
    %1197 = vector.shape_cast %1196 : vector<1x32xf32> to vector<1x1x32xf32>
    %1198 = vector.extract_strided_slice %1045 {offsets = [3, 0], sizes = [1, 32], strides = [1, 1]} : vector<4x32xf32> to vector<1x32xf32>
    %1199 = vector.shape_cast %1198 : vector<1x32xf32> to vector<1x1x32xf32>
    %1200 = vector.broadcast %1197 : vector<1x1x32xf32> to vector<2x8x32xf32>
    %1201 = arith.mulf %1195, %1200 : vector<2x8x32xf32>
    %cst_225 = arith.constant dense<0.000000e+00> : vector<2x8xf32>
    %1202 = vector.multi_reduction <add>, %1201, %cst_225 [2] : vector<2x8x32xf32> to vector<2x8xf32>
    %1203 = vector.broadcast %1199 : vector<1x1x32xf32> to vector<2x8x32xf32>
    %1204 = arith.mulf %1195, %1203 : vector<2x8x32xf32>
    %cst_226 = arith.constant dense<0.000000e+00> : vector<2x8xf32>
    %1205 = vector.multi_reduction <add>, %1204, %cst_226 [2] : vector<2x8x32xf32> to vector<2x8xf32>
    %1206 = vector.shape_cast %1202 : vector<2x8xf32> to vector<2x8x1xf32>
    %1207 = vector.shape_cast %1205 : vector<2x8xf32> to vector<2x1x8xf32>
    %1208 = vector.broadcast %1206 : vector<2x8x1xf32> to vector<2x8x8xf32>
    %1209 = vector.broadcast %1207 : vector<2x1x8xf32> to vector<2x8x8xf32>
    %1210 = arith.addf %1208, %1209 : vector<2x8x8xf32>
    %cst_227 = arith.constant 0.000000e+00 : f32
    %1211 = vector.broadcast %cst_227 : f32 to vector<2x8x8xf32>
    %1212 = arith.cmpf ogt, %1210, %1211 : vector<2x8x8xf32>
    %cst_228 = arith.constant 2.000000e-01 : f32
    %1213 = vector.broadcast %cst_228 : f32 to vector<2x8x8xf32>
    %1214 = arith.mulf %1213, %1210 : vector<2x8x8xf32>
    %1215 = arith.select %1212, %1210, %1214 : vector<2x8x8xi1>, vector<2x8x8xf32>
    %cst_229 = arith.constant dense<0xFF800000> : vector<2x8xf32>
    %1216 = vector.multi_reduction <maximumf>, %1215, %cst_229 [2] : vector<2x8x8xf32> to vector<2x8xf32>
    %1217 = vector.shape_cast %1216 : vector<2x8xf32> to vector<2x8x1xf32>
    %1218 = vector.broadcast %1217 : vector<2x8x1xf32> to vector<2x8x8xf32>
    %1219 = arith.subf %1215, %1218 : vector<2x8x8xf32>
    %1220 = math.exp %1219 : vector<2x8x8xf32>
    %1221 = arith.mulf %1220, %1040 : vector<2x8x8xf32>
    %cst_230 = arith.constant dense<0.000000e+00> : vector<2x8xf32>
    %1222 = vector.multi_reduction <add>, %1221, %cst_230 [2] : vector<2x8x8xf32> to vector<2x8xf32>
    %cst_231 = arith.constant 9.99999971E-10 : f32
    %1223 = vector.broadcast %cst_231 : f32 to vector<2x8xf32>
    %1224 = arith.addf %1222, %1223 : vector<2x8xf32>
    %1225 = tpu.reciprocal %1224 {approx = true} : vector<2x8xf32> -> vector<2x8xf32>
    %1226 = vector.shape_cast %1225 : vector<2x8xf32> to vector<2x8x1xf32>
    %1227 = vector.broadcast %1226 : vector<2x8x1xf32> to vector<2x8x8xf32>
    %1228 = arith.mulf %1221, %1227 : vector<2x8x8xf32>
    %1229 = arith.truncf %1228 : vector<2x8x8xf32> to vector<2x8x8xbf16>
    %1230 = arith.truncf %1195 : vector<2x8x32xf32> to vector<2x8x32xbf16>
    "tpu.trace_start"() <{level = 10 : i32, message = "bnm,bmf->bnf"}> : () -> ()
    %cst_232 = arith.constant dense<0.000000e+00> : vector<2x8x32xf32>
    %1231 = tpu.matmul %1229, %1230, %cst_232 {dimension_numbers = #tpu.dot_dimension_numbers<[2], [1], [1], [2], [0, 0, 0, 1, 1, 2], [0], [0]>} : vector<2x8x8xbf16>, vector<2x8x32xbf16>, vector<2x8x32xf32> -> vector<2x8x32xf32>
    %cst_233 = arith.constant 0.000000e+00 : f32
    "tpu.trace_stop"() : () -> ()
    %1232 = vector.broadcast %cst_233 : f32 to vector<2x8x32xf32>
    %1233 = arith.cmpf ogt, %1231, %1232 : vector<2x8x32xf32>
    %cst_234 = arith.constant 0.000000e+00 : f32
    %1234 = vector.broadcast %cst_234 : f32 to vector<2x8x32xf32>
    %1235 = arith.minimumf %1231, %1234 : vector<2x8x32xf32>
    %1236 = math.exp %1235 : vector<2x8x32xf32>
    %cst_235 = arith.constant 1.000000e+00 : f32
    %1237 = vector.broadcast %cst_235 : f32 to vector<2x8x32xf32>
    %1238 = arith.subf %1236, %1237 : vector<2x8x32xf32>
    %1239 = arith.select %1233, %1231, %1238 : vector<2x8x32xi1>, vector<2x8x32xf32>
    %1240 = arith.truncf %1239 : vector<2x8x32xf32> to vector<2x8x32xbf16>
    %1241 = vector.extract_strided_slice %1046 {offsets = [96, 0], sizes = [32, 4], strides = [1, 1]} : vector<128x4xbf16> to vector<32x4xbf16>
    "tpu.trace_start"() <{level = 10 : i32, message = "bnf,fo->bno"}> : () -> ()
    %cst_236 = arith.constant dense<0.000000e+00> : vector<2x8x4xf32>
    %1242 = tpu.matmul %1240, %1241, %cst_236 {dimension_numbers = #tpu.dot_dimension_numbers<[2], [0], [0, 1], [1], [0, 0, 0, 1, 1, 1], [], []>} : vector<2x8x32xbf16>, vector<32x4xbf16>, vector<2x8x4xf32> -> vector<2x8x4xf32>
    "tpu.trace_stop"() : () -> ()
    %1243 = arith.addf %1194, %1242 : vector<2x8x4xf32>
    %cst_237 = arith.constant dense<0.000000e+00> : vector<2x4xf32>
    %1244 = vector.multi_reduction <add>, %1243, %cst_237 [1] : vector<2x8x4xf32> to vector<2x4xf32>
    %cst_238 = arith.constant 8.000000e+00 : f32
    %1245 = vector.broadcast %cst_238 : f32 to vector<2x4xf32>
    %1246 = arith.divf %1244, %1245 : vector<2x4xf32>
    %c0_239 = arith.constant 0 : index
    %c0_240 = arith.constant 0 : index
    %1247 = vector.load %arg16[%c0_239, %c0_240] : memref<1x4xf32, #tpu.memory_space<vmem>>, vector<1x4xf32>
    %1248 = vector.broadcast %1247 : vector<1x4xf32> to vector<2x4xf32>
    %1249 = arith.addf %1246, %1248 : vector<2x4xf32>
    %cst_241 = arith.constant dense<0.000000e+00> : vector<2xf32>
    %1250 = vector.multi_reduction <add>, %1249, %cst_241 [1] : vector<2x4xf32> to vector<2xf32>
    %1251 = vector.shape_cast %1250 : vector<2xf32> to vector<2x1xf32>
    %cst_242 = arith.constant 4.000000e+00 : f32
    %1252 = vector.broadcast %cst_242 : f32 to vector<2x1xf32>
    %1253 = arith.divf %1251, %1252 : vector<2x1xf32>
    %c0_243 = arith.constant 0 : index
    %c0_244 = arith.constant 0 : index
    %1254 = vector.load %arg18[%c0_243, %c0_244] : memref<1x64xf32, #tpu.memory_space<vmem>>, vector<1x64xf32>
    %1255 = arith.truncf %1013 : vector<2x8x128xf32> to vector<2x8x128xbf16>
    %c0_245 = arith.constant 0 : index
    %c0_246 = arith.constant 0 : index
    %c0_247 = arith.constant 0 : index
    %1256 = vector.load %arg17[%c0_245, %c0_246, %c0_247] : memref<3x128x64xbf16, #tpu.memory_space<vmem>>, vector<1x128x64xbf16>
    %1257 = vector.shape_cast %1256 : vector<1x128x64xbf16> to vector<128x64xbf16>
    "tpu.trace_start"() <{level = 10 : i32, message = "blc,cf->blf"}> : () -> ()
    %cst_248 = arith.constant dense<0.000000e+00> : vector<2x8x64xf32>
    %1258 = tpu.matmul %1255, %1257, %cst_248 {dimension_numbers = #tpu.dot_dimension_numbers<[2], [0], [0, 1], [1], [0, 0, 0, 1, 1, 1], [], []>} : vector<2x8x128xbf16>, vector<128x64xbf16>, vector<2x8x64xf32> -> vector<2x8x64xf32>
    "tpu.trace_stop"() : () -> ()
    %c1 = arith.constant 1 : index
    %c0_249 = arith.constant 0 : index
    %c0_250 = arith.constant 0 : index
    %1259 = vector.load %arg17[%c1, %c0_249, %c0_250] : memref<3x128x64xbf16, #tpu.memory_space<vmem>>, vector<1x128x64xbf16>
    %1260 = vector.shape_cast %1259 : vector<1x128x64xbf16> to vector<128x64xbf16>
    "tpu.trace_start"() <{level = 10 : i32, message = "blc,cf->blf"}> : () -> ()
    %cst_251 = arith.constant dense<0.000000e+00> : vector<2x8x64xf32>
    %1261 = tpu.matmul %1255, %1260, %cst_251 {dimension_numbers = #tpu.dot_dimension_numbers<[2], [0], [0, 1], [1], [0, 0, 0, 1, 1, 1], [], []>} : vector<2x8x128xbf16>, vector<128x64xbf16>, vector<2x8x64xf32> -> vector<2x8x64xf32>
    "tpu.trace_stop"() : () -> ()
    %c2 = arith.constant 2 : index
    %c0_252 = arith.constant 0 : index
    %c0_253 = arith.constant 0 : index
    %1262 = vector.load %arg17[%c2, %c0_252, %c0_253] : memref<3x128x64xbf16, #tpu.memory_space<vmem>>, vector<1x128x64xbf16>
    %1263 = vector.shape_cast %1262 : vector<1x128x64xbf16> to vector<128x64xbf16>
    "tpu.trace_start"() <{level = 10 : i32, message = "blc,cf->blf"}> : () -> ()
    %cst_254 = arith.constant dense<0.000000e+00> : vector<2x8x64xf32>
    %1264 = tpu.matmul %1255, %1263, %cst_254 {dimension_numbers = #tpu.dot_dimension_numbers<[2], [0], [0, 1], [1], [0, 0, 0, 1, 1, 1], [], []>} : vector<2x8x128xbf16>, vector<128x64xbf16>, vector<2x8x64xf32> -> vector<2x8x64xf32>
    %cst_255 = arith.constant 0.000000e+00 : f32
    "tpu.trace_stop"() : () -> ()
    %1265 = vector.broadcast %cst_255 : f32 to vector<2x1x64xf32>
    %1266 = vector.extract_strided_slice %1258 {offsets = [0, 0, 0], sizes = [2, 7, 64], strides = [1, 1, 1]} : vector<2x8x64xf32> to vector<2x7x64xf32>
    %1267 = tpu.concatenate %1265, %1266 in 1 : vector<2x1x64xf32>, vector<2x7x64xf32> -> vector<2x8x64xf32>
    %1268 = arith.addf %1267, %1261 : vector<2x8x64xf32>
    %1269 = vector.extract_strided_slice %1264 {offsets = [0, 1, 0], sizes = [2, 7, 64], strides = [1, 1, 1]} : vector<2x8x64xf32> to vector<2x7x64xf32>
    %1270 = tpu.concatenate %1269, %1265 in 1 : vector<2x7x64xf32>, vector<2x1x64xf32> -> vector<2x8x64xf32>
    %1271 = arith.addf %1268, %1270 : vector<2x8x64xf32>
    %1272 = vector.shape_cast %1254 : vector<1x64xf32> to vector<1x1x64xf32>
    %1273 = vector.broadcast %1272 : vector<1x1x64xf32> to vector<2x8x64xf32>
    %1274 = arith.addf %1271, %1273 : vector<2x8x64xf32>
    %cst_256 = arith.constant 0.000000e+00 : f32
    %1275 = vector.broadcast %cst_256 : f32 to vector<2x8x64xf32>
    %1276 = arith.maximumf %1274, %1275 : vector<2x8x64xf32>
    %c0_257 = arith.constant 0 : index
    %c0_258 = arith.constant 0 : index
    %1277 = vector.load %arg20[%c0_257, %c0_258] : memref<1x64xf32, #tpu.memory_space<vmem>>, vector<1x64xf32>
    %1278 = arith.truncf %1276 : vector<2x8x64xf32> to vector<2x8x64xbf16>
    %c0_259 = arith.constant 0 : index
    %c0_260 = arith.constant 0 : index
    %c0_261 = arith.constant 0 : index
    %1279 = vector.load %arg19[%c0_259, %c0_260, %c0_261] : memref<3x64x64xbf16, #tpu.memory_space<vmem>>, vector<1x64x64xbf16>
    %1280 = vector.shape_cast %1279 : vector<1x64x64xbf16> to vector<64x64xbf16>
    "tpu.trace_start"() <{level = 10 : i32, message = "blc,cf->blf"}> : () -> ()
    %cst_262 = arith.constant dense<0.000000e+00> : vector<2x8x64xf32>
    %1281 = tpu.matmul %1278, %1280, %cst_262 {dimension_numbers = #tpu.dot_dimension_numbers<[2], [0], [0, 1], [1], [0, 0, 0, 1, 1, 1], [], []>} : vector<2x8x64xbf16>, vector<64x64xbf16>, vector<2x8x64xf32> -> vector<2x8x64xf32>
    "tpu.trace_stop"() : () -> ()
    %c1_263 = arith.constant 1 : index
    %c0_264 = arith.constant 0 : index
    %c0_265 = arith.constant 0 : index
    %1282 = vector.load %arg19[%c1_263, %c0_264, %c0_265] : memref<3x64x64xbf16, #tpu.memory_space<vmem>>, vector<1x64x64xbf16>
    %1283 = vector.shape_cast %1282 : vector<1x64x64xbf16> to vector<64x64xbf16>
    "tpu.trace_start"() <{level = 10 : i32, message = "blc,cf->blf"}> : () -> ()
    %cst_266 = arith.constant dense<0.000000e+00> : vector<2x8x64xf32>
    %1284 = tpu.matmul %1278, %1283, %cst_266 {dimension_numbers = #tpu.dot_dimension_numbers<[2], [0], [0, 1], [1], [0, 0, 0, 1, 1, 1], [], []>} : vector<2x8x64xbf16>, vector<64x64xbf16>, vector<2x8x64xf32> -> vector<2x8x64xf32>
    "tpu.trace_stop"() : () -> ()
    %c2_267 = arith.constant 2 : index
    %c0_268 = arith.constant 0 : index
    %c0_269 = arith.constant 0 : index
    %1285 = vector.load %arg19[%c2_267, %c0_268, %c0_269] : memref<3x64x64xbf16, #tpu.memory_space<vmem>>, vector<1x64x64xbf16>
    %1286 = vector.shape_cast %1285 : vector<1x64x64xbf16> to vector<64x64xbf16>
    "tpu.trace_start"() <{level = 10 : i32, message = "blc,cf->blf"}> : () -> ()
    %cst_270 = arith.constant dense<0.000000e+00> : vector<2x8x64xf32>
    %1287 = tpu.matmul %1278, %1286, %cst_270 {dimension_numbers = #tpu.dot_dimension_numbers<[2], [0], [0, 1], [1], [0, 0, 0, 1, 1, 1], [], []>} : vector<2x8x64xbf16>, vector<64x64xbf16>, vector<2x8x64xf32> -> vector<2x8x64xf32>
    %cst_271 = arith.constant 0.000000e+00 : f32
    "tpu.trace_stop"() : () -> ()
    %1288 = vector.broadcast %cst_271 : f32 to vector<2x1x64xf32>
    %1289 = vector.extract_strided_slice %1281 {offsets = [0, 0, 0], sizes = [2, 7, 64], strides = [1, 1, 1]} : vector<2x8x64xf32> to vector<2x7x64xf32>
    %1290 = tpu.concatenate %1288, %1289 in 1 : vector<2x1x64xf32>, vector<2x7x64xf32> -> vector<2x8x64xf32>
    %1291 = arith.addf %1290, %1284 : vector<2x8x64xf32>
    %1292 = vector.extract_strided_slice %1287 {offsets = [0, 1, 0], sizes = [2, 7, 64], strides = [1, 1, 1]} : vector<2x8x64xf32> to vector<2x7x64xf32>
    %1293 = tpu.concatenate %1292, %1288 in 1 : vector<2x7x64xf32>, vector<2x1x64xf32> -> vector<2x8x64xf32>
    %1294 = arith.addf %1291, %1293 : vector<2x8x64xf32>
    %1295 = vector.shape_cast %1277 : vector<1x64xf32> to vector<1x1x64xf32>
    %1296 = vector.broadcast %1295 : vector<1x1x64xf32> to vector<2x8x64xf32>
    %1297 = arith.addf %1294, %1296 : vector<2x8x64xf32>
    %cst_272 = arith.constant 0.000000e+00 : f32
    %1298 = vector.broadcast %cst_272 : f32 to vector<2x8x64xf32>
    %1299 = arith.maximumf %1297, %1298 : vector<2x8x64xf32>
    %cst_273 = arith.constant dense<0.000000e+00> : vector<2x64xf32>
    %1300 = vector.multi_reduction <add>, %1299, %cst_273 [1] : vector<2x8x64xf32> to vector<2x64xf32>
    %cst_274 = arith.constant 8.000000e+00 : f32
    %1301 = vector.broadcast %cst_274 : f32 to vector<2x64xf32>
    %1302 = arith.divf %1300, %1301 : vector<2x64xf32>
    %1303 = arith.truncf %1302 : vector<2x64xf32> to vector<2x64xbf16>
    %c0_275 = arith.constant 0 : index
    %c0_276 = arith.constant 0 : index
    %1304 = vector.load %arg21[%c0_275, %c0_276] : memref<64x4xbf16, #tpu.memory_space<vmem>>, vector<64x4xbf16>
    %cst_277 = arith.constant dense<0.000000e+00> : vector<2x4xf32>
    %1305 = tpu.matmul %1303, %1304, %cst_277 {dimension_numbers = #tpu.dot_dimension_numbers<[1], [0], [0], [1], [0, 0, 1, 1], [], []>} : vector<2x64xbf16>, vector<64x4xbf16>, vector<2x4xf32> -> vector<2x4xf32>
    %c0_278 = arith.constant 0 : index
    %c0_279 = arith.constant 0 : index
    %1306 = vector.load %arg22[%c0_278, %c0_279] : memref<1x4xf32, #tpu.memory_space<vmem>>, vector<1x4xf32>
    %1307 = vector.broadcast %1253 : vector<2x1xf32> to vector<2x4xf32>
    %1308 = vector.broadcast %1306 : vector<1x4xf32> to vector<2x4xf32>
    %1309 = arith.mulf %1307, %1308 : vector<2x4xf32>
    %1310 = arith.addf %1305, %1309 : vector<2x4xf32>
    %c0_280 = arith.constant 0 : index
    %c0_281 = arith.constant 0 : index
    %1311 = vector.load %arg23[%c0_280, %c0_281] : memref<1x4xf32, #tpu.memory_space<vmem>>, vector<1x4xf32>
    %1312 = vector.broadcast %1311 : vector<1x4xf32> to vector<2x4xf32>
    %1313 = arith.addf %1310, %1312 : vector<2x4xf32>
    %c0_282 = arith.constant 0 : index
    %c0_283 = arith.constant 0 : index
    %1314 = vector.load %arg24[%c0_282, %c0_283] : memref<2x4xf32, #tpu.memory_space<vmem>>, vector<2x4xf32>
    tpu.vector_store %arg24[%c0_282, %c0_283], %1313 {strides = array<i32>} : memref<2x4xf32, #tpu.memory_space<vmem>>, vector<2x4xf32>,
    return
  }
  func.func @transform_0(%arg0: i32) -> (i32, i32, i32) {
    %c0_i32 = arith.constant 0 : i32
    %c0_i32_0 = arith.constant 0 : i32
    %c0_i32_1 = arith.constant 0 : i32
    %c0_i32_2 = arith.constant 0 : i32
    return %c0_i32, %c0_i32_0, %c0_i32_1 : i32, i32, i32
  }
  func.func @transform_1(%arg0: i32) -> (i32, i32, i32) {
    %c0_i32 = arith.constant 0 : i32
    %c0_i32_0 = arith.constant 0 : i32
    %c0_i32_1 = arith.constant 0 : i32
    %c0_i32_2 = arith.constant 0 : i32
    return %c0_i32, %c0_i32_0, %c0_i32_1 : i32, i32, i32
  }
  func.func @transform_2(%arg0: i32) -> (i32, i32) {
    %c0_i32 = arith.constant 0 : i32
    %c0_i32_0 = arith.constant 0 : i32
    %c0_i32_1 = arith.constant 0 : i32
    return %c0_i32, %c0_i32_0 : i32, i32
  }
  func.func @transform_3(%arg0: i32) -> (i32, i32) {
    %c0_i32 = arith.constant 0 : i32
    %c0_i32_0 = arith.constant 0 : i32
    %c0_i32_1 = arith.constant 0 : i32
    return %c0_i32, %c0_i32_0 : i32, i32
  }
  func.func @transform_4(%arg0: i32) -> (i32, i32) {
    %c0_i32 = arith.constant 0 : i32
    %c0_i32_0 = arith.constant 0 : i32
    %c0_i32_1 = arith.constant 0 : i32
    return %c0_i32, %c0_i32_0 : i32, i32
  }
  func.func @transform_5(%arg0: i32) -> (i32, i32) {
    %c0_i32 = arith.constant 0 : i32
    %c0_i32_0 = arith.constant 0 : i32
    %c0_i32_1 = arith.constant 0 : i32
    return %c0_i32, %c0_i32_0 : i32, i32
  }
  func.func @transform_6(%arg0: i32) -> (i32, i32) {
    %c0_i32 = arith.constant 0 : i32
    %c0_i32_0 = arith.constant 0 : i32
    %c0_i32_1 = arith.constant 0 : i32
    return %c0_i32, %c0_i32_0 : i32, i32
  }
  func.func @transform_7(%arg0: i32) -> (i32, i32) {
    %c0_i32 = arith.constant 0 : i32
    %c0_i32_0 = arith.constant 0 : i32
    %c0_i32_1 = arith.constant 0 : i32
    return %c0_i32, %c0_i32_0 : i32, i32
  }
  func.func @transform_8(%arg0: i32) -> (i32, i32) {
    %c0_i32 = arith.constant 0 : i32
    %c0_i32_0 = arith.constant 0 : i32
    %c0_i32_1 = arith.constant 0 : i32
    return %c0_i32, %c0_i32_0 : i32, i32
  }
  func.func @transform_9(%arg0: i32) -> (i32, i32) {
    %c0_i32 = arith.constant 0 : i32
    %c0_i32_0 = arith.constant 0 : i32
    %c0_i32_1 = arith.constant 0 : i32
    return %c0_i32, %c0_i32_0 : i32, i32
  }
  func.func @transform_10(%arg0: i32) -> (i32, i32) {
    %c0_i32 = arith.constant 0 : i32
    %c0_i32_0 = arith.constant 0 : i32
    %c0_i32_1 = arith.constant 0 : i32
    return %c0_i32, %c0_i32_0 : i32, i32
  }
  func.func @transform_11(%arg0: i32) -> (i32, i32) {
    %c0_i32 = arith.constant 0 : i32
    %c0_i32_0 = arith.constant 0 : i32
    %c0_i32_1 = arith.constant 0 : i32
    return %c0_i32, %c0_i32_0 : i32, i32
  }
  func.func @transform_12(%arg0: i32) -> (i32, i32) {
    %c0_i32 = arith.constant 0 : i32
    %c0_i32_0 = arith.constant 0 : i32
    %c0_i32_1 = arith.constant 0 : i32
    return %c0_i32, %c0_i32_0 : i32, i32
  }
  func.func @transform_13(%arg0: i32) -> (i32, i32) {
    %c0_i32 = arith.constant 0 : i32
    %c0_i32_0 = arith.constant 0 : i32
    %c0_i32_1 = arith.constant 0 : i32
    return %c0_i32, %c0_i32_0 : i32, i32
  }
  func.func @transform_14(%arg0: i32) -> (i32, i32) {
    %c0_i32 = arith.constant 0 : i32
    %c0_i32_0 = arith.constant 0 : i32
    %c0_i32_1 = arith.constant 0 : i32
    return %c0_i32, %c0_i32_0 : i32, i32
  }
  func.func @transform_15(%arg0: i32) -> (i32, i32) {
    %c0_i32 = arith.constant 0 : i32
    %c0_i32_0 = arith.constant 0 : i32
    %c0_i32_1 = arith.constant 0 : i32
    return %c0_i32, %c0_i32_0 : i32, i32
  }
  func.func @transform_16(%arg0: i32) -> (i32, i32, i32) {
    %c0_i32 = arith.constant 0 : i32
    %c0_i32_0 = arith.constant 0 : i32
    %c0_i32_1 = arith.constant 0 : i32
    %c0_i32_2 = arith.constant 0 : i32
    return %c0_i32, %c0_i32_0, %c0_i32_1 : i32, i32, i32
  }
  func.func @transform_17(%arg0: i32) -> (i32, i32) {
    %c0_i32 = arith.constant 0 : i32
    %c0_i32_0 = arith.constant 0 : i32
    %c0_i32_1 = arith.constant 0 : i32
    return %c0_i32, %c0_i32_0 : i32, i32
  }
  func.func @transform_18(%arg0: i32) -> (i32, i32, i32) {
    %c0_i32 = arith.constant 0 : i32
    %c0_i32_0 = arith.constant 0 : i32
    %c0_i32_1 = arith.constant 0 : i32
    %c0_i32_2 = arith.constant 0 : i32
    return %c0_i32, %c0_i32_0, %c0_i32_1 : i32, i32, i32
  }
  func.func @transform_19(%arg0: i32) -> (i32, i32) {
    %c0_i32 = arith.constant 0 : i32
    %c0_i32_0 = arith.constant 0 : i32
    %c0_i32_1 = arith.constant 0 : i32
    return %c0_i32, %c0_i32_0 : i32, i32
  }
  func.func @transform_20(%arg0: i32) -> (i32, i32) {
    %c0_i32 = arith.constant 0 : i32
    %c0_i32_0 = arith.constant 0 : i32
    %c0_i32_1 = arith.constant 0 : i32
    return %c0_i32, %c0_i32_0 : i32, i32
  }
  func.func @transform_21(%arg0: i32) -> (i32, i32) {
    %c0_i32 = arith.constant 0 : i32
    %c0_i32_0 = arith.constant 0 : i32
    %c0_i32_1 = arith.constant 0 : i32
    return %c0_i32, %c0_i32_0 : i32, i32
  }
  func.func @transform_22(%arg0: i32) -> (i32, i32) {
    %c0_i32 = arith.constant 0 : i32
    %c0_i32_0 = arith.constant 0 : i32
    %c0_i32_1 = arith.constant 0 : i32
    return %c0_i32, %c0_i32_0 : i32, i32
  }
  func.func @transform_23(%arg0: i32) -> (i32, i32) {
    %c0_i32 = arith.constant 0 : i32
    %c0_i32_0 = arith.constant 0 : i32
    %c0_i32_1 = arith.constant 0 : i32
    return %c0_i32, %c0_i32_0 : i32, i32
  }
}

</mosaic_0001>

<llo_original>
// kernel: ggn_forward.1
$region0: #{ggn_forward.1}
  #allocation0 [shape = 'u32[]', space=smem, size = 0x4, offset = 0x4, fixed_abs, tag = 'smem constant byte address 0x4 - core index']
  #allocation1 [shape = 'u32[144,128]{1,0:T(1,128)}', space=vmem, size = 0x12000, scoped, tag = 'internal scratch']
  %s0 = inlined_call_operand.vmem [shape: f32[2,16,128], index: 0, kind: input, shape index: {}]
  %s1 = inlined_call_operand.hbm [shape: f32[2,8,8], index: 1, kind: input, shape index: {}]
  %s2 = inlined_call_operand.vmem [shape: bf16[128,512], index: 2, kind: input, shape index: {}]
  %s3 = inlined_call_operand.hbm [shape: bf16[128,512], index: 3, kind: input, shape index: {}]
  %s4 = inlined_call_operand.hbm [shape: f32[1,512], index: 4, kind: input, shape index: {}]
  %s5 = inlined_call_operand.hbm [shape: bf16[128,512], index: 5, kind: input, shape index: {}]
  %s6 = inlined_call_operand.hbm [shape: bf16[128,512], index: 6, kind: input, shape index: {}]
  %s7 = inlined_call_operand.hbm [shape: f32[1,512], index: 7, kind: input, shape index: {}]
  %s8 = inlined_call_operand.vmem [shape: bf16[8,128], index: 8, kind: input, shape index: {}]
  %s9 = inlined_call_operand.vmem [shape: f32[1,128], index: 9, kind: input, shape index: {}]
  %s10 = inlined_call_operand.vmem [shape: bf16[128,128], index: 10, kind: input, shape index: {}]
  %s11 = inlined_call_operand.vmem [shape: bf16[128,128], index: 11, kind: input, shape index: {}]
  %s12 = inlined_call_operand.hbm [shape: f32[4,32], index: 12, kind: input, shape index: {}]
  %s13 = inlined_call_operand.hbm [shape: f32[4,32], index: 13, kind: input, shape index: {}]
  %s14 = inlined_call_operand.vmem [shape: bf16[128,4], index: 14, kind: input, shape index: {}]
  %s15 = inlined_call_operand.hbm [shape: f32[1,4], index: 15, kind: input, shape index: {}]
  %s16 = inlined_call_operand.vmem [shape: bf16[3,128,64], index: 16, kind: input, shape index: {}]
  %s17 = inlined_call_operand.hbm [shape: f32[1,64], index: 17, kind: input, shape index: {}]
  %s18 = inlined_call_operand.vmem [shape: bf16[3,64,64], index: 18, kind: input, shape index: {}]
  %s19 = inlined_call_operand.hbm [shape: f32[1,64], index: 19, kind: input, shape index: {}]
  %s20 = inlined_call_operand.vmem [shape: bf16[64,4], index: 20, kind: input, shape index: {}]
  %s21 = inlined_call_operand.hbm [shape: f32[1,4], index: 21, kind: input, shape index: {}]
  %s22 = inlined_call_operand.hbm [shape: f32[1,4], index: 22, kind: input, shape index: {}]
  %s23 = inlined_call_operand.hbm [shape: f32[2,4], index: 23, kind: output, shape index: {}]
  %s24 = sld [smem:[#allocation0]]
  $region154: #{ggn_forward.1} parent=0
    _
  %s26 = ssub.s32 1, %s24
  %s27 = scalar_select 0, %s26, %s24
  $region1: #{ggn_forward.1} parent=0
    #allocation2 [shape = 'u8[8192]{0}', space=vmem, size = 0x2000, scoped, tag = 'input window, operand 1, single buffered']
    #allocation3 [shape = 's32[1]{0}', space=sflag, size = 0x4, scoped, tag = 'scoped memory for ggn_forward.1']
    #allocation4 [shape = 's32[1]{0}', space=sflag, size = 0x4, scoped, tag = 'scoped memory for ggn_forward.1']
    #allocation5 [shape = 'u8[131072]{0}', space=vmem, size = 0x20000, scoped, tag = 'input window, operand 3, single buffered']
    #allocation6 [shape = 's32[1]{0}', space=sflag, size = 0x4, scoped, tag = 'scoped memory for ggn_forward.1']
    #allocation7 [shape = 'u8[2048]{0}', space=vmem, size = 0x800, scoped, tag = 'input window, operand 4, single buffered']
    #allocation8 [shape = 'u8[131072]{0}', space=vmem, size = 0x20000, scoped, tag = 'input window, operand 5, single buffered']
    #allocation9 [shape = 's32[1]{0}', space=sflag, size = 0x4, scoped, tag = 'scoped memory for ggn_forward.1']
    #allocation10 [shape = 'u8[131072]{0}', space=vmem, size = 0x20000, scoped, tag = 'input window, operand 6, single buffered']
    #allocation11 [shape = 'u8[2048]{0}', space=vmem, size = 0x800, scoped, tag = 'input window, operand 7, single buffered']
    #allocation12 [shape = 's32[1]{0}', space=sflag, size = 0x4, scoped, tag = 'scoped memory for ggn_forward.1']
    #allocation13 [shape = 'u8[2048]{0}', space=vmem, size = 0x800, scoped, tag = 'input window, operand 12, single buffered']
    #allocation14 [shape = 'u8[2048]{0}', space=vmem, size = 0x800, scoped, tag = 'input window, operand 13, single buffered']
    #allocation15 [shape = 's32[1]{0}', space=sflag, size = 0x4, scoped, tag = 'scoped memory for ggn_forward.1']
    #allocation16 [shape = 'u8[512]{0}', space=vmem, size = 0x400, scoped, tag = 'input window, operand 15, single buffered']
    #allocation17 [shape = 'u8[512]{0}', space=vmem, size = 0x400, scoped, tag = 'input window, operand 17, single buffered']
    #allocation18 [shape = 's32[1]{0}', space=sflag, size = 0x4, scoped, tag = 'scoped memory for ggn_forward.1']
    #allocation19 [shape = 'u8[512]{0}', space=vmem, size = 0x400, scoped, tag = 'input window, operand 19, single buffered']
    #allocation20 [shape = 'u8[512]{0}', space=vmem, size = 0x400, scoped, tag = 'input window, operand 21, single buffered']
    #allocation21 [shape = 's32[1]{0}', space=sflag, size = 0x4, scoped, tag = 'scoped memory for ggn_forward.1']
    #allocation22 [shape = 'u8[512]{0}', space=vmem, size = 0x400, scoped, tag = 'input window, operand 22, single buffered']
    #allocation23 [shape = 'u8[1024]{0}', space=vmem, size = 0x400, scoped, tag = 'output window, operand 0, single buffered']
    %28 = vsyncpa [#allocation3], 0
    %29 = vsyncpa [#allocation6], 0
    %30 = vsyncpa [#allocation9], 0
    %31 = vsyncpa [#allocation12], 0
    %32 = vsyncpa [#allocation15], 0
    %33 = vsyncpa [#allocation18], 0
    %34 = vsyncpa [#allocation21], 0
    %35 = vsyncpa [#allocation4], 0
    // Predicated region
    $region2: #{ggn_forward.1} parent=1 // pred_check
      _
    $region3: #{ggn_forward.1} parent=1 // pred_check_branch
      %37 = sbr.rel (0) target = $region5
    $region4: #{ggn_forward.1} parent=1 // pred_region
      _
    $region5: #{ggn_forward.1} parent=1 // pred_fallthru
      _
    // Predicated region
    $region6: #{ggn_forward.1} parent=1 // pred_check
      _
    $region7: #{ggn_forward.1} parent=1 // pred_check_branch
      %39 = sbr.rel (0) target = $region9
    $region8: #{ggn_forward.1} parent=1 // pred_region
      %s41 = ssub.s32 256, 256
      %42 = vsyncadd [#allocation3], %s41
      %s43 = sshll.u32 [#allocation2], 4
      %s44 = int_to_ptr.vmem [resolvable:$true] %s43
      %49 = dma.hbm_to_vmem [thread:$0]  %s1, 256, %s44, [#allocation3], 128, 128, 8
    $region9: #{ggn_forward.1} parent=1 // pred_fallthru
      _
    // Predicated region
    $region10: #{ggn_forward.1} parent=1 // pred_check
      _
    $region11: #{ggn_forward.1} parent=1 // pred_check_branch
      %51 = sbr.rel (0) target = $region13
    $region12: #{ggn_forward.1} parent=1 // pred_region
      _
    $region13: #{ggn_forward.1} parent=1 // pred_fallthru
      _
    // Predicated region
    $region14: #{ggn_forward.1} parent=1 // pred_check
      _
    $region15: #{ggn_forward.1} parent=1 // pred_check_branch
      %53 = sbr.rel (0) target = $region17
    $region16: #{ggn_forward.1} parent=1 // pred_region
      %s55 = ssub.s32 4096, 4096
      %56 = vsyncadd [#allocation6], %s55
      %s57 = sshll.u32 [#allocation5], 4
      %s58 = int_to_ptr.vmem [resolvable:$true] %s57
      %63 = dma.hbm_to_vmem [thread:$0]  %s3, 4096, %s58, [#allocation6], 256, 256, 16
    $region17: #{ggn_forward.1} parent=1 // pred_fallthru
      _
    // Predicated region
    $region18: #{ggn_forward.1} parent=1 // pred_check
      _
    $region19: #{ggn_forward.1} parent=1 // pred_check_branch
      %65 = sbr.rel (0) target = $region21
    $region20: #{ggn_forward.1} parent=1 // pred_region
      %s67 = ssub.s32 64, 64
      %68 = vsyncadd [#allocation6], %s67
      %s70 = sshll.u32 [#allocation7], 4
      %s71 = int_to_ptr.vmem [resolvable:$true] %s70
      %73 = dma.hbm_to_vmem [thread:$0]  %s4, 64, %s71, [#allocation6]
    $region21: #{ggn_forward.1} parent=1 // pred_fallthru
      _
    // Predicated region
    $region22: #{ggn_forward.1} parent=1 // pred_check
      _
    $region23: #{ggn_forward.1} parent=1 // pred_check_branch
      %75 = sbr.rel (0) target = $region25
    $region24: #{ggn_forward.1} parent=1 // pred_region
      %s77 = ssub.s32 4096, 4096
      %78 = vsyncadd [#allocation9], %s77
      %s79 = sshll.u32 [#allocation8], 4
      %s80 = int_to_ptr.vmem [resolvable:$true] %s79
      %85 = dma.hbm_to_vmem [thread:$0]  %s5, 4096, %s80, [#allocation9], 256, 256, 16
    $region25: #{ggn_forward.1} parent=1 // pred_fallthru
      _
    // Predicated region
    $region26: #{ggn_forward.1} parent=1 // pred_check
      _
    $region27: #{ggn_forward.1} parent=1 // pred_check_branch
      %87 = sbr.rel (0) target = $region29
    $region28: #{ggn_forward.1} parent=1 // pred_region
      %s89 = ssub.s32 4096, 4096
      %90 = vsyncadd [#allocation9], %s89
      %s91 = sshll.u32 [#allocation10], 4
      %s92 = int_to_ptr.vmem [resolvable:$true] %s91
      %97 = dma.hbm_to_vmem [thread:$0]  %s6, 4096, %s92, [#allocation9], 256, 256, 16
    $region29: #{ggn_forward.1} parent=1 // pred_fallthru
      _
    // Predicated region
    $region30: #{ggn_forward.1} parent=1 // pred_check
      _
    $region31: #{ggn_forward.1} parent=1 // pred_check_branch
      %99 = sbr.rel (0) target = $region33
    $region32: #{ggn_forward.1} parent=1 // pred_region
      %s101 = ssub.s32 64, 64
      %102 = vsyncadd [#allocation12], %s101
      %s104 = sshll.u32 [#allocation11], 4
      %s105 = int_to_ptr.vmem [resolvable:$true] %s104
      %107 = dma.hbm_to_vmem [thread:$0]  %s7, 64, %s105, [#allocation12]
    $region33: #{ggn_forward.1} parent=1 // pred_fallthru
      _
    // Predicated region
    $region34: #{ggn_forward.1} parent=1 // pred_check
      _
    $region35: #{ggn_forward.1} parent=1 // pred_check_branch
      %109 = sbr.rel (0) target = $region37
    $region36: #{ggn_forward.1} parent=1 // pred_region
      _
    $region37: #{ggn_forward.1} parent=1 // pred_fallthru
      _
    // Predicated region
    $region38: #{ggn_forward.1} parent=1 // pred_check
      _
    $region39: #{ggn_forward.1} parent=1 // pred_check_branch
      %111 = sbr.rel (0) target = $region41
    $region40: #{ggn_forward.1} parent=1 // pred_region
      _
    $region41: #{ggn_forward.1} parent=1 // pred_fallthru
      _
    // Predicated region
    $region42: #{ggn_forward.1} parent=1 // pred_check
      _
    $region43: #{ggn_forward.1} parent=1 // pred_check_branch
      %113 = sbr.rel (0) target = $region45
    $region44: #{ggn_forward.1} parent=1 // pred_region
      _
    $region45: #{ggn_forward.1} parent=1 // pred_fallthru
      _
    // Predicated region
    $region46: #{ggn_forward.1} parent=1 // pred_check
      _
    $region47: #{ggn_forward.1} parent=1 // pred_check_branch
      %115 = sbr.rel (0) target = $region49
    $region48: #{ggn_forward.1} parent=1 // pred_region
      _
    $region49: #{ggn_forward.1} parent=1 // pred_fallthru
      _
    // Predicated region
    $region50: #{ggn_forward.1} parent=1 // pred_check
      _
    $region51: #{ggn_forward.1} parent=1 // pred_check_branch
      %117 = sbr.rel (0) target = $region53
    $region52: #{ggn_forward.1} parent=1 // pred_region
      %s119 = ssub.s32 64, 64
      %120 = vsyncadd [#allocation12], %s119
      %s122 = sshll.u32 [#allocation13], 4
      %s123 = int_to_ptr.vmem [resolvable:$true] %s122
      %125 = dma.hbm_to_vmem [thread:$0]  %s12, 64, %s123, [#allocation12]
    $region53: #{ggn_forward.1} parent=1 // pred_fallthru
      _
    // Predicated region
    $region54: #{ggn_forward.1} parent=1 // pred_check
      _
    $region55: #{ggn_forward.1} parent=1 // pred_check_branch
      %127 = sbr.rel (0) target = $region57
    $region56: #{ggn_forward.1} parent=1 // pred_region
      %s129 = ssub.s32 64, 64
      %130 = vsyncadd [#allocation15], %s129
      %s132 = sshll.u32 [#allocation14], 4
      %s133 = int_to_ptr.vmem [resolvable:$true] %s132
      %135 = dma.hbm_to_vmem [thread:$0]  %s13, 64, %s133, [#allocation15]
    $region57: #{ggn_forward.1} parent=1 // pred_fallthru
      _
    // Predicated region
    $region58: #{ggn_forward.1} parent=1 // pred_check
      _
    $region59: #{ggn_forward.1} parent=1 // pred_check_branch
      %137 = sbr.rel (0) target = $region61
    $region60: #{ggn_forward.1} parent=1 // pred_region
      _
    $region61: #{ggn_forward.1} parent=1 // pred_fallthru
      _
    // Predicated region
    $region62: #{ggn_forward.1} parent=1 // pred_check
      _
    $region63: #{ggn_forward.1} parent=1 // pred_check_branch
      %139 = sbr.rel (0) target = $region65
    $region64: #{ggn_forward.1} parent=1 // pred_region
      %s141 = ssub.s32 16, 16
      %142 = vsyncadd [#allocation15], %s141
      %s144 = sshll.u32 [#allocation16], 4
      %s145 = int_to_ptr.vmem [resolvable:$true] %s144
      %147 = dma.hbm_to_vmem [thread:$0]  %s15, 16, %s145, [#allocation15]
    $region65: #{ggn_forward.1} parent=1 // pred_fallthru
      _
    // Predicated region
    $region66: #{ggn_forward.1} parent=1 // pred_check
      _
    $region67: #{ggn_forward.1} parent=1 // pred_check_branch
      %149 = sbr.rel (0) target = $region69
    $region68: #{ggn_forward.1} parent=1 // pred_region
      _
    $region69: #{ggn_forward.1} parent=1 // pred_fallthru
      _
    // Predicated region
    $region70: #{ggn_forward.1} parent=1 // pred_check
      _
    $region71: #{ggn_forward.1} parent=1 // pred_check_branch
      %151 = sbr.rel (0) target = $region73
    $region72: #{ggn_forward.1} parent=1 // pred_region
      %s153 = ssub.s32 16, 16
      %154 = vsyncadd [#allocation18], %s153
      %s156 = sshll.u32 [#allocation17], 4
      %s157 = int_to_ptr.vmem [resolvable:$true] %s156
      %159 = dma.hbm_to_vmem [thread:$0]  %s17, 16, %s157, [#allocation18]
    $region73: #{ggn_forward.1} parent=1 // pred_fallthru
      _
    // Predicated region
    $region74: #{ggn_forward.1} parent=1 // pred_check
      _
    $region75: #{ggn_forward.1} parent=1 // pred_check_branch
      %161 = sbr.rel (0) target = $region77
    $region76: #{ggn_forward.1} parent=1 // pred_region
      _
    $region77: #{ggn_forward.1} parent=1 // pred_fallthru
      _
    // Predicated region
    $region78: #{ggn_forward.1} parent=1 // pred_check
      _
    $region79: #{ggn_forward.1} parent=1 // pred_check_branch
      %163 = sbr.rel (0) target = $region81
    $region80: #{ggn_forward.1} parent=1 // pred_region
      %s165 = ssub.s32 16, 16
      %166 = vsyncadd [#allocation18], %s165
      %s168 = sshll.u32 [#allocation19], 4
      %s169 = int_to_ptr.vmem [resolvable:$true] %s168
      %171 = dma.hbm_to_vmem [thread:$0]  %s19, 16, %s169, [#allocation18]
    $region81: #{ggn_forward.1} parent=1 // pred_fallthru
      _
    // Predicated region
    $region82: #{ggn_forward.1} parent=1 // pred_check
      _
    $region83: #{ggn_forward.1} parent=1 // pred_check_branch
      %173 = sbr.rel (0) target = $region85
    $region84: #{ggn_forward.1} parent=1 // pred_region
      _
    $region85: #{ggn_forward.1} parent=1 // pred_fallthru
      _
    // Predicated region
    $region86: #{ggn_forward.1} parent=1 // pred_check
      _
    $region87: #{ggn_forward.1} parent=1 // pred_check_branch
      %175 = sbr.rel (0) target = $region89
    $region88: #{ggn_forward.1} parent=1 // pred_region
      %s177 = ssub.s32 16, 16
      %178 = vsyncadd [#allocation21], %s177
      %s180 = sshll.u32 [#allocation20], 4
      %s181 = int_to_ptr.vmem [resolvable:$true] %s180
      %183 = dma.hbm_to_vmem [thread:$0]  %s21, 16, %s181, [#allocation21]
    $region89: #{ggn_forward.1} parent=1 // pred_fallthru
      _
    // Predicated region
    $region90: #{ggn_forward.1} parent=1 // pred_check
      _
    $region91: #{ggn_forward.1} parent=1 // pred_check_branch
      %185 = sbr.rel (0) target = $region93
    $region92: #{ggn_forward.1} parent=1 // pred_region
      %s187 = ssub.s32 16, 16
      %188 = vsyncadd [#allocation21], %s187
      %s190 = sshll.u32 [#allocation22], 4
      %s191 = int_to_ptr.vmem [resolvable:$true] %s190
      %193 = dma.hbm_to_vmem [thread:$0]  %s22, 16, %s191, [#allocation21]
    $region93: #{ggn_forward.1} parent=1 // pred_fallthru
      _
    // Predicated region
    $region94: #{ggn_forward.1} parent=1 // pred_check
      _
    $region95: #{ggn_forward.1} parent=1 // pred_check_branch
      %195 = sbr.rel (0) target = $region97
    $region96: #{ggn_forward.1} parent=1 // pred_region
      %196 = dma.done [#allocation3], 256
    $region97: #{ggn_forward.1} parent=1 // pred_fallthru
      _
    // Predicated region
    $region98: #{ggn_forward.1} parent=1 // pred_check
      _
    $region99: #{ggn_forward.1} parent=1 // pred_check_branch
      %198 = sbr.rel (0) target = $region101
    $region100: #{ggn_forward.1} parent=1 // pred_region
      %199 = dma.done [#allocation6], 4096
    $region101: #{ggn_forward.1} parent=1 // pred_fallthru
      _
    // Predicated region
    $region102: #{ggn_forward.1} parent=1 // pred_check
      _
    $region103: #{ggn_forward.1} parent=1 // pred_check_branch
      %201 = sbr.rel (0) target = $region105
    $region104: #{ggn_forward.1} parent=1 // pred_region
      %202 = dma.done [#allocation6], 64
    $region105: #{ggn_forward.1} parent=1 // pred_fallthru
      _
    // Predicated region
    $region106: #{ggn_forward.1} parent=1 // pred_check
      _
    $region107: #{ggn_forward.1} parent=1 // pred_check_branch
      %204 = sbr.rel (0) target = $region109
    $region108: #{ggn_forward.1} parent=1 // pred_region
      %205 = dma.done [#allocation9], 4096
    $region109: #{ggn_forward.1} parent=1 // pred_fallthru
      _
    // Predicated region
    $region110: #{ggn_forward.1} parent=1 // pred_check
      _
    $region111: #{ggn_forward.1} parent=1 // pred_check_branch
      %207 = sbr.rel (0) target = $region113
    $region112: #{ggn_forward.1} parent=1 // pred_region
      %208 = dma.done [#allocation9], 4096
    $region113: #{ggn_forward.1} parent=1 // pred_fallthru
      _
    // Predicated region
    $region114: #{ggn_forward.1} parent=1 // pred_check
      _
    $region115: #{ggn_forward.1} parent=1 // pred_check_branch
      %210 = sbr.rel (0) target = $region117
    $region116: #{ggn_forward.1} parent=1 // pred_region
      %211 = dma.done [#allocation12], 64
    $region117: #{ggn_forward.1} parent=1 // pred_fallthru
      _
    // Predicated region
    $region118: #{ggn_forward.1} parent=1 // pred_check
      _
    $region119: #{ggn_forward.1} parent=1 // pred_check_branch
      %213 = sbr.rel (0) target = $region121
    $region120: #{ggn_forward.1} parent=1 // pred_region
      %214 = dma.done [#allocation12], 64
    $region121: #{ggn_forward.1} parent=1 // pred_fallthru
      _
    // Predicated region
    $region122: #{ggn_forward.1} parent=1 // pred_check
      _
    $region123: #{ggn_forward.1} parent=1 // pred_check_branch
      %216 = sbr.rel (0) target = $region125
    $region124: #{ggn_forward.1} parent=1 // pred_region
      %217 = dma.done [#allocation15], 64
    $region125: #{ggn_forward.1} parent=1 // pred_fallthru
      _
    // Predicated region
    $region126: #{ggn_forward.1} parent=1 // pred_check
      _
    $region127: #{ggn_forward.1} parent=1 // pred_check_branch
      %219 = sbr.rel (0) target = $region129
    $region128: #{ggn_forward.1} parent=1 // pred_region
      %220 = dma.done [#allocation15], 16
    $region129: #{ggn_forward.1} parent=1 // pred_fallthru
      _
    // Predicated region
    $region130: #{ggn_forward.1} parent=1 // pred_check
      _
    $region131: #{ggn_forward.1} parent=1 // pred_check_branch
      %222 = sbr.rel (0) target = $region133
    $region132: #{ggn_forward.1} parent=1 // pred_region
      %223 = dma.done [#allocation18], 16
    $region133: #{ggn_forward.1} parent=1 // pred_fallthru
      _
    // Predicated region
    $region134: #{ggn_forward.1} parent=1 // pred_check
      _
    $region135: #{ggn_forward.1} parent=1 // pred_check_branch
      %225 = sbr.rel (0) target = $region137
    $region136: #{ggn_forward.1} parent=1 // pred_region
      %226 = dma.done [#allocation18], 16
    $region137: #{ggn_forward.1} parent=1 // pred_fallthru
      _
    // Predicated region
    $region138: #{ggn_forward.1} parent=1 // pred_check
      _
    $region139: #{ggn_forward.1} parent=1 // pred_check_branch
      %228 = sbr.rel (0) target = $region141
    $region140: #{ggn_forward.1} parent=1 // pred_region
      %229 = dma.done [#allocation21], 16
    $region141: #{ggn_forward.1} parent=1 // pred_fallthru
      _
    // Predicated region
    $region142: #{ggn_forward.1} parent=1 // pred_check
      _
    $region143: #{ggn_forward.1} parent=1 // pred_check_branch
      %231 = sbr.rel (0) target = $region145
    $region144: #{ggn_forward.1} parent=1 // pred_region
      %232 = dma.done [#allocation21], 16
    $region145: #{ggn_forward.1} parent=1 // pred_fallthru
      _
    %v234 = vld [vmem:[%s0] sm:$0xff]
    %v235 = vld [vmem:[%s0 + $0x8] sm:$0xff]
    %v236 = vld [vmem:[%s0 + $0x10] sm:$0xff]
    %v237 = vld [vmem:[%s0 + $0x18] sm:$0xff]
    %v238 = vld [vmem:[#allocation2] sm:$0xff]
    %v239 = vld [vmem:[#allocation2 + $0x8] sm:$0xff]
    %v240 = vld [vmem:[#allocation5] sm:$0xff]
    %v241 = vld [vmem:[#allocation5 + $0x8] sm:$0xff]
    %v242 = vld [vmem:[#allocation5 + $0x10] sm:$0xff]
    %v243 = vld [vmem:[#allocation5 + $0x18] sm:$0xff]
    %v244 = vld [vmem:[#allocation5 + $0x20] sm:$0xff]
    %v245 = vld [vmem:[#allocation5 + $0x28] sm:$0xff]
    %v246 = vld [vmem:[#allocation5 + $0x30] sm:$0xff]
    %v247 = vld [vmem:[#allocation5 + $0x38] sm:$0xff]
    %v248 = vld [vmem:[#allocation5 + $0x40] sm:$0xff]
    %v249 = vld [vmem:[#allocation5 + $0x48] sm:$0xff]
    %v250 = vld [vmem:[#allocation5 + $0x50] sm:$0xff]
    %v251 = vld [vmem:[#allocation5 + $0x58] sm:$0xff]
    %v252 = vld [vmem:[#allocation5 + $0x60] sm:$0xff]
    %v253 = vld [vmem:[#allocation5 + $0x68] sm:$0xff]
    %v254 = vld [vmem:[#allocation5 + $0x70] sm:$0xff]
    %v255 = vld [vmem:[#allocation5 + $0x78] sm:$0xff]
    %v256 = vld [vmem:[#allocation5 + $0x80] sm:$0xff]
    %v257 = vld [vmem:[#allocation5 + $0x88] sm:$0xff]
    %v258 = vld [vmem:[#allocation5 + $0x90] sm:$0xff]
    %v259 = vld [vmem:[#allocation5 + $0x98] sm:$0xff]
    %v260 = vld [vmem:[#allocation5 + $0xa0] sm:$0xff]
    %v261 = vld [vmem:[#allocation5 + $0xa8] sm:$0xff]
    %v262 = vld [vmem:[#allocation5 + $0xb0] sm:$0xff]
    %v263 = vld [vmem:[#allocation5 + $0xb8] sm:$0xff]
    %v264 = vld [vmem:[#allocation5 + $0xc0] sm:$0xff]
    %v265 = vld [vmem:[#allocation5 + $0xc8] sm:$0xff]
    %v266 = vld [vmem:[#allocation5 + $0xd0] sm:$0xff]
    %v267 = vld [vmem:[#allocation5 + $0xd8] sm:$0xff]
    %v268 = vld [vmem:[#allocation5 + $0xe0] sm:$0xff]
    %v269 = vld [vmem:[#allocation5 + $0xe8] sm:$0xff]
    %v270 = vld [vmem:[#allocation5 + $0xf0] sm:$0xff]
    %v271 = vld [vmem:[#allocation5 + $0xf8] sm:$0xff]
    %v272 = vld [vmem:[#allocation8] sm:$0xff]
    %v273 = vld [vmem:[#allocation8 + $0x8] sm:$0xff]
    %v274 = vld [vmem:[#allocation8 + $0x10] sm:$0xff]
    %v275 = vld [vmem:[#allocation8 + $0x18] sm:$0xff]
    %v276 = vld [vmem:[#allocation8 + $0x20] sm:$0xff]
    %v277 = vld [vmem:[#allocation8 + $0x28] sm:$0xff]
    %v278 = vld [vmem:[#allocation8 + $0x30] sm:$0xff]
    %v279 = vld [vmem:[#allocation8 + $0x38] sm:$0xff]
    %v280 = vld [vmem:[#allocation8 + $0x40] sm:$0xff]
    %v281 = vld [vmem:[#allocation8 + $0x48] sm:$0xff]
    %v282 = vld [vmem:[#allocation8 + $0x50] sm:$0xff]
    %v283 = vld [vmem:[#allocation8 + $0x58] sm:$0xff]
    %v284 = vld [vmem:[#allocation8 + $0x60] sm:$0xff]
    %v285 = vld [vmem:[#allocation8 + $0x68] sm:$0xff]
    %v286 = vld [vmem:[#allocation8 + $0x70] sm:$0xff]
    %v287 = vld [vmem:[#allocation8 + $0x78] sm:$0xff]
    %v288 = vld [vmem:[#allocation8 + $0x80] sm:$0xff]
    %v289 = vld [vmem:[#allocation8 + $0x88] sm:$0xff]
    %v290 = vld [vmem:[#allocation8 + $0x90] sm:$0xff]
    %v291 = vld [vmem:[#allocation8 + $0x98] sm:$0xff]
    %v292 = vld [vmem:[#allocation8 + $0xa0] sm:$0xff]
    %v293 = vld [vmem:[#allocation8 + $0xa8] sm:$0xff]
    %v294 = vld [vmem:[#allocation8 + $0xb0] sm:$0xff]
    %v295 = vld [vmem:[#allocation8 + $0xb8] sm:$0xff]
    %v296 = vld [vmem:[#allocation8 + $0xc0] sm:$0xff]
    %v297 = vld [vmem:[#allocation8 + $0xc8] sm:$0xff]
    %v298 = vld [vmem:[#allocation8 + $0xd0] sm:$0xff]
    %v299 = vld [vmem:[#allocation8 + $0xd8] sm:$0xff]
    %v300 = vld [vmem:[#allocation8 + $0xe0] sm:$0xff]
    %v301 = vld [vmem:[#allocation8 + $0xe8] sm:$0xff]
    %v302 = vld [vmem:[#allocation8 + $0xf0] sm:$0xff]
    %v303 = vld [vmem:[#allocation8 + $0xf8] sm:$0xff]
    %v304 = vld [vmem:[#allocation10] sm:$0xff]
    %v305 = vld [vmem:[#allocation10 + $0x8] sm:$0xff]
    %v306 = vld [vmem:[#allocation10 + $0x10] sm:$0xff]
    %v307 = vld [vmem:[#allocation10 + $0x18] sm:$0xff]
    %v308 = vld [vmem:[#allocation10 + $0x20] sm:$0xff]
    %v309 = vld [vmem:[#allocation10 + $0x28] sm:$0xff]
    %v310 = vld [vmem:[#allocation10 + $0x30] sm:$0xff]
    %v311 = vld [vmem:[#allocation10 + $0x38] sm:$0xff]
    %v312 = vld [vmem:[#allocation10 + $0x40] sm:$0xff]
    %v313 = vld [vmem:[#allocation10 + $0x48] sm:$0xff]
    %v314 = vld [vmem:[#allocation10 + $0x50] sm:$0xff]
    %v315 = vld [vmem:[#allocation10 + $0x58] sm:$0xff]
    %v316 = vld [vmem:[#allocation10 + $0x60] sm:$0xff]
    %v317 = vld [vmem:[#allocation10 + $0x68] sm:$0xff]
    %v318 = vld [vmem:[#allocation10 + $0x70] sm:$0xff]
    %v319 = vld [vmem:[#allocation10 + $0x78] sm:$0xff]
    %v320 = vld [vmem:[#allocation10 + $0x80] sm:$0xff]
    %v321 = vld [vmem:[#allocation10 + $0x88] sm:$0xff]
    %v322 = vld [vmem:[#allocation10 + $0x90] sm:$0xff]
    %v323 = vld [vmem:[#allocation10 + $0x98] sm:$0xff]
    %v324 = vld [vmem:[#allocation10 + $0xa0] sm:$0xff]
    %v325 = vld [vmem:[#allocation10 + $0xa8] sm:$0xff]
    %v326 = vld [vmem:[#allocation10 + $0xb0] sm:$0xff]
    %v327 = vld [vmem:[#allocation10 + $0xb8] sm:$0xff]
    %v328 = vld [vmem:[#allocation10 + $0xc0] sm:$0xff]
    %v329 = vld [vmem:[#allocation10 + $0xc8] sm:$0xff]
    %v330 = vld [vmem:[#allocation10 + $0xd0] sm:$0xff]
    %v331 = vld [vmem:[#allocation10 + $0xd8] sm:$0xff]
    %v332 = vld [vmem:[#allocation10 + $0xe0] sm:$0xff]
    %v333 = vld [vmem:[#allocation10 + $0xe8] sm:$0xff]
    %v334 = vld [vmem:[#allocation10 + $0xf0] sm:$0xff]
    %v335 = vld [vmem:[#allocation10 + $0xf8] sm:$0xff]
    %v336 = vld [vmem:[#allocation11] sm:$0xf]
    %v337 = vpack.c.bf16 %v235, %v234
    %v338 = vpack.c.bf16 %v237, %v236
    %v339 = vld [vmem:[%s2] sm:$0xff]
    %v340 = vld [vmem:[%s2 + $0x8] sm:$0xff]
    %v341 = vld [vmem:[%s2 + $0x10] sm:$0xff]
    %v342 = vld [vmem:[%s2 + $0x18] sm:$0xff]
    %v343 = vld [vmem:[%s2 + $0x20] sm:$0xff]
    %v344 = vld [vmem:[%s2 + $0x28] sm:$0xff]
    %v345 = vld [vmem:[%s2 + $0x30] sm:$0xff]
    %v346 = vld [vmem:[%s2 + $0x38] sm:$0xff]
    %v347 = vld [vmem:[%s2 + $0x40] sm:$0xff]
    %v348 = vld [vmem:[%s2 + $0x48] sm:$0xff]
    %v349 = vld [vmem:[%s2 + $0x50] sm:$0xff]
    %v350 = vld [vmem:[%s2 + $0x58] sm:$0xff]
    %v351 = vld [vmem:[%s2 + $0x60] sm:$0xff]
    %v352 = vld [vmem:[%s2 + $0x68] sm:$0xff]
    %v353 = vld [vmem:[%s2 + $0x70] sm:$0xff]
    %v354 = vld [vmem:[%s2 + $0x78] sm:$0xff]
    %v355 = vld [vmem:[%s2 + $0x80] sm:$0xff]
    %v356 = vld [vmem:[%s2 + $0x88] sm:$0xff]
    %v357 = vld [vmem:[%s2 + $0x90] sm:$0xff]
    %v358 = vld [vmem:[%s2 + $0x98] sm:$0xff]
    %v359 = vld [vmem:[%s2 + $0xa0] sm:$0xff]
    %v360 = vld [vmem:[%s2 + $0xa8] sm:$0xff]
    %v361 = vld [vmem:[%s2 + $0xb0] sm:$0xff]
    %v362 = vld [vmem:[%s2 + $0xb8] sm:$0xff]
    %v363 = vld [vmem:[%s2 + $0xc0] sm:$0xff]
    %v364 = vld [vmem:[%s2 + $0xc8] sm:$0xff]
    %v365 = vld [vmem:[%s2 + $0xd0] sm:$0xff]
    %v366 = vld [vmem:[%s2 + $0xd8] sm:$0xff]
    %v367 = vld [vmem:[%s2 + $0xe0] sm:$0xff]
    %v368 = vld [vmem:[%s2 + $0xe8] sm:$0xff]
    %v369 = vld [vmem:[%s2 + $0xf0] sm:$0xff]
    %v370 = vld [vmem:[%s2 + $0xf8] sm:$0xff]
    %v403 = vunpack.c.l.b16 %v339
    %v404 = vunpack.c.h.b16 %v339
    %v405 = vunpack.c.l.b16 %v340
    %v406 = vunpack.c.h.b16 %v340
    %v407 = vunpack.c.l.b16 %v341
    %v408 = vunpack.c.h.b16 %v341
    %v409 = vunpack.c.l.b16 %v342
    %v410 = vunpack.c.h.b16 %v342
    %v411 = vunpack.c.l.b16 %v343
    %v412 = vunpack.c.h.b16 %v343
    %v413 = vunpack.c.l.b16 %v344
    %v414 = vunpack.c.h.b16 %v344
    %v415 = vunpack.c.l.b16 %v345
    %v416 = vunpack.c.h.b16 %v345
    %v417 = vunpack.c.l.b16 %v346
    %v418 = vunpack.c.h.b16 %v346
    %v419 = vunpack.c.l.b16 %v347
    %v420 = vunpack.c.h.b16 %v347
    %v421 = vunpack.c.l.b16 %v348
    %v422 = vunpack.c.h.b16 %v348
    %v423 = vunpack.c.l.b16 %v349
    %v424 = vunpack.c.h.b16 %v349
    %v425 = vunpack.c.l.b16 %v350
    %v426 = vunpack.c.h.b16 %v350
    %v427 = vunpack.c.l.b16 %v351
    %v428 = vunpack.c.h.b16 %v351
    %v429 = vunpack.c.l.b16 %v352
    %v430 = vunpack.c.h.b16 %v352
    %v431 = vunpack.c.l.b16 %v353
    %v432 = vunpack.c.h.b16 %v353
    %v433 = vunpack.c.l.b16 %v354
    %v434 = vunpack.c.h.b16 %v354
    %v435 = vunpack.c.l.b16 %v355
    %v436 = vunpack.c.h.b16 %v355
    %v437 = vunpack.c.l.b16 %v356
    %v438 = vunpack.c.h.b16 %v356
    %v439 = vunpack.c.l.b16 %v357
    %v440 = vunpack.c.h.b16 %v357
    %v441 = vunpack.c.l.b16 %v358
    %v442 = vunpack.c.h.b16 %v358
    %v443 = vunpack.c.l.b16 %v359
    %v444 = vunpack.c.h.b16 %v359
    %v445 = vunpack.c.l.b16 %v360
    %v446 = vunpack.c.h.b16 %v360
    %v447 = vunpack.c.l.b16 %v361
    %v448 = vunpack.c.h.b16 %v361
    %v449 = vunpack.c.l.b16 %v362
    %v450 = vunpack.c.h.b16 %v362
    %v451 = vunpack.c.l.b16 %v363
    %v452 = vunpack.c.h.b16 %v363
    %v453 = vunpack.c.l.b16 %v364
    %v454 = vunpack.c.h.b16 %v364
    %v455 = vunpack.c.l.b16 %v365
    %v456 = vunpack.c.h.b16 %v365
    %v457 = vunpack.c.l.b16 %v366
    %v458 = vunpack.c.h.b16 %v366
    %v459 = vunpack.c.l.b16 %v367
    %v460 = vunpack.c.h.b16 %v367
    %v461 = vunpack.c.l.b16 %v368
    %v462 = vunpack.c.h.b16 %v368
    %v463 = vunpack.c.l.b16 %v369
    %v464 = vunpack.c.h.b16 %v369
    %v465 = vunpack.c.l.b16 %v370
    %v466 = vunpack.c.h.b16 %v370
    %v467 = vpack.c.b16 %v407, %v403
    %v468 = vpack.c.b16 %v408, %v404
    %v469 = vpack.c.b16 %v409, %v405
    %v470 = vpack.c.b16 %v410, %v406
    %v471 = vpack.c.b16 %v415, %v411
    %v472 = vpack.c.b16 %v416, %v412
    %v473 = vpack.c.b16 %v417, %v413
    %v474 = vpack.c.b16 %v418, %v414
    %v475 = vpack.c.b16 %v423, %v419
    %v476 = vpack.c.b16 %v424, %v420
    %v477 = vpack.c.b16 %v425, %v421
    %v478 = vpack.c.b16 %v426, %v422
    %v479 = vpack.c.b16 %v431, %v427
    %v480 = vpack.c.b16 %v432, %v428
    %v481 = vpack.c.b16 %v433, %v429
    %v482 = vpack.c.b16 %v434, %v430
    %v483 = vpack.c.b16 %v439, %v435
    %v484 = vpack.c.b16 %v440, %v436
    %v485 = vpack.c.b16 %v441, %v437
    %v486 = vpack.c.b16 %v442, %v438
    %v487 = vpack.c.b16 %v447, %v443
    %v488 = vpack.c.b16 %v448, %v444
    %v489 = vpack.c.b16 %v449, %v445
    %v490 = vpack.c.b16 %v450, %v446
    %v491 = vpack.c.b16 %v455, %v451
    %v492 = vpack.c.b16 %v456, %v452
    %v493 = vpack.c.b16 %v457, %v453
    %v494 = vpack.c.b16 %v458, %v454
    %v495 = vpack.c.b16 %v463, %v459
    %v496 = vpack.c.b16 %v464, %v460
    %v497 = vpack.c.b16 %v465, %v461
    %v498 = vpack.c.b16 %v466, %v462
    %531 = vmatprep.subr.bf16.mxu0 %v496
    %532 = vmatpush1.bf16.msra.mxu0 %v495
    %533 = vmatprep.subr.bf16.mxu0 %v492
    %534 = vmatpush1.bf16.msra.mxu0 %v491
    %535 = vmatprep.subr.bf16.mxu0 %v488
    %536 = vmatpush1.bf16.msra.mxu0 %v487
    %537 = vmatprep.subr.bf16.mxu0 %v484
    %538 = vmatpush1.bf16.msra.mxu0 %v483
    %539 = vmatprep.subr.bf16.mxu0 %v480
    %540 = vmatpush1.bf16.msra.mxu0 %v479
    %541 = vmatprep.subr.bf16.mxu0 %v476
    %542 = vmatpush1.bf16.msra.mxu0 %v475
    %543 = vmatprep.subr.bf16.mxu0 %v472
    %544 = vmatpush1.bf16.msra.mxu0 %v471
    %545 = vmatprep.subr.bf16.mxu0 %v468
    %546 = vmatpush1.bf16.msra.mxu0 %v467
    %547 = vmatprep.subr.bf16.mxu0 0
    %548 = vmatpush2.bf16.msra.mxu0 0
    %549 = vmatprep.subr.bf16.mxu0 0
    %550 = vmatpush2.bf16.msra.mxu0 0
    %551 = vmatprep.subr.bf16.mxu0 0
    %552 = vmatpush2.bf16.msra.mxu0 0
    %553 = vmatprep.subr.bf16.mxu0 0
    %554 = vmatpush2.bf16.msra.mxu0 0
    %555 = vmatprep.subr.bf16.mxu0 0
    %556 = vmatpush2.bf16.msra.mxu0 0
    %557 = vmatprep.subr.bf16.mxu0 0
    %558 = vmatpush2.bf16.msra.mxu0 0
    %559 = vmatprep.subr.bf16.mxu0 0
    %560 = vmatpush2.bf16.msra.mxu0 0
    %561 = vmatprep.subr.bf16.mxu0 0
    %562 = vmatpush2.bf16.msra.mxu0 0
    %563 = vmatprep.mubr.bf16.mxu0 0
    %564 = vmatmul.mubr.bf16.gmra.mxu0 %v337
    %v565 = vpop.f32.mrf.mxu0
    %v566 = vadd.f32 0.0, %v565
    %v567 = vpop.f32.mrf.mxu0
    %v568 = vadd.f32 0.0, %v567
    %v569 = vpop.f32.mrf.mxu0
    %v570 = vadd.f32 0.0, %v569
    %v571 = vpop.f32.mrf.mxu0
    %v572 = vadd.f32 0.0, %v571
    %573 = vmatprep.mubr.bf16.mxu0 0
    %574 = vmatmul.mubr.bf16.gmra.mxu0 %v338
    %v575 = vpop.f32.mrf.mxu0
    %v576 = vadd.f32 0.0, %v575
    %v577 = vpop.f32.mrf.mxu0
    %v578 = vadd.f32 0.0, %v577
    %v579 = vpop.f32.mrf.mxu0
    %v580 = vadd.f32 0.0, %v579
    %v581 = vpop.f32.mrf.mxu0
    %v582 = vadd.f32 0.0, %v581
    %583 = vdwg.mxu0
    %584 = vmatprep.subr.bf16.mxu0 %v498
    %585 = vmatpush1.bf16.msra.mxu0 %v497
    %586 = vmatprep.subr.bf16.mxu0 %v494
    %587 = vmatpush1.bf16.msra.mxu0 %v493
    %588 = vmatprep.subr.bf16.mxu0 %v490
    %589 = vmatpush1.bf16.msra.mxu0 %v489
    %590 = vmatprep.subr.bf16.mxu0 %v486
    %591 = vmatpush1.bf16.msra.mxu0 %v485
    %592 = vmatprep.subr.bf16.mxu0 %v482
    %593 = vmatpush1.bf16.msra.mxu0 %v481
    %594 = vmatprep.subr.bf16.mxu0 %v478
    %595 = vmatpush1.bf16.msra.mxu0 %v477
    %596 = vmatprep.subr.bf16.mxu0 %v474
    %597 = vmatpush1.bf16.msra.mxu0 %v473
    %598 = vmatprep.subr.bf16.mxu0 %v470
    %599 = vmatpush1.bf16.msra.mxu0 %v469
    %600 = vmatprep.subr.bf16.mxu0 0
    %601 = vmatpush2.bf16.msra.mxu0 0
    %602 = vmatprep.subr.bf16.mxu0 0
    %603 = vmatpush2.bf16.msra.mxu0 0
    %604 = vmatprep.subr.bf16.mxu0 0
    %605 = vmatpush2.bf16.msra.mxu0 0
    %606 = vmatprep.subr.bf16.mxu0 0
    %607 = vmatpush2.bf16.msra.mxu0 0
    %608 = vmatprep.subr.bf16.mxu0 0
    %609 = vmatpush2.bf16.msra.mxu0 0
    %610 = vmatprep.subr.bf16.mxu0 0
    %611 = vmatpush2.bf16.msra.mxu0 0
    %612 = vmatprep.subr.bf16.mxu0 0
    %613 = vmatpush2.bf16.msra.mxu0 0
    %614 = vmatprep.subr.bf16.mxu0 0
    %615 = vmatpush2.bf16.msra.mxu0 0
    %616 = vmatprep.mubr.bf16.mxu0 0
    %617 = vmatmul.mubr.bf16.gmra.mxu0 %v337
    %v618 = vpop.f32.mrf.mxu0
    %v619 = vadd.f32 0.0, %v618
    %v620 = vpop.f32.mrf.mxu0
    %v621 = vadd.f32 0.0, %v620
    %v622 = vpop.f32.mrf.mxu0
    %v623 = vadd.f32 0.0, %v622
    %v624 = vpop.f32.mrf.mxu0
    %v625 = vadd.f32 0.0, %v624
    %626 = vmatprep.mubr.bf16.mxu0 0
    %627 = vmatmul.mubr.bf16.gmra.mxu0 %v338
    %v628 = vpop.f32.mrf.mxu0
    %v629 = vadd.f32 0.0, %v628
    %v630 = vpop.f32.mrf.mxu0
    %v631 = vadd.f32 0.0, %v630
    %v632 = vpop.f32.mrf.mxu0
    %v633 = vadd.f32 0.0, %v632
    %v634 = vpop.f32.mrf.mxu0
    %v635 = vadd.f32 0.0, %v634
    %636 = vdwg.mxu0
    %v637 = vld [vmem:[#allocation7] sm:$0xf]
    %v639 = vlaneseq
    %v640 = vshrl.u32 %v639, 7
    %v641 = vsub.s32 0, %v640
    %v642 = vrot.slane %v637, %v641
    %v643 = vlaneseq
    %v644 = vshrl.u32 %v643, 7
    %v645 = vsub.s32 1, %v644
    %v646 = vrot.slane %v637, %v645
    %v647 = vlaneseq
    %v648 = vshrl.u32 %v647, 7
    %v649 = vsub.s32 2, %v648
    %v650 = vrot.slane %v637, %v649
    %v651 = vlaneseq
    %v652 = vshrl.u32 %v651, 7
    %v653 = vsub.s32 3, %v652
    %v654 = vrot.slane %v637, %v653
    %v659 = vadd.f32 %v566, %v642
    %v660 = vadd.f32 %v568, %v646
    %v661 = vadd.f32 %v619, %v650
    %v662 = vadd.f32 %v621, %v654
    %v663 = vadd.f32 %v570, %v642
    %v664 = vadd.f32 %v572, %v646
    %v665 = vadd.f32 %v623, %v650
    %v666 = vadd.f32 %v625, %v654
    %v667 = vadd.f32 %v576, %v642
    %v668 = vadd.f32 %v578, %v646
    %v669 = vadd.f32 %v629, %v650
    %v670 = vadd.f32 %v631, %v654
    %v671 = vadd.f32 %v580, %v642
    %v672 = vadd.f32 %v582, %v646
    %v673 = vadd.f32 %v633, %v650
    %v674 = vadd.f32 %v635, %v654
    %v707 = vunpack.c.l.b16 %v240
    %v708 = vunpack.c.h.b16 %v240
    %v709 = vunpack.c.l.b16 %v241
    %v710 = vunpack.c.h.b16 %v241
    %v711 = vunpack.c.l.b16 %v242
    %v712 = vunpack.c.h.b16 %v242
    %v713 = vunpack.c.l.b16 %v243
    %v714 = vunpack.c.h.b16 %v243
    %v715 = vunpack.c.l.b16 %v244
    %v716 = vunpack.c.h.b16 %v244
    %v717 = vunpack.c.l.b16 %v245
    %v718 = vunpack.c.h.b16 %v245
    %v719 = vunpack.c.l.b16 %v246
    %v720 = vunpack.c.h.b16 %v246
    %v721 = vunpack.c.l.b16 %v247
    %v722 = vunpack.c.h.b16 %v247
    %v723 = vunpack.c.l.b16 %v248
    %v724 = vunpack.c.h.b16 %v248
    %v725 = vunpack.c.l.b16 %v249
    %v726 = vunpack.c.h.b16 %v249
    %v727 = vunpack.c.l.b16 %v250
    %v728 = vunpack.c.h.b16 %v250
    %v729 = vunpack.c.l.b16 %v251
    %v730 = vunpack.c.h.b16 %v251
    %v731 = vunpack.c.l.b16 %v252
    %v732 = vunpack.c.h.b16 %v252
    %v733 = vunpack.c.l.b16 %v253
    %v734 = vunpack.c.h.b16 %v253
    %v735 = vunpack.c.l.b16 %v254
    %v736 = vunpack.c.h.b16 %v254
    %v737 = vunpack.c.l.b16 %v255
    %v738 = vunpack.c.h.b16 %v255
    %v739 = vunpack.c.l.b16 %v256
    %v740 = vunpack.c.h.b16 %v256
    %v741 = vunpack.c.l.b16 %v257
    %v742 = vunpack.c.h.b16 %v257
    %v743 = vunpack.c.l.b16 %v258
    %v744 = vunpack.c.h.b16 %v258
    %v745 = vunpack.c.l.b16 %v259
    %v746 = vunpack.c.h.b16 %v259
    %v747 = vunpack.c.l.b16 %v260
    %v748 = vunpack.c.h.b16 %v260
    %v749 = vunpack.c.l.b16 %v261
    %v750 = vunpack.c.h.b16 %v261
    %v751 = vunpack.c.l.b16 %v262
    %v752 = vunpack.c.h.b16 %v262
    %v753 = vunpack.c.l.b16 %v263
    %v754 = vunpack.c.h.b16 %v263
    %v755 = vunpack.c.l.b16 %v264
    %v756 = vunpack.c.h.b16 %v264
    %v757 = vunpack.c.l.b16 %v265
    %v758 = vunpack.c.h.b16 %v265
    %v759 = vunpack.c.l.b16 %v266
    %v760 = vunpack.c.h.b16 %v266
    %v761 = vunpack.c.l.b16 %v267
    %v762 = vunpack.c.h.b16 %v267
    %v763 = vunpack.c.l.b16 %v268
    %v764 = vunpack.c.h.b16 %v268
    %v765 = vunpack.c.l.b16 %v269
    %v766 = vunpack.c.h.b16 %v269
    %v767 = vunpack.c.l.b16 %v270
    %v768 = vunpack.c.h.b16 %v270
    %v769 = vunpack.c.l.b16 %v271
    %v770 = vunpack.c.h.b16 %v271
    %v771 = vpack.c.b16 %v711, %v707
    %v772 = vpack.c.b16 %v712, %v708
    %v773 = vpack.c.b16 %v713, %v709
    %v774 = vpack.c.b16 %v714, %v710
    %v775 = vpack.c.b16 %v719, %v715
    %v776 = vpack.c.b16 %v720, %v716
    %v777 = vpack.c.b16 %v721, %v717
    %v778 = vpack.c.b16 %v722, %v718
    %v779 = vpack.c.b16 %v727, %v723
    %v780 = vpack.c.b16 %v728, %v724
    %v781 = vpack.c.b16 %v729, %v725
    %v782 = vpack.c.b16 %v730, %v726
    %v783 = vpack.c.b16 %v735, %v731
    %v784 = vpack.c.b16 %v736, %v732
    %v785 = vpack.c.b16 %v737, %v733
    %v786 = vpack.c.b16 %v738, %v734
    %v787 = vpack.c.b16 %v743, %v739
    %v788 = vpack.c.b16 %v744, %v740
    %v789 = vpack.c.b16 %v745, %v741
    %v790 = vpack.c.b16 %v746, %v742
    %v791 = vpack.c.b16 %v751, %v747
    %v792 = vpack.c.b16 %v752, %v748
    %v793 = vpack.c.b16 %v753, %v749
    %v794 = vpack.c.b16 %v754, %v750
    %v795 = vpack.c.b16 %v759, %v755
    %v796 = vpack.c.b16 %v760, %v756
    %v797 = vpack.c.b16 %v761, %v757
    %v798 = vpack.c.b16 %v762, %v758
    %v799 = vpack.c.b16 %v767, %v763
    %v800 = vpack.c.b16 %v768, %v764
    %v801 = vpack.c.b16 %v769, %v765
    %v802 = vpack.c.b16 %v770, %v766
    %835 = vmatprep.subr.bf16.mxu0 %v800
    %836 = vmatpush1.bf16.msra.mxu0 %v799
    %837 = vmatprep.subr.bf16.mxu0 %v796
    %838 = vmatpush1.bf16.msra.mxu0 %v795
    %839 = vmatprep.subr.bf16.mxu0 %v792
    %840 = vmatpush1.bf16.msra.mxu0 %v791
    %841 = vmatprep.subr.bf16.mxu0 %v788
    %842 = vmatpush1.bf16.msra.mxu0 %v787
    %843 = vmatprep.subr.bf16.mxu0 %v784
    %844 = vmatpush1.bf16.msra.mxu0 %v783
    %845 = vmatprep.subr.bf16.mxu0 %v780
    %846 = vmatpush1.bf16.msra.mxu0 %v779
    %847 = vmatprep.subr.bf16.mxu0 %v776
    %848 = vmatpush1.bf16.msra.mxu0 %v775
    %849 = vmatprep.subr.bf16.mxu0 %v772
    %850 = vmatpush1.bf16.msra.mxu0 %v771
    %851 = vmatprep.subr.bf16.mxu0 0
    %852 = vmatpush2.bf16.msra.mxu0 0
    %853 = vmatprep.subr.bf16.mxu0 0
    %854 = vmatpush2.bf16.msra.mxu0 0
    %855 = vmatprep.subr.bf16.mxu0 0
    %856 = vmatpush2.bf16.msra.mxu0 0
    %857 = vmatprep.subr.bf16.mxu0 0
    %858 = vmatpush2.bf16.msra.mxu0 0
    %859 = vmatprep.subr.bf16.mxu0 0
    %860 = vmatpush2.bf16.msra.mxu0 0
    %861 = vmatprep.subr.bf16.mxu0 0
    %862 = vmatpush2.bf16.msra.mxu0 0
    %863 = vmatprep.subr.bf16.mxu0 0
    %864 = vmatpush2.bf16.msra.mxu0 0
    %865 = vmatprep.subr.bf16.mxu0 0
    %866 = vmatpush2.bf16.msra.mxu0 0
    %867 = vmatprep.mubr.bf16.mxu0 0
    %868 = vmatmul.mubr.bf16.gmra.mxu0 0
    %v869 = vpop.f32.mrf.mxu0
    %v870 = vadd.f32 0.0, %v869
    %v871 = vpop.f32.mrf.mxu0
    %v872 = vadd.f32 0.0, %v871
    %v873 = vpop.f32.mrf.mxu0
    %v874 = vpop.f32.mrf.mxu0
    %875 = vdwg.mxu0
    %876 = vmatprep.subr.bf16.mxu0 %v802
    %877 = vmatpush1.bf16.msra.mxu0 %v801
    %878 = vmatprep.subr.bf16.mxu0 %v798
    %879 = vmatpush1.bf16.msra.mxu0 %v797
    %880 = vmatprep.subr.bf16.mxu0 %v794
    %881 = vmatpush1.bf16.msra.mxu0 %v793
    %882 = vmatprep.subr.bf16.mxu0 %v790
    %883 = vmatpush1.bf16.msra.mxu0 %v789
    %884 = vmatprep.subr.bf16.mxu0 %v786
    %885 = vmatpush1.bf16.msra.mxu0 %v785
    %886 = vmatprep.subr.bf16.mxu0 %v782
    %887 = vmatpush1.bf16.msra.mxu0 %v781
    %888 = vmatprep.subr.bf16.mxu0 %v778
    %889 = vmatpush1.bf16.msra.mxu0 %v777
    %890 = vmatprep.subr.bf16.mxu0 %v774
    %891 = vmatpush1.bf16.msra.mxu0 %v773
    %892 = vmatprep.subr.bf16.mxu0 0
    %893 = vmatpush2.bf16.msra.mxu0 0
    %894 = vmatprep.subr.bf16.mxu0 0
    %895 = vmatpush2.bf16.msra.mxu0 0
    %896 = vmatprep.subr.bf16.mxu0 0
    %897 = vmatpush2.bf16.msra.mxu0 0
    %898 = vmatprep.subr.bf16.mxu0 0
    %899 = vmatpush2.bf16.msra.mxu0 0
    %900 = vmatprep.subr.bf16.mxu0 0
    %901 = vmatpush2.bf16.msra.mxu0 0
    %902 = vmatprep.subr.bf16.mxu0 0
    %903 = vmatpush2.bf16.msra.mxu0 0
    %904 = vmatprep.subr.bf16.mxu0 0
    %905 = vmatpush2.bf16.msra.mxu0 0
    %906 = vmatprep.subr.bf16.mxu0 0
    %907 = vmatpush2.bf16.msra.mxu0 0
    %908 = vmatprep.mubr.bf16.mxu0 0
    %909 = vmatmul.mubr.bf16.gmra.mxu0 0
    %v910 = vpop.f32.mrf.mxu0
    %v911 = vadd.f32 0.0, %v910
    %v912 = vpop.f32.mrf.mxu0
    %v913 = vadd.f32 0.0, %v912
    %v914 = vpop.f32.mrf.mxu0
    %v915 = vpop.f32.mrf.mxu0
    %916 = vdwg.mxu0
    %v921 = vrot.slane %v870, 1
    %v922 = vrot.slane %v872, 1
    %v923 = vrot.slane %v911, 1
    %v924 = vrot.slane %v913, 1
    %v933 = vadd.f32 %v659, %v870
    %v934 = vadd.f32 %v660, %v872
    %v935 = vadd.f32 %v661, %v911
    %v936 = vadd.f32 %v662, %v913
    %v937 = vadd.f32 %v667, %v921
    %v938 = vadd.f32 %v668, %v922
    %v939 = vadd.f32 %v669, %v923
    %v940 = vadd.f32 %v670, %v924
    %v941 = vxor.u32 %v933, 2147483648
    %v942 = vxor.u32 %v937, 2147483648
    %v943 = vmul.f32 %v941, 1.442695
    %v944 = vpow.pop %v943
    %v945 = vmul.f32 %v942, 1.442695
    %v946 = vpow.pop %v945
    %v947 = vadd.f32 %v944, 1.0
    %v948 = vadd.f32 %v946, 1.0
    %v949 = vrcp.pop %v947
    %v950 = vmul.f32 1.0, %v949
    %v951 = vrcp.pop %v948
    %v952 = vmul.f32 1.0, %v951
    %v953 = vxor.u32 %v934, 2147483648
    %v954 = vxor.u32 %v938, 2147483648
    %v955 = vmul.f32 %v953, 1.442695
    %v956 = vpow.pop %v955
    %v957 = vmul.f32 %v954, 1.442695
    %v958 = vpow.pop %v957
    %v959 = vadd.f32 %v956, 1.0
    %v960 = vadd.f32 %v958, 1.0
    %v961 = vrcp.pop %v959
    %v962 = vmul.f32 1.0, %v961
    %v963 = vrcp.pop %v960
    %v964 = vmul.f32 1.0, %v963
    %v965 = vtanh.pop %v935
    %v966 = vtanh.pop %v939
    %v967 = vxor.u32 %v936, 2147483648
    %v968 = vxor.u32 %v940, 2147483648
    %v969 = vmul.f32 %v967, 1.442695
    %v970 = vpow.pop %v969
    %v971 = vmul.f32 %v968, 1.442695
    %v972 = vpow.pop %v971
    %v973 = vadd.f32 %v970, 1.0
    %v974 = vadd.f32 %v972, 1.0
    %v975 = vrcp.pop %v973
    %v976 = vmul.f32 1.0, %v975
    %v977 = vrcp.pop %v974
    %v978 = vmul.f32 1.0, %v977
    %v979 = vmul.f32 %v962, 0.0
    %v980 = vmul.f32 %v964, 0.0
    %v981 = vmul.f32 %v950, %v965
    %v982 = vmul.f32 %v952, %v966
    %v983 = vadd.f32 %v979, %v981
    %v984 = vadd.f32 %v980, %v982
    %v985 = vtanh.pop %v983
    %v986 = vtanh.pop %v984
    %v987 = vmul.f32 %v976, %v985
    %v988 = vmul.f32 %v978, %v986
    %v989 = vpack.c.bf16 %v987, %v987
    %v990 = vpack.c.bf16 %v988, %v988
    %v992 = vlaneseq
    %v993 = vshrl.u32 %v992, 7
    %v994 = vsub.s32 0, %v993
    %v995 = vrot.slane %v336, %v994
    %v996 = vlaneseq
    %v997 = vshrl.u32 %v996, 7
    %v998 = vsub.s32 1, %v997
    %v999 = vrot.slane %v336, %v998
    %v1000 = vlaneseq
    %v1001 = vshrl.u32 %v1000, 7
    %v1002 = vsub.s32 2, %v1001
    %v1003 = vrot.slane %v336, %v1002
    %v1004 = vlaneseq
    %v1005 = vshrl.u32 %v1004, 7
    %v1006 = vsub.s32 3, %v1005
    %v1007 = vrot.slane %v336, %v1006
    %v1014 = vunpack.c.l.b16 %v989
    %v1015 = vunpack.c.l.b16 %v990
    %v1016 = vrot.slane %v1015, 7
    %vm1017 = vcmask 1041409
    %v1018 = vsel %vm1017, %v1016, %v1014
    %v1019 = vpack.c.b16 %v1018, %v1018
    %v1053 = vunpack.c.l.b16 %v272
    %v1054 = vunpack.c.h.b16 %v272
    %v1055 = vunpack.c.l.b16 %v273
    %v1056 = vunpack.c.h.b16 %v273
    %v1057 = vunpack.c.l.b16 %v274
    %v1058 = vunpack.c.h.b16 %v274
    %v1059 = vunpack.c.l.b16 %v275
    %v1060 = vunpack.c.h.b16 %v275
    %v1061 = vunpack.c.l.b16 %v276
    %v1062 = vunpack.c.h.b16 %v276
    %v1063 = vunpack.c.l.b16 %v277
    %v1064 = vunpack.c.h.b16 %v277
    %v1065 = vunpack.c.l.b16 %v278
    %v1066 = vunpack.c.h.b16 %v278
    %v1067 = vunpack.c.l.b16 %v279
    %v1068 = vunpack.c.h.b16 %v279
    %v1069 = vunpack.c.l.b16 %v280
    %v1070 = vunpack.c.h.b16 %v280
    %v1071 = vunpack.c.l.b16 %v281
    %v1072 = vunpack.c.h.b16 %v281
    %v1073 = vunpack.c.l.b16 %v282
    %v1074 = vunpack.c.h.b16 %v282
    %v1075 = vunpack.c.l.b16 %v283
    %v1076 = vunpack.c.h.b16 %v283
    %v1077 = vunpack.c.l.b16 %v284
    %v1078 = vunpack.c.h.b16 %v284
    %v1079 = vunpack.c.l.b16 %v285
    %v1080 = vunpack.c.h.b16 %v285
    %v1081 = vunpack.c.l.b16 %v286
    %v1082 = vunpack.c.h.b16 %v286
    %v1083 = vunpack.c.l.b16 %v287
    %v1084 = vunpack.c.h.b16 %v287
    %v1085 = vunpack.c.l.b16 %v288
    %v1086 = vunpack.c.h.b16 %v288
    %v1087 = vunpack.c.l.b16 %v289
    %v1088 = vunpack.c.h.b16 %v289
    %v1089 = vunpack.c.l.b16 %v290
    %v1090 = vunpack.c.h.b16 %v290
    %v1091 = vunpack.c.l.b16 %v291
    %v1092 = vunpack.c.h.b16 %v291
    %v1093 = vunpack.c.l.b16 %v292
    %v1094 = vunpack.c.h.b16 %v292
    %v1095 = vunpack.c.l.b16 %v293
    %v1096 = vunpack.c.h.b16 %v293
    %v1097 = vunpack.c.l.b16 %v294
    %v1098 = vunpack.c.h.b16 %v294
    %v1099 = vunpack.c.l.b16 %v295
    %v1100 = vunpack.c.h.b16 %v295
    %v1101 = vunpack.c.l.b16 %v296
    %v1102 = vunpack.c.h.b16 %v296
    %v1103 = vunpack.c.l.b16 %v297
    %v1104 = vunpack.c.h.b16 %v297
    %v1105 = vunpack.c.l.b16 %v298
    %v1106 = vunpack.c.h.b16 %v298
    %v1107 = vunpack.c.l.b16 %v299
    %v1108 = vunpack.c.h.b16 %v299
    %v1109 = vunpack.c.l.b16 %v300
    %v1110 = vunpack.c.h.b16 %v300
    %v1111 = vunpack.c.l.b16 %v301
    %v1112 = vunpack.c.h.b16 %v301
    %v1113 = vunpack.c.l.b16 %v302
    %v1114 = vunpack.c.h.b16 %v302
    %v1115 = vunpack.c.l.b16 %v303
    %v1116 = vunpack.c.h.b16 %v303
    %v1117 = vpack.c.b16 %v1057, %v1053
    %v1118 = vpack.c.b16 %v1058, %v1054
    %v1119 = vpack.c.b16 %v1059, %v1055
    %v1120 = vpack.c.b16 %v1060, %v1056
    %v1121 = vpack.c.b16 %v1065, %v1061
    %v1122 = vpack.c.b16 %v1066, %v1062
    %v1123 = vpack.c.b16 %v1067, %v1063
    %v1124 = vpack.c.b16 %v1068, %v1064
    %v1125 = vpack.c.b16 %v1073, %v1069
    %v1126 = vpack.c.b16 %v1074, %v1070
    %v1127 = vpack.c.b16 %v1075, %v1071
    %v1128 = vpack.c.b16 %v1076, %v1072
    %v1129 = vpack.c.b16 %v1081, %v1077
    %v1130 = vpack.c.b16 %v1082, %v1078
    %v1131 = vpack.c.b16 %v1083, %v1079
    %v1132 = vpack.c.b16 %v1084, %v1080
    %v1133 = vpack.c.b16 %v1089, %v1085
    %v1134 = vpack.c.b16 %v1090, %v1086
    %v1135 = vpack.c.b16 %v1091, %v1087
    %v1136 = vpack.c.b16 %v1092, %v1088
    %v1137 = vpack.c.b16 %v1097, %v1093
    %v1138 = vpack.c.b16 %v1098, %v1094
    %v1139 = vpack.c.b16 %v1099, %v1095
    %v1140 = vpack.c.b16 %v1100, %v1096
    %v1141 = vpack.c.b16 %v1105, %v1101
    %v1142 = vpack.c.b16 %v1106, %v1102
    %v1143 = vpack.c.b16 %v1107, %v1103
    %v1144 = vpack.c.b16 %v1108, %v1104
    %v1145 = vpack.c.b16 %v1113, %v1109
    %v1146 = vpack.c.b16 %v1114, %v1110
    %v1147 = vpack.c.b16 %v1115, %v1111
    %v1148 = vpack.c.b16 %v1116, %v1112
    %1181 = vmatprep.subr.bf16.mxu0 %v1146
    %1182 = vmatpush1.bf16.msra.mxu0 %v1145
    %1183 = vmatprep.subr.bf16.mxu0 %v1142
    %1184 = vmatpush1.bf16.msra.mxu0 %v1141
    %1185 = vmatprep.subr.bf16.mxu0 %v1138
    %1186 = vmatpush1.bf16.msra.mxu0 %v1137
    %1187 = vmatprep.subr.bf16.mxu0 %v1134
    %1188 = vmatpush1.bf16.msra.mxu0 %v1133
    %1189 = vmatprep.subr.bf16.mxu0 %v1130
    %1190 = vmatpush1.bf16.msra.mxu0 %v1129
    %1191 = vmatprep.subr.bf16.mxu0 %v1126
    %1192 = vmatpush1.bf16.msra.mxu0 %v1125
    %1193 = vmatprep.subr.bf16.mxu0 %v1122
    %1194 = vmatpush1.bf16.msra.mxu0 %v1121
    %1195 = vmatprep.subr.bf16.mxu0 %v1118
    %1196 = vmatpush1.bf16.msra.mxu0 %v1117
    %1197 = vmatprep.subr.bf16.mxu0 0
    %1198 = vmatpush2.bf16.msra.mxu0 0
    %1199 = vmatprep.subr.bf16.mxu0 0
    %1200 = vmatpush2.bf16.msra.mxu0 0
    %1201 = vmatprep.subr.bf16.mxu0 0
    %1202 = vmatpush2.bf16.msra.mxu0 0
    %1203 = vmatprep.subr.bf16.mxu0 0
    %1204 = vmatpush2.bf16.msra.mxu0 0
    %1205 = vmatprep.subr.bf16.mxu0 0
    %1206 = vmatpush2.bf16.msra.mxu0 0
    %1207 = vmatprep.subr.bf16.mxu0 0
    %1208 = vmatpush2.bf16.msra.mxu0 0
    %1209 = vmatprep.subr.bf16.mxu0 0
    %1210 = vmatpush2.bf16.msra.mxu0 0
    %1211 = vmatprep.subr.bf16.mxu0 0
    %1212 = vmatpush2.bf16.msra.mxu0 0
    %1213 = vmatprep.mubr.bf16.mxu0 0
    %1214 = vmatmul.mubr.bf16.gmra.mxu0 %v1019
    %v1215 = vpop.f32.mrf.mxu0
    %v1216 = vadd.f32 %v995, %v1215
    %v1217 = vpop.f32.mrf.mxu0
    %v1218 = vadd.f32 %v999, %v1217
    %v1219 = vpop.f32.mrf.mxu0
    %v1220 = vpop.f32.mrf.mxu0
    %1221 = vdwg.mxu0
    %1222 = vmatprep.subr.bf16.mxu0 %v1148
    %1223 = vmatpush1.bf16.msra.mxu0 %v1147
    %1224 = vmatprep.subr.bf16.mxu0 %v1144
    %1225 = vmatpush1.bf16.msra.mxu0 %v1143
    %1226 = vmatprep.subr.bf16.mxu0 %v1140
    %1227 = vmatpush1.bf16.msra.mxu0 %v1139
    %1228 = vmatprep.subr.bf16.mxu0 %v1136
    %1229 = vmatpush1.bf16.msra.mxu0 %v1135
    %1230 = vmatprep.subr.bf16.mxu0 %v1132
    %1231 = vmatpush1.bf16.msra.mxu0 %v1131
    %1232 = vmatprep.subr.bf16.mxu0 %v1128
    %1233 = vmatpush1.bf16.msra.mxu0 %v1127
    %1234 = vmatprep.subr.bf16.mxu0 %v1124
    %1235 = vmatpush1.bf16.msra.mxu0 %v1123
    %1236 = vmatprep.subr.bf16.mxu0 %v1120
    %1237 = vmatpush1.bf16.msra.mxu0 %v1119
    %1238 = vmatprep.subr.bf16.mxu0 0
    %1239 = vmatpush2.bf16.msra.mxu0 0
    %1240 = vmatprep.subr.bf16.mxu0 0
    %1241 = vmatpush2.bf16.msra.mxu0 0
    %1242 = vmatprep.subr.bf16.mxu0 0
    %1243 = vmatpush2.bf16.msra.mxu0 0
    %1244 = vmatprep.subr.bf16.mxu0 0
    %1245 = vmatpush2.bf16.msra.mxu0 0
    %1246 = vmatprep.subr.bf16.mxu0 0
    %1247 = vmatpush2.bf16.msra.mxu0 0
    %1248 = vmatprep.subr.bf16.mxu0 0
    %1249 = vmatpush2.bf16.msra.mxu0 0
    %1250 = vmatprep.subr.bf16.mxu0 0
    %1251 = vmatpush2.bf16.msra.mxu0 0
    %1252 = vmatprep.subr.bf16.mxu0 0
    %1253 = vmatpush2.bf16.msra.mxu0 0
    %1254 = vmatprep.mubr.bf16.mxu0 0
    %1255 = vmatmul.mubr.bf16.gmra.mxu0 %v1019
    %v1256 = vpop.f32.mrf.mxu0
    %v1257 = vadd.f32 %v1003, %v1256
    %v1258 = vpop.f32.mrf.mxu0
    %v1259 = vadd.f32 %v1007, %v1258
    %v1260 = vpop.f32.mrf.mxu0
    %v1261 = vpop.f32.mrf.mxu0
    %1262 = vdwg.mxu0
    %v1295 = vunpack.c.l.b16 %v304
    %v1296 = vunpack.c.h.b16 %v304
    %v1297 = vunpack.c.l.b16 %v305
    %v1298 = vunpack.c.h.b16 %v305
    %v1299 = vunpack.c.l.b16 %v306
    %v1300 = vunpack.c.h.b16 %v306
    %v1301 = vunpack.c.l.b16 %v307
    %v1302 = vunpack.c.h.b16 %v307
    %v1303 = vunpack.c.l.b16 %v308
    %v1304 = vunpack.c.h.b16 %v308
    %v1305 = vunpack.c.l.b16 %v309
    %v1306 = vunpack.c.h.b16 %v309
    %v1307 = vunpack.c.l.b16 %v310
    %v1308 = vunpack.c.h.b16 %v310
    %v1309 = vunpack.c.l.b16 %v311
    %v1310 = vunpack.c.h.b16 %v311
    %v1311 = vunpack.c.l.b16 %v312
    %v1312 = vunpack.c.h.b16 %v312
    %v1313 = vunpack.c.l.b16 %v313
    %v1314 = vunpack.c.h.b16 %v313
    %v1315 = vunpack.c.l.b16 %v314
    %v1316 = vunpack.c.h.b16 %v314
    %v1317 = vunpack.c.l.b16 %v315
    %v1318 = vunpack.c.h.b16 %v315
    %v1319 = vunpack.c.l.b16 %v316
    %v1320 = vunpack.c.h.b16 %v316
    %v1321 = vunpack.c.l.b16 %v317
    %v1322 = vunpack.c.h.b16 %v317
    %v1323 = vunpack.c.l.b16 %v318
    %v1324 = vunpack.c.h.b16 %v318
    %v1325 = vunpack.c.l.b16 %v319
    %v1326 = vunpack.c.h.b16 %v319
    %v1327 = vunpack.c.l.b16 %v320
    %v1328 = vunpack.c.h.b16 %v320
    %v1329 = vunpack.c.l.b16 %v321
    %v1330 = vunpack.c.h.b16 %v321
    %v1331 = vunpack.c.l.b16 %v322
    %v1332 = vunpack.c.h.b16 %v322
    %v1333 = vunpack.c.l.b16 %v323
    %v1334 = vunpack.c.h.b16 %v323
    %v1335 = vunpack.c.l.b16 %v324
    %v1336 = vunpack.c.h.b16 %v324
    %v1337 = vunpack.c.l.b16 %v325
    %v1338 = vunpack.c.h.b16 %v325
    %v1339 = vunpack.c.l.b16 %v326
    %v1340 = vunpack.c.h.b16 %v326
    %v1341 = vunpack.c.l.b16 %v327
    %v1342 = vunpack.c.h.b16 %v327
    %v1343 = vunpack.c.l.b16 %v328
    %v1344 = vunpack.c.h.b16 %v328
    %v1345 = vunpack.c.l.b16 %v329
    %v1346 = vunpack.c.h.b16 %v329
    %v1347 = vunpack.c.l.b16 %v330
    %v1348 = vunpack.c.h.b16 %v330
    %v1349 = vunpack.c.l.b16 %v331
    %v1350 = vunpack.c.h.b16 %v331
    %v1351 = vunpack.c.l.b16 %v332
    %v1352 = vunpack.c.h.b16 %v332
    %v1353 = vunpack.c.l.b16 %v333
    %v1354 = vunpack.c.h.b16 %v333
    %v1355 = vunpack.c.l.b16 %v334
    %v1356 = vunpack.c.h.b16 %v334
    %v1357 = vunpack.c.l.b16 %v335
    %v1358 = vunpack.c.h.b16 %v335
    %v1359 = vpack.c.b16 %v1299, %v1295
    %v1360 = vpack.c.b16 %v1300, %v1296
    %v1361 = vpack.c.b16 %v1301, %v1297
    %v1362 = vpack.c.b16 %v1302, %v1298
    %v1363 = vpack.c.b16 %v1307, %v1303
    %v1364 = vpack.c.b16 %v1308, %v1304
    %v1365 = vpack.c.b16 %v1309, %v1305
    %v1366 = vpack.c.b16 %v1310, %v1306
    %v1367 = vpack.c.b16 %v1315, %v1311
    %v1368 = vpack.c.b16 %v1316, %v1312
    %v1369 = vpack.c.b16 %v1317, %v1313
    %v1370 = vpack.c.b16 %v1318, %v1314
    %v1371 = vpack.c.b16 %v1323, %v1319
    %v1372 = vpack.c.b16 %v1324, %v1320
    %v1373 = vpack.c.b16 %v1325, %v1321
    %v1374 = vpack.c.b16 %v1326, %v1322
    %v1375 = vpack.c.b16 %v1331, %v1327
    %v1376 = vpack.c.b16 %v1332, %v1328
    %v1377 = vpack.c.b16 %v1333, %v1329
    %v1378 = vpack.c.b16 %v1334, %v1330
    %v1379 = vpack.c.b16 %v1339, %v1335
    %v1380 = vpack.c.b16 %v1340, %v1336
    %v1381 = vpack.c.b16 %v1341, %v1337
    %v1382 = vpack.c.b16 %v1342, %v1338
    %v1383 = vpack.c.b16 %v1347, %v1343
    %v1384 = vpack.c.b16 %v1348, %v1344
    %v1385 = vpack.c.b16 %v1349, %v1345
    %v1386 = vpack.c.b16 %v1350, %v1346
    %v1387 = vpack.c.b16 %v1355, %v1351
    %v1388 = vpack.c.b16 %v1356, %v1352
    %v1389 = vpack.c.b16 %v1357, %v1353
    %v1390 = vpack.c.b16 %v1358, %v1354
    %1423 = vmatprep.subr.bf16.mxu0 %v1388
    %1424 = vmatpush1.bf16.msra.mxu0 %v1387
    %1425 = vmatprep.subr.bf16.mxu0 %v1384
    %1426 = vmatpush1.bf16.msra.mxu0 %v1383
    %1427 = vmatprep.subr.bf16.mxu0 %v1380
    %1428 = vmatpush1.bf16.msra.mxu0 %v1379
    %1429 = vmatprep.subr.bf16.mxu0 %v1376
    %1430 = vmatpush1.bf16.msra.mxu0 %v1375
    %1431 = vmatprep.subr.bf16.mxu0 %v1372
    %1432 = vmatpush1.bf16.msra.mxu0 %v1371
    %1433 = vmatprep.subr.bf16.mxu0 %v1368
    %1434 = vmatpush1.bf16.msra.mxu0 %v1367
    %1435 = vmatprep.subr.bf16.mxu0 %v1364
    %1436 = vmatpush1.bf16.msra.mxu0 %v1363
    %1437 = vmatprep.subr.bf16.mxu0 %v1360
    %1438 = vmatpush1.bf16.msra.mxu0 %v1359
    %1439 = vmatprep.subr.bf16.mxu0 0
    %1440 = vmatpush2.bf16.msra.mxu0 0
    %1441 = vmatprep.subr.bf16.mxu0 0
    %1442 = vmatpush2.bf16.msra.mxu0 0
    %1443 = vmatprep.subr.bf16.mxu0 0
    %1444 = vmatpush2.bf16.msra.mxu0 0
    %1445 = vmatprep.subr.bf16.mxu0 0
    %1446 = vmatpush2.bf16.msra.mxu0 0
    %1447 = vmatprep.subr.bf16.mxu0 0
    %1448 = vmatpush2.bf16.msra.mxu0 0
    %1449 = vmatprep.subr.bf16.mxu0 0
    %1450 = vmatpush2.bf16.msra.mxu0 0
    %1451 = vmatprep.subr.bf16.mxu0 0
    %1452 = vmatpush2.bf16.msra.mxu0 0
    %1453 = vmatprep.subr.bf16.mxu0 0
    %1454 = vmatpush2.bf16.msra.mxu0 0
    %1455 = vmatprep.mubr.bf16.mxu0 0
    %1456 = vmatmul.mubr.bf16.gmra.mxu0 0
    %v1457 = vpop.f32.mrf.mxu0
    %v1458 = vadd.f32 0.0, %v1457
    %v1459 = vpop.f32.mrf.mxu0
    %v1460 = vadd.f32 0.0, %v1459
    %v1461 = vpop.f32.mrf.mxu0
    %v1462 = vpop.f32.mrf.mxu0
    %1463 = vdwg.mxu0
    %1464 = vmatprep.subr.bf16.mxu0 %v1390
    %1465 = vmatpush1.bf16.msra.mxu0 %v1389
    %1466 = vmatprep.subr.bf16.mxu0 %v1386
    %1467 = vmatpush1.bf16.msra.mxu0 %v1385
    %1468 = vmatprep.subr.bf16.mxu0 %v1382
    %1469 = vmatpush1.bf16.msra.mxu0 %v1381
    %1470 = vmatprep.subr.bf16.mxu0 %v1378
    %1471 = vmatpush1.bf16.msra.mxu0 %v1377
    %1472 = vmatprep.subr.bf16.mxu0 %v1374
    %1473 = vmatpush1.bf16.msra.mxu0 %v1373
    %1474 = vmatprep.subr.bf16.mxu0 %v1370
    %1475 = vmatpush1.bf16.msra.mxu0 %v1369
    %1476 = vmatprep.subr.bf16.mxu0 %v1366
    %1477 = vmatpush1.bf16.msra.mxu0 %v1365
    %1478 = vmatprep.subr.bf16.mxu0 %v1362
    %1479 = vmatpush1.bf16.msra.mxu0 %v1361
    %1480 = vmatprep.subr.bf16.mxu0 0
    %1481 = vmatpush2.bf16.msra.mxu0 0
    %1482 = vmatprep.subr.bf16.mxu0 0
    %1483 = vmatpush2.bf16.msra.mxu0 0
    %1484 = vmatprep.subr.bf16.mxu0 0
    %1485 = vmatpush2.bf16.msra.mxu0 0
    %1486 = vmatprep.subr.bf16.mxu0 0
    %1487 = vmatpush2.bf16.msra.mxu0 0
    %1488 = vmatprep.subr.bf16.mxu0 0
    %1489 = vmatpush2.bf16.msra.mxu0 0
    %1490 = vmatprep.subr.bf16.mxu0 0
    %1491 = vmatpush2.bf16.msra.mxu0 0
    %1492 = vmatprep.subr.bf16.mxu0 0
    %1493 = vmatpush2.bf16.msra.mxu0 0
    %1494 = vmatprep.subr.bf16.mxu0 0
    %1495 = vmatpush2.bf16.msra.mxu0 0
    %1496 = vmatprep.mubr.bf16.mxu0 0
    %1497 = vmatmul.mubr.bf16.gmra.mxu0 0
    %v1498 = vpop.f32.mrf.mxu0
    %v1499 = vadd.f32 0.0, %v1498
    %v1500 = vpop.f32.mrf.mxu0
    %v1501 = vadd.f32 0.0, %v1500
    %v1502 = vpop.f32.mrf.mxu0
    %v1503 = vpop.f32.mrf.mxu0
    %1504 = vdwg.mxu0
    %v1505 = vadd.f32 %v1216, %v1458
    %v1506 = vadd.f32 %v1218, %v1460
    %v1507 = vadd.f32 %v1257, %v1499
    %v1508 = vadd.f32 %v1259, %v1501
    %v1509 = vxor.u32 %v1505, 2147483648
    %v1510 = vmul.f32 %v1509, 1.442695
    %v1511 = vpow.pop %v1510
    %v1512 = vadd.f32 %v1511, 1.0
    %v1513 = vrcp.pop %v1512
    %v1514 = vmul.f32 1.0, %v1513
    %v1515 = vxor.u32 %v1506, 2147483648
    %v1516 = vmul.f32 %v1515, 1.442695
    %v1517 = vpow.pop %v1516
    %v1518 = vadd.f32 %v1517, 1.0
    %v1519 = vrcp.pop %v1518
    %v1520 = vmul.f32 1.0, %v1519
    %v1521 = vtanh.pop %v1507
    %v1522 = vxor.u32 %v1508, 2147483648
    %v1523 = vmul.f32 %v1522, 1.442695
    %v1524 = vpow.pop %v1523
    %v1525 = vadd.f32 %v1524, 1.0
    %v1526 = vrcp.pop %v1525
    %v1527 = vmul.f32 1.0, %v1526
    %v1528 = vmul.f32 %v1520, 0.0
    %v1529 = vmul.f32 %v1514, %v1521
    %v1530 = vadd.f32 %v1528, %v1529
    %v1531 = vtanh.pop %v1530
    %v1532 = vmul.f32 %v1527, %v1531
    %1533 = vmatprep.subr.bf16.mxu0 %v800
    %1534 = vmatpush1.bf16.msra.mxu0 %v799
    %1535 = vmatprep.subr.bf16.mxu0 %v796
    %1536 = vmatpush1.bf16.msra.mxu0 %v795
    %1537 = vmatprep.subr.bf16.mxu0 %v792
    %1538 = vmatpush1.bf16.msra.mxu0 %v791
    %1539 = vmatprep.subr.bf16.mxu0 %v788
    %1540 = vmatpush1.bf16.msra.mxu0 %v787
    %1541 = vmatprep.subr.bf16.mxu0 %v784
    %1542 = vmatpush1.bf16.msra.mxu0 %v783
    %1543 = vmatprep.subr.bf16.mxu0 %v780
    %1544 = vmatpush1.bf16.msra.mxu0 %v779
    %1545 = vmatprep.subr.bf16.mxu0 %v776
    %1546 = vmatpush1.bf16.msra.mxu0 %v775
    %1547 = vmatprep.subr.bf16.mxu0 %v772
    %1548 = vmatpush1.bf16.msra.mxu0 %v771
    %1549 = vmatprep.subr.bf16.mxu0 0
    %1550 = vmatpush2.bf16.msra.mxu0 0
    %1551 = vmatprep.subr.bf16.mxu0 0
    %1552 = vmatpush2.bf16.msra.mxu0 0
    %1553 = vmatprep.subr.bf16.mxu0 0
    %1554 = vmatpush2.bf16.msra.mxu0 0
    %1555 = vmatprep.subr.bf16.mxu0 0
    %1556 = vmatpush2.bf16.msra.mxu0 0
    %1557 = vmatprep.subr.bf16.mxu0 0
    %1558 = vmatpush2.bf16.msra.mxu0 0
    %1559 = vmatprep.subr.bf16.mxu0 0
    %1560 = vmatpush2.bf16.msra.mxu0 0
    %1561 = vmatprep.subr.bf16.mxu0 0
    %1562 = vmatpush2.bf16.msra.mxu0 0
    %1563 = vmatprep.subr.bf16.mxu0 0
    %1564 = vmatpush2.bf16.msra.mxu0 0
    %1565 = vmatprep.mubr.bf16.mxu0 0
    %1566 = vmatmul.mubr.bf16.gmra.mxu0 %v1019
    %v1567 = vpop.f32.mrf.mxu0
    %v1568 = vadd.f32 0.0, %v1567
    %v1569 = vpop.f32.mrf.mxu0
    %v1570 = vadd.f32 0.0, %v1569
    %v1571 = vpop.f32.mrf.mxu0
    %v1572 = vpop.f32.mrf.mxu0
    %1573 = vdwg.mxu0
    %1574 = vmatprep.subr.bf16.mxu0 %v802
    %1575 = vmatpush1.bf16.msra.mxu0 %v801
    %1576 = vmatprep.subr.bf16.mxu0 %v798
    %1577 = vmatpush1.bf16.msra.mxu0 %v797
    %1578 = vmatprep.subr.bf16.mxu0 %v794
    %1579 = vmatpush1.bf16.msra.mxu0 %v793
    %1580 = vmatprep.subr.bf16.mxu0 %v790
    %1581 = vmatpush1.bf16.msra.mxu0 %v789
    %1582 = vmatprep.subr.bf16.mxu0 %v786
    %1583 = vmatpush1.bf16.msra.mxu0 %v785
    %1584 = vmatprep.subr.bf16.mxu0 %v782
    %1585 = vmatpush1.bf16.msra.mxu0 %v781
    %1586 = vmatprep.subr.bf16.mxu0 %v778
    %1587 = vmatpush1.bf16.msra.mxu0 %v777
    %1588 = vmatprep.subr.bf16.mxu0 %v774
    %1589 = vmatpush1.bf16.msra.mxu0 %v773
    %1590 = vmatprep.subr.bf16.mxu0 0
    %1591 = vmatpush2.bf16.msra.mxu0 0
    %1592 = vmatprep.subr.bf16.mxu0 0
    %1593 = vmatpush2.bf16.msra.mxu0 0
    %1594 = vmatprep.subr.bf16.mxu0 0
    %1595 = vmatpush2.bf16.msra.mxu0 0
    %1596 = vmatprep.subr.bf16.mxu0 0
    %1597 = vmatpush2.bf16.msra.mxu0 0
    %1598 = vmatprep.subr.bf16.mxu0 0
    %1599 = vmatpush2.bf16.msra.mxu0 0
    %1600 = vmatprep.subr.bf16.mxu0 0
    %1601 = vmatpush2.bf16.msra.mxu0 0
    %1602 = vmatprep.subr.bf16.mxu0 0
    %1603 = vmatpush2.bf16.msra.mxu0 0
    %1604 = vmatprep.subr.bf16.mxu0 0
    %1605 = vmatpush2.bf16.msra.mxu0 0
    %1606 = vmatprep.mubr.bf16.mxu0 0
    %1607 = vmatmul.mubr.bf16.gmra.mxu0 %v1019
    %v1608 = vpop.f32.mrf.mxu0
    %v1609 = vadd.f32 0.0, %v1608
    %v1610 = vpop.f32.mrf.mxu0
    %v1611 = vadd.f32 0.0, %v1610
    %v1612 = vpop.f32.mrf.mxu0
    %v1613 = vpop.f32.mrf.mxu0
    %1614 = vdwg.mxu0
    %v1619 = vrot.slane %v1568, 7
    %v1620 = vrot.slane %v1570, 7
    %v1621 = vrot.slane %v1609, 7
    %v1622 = vrot.slane %v1611, 7
    %v1631 = vadd.f32 %v659, %v1619
    %v1632 = vadd.f32 %v660, %v1620
    %v1633 = vadd.f32 %v661, %v1621
    %v1634 = vadd.f32 %v662, %v1622
    %v1635 = vadd.f32 %v667, %v1568
    %v1636 = vadd.f32 %v668, %v1570
    %v1637 = vadd.f32 %v669, %v1609
    %v1638 = vadd.f32 %v670, %v1611
    %v1639 = vxor.u32 %v1631, 2147483648
    %v1640 = vxor.u32 %v1635, 2147483648
    %v1641 = vmul.f32 %v1639, 1.442695
    %v1642 = vpow.pop %v1641
    %v1643 = vmul.f32 %v1640, 1.442695
    %v1644 = vpow.pop %v1643
    %v1645 = vadd.f32 %v1642, 1.0
    %v1646 = vadd.f32 %v1644, 1.0
    %v1647 = vrcp.pop %v1645
    %v1648 = vmul.f32 1.0, %v1647
    %v1649 = vrcp.pop %v1646
    %v1650 = vmul.f32 1.0, %v1649
    %v1651 = vxor.u32 %v1632, 2147483648
    %v1652 = vxor.u32 %v1636, 2147483648
    %v1653 = vmul.f32 %v1651, 1.442695
    %v1654 = vpow.pop %v1653
    %v1655 = vmul.f32 %v1652, 1.442695
    %v1656 = vpow.pop %v1655
    %v1657 = vadd.f32 %v1654, 1.0
    %v1658 = vadd.f32 %v1656, 1.0
    %v1659 = vrcp.pop %v1657
    %v1660 = vmul.f32 1.0, %v1659
    %v1661 = vrcp.pop %v1658
    %v1662 = vmul.f32 1.0, %v1661
    %v1663 = vtanh.pop %v1633
    %v1664 = vtanh.pop %v1637
    %v1665 = vxor.u32 %v1634, 2147483648
    %v1666 = vxor.u32 %v1638, 2147483648
    %v1667 = vmul.f32 %v1665, 1.442695
    %v1668 = vpow.pop %v1667
    %v1669 = vmul.f32 %v1666, 1.442695
    %v1670 = vpow.pop %v1669
    %v1671 = vadd.f32 %v1668, 1.0
    %v1672 = vadd.f32 %v1670, 1.0
    %v1673 = vrcp.pop %v1671
    %v1674 = vmul.f32 1.0, %v1673
    %v1675 = vrcp.pop %v1672
    %v1676 = vmul.f32 1.0, %v1675
    %v1679 = vrot.slane %v983, 7
    %v1680 = vrot.slane %v984, 7
    %v1683 = vmul.f32 %v1660, %v1679
    %v1684 = vmul.f32 %v1662, %v1680
    %v1685 = vmul.f32 %v1648, %v1663
    %v1686 = vmul.f32 %v1650, %v1664
    %v1687 = vadd.f32 %v1683, %v1685
    %v1688 = vadd.f32 %v1684, %v1686
    %v1689 = vtanh.pop %v1687
    %v1690 = vtanh.pop %v1688
    %v1691 = vmul.f32 %v1674, %v1689
    %v1692 = vmul.f32 %v1676, %v1690
    %v1693 = vpack.c.bf16 %v1691, %v1691
    %v1694 = vpack.c.bf16 %v1692, %v1692
    %v1697 = vunpack.c.l.b16 %v1693
    %v1698 = vunpack.c.l.b16 %v1694
    %v1699 = vrot.slane %v1697, 1
    %v1700 = vsel %vm1017, %v1698, %v1699
    %v1701 = vpack.c.b16 %v1700, %v1700
    %1703 = vmatprep.subr.bf16.mxu0 %v1146
    %1704 = vmatpush1.bf16.msra.mxu0 %v1145
    %1705 = vmatprep.subr.bf16.mxu0 %v1142
    %1706 = vmatpush1.bf16.msra.mxu0 %v1141
    %1707 = vmatprep.subr.bf16.mxu0 %v1138
    %1708 = vmatpush1.bf16.msra.mxu0 %v1137
    %1709 = vmatprep.subr.bf16.mxu0 %v1134
    %1710 = vmatpush1.bf16.msra.mxu0 %v1133
    %1711 = vmatprep.subr.bf16.mxu0 %v1130
    %1712 = vmatpush1.bf16.msra.mxu0 %v1129
    %1713 = vmatprep.subr.bf16.mxu0 %v1126
    %1714 = vmatpush1.bf16.msra.mxu0 %v1125
    %1715 = vmatprep.subr.bf16.mxu0 %v1122
    %1716 = vmatpush1.bf16.msra.mxu0 %v1121
    %1717 = vmatprep.subr.bf16.mxu0 %v1118
    %1718 = vmatpush1.bf16.msra.mxu0 %v1117
    %1719 = vmatprep.subr.bf16.mxu0 0
    %1720 = vmatpush2.bf16.msra.mxu0 0
    %1721 = vmatprep.subr.bf16.mxu0 0
    %1722 = vmatpush2.bf16.msra.mxu0 0
    %1723 = vmatprep.subr.bf16.mxu0 0
    %1724 = vmatpush2.bf16.msra.mxu0 0
    %1725 = vmatprep.subr.bf16.mxu0 0
    %1726 = vmatpush2.bf16.msra.mxu0 0
    %1727 = vmatprep.subr.bf16.mxu0 0
    %1728 = vmatpush2.bf16.msra.mxu0 0
    %1729 = vmatprep.subr.bf16.mxu0 0
    %1730 = vmatpush2.bf16.msra.mxu0 0
    %1731 = vmatprep.subr.bf16.mxu0 0
    %1732 = vmatpush2.bf16.msra.mxu0 0
    %1733 = vmatprep.subr.bf16.mxu0 0
    %1734 = vmatpush2.bf16.msra.mxu0 0
    %1735 = vmatprep.mubr.bf16.mxu0 0
    %1736 = vmatmul.mubr.bf16.gmra.mxu0 %v1701
    %v1737 = vpop.f32.mrf.mxu0
    %v1738 = vadd.f32 %v995, %v1737
    %v1739 = vpop.f32.mrf.mxu0
    %v1740 = vadd.f32 %v999, %v1739
    %v1741 = vpop.f32.mrf.mxu0
    %v1742 = vpop.f32.mrf.mxu0
    %1743 = vdwg.mxu0
    %1744 = vmatprep.subr.bf16.mxu0 %v1148
    %1745 = vmatpush1.bf16.msra.mxu0 %v1147
    %1746 = vmatprep.subr.bf16.mxu0 %v1144
    %1747 = vmatpush1.bf16.msra.mxu0 %v1143
    %1748 = vmatprep.subr.bf16.mxu0 %v1140
    %1749 = vmatpush1.bf16.msra.mxu0 %v1139
    %1750 = vmatprep.subr.bf16.mxu0 %v1136
    %1751 = vmatpush1.bf16.msra.mxu0 %v1135
    %1752 = vmatprep.subr.bf16.mxu0 %v1132
    %1753 = vmatpush1.bf16.msra.mxu0 %v1131
    %1754 = vmatprep.subr.bf16.mxu0 %v1128
    %1755 = vmatpush1.bf16.msra.mxu0 %v1127
    %1756 = vmatprep.subr.bf16.mxu0 %v1124
    %1757 = vmatpush1.bf16.msra.mxu0 %v1123
    %1758 = vmatprep.subr.bf16.mxu0 %v1120
    %1759 = vmatpush1.bf16.msra.mxu0 %v1119
    %1760 = vmatprep.subr.bf16.mxu0 0
    %1761 = vmatpush2.bf16.msra.mxu0 0
    %1762 = vmatprep.subr.bf16.mxu0 0
    %1763 = vmatpush2.bf16.msra.mxu0 0
    %1764 = vmatprep.subr.bf16.mxu0 0
    %1765 = vmatpush2.bf16.msra.mxu0 0
    %1766 = vmatprep.subr.bf16.mxu0 0
    %1767 = vmatpush2.bf16.msra.mxu0 0
    %1768 = vmatprep.subr.bf16.mxu0 0
    %1769 = vmatpush2.bf16.msra.mxu0 0
    %1770 = vmatprep.subr.bf16.mxu0 0
    %1771 = vmatpush2.bf16.msra.mxu0 0
    %1772 = vmatprep.subr.bf16.mxu0 0
    %1773 = vmatpush2.bf16.msra.mxu0 0
    %1774 = vmatprep.subr.bf16.mxu0 0
    %1775 = vmatpush2.bf16.msra.mxu0 0
    %1776 = vmatprep.mubr.bf16.mxu0 0
    %1777 = vmatmul.mubr.bf16.gmra.mxu0 %v1701
    %v1778 = vpop.f32.mrf.mxu0
    %v1779 = vadd.f32 %v1003, %v1778
    %v1780 = vpop.f32.mrf.mxu0
    %v1781 = vadd.f32 %v1007, %v1780
    %v1782 = vpop.f32.mrf.mxu0
    %v1783 = vpop.f32.mrf.mxu0
    %1784 = vdwg.mxu0
    %v1785 = vpack.c.bf16 %v1532, %v1532
    %1786 = vmatprep.subr.bf16.mxu0 %v1388
    %1787 = vmatpush1.bf16.msra.mxu0 %v1387
    %1788 = vmatprep.subr.bf16.mxu0 %v1384
    %1789 = vmatpush1.bf16.msra.mxu0 %v1383
    %1790 = vmatprep.subr.bf16.mxu0 %v1380
    %1791 = vmatpush1.bf16.msra.mxu0 %v1379
    %1792 = vmatprep.subr.bf16.mxu0 %v1376
    %1793 = vmatpush1.bf16.msra.mxu0 %v1375
    %1794 = vmatprep.subr.bf16.mxu0 %v1372
    %1795 = vmatpush1.bf16.msra.mxu0 %v1371
    %1796 = vmatprep.subr.bf16.mxu0 %v1368
    %1797 = vmatpush1.bf16.msra.mxu0 %v1367
    %1798 = vmatprep.subr.bf16.mxu0 %v1364
    %1799 = vmatpush1.bf16.msra.mxu0 %v1363
    %1800 = vmatprep.subr.bf16.mxu0 %v1360
    %1801 = vmatpush1.bf16.msra.mxu0 %v1359
    %1802 = vmatprep.subr.bf16.mxu0 0
    %1803 = vmatpush2.bf16.msra.mxu0 0
    %1804 = vmatprep.subr.bf16.mxu0 0
    %1805 = vmatpush2.bf16.msra.mxu0 0
    %1806 = vmatprep.subr.bf16.mxu0 0
    %1807 = vmatpush2.bf16.msra.mxu0 0
    %1808 = vmatprep.subr.bf16.mxu0 0
    %1809 = vmatpush2.bf16.msra.mxu0 0
    %1810 = vmatprep.subr.bf16.mxu0 0
    %1811 = vmatpush2.bf16.msra.mxu0 0
    %1812 = vmatprep.subr.bf16.mxu0 0
    %1813 = vmatpush2.bf16.msra.mxu0 0
    %1814 = vmatprep.subr.bf16.mxu0 0
    %1815 = vmatpush2.bf16.msra.mxu0 0
    %1816 = vmatprep.subr.bf16.mxu0 0
    %1817 = vmatpush2.bf16.msra.mxu0 0
    %1818 = vmatprep.mubr.bf16.mxu0 0
    %1819 = vmatmul.mubr.bf16.gmra.mxu0 %v1785
    %v1820 = vpop.f32.mrf.mxu0
    %v1821 = vadd.f32 0.0, %v1820
    %v1822 = vpop.f32.mrf.mxu0
    %v1823 = vadd.f32 0.0, %v1822
    %v1824 = vpop.f32.mrf.mxu0
    %v1825 = vpop.f32.mrf.mxu0
    %1826 = vdwg.mxu0
    %1827 = vmatprep.subr.bf16.mxu0 %v1390
    %1828 = vmatpush1.bf16.msra.mxu0 %v1389
    %1829 = vmatprep.subr.bf16.mxu0 %v1386
    %1830 = vmatpush1.bf16.msra.mxu0 %v1385
    %1831 = vmatprep.subr.bf16.mxu0 %v1382
    %1832 = vmatpush1.bf16.msra.mxu0 %v1381
    %1833 = vmatprep.subr.bf16.mxu0 %v1378
    %1834 = vmatpush1.bf16.msra.mxu0 %v1377
    %1835 = vmatprep.subr.bf16.mxu0 %v1374
    %1836 = vmatpush1.bf16.msra.mxu0 %v1373
    %1837 = vmatprep.subr.bf16.mxu0 %v1370
    %1838 = vmatpush1.bf16.msra.mxu0 %v1369
    %1839 = vmatprep.subr.bf16.mxu0 %v1366
    %1840 = vmatpush1.bf16.msra.mxu0 %v1365
    %1841 = vmatprep.subr.bf16.mxu0 %v1362
    %1842 = vmatpush1.bf16.msra.mxu0 %v1361
    %1843 = vmatprep.subr.bf16.mxu0 0
    %1844 = vmatpush2.bf16.msra.mxu0 0
    %1845 = vmatprep.subr.bf16.mxu0 0
    %1846 = vmatpush2.bf16.msra.mxu0 0
    %1847 = vmatprep.subr.bf16.mxu0 0
    %1848 = vmatpush2.bf16.msra.mxu0 0
    %1849 = vmatprep.subr.bf16.mxu0 0
    %1850 = vmatpush2.bf16.msra.mxu0 0
    %1851 = vmatprep.subr.bf16.mxu0 0
    %1852 = vmatpush2.bf16.msra.mxu0 0
    %1853 = vmatprep.subr.bf16.mxu0 0
    %1854 = vmatpush2.bf16.msra.mxu0 0
    %1855 = vmatprep.subr.bf16.mxu0 0
    %1856 = vmatpush2.bf16.msra.mxu0 0
    %1857 = vmatprep.subr.bf16.mxu0 0
    %1858 = vmatpush2.bf16.msra.mxu0 0
    %1859 = vmatprep.mubr.bf16.mxu0 0
    %1860 = vmatmul.mubr.bf16.gmra.mxu0 %v1785
    %v1861 = vpop.f32.mrf.mxu0
    %v1862 = vadd.f32 0.0, %v1861
    %v1863 = vpop.f32.mrf.mxu0
    %v1864 = vadd.f32 0.0, %v1863
    %v1865 = vpop.f32.mrf.mxu0
    %v1866 = vpop.f32.mrf.mxu0
    %1867 = vdwg.mxu0
    %v1868 = vadd.f32 %v1738, %v1821
    %v1869 = vadd.f32 %v1740, %v1823
    %v1870 = vadd.f32 %v1779, %v1862
    %v1871 = vadd.f32 %v1781, %v1864
    %v1872 = vxor.u32 %v1868, 2147483648
    %v1873 = vmul.f32 %v1872, 1.442695
    %v1874 = vpow.pop %v1873
    %v1875 = vadd.f32 %v1874, 1.0
    %v1876 = vrcp.pop %v1875
    %v1877 = vmul.f32 1.0, %v1876
    %v1878 = vxor.u32 %v1869, 2147483648
    %v1879 = vmul.f32 %v1878, 1.442695
    %v1880 = vpow.pop %v1879
    %v1881 = vadd.f32 %v1880, 1.0
    %v1882 = vrcp.pop %v1881
    %v1883 = vmul.f32 1.0, %v1882
    %v1884 = vtanh.pop %v1870
    %v1885 = vxor.u32 %v1871, 2147483648
    %v1886 = vmul.f32 %v1885, 1.442695
    %v1887 = vpow.pop %v1886
    %v1888 = vadd.f32 %v1887, 1.0
    %v1889 = vrcp.pop %v1888
    %v1890 = vmul.f32 1.0, %v1889
    %v1891 = vmul.f32 %v1883, %v1530
    %v1892 = vmul.f32 %v1877, %v1884
    %v1893 = vadd.f32 %v1891, %v1892
    %v1894 = vtanh.pop %v1893
    %v1895 = vmul.f32 %v1890, %v1894
    %1896 = vmatprep.subr.bf16.mxu0 %v800
    %1897 = vmatpush1.bf16.msra.mxu0 %v799
    %1898 = vmatprep.subr.bf16.mxu0 %v796
    %1899 = vmatpush1.bf16.msra.mxu0 %v795
    %1900 = vmatprep.subr.bf16.mxu0 %v792
    %1901 = vmatpush1.bf16.msra.mxu0 %v791
    %1902 = vmatprep.subr.bf16.mxu0 %v788
    %1903 = vmatpush1.bf16.msra.mxu0 %v787
    %1904 = vmatprep.subr.bf16.mxu0 %v784
    %1905 = vmatpush1.bf16.msra.mxu0 %v783
    %1906 = vmatprep.subr.bf16.mxu0 %v780
    %1907 = vmatpush1.bf16.msra.mxu0 %v779
    %1908 = vmatprep.subr.bf16.mxu0 %v776
    %1909 = vmatpush1.bf16.msra.mxu0 %v775
    %1910 = vmatprep.subr.bf16.mxu0 %v772
    %1911 = vmatpush1.bf16.msra.mxu0 %v771
    %1912 = vmatprep.subr.bf16.mxu0 0
    %1913 = vmatpush2.bf16.msra.mxu0 0
    %1914 = vmatprep.subr.bf16.mxu0 0
    %1915 = vmatpush2.bf16.msra.mxu0 0
    %1916 = vmatprep.subr.bf16.mxu0 0
    %1917 = vmatpush2.bf16.msra.mxu0 0
    %1918 = vmatprep.subr.bf16.mxu0 0
    %1919 = vmatpush2.bf16.msra.mxu0 0
    %1920 = vmatprep.subr.bf16.mxu0 0
    %1921 = vmatpush2.bf16.msra.mxu0 0
    %1922 = vmatprep.subr.bf16.mxu0 0
    %1923 = vmatpush2.bf16.msra.mxu0 0
    %1924 = vmatprep.subr.bf16.mxu0 0
    %1925 = vmatpush2.bf16.msra.mxu0 0
    %1926 = vmatprep.subr.bf16.mxu0 0
    %1927 = vmatpush2.bf16.msra.mxu0 0
    %1928 = vmatprep.mubr.bf16.mxu0 0
    %1929 = vmatmul.mubr.bf16.gmra.mxu0 %v1701
    %v1930 = vpop.f32.mrf.mxu0
    %v1931 = vadd.f32 0.0, %v1930
    %v1932 = vpop.f32.mrf.mxu0
    %v1933 = vadd.f32 0.0, %v1932
    %v1934 = vpop.f32.mrf.mxu0
    %v1935 = vpop.f32.mrf.mxu0
    %1936 = vdwg.mxu0
    %1937 = vmatprep.subr.bf16.mxu0 %v802
    %1938 = vmatpush1.bf16.msra.mxu0 %v801
    %1939 = vmatprep.subr.bf16.mxu0 %v798
    %1940 = vmatpush1.bf16.msra.mxu0 %v797
    %1941 = vmatprep.subr.bf16.mxu0 %v794
    %1942 = vmatpush1.bf16.msra.mxu0 %v793
    %1943 = vmatprep.subr.bf16.mxu0 %v790
    %1944 = vmatpush1.bf16.msra.mxu0 %v789
    %1945 = vmatprep.subr.bf16.mxu0 %v786
    %1946 = vmatpush1.bf16.msra.mxu0 %v785
    %1947 = vmatprep.subr.bf16.mxu0 %v782
    %1948 = vmatpush1.bf16.msra.mxu0 %v781
    %1949 = vmatprep.subr.bf16.mxu0 %v778
    %1950 = vmatpush1.bf16.msra.mxu0 %v777
    %1951 = vmatprep.subr.bf16.mxu0 %v774
    %1952 = vmatpush1.bf16.msra.mxu0 %v773
    %1953 = vmatprep.subr.bf16.mxu0 0
    %1954 = vmatpush2.bf16.msra.mxu0 0
    %1955 = vmatprep.subr.bf16.mxu0 0
    %1956 = vmatpush2.bf16.msra.mxu0 0
    %1957 = vmatprep.subr.bf16.mxu0 0
    %1958 = vmatpush2.bf16.msra.mxu0 0
    %1959 = vmatprep.subr.bf16.mxu0 0
    %1960 = vmatpush2.bf16.msra.mxu0 0
    %1961 = vmatprep.subr.bf16.mxu0 0
    %1962 = vmatpush2.bf16.msra.mxu0 0
    %1963 = vmatprep.subr.bf16.mxu0 0
    %1964 = vmatpush2.bf16.msra.mxu0 0
    %1965 = vmatprep.subr.bf16.mxu0 0
    %1966 = vmatpush2.bf16.msra.mxu0 0
    %1967 = vmatprep.subr.bf16.mxu0 0
    %1968 = vmatpush2.bf16.msra.mxu0 0
    %1969 = vmatprep.mubr.bf16.mxu0 0
    %1970 = vmatmul.mubr.bf16.gmra.mxu0 %v1701
    %v1971 = vpop.f32.mrf.mxu0
    %v1972 = vadd.f32 0.0, %v1971
    %v1973 = vpop.f32.mrf.mxu0
    %v1974 = vadd.f32 0.0, %v1973
    %v1975 = vpop.f32.mrf.mxu0
    %v1976 = vpop.f32.mrf.mxu0
    %1977 = vdwg.mxu0
    %v1982 = vrot.slane %v1931, 6
    %v1983 = vrot.slane %v1933, 6
    %v1984 = vrot.slane %v1972, 6
    %v1985 = vrot.slane %v1974, 6
    %v1986 = vrot.slane %v1931, 7
    %v1987 = vrot.slane %v1933, 7
    %v1988 = vrot.slane %v1972, 7
    %v1989 = vrot.slane %v1974, 7
    %v1998 = vadd.f32 %v659, %v1982
    %v1999 = vadd.f32 %v660, %v1983
    %v2000 = vadd.f32 %v661, %v1984
    %v2001 = vadd.f32 %v662, %v1985
    %v2002 = vadd.f32 %v667, %v1986
    %v2003 = vadd.f32 %v668, %v1987
    %v2004 = vadd.f32 %v669, %v1988
    %v2005 = vadd.f32 %v670, %v1989
    %v2006 = vxor.u32 %v1998, 2147483648
    %v2007 = vxor.u32 %v2002, 2147483648
    %v2008 = vmul.f32 %v2006, 1.442695
    %v2009 = vpow.pop %v2008
    %v2010 = vmul.f32 %v2007, 1.442695
    %v2011 = vpow.pop %v2010
    %v2012 = vadd.f32 %v2009, 1.0
    %v2013 = vadd.f32 %v2011, 1.0
    %v2014 = vrcp.pop %v2012
    %v2015 = vmul.f32 1.0, %v2014
    %v2016 = vrcp.pop %v2013
    %v2017 = vmul.f32 1.0, %v2016
    %v2018 = vxor.u32 %v1999, 2147483648
    %v2019 = vxor.u32 %v2003, 2147483648
    %v2020 = vmul.f32 %v2018, 1.442695
    %v2021 = vpow.pop %v2020
    %v2022 = vmul.f32 %v2019, 1.442695
    %v2023 = vpow.pop %v2022
    %v2024 = vadd.f32 %v2021, 1.0
    %v2025 = vadd.f32 %v2023, 1.0
    %v2026 = vrcp.pop %v2024
    %v2027 = vmul.f32 1.0, %v2026
    %v2028 = vrcp.pop %v2025
    %v2029 = vmul.f32 1.0, %v2028
    %v2030 = vtanh.pop %v2000
    %v2031 = vtanh.pop %v2004
    %v2032 = vxor.u32 %v2001, 2147483648
    %v2033 = vxor.u32 %v2005, 2147483648
    %v2034 = vmul.f32 %v2032, 1.442695
    %v2035 = vpow.pop %v2034
    %v2036 = vmul.f32 %v2033, 1.442695
    %v2037 = vpow.pop %v2036
    %v2038 = vadd.f32 %v2035, 1.0
    %v2039 = vadd.f32 %v2037, 1.0
    %v2040 = vrcp.pop %v2038
    %v2041 = vmul.f32 1.0, %v2040
    %v2042 = vrcp.pop %v2039
    %v2043 = vmul.f32 1.0, %v2042
    %v2046 = vrot.slane %v1687, 7
    %v2047 = vrot.slane %v1688, 7
    %v2050 = vmul.f32 %v2027, %v2046
    %v2051 = vmul.f32 %v2029, %v2047
    %v2052 = vmul.f32 %v2015, %v2030
    %v2053 = vmul.f32 %v2017, %v2031
    %v2054 = vadd.f32 %v2050, %v2052
    %v2055 = vadd.f32 %v2051, %v2053
    %v2056 = vtanh.pop %v2054
    %v2057 = vtanh.pop %v2055
    %v2058 = vmul.f32 %v2041, %v2056
    %v2059 = vmul.f32 %v2043, %v2057
    %v2060 = vpack.c.bf16 %v2058, %v2058
    %v2061 = vpack.c.bf16 %v2059, %v2059
    %v2064 = vunpack.c.l.b16 %v2060
    %v2065 = vunpack.c.l.b16 %v2061
    %v2066 = vrot.slane %v2064, 2
    %v2067 = vrot.slane %v2065, 1
    %v2068 = vsel %vm1017, %v2067, %v2066
    %v2069 = vpack.c.b16 %v2068, %v2068
    %2071 = vmatprep.subr.bf16.mxu0 %v1146
    %2072 = vmatpush1.bf16.msra.mxu0 %v1145
    %2073 = vmatprep.subr.bf16.mxu0 %v1142
    %2074 = vmatpush1.bf16.msra.mxu0 %v1141
    %2075 = vmatprep.subr.bf16.mxu0 %v1138
    %2076 = vmatpush1.bf16.msra.mxu0 %v1137
    %2077 = vmatprep.subr.bf16.mxu0 %v1134
    %2078 = vmatpush1.bf16.msra.mxu0 %v1133
    %2079 = vmatprep.subr.bf16.mxu0 %v1130
    %2080 = vmatpush1.bf16.msra.mxu0 %v1129
    %2081 = vmatprep.subr.bf16.mxu0 %v1126
    %2082 = vmatpush1.bf16.msra.mxu0 %v1125
    %2083 = vmatprep.subr.bf16.mxu0 %v1122
    %2084 = vmatpush1.bf16.msra.mxu0 %v1121
    %2085 = vmatprep.subr.bf16.mxu0 %v1118
    %2086 = vmatpush1.bf16.msra.mxu0 %v1117
    %2087 = vmatprep.subr.bf16.mxu0 0
    %2088 = vmatpush2.bf16.msra.mxu0 0
    %2089 = vmatprep.subr.bf16.mxu0 0
    %2090 = vmatpush2.bf16.msra.mxu0 0
    %2091 = vmatprep.subr.bf16.mxu0 0
    %2092 = vmatpush2.bf16.msra.mxu0 0
    %2093 = vmatprep.subr.bf16.mxu0 0
    %2094 = vmatpush2.bf16.msra.mxu0 0
    %2095 = vmatprep.subr.bf16.mxu0 0
    %2096 = vmatpush2.bf16.msra.mxu0 0
    %2097 = vmatprep.subr.bf16.mxu0 0
    %2098 = vmatpush2.bf16.msra.mxu0 0
    %2099 = vmatprep.subr.bf16.mxu0 0
    %2100 = vmatpush2.bf16.msra.mxu0 0
    %2101 = vmatprep.subr.bf16.mxu0 0
    %2102 = vmatpush2.bf16.msra.mxu0 0
    %2103 = vmatprep.mubr.bf16.mxu0 0
    %2104 = vmatmul.mubr.bf16.gmra.mxu0 %v2069
    %v2105 = vpop.f32.mrf.mxu0
    %v2106 = vadd.f32 %v995, %v2105
    %v2107 = vpop.f32.mrf.mxu0
    %v2108 = vadd.f32 %v999, %v2107
    %v2109 = vpop.f32.mrf.mxu0
    %v2110 = vpop.f32.mrf.mxu0
    %2111 = vdwg.mxu0
    %2112 = vmatprep.subr.bf16.mxu0 %v1148
    %2113 = vmatpush1.bf16.msra.mxu0 %v1147
    %2114 = vmatprep.subr.bf16.mxu0 %v1144
    %2115 = vmatpush1.bf16.msra.mxu0 %v1143
    %2116 = vmatprep.subr.bf16.mxu0 %v1140
    %2117 = vmatpush1.bf16.msra.mxu0 %v1139
    %2118 = vmatprep.subr.bf16.mxu0 %v1136
    %2119 = vmatpush1.bf16.msra.mxu0 %v1135
    %2120 = vmatprep.subr.bf16.mxu0 %v1132
    %2121 = vmatpush1.bf16.msra.mxu0 %v1131
    %2122 = vmatprep.subr.bf16.mxu0 %v1128
    %2123 = vmatpush1.bf16.msra.mxu0 %v1127
    %2124 = vmatprep.subr.bf16.mxu0 %v1124
    %2125 = vmatpush1.bf16.msra.mxu0 %v1123
    %2126 = vmatprep.subr.bf16.mxu0 %v1120
    %2127 = vmatpush1.bf16.msra.mxu0 %v1119
    %2128 = vmatprep.subr.bf16.mxu0 0
    %2129 = vmatpush2.bf16.msra.mxu0 0
    %2130 = vmatprep.subr.bf16.mxu0 0
    %2131 = vmatpush2.bf16.msra.mxu0 0
    %2132 = vmatprep.subr.bf16.mxu0 0
    %2133 = vmatpush2.bf16.msra.mxu0 0
    %2134 = vmatprep.subr.bf16.mxu0 0
    %2135 = vmatpush2.bf16.msra.mxu0 0
    %2136 = vmatprep.subr.bf16.mxu0 0
    %2137 = vmatpush2.bf16.msra.mxu0 0
    %2138 = vmatprep.subr.bf16.mxu0 0
    %2139 = vmatpush2.bf16.msra.mxu0 0
    %2140 = vmatprep.subr.bf16.mxu0 0
    %2141 = vmatpush2.bf16.msra.mxu0 0
    %2142 = vmatprep.subr.bf16.mxu0 0
    %2143 = vmatpush2.bf16.msra.mxu0 0
    %2144 = vmatprep.mubr.bf16.mxu0 0
    %2145 = vmatmul.mubr.bf16.gmra.mxu0 %v2069
    %v2146 = vpop.f32.mrf.mxu0
    %v2147 = vadd.f32 %v1003, %v2146
    %v2148 = vpop.f32.mrf.mxu0
    %v2149 = vadd.f32 %v1007, %v2148
    %v2150 = vpop.f32.mrf.mxu0
    %v2151 = vpop.f32.mrf.mxu0
    %2152 = vdwg.mxu0
    %v2153 = vpack.c.bf16 %v1895, %v1895
    %2154 = vmatprep.subr.bf16.mxu0 %v1388
    %2155 = vmatpush1.bf16.msra.mxu0 %v1387
    %2156 = vmatprep.subr.bf16.mxu0 %v1384
    %2157 = vmatpush1.bf16.msra.mxu0 %v1383
    %2158 = vmatprep.subr.bf16.mxu0 %v1380
    %2159 = vmatpush1.bf16.msra.mxu0 %v1379
    %2160 = vmatprep.subr.bf16.mxu0 %v1376
    %2161 = vmatpush1.bf16.msra.mxu0 %v1375
    %2162 = vmatprep.subr.bf16.mxu0 %v1372
    %2163 = vmatpush1.bf16.msra.mxu0 %v1371
    %2164 = vmatprep.subr.bf16.mxu0 %v1368
    %2165 = vmatpush1.bf16.msra.mxu0 %v1367
    %2166 = vmatprep.subr.bf16.mxu0 %v1364
    %2167 = vmatpush1.bf16.msra.mxu0 %v1363
    %2168 = vmatprep.subr.bf16.mxu0 %v1360
    %2169 = vmatpush1.bf16.msra.mxu0 %v1359
    %2170 = vmatprep.subr.bf16.mxu0 0
    %2171 = vmatpush2.bf16.msra.mxu0 0
    %2172 = vmatprep.subr.bf16.mxu0 0
    %2173 = vmatpush2.bf16.msra.mxu0 0
    %2174 = vmatprep.subr.bf16.mxu0 0
    %2175 = vmatpush2.bf16.msra.mxu0 0
    %2176 = vmatprep.subr.bf16.mxu0 0
    %2177 = vmatpush2.bf16.msra.mxu0 0
    %2178 = vmatprep.subr.bf16.mxu0 0
    %2179 = vmatpush2.bf16.msra.mxu0 0
    %2180 = vmatprep.subr.bf16.mxu0 0
    %2181 = vmatpush2.bf16.msra.mxu0 0
    %2182 = vmatprep.subr.bf16.mxu0 0
    %2183 = vmatpush2.bf16.msra.mxu0 0
    %2184 = vmatprep.subr.bf16.mxu0 0
    %2185 = vmatpush2.bf16.msra.mxu0 0
    %2186 = vmatprep.mubr.bf16.mxu0 0
    %2187 = vmatmul.mubr.bf16.gmra.mxu0 %v2153
    %v2188 = vpop.f32.mrf.mxu0
    %v2189 = vadd.f32 0.0, %v2188
    %v2190 = vpop.f32.mrf.mxu0
    %v2191 = vadd.f32 0.0, %v2190
    %v2192 = vpop.f32.mrf.mxu0
    %v2193 = vpop.f32.mrf.mxu0
    %2194 = vdwg.mxu0
    %2195 = vmatprep.subr.bf16.mxu0 %v1390
    %2196 = vmatpush1.bf16.msra.mxu0 %v1389
    %2197 = vmatprep.subr.bf16.mxu0 %v1386
    %2198 = vmatpush1.bf16.msra.mxu0 %v1385
    %2199 = vmatprep.subr.bf16.mxu0 %v1382
    %2200 = vmatpush1.bf16.msra.mxu0 %v1381
    %2201 = vmatprep.subr.bf16.mxu0 %v1378
    %2202 = vmatpush1.bf16.msra.mxu0 %v1377
    %2203 = vmatprep.subr.bf16.mxu0 %v1374
    %2204 = vmatpush1.bf16.msra.mxu0 %v1373
    %2205 = vmatprep.subr.bf16.mxu0 %v1370
    %2206 = vmatpush1.bf16.msra.mxu0 %v1369
    %2207 = vmatprep.subr.bf16.mxu0 %v1366
    %2208 = vmatpush1.bf16.msra.mxu0 %v1365
    %2209 = vmatprep.subr.bf16.mxu0 %v1362
    %2210 = vmatpush1.bf16.msra.mxu0 %v1361
    %2211 = vmatprep.subr.bf16.mxu0 0
    %2212 = vmatpush2.bf16.msra.mxu0 0
    %2213 = vmatprep.subr.bf16.mxu0 0
    %2214 = vmatpush2.bf16.msra.mxu0 0
    %2215 = vmatprep.subr.bf16.mxu0 0
    %2216 = vmatpush2.bf16.msra.mxu0 0
    %2217 = vmatprep.subr.bf16.mxu0 0
    %2218 = vmatpush2.bf16.msra.mxu0 0
    %2219 = vmatprep.subr.bf16.mxu0 0
    %2220 = vmatpush2.bf16.msra.mxu0 0
    %2221 = vmatprep.subr.bf16.mxu0 0
    %2222 = vmatpush2.bf16.msra.mxu0 0
    %2223 = vmatprep.subr.bf16.mxu0 0
    %2224 = vmatpush2.bf16.msra.mxu0 0
    %2225 = vmatprep.subr.bf16.mxu0 0
    %2226 = vmatpush2.bf16.msra.mxu0 0
    %2227 = vmatprep.mubr.bf16.mxu0 0
    %2228 = vmatmul.mubr.bf16.gmra.mxu0 %v2153
    %v2229 = vpop.f32.mrf.mxu0
    %v2230 = vadd.f32 0.0, %v2229
    %v2231 = vpop.f32.mrf.mxu0
    %v2232 = vadd.f32 0.0, %v2231
    %v2233 = vpop.f32.mrf.mxu0
    %v2234 = vpop.f32.mrf.mxu0
    %2235 = vdwg.mxu0
    %v2236 = vadd.f32 %v2106, %v2189
    %v2237 = vadd.f32 %v2108, %v2191
    %v2238 = vadd.f32 %v2147, %v2230
    %v2239 = vadd.f32 %v2149, %v2232
    %v2240 = vxor.u32 %v2236, 2147483648
    %v2241 = vmul.f32 %v2240, 1.442695
    %v2242 = vpow.pop %v2241
    %v2243 = vadd.f32 %v2242, 1.0
    %v2244 = vrcp.pop %v2243
    %v2245 = vmul.f32 1.0, %v2244
    %v2246 = vxor.u32 %v2237, 2147483648
    %v2247 = vmul.f32 %v2246, 1.442695
    %v2248 = vpow.pop %v2247
    %v2249 = vadd.f32 %v2248, 1.0
    %v2250 = vrcp.pop %v2249
    %v2251 = vmul.f32 1.0, %v2250
    %v2252 = vtanh.pop %v2238
    %v2253 = vxor.u32 %v2239, 2147483648
    %v2254 = vmul.f32 %v2253, 1.442695
    %v2255 = vpow.pop %v2254
    %v2256 = vadd.f32 %v2255, 1.0
    %v2257 = vrcp.pop %v2256
    %v2258 = vmul.f32 1.0, %v2257
    %v2259 = vmul.f32 %v2251, %v1893
    %v2260 = vmul.f32 %v2245, %v2252
    %v2261 = vadd.f32 %v2259, %v2260
    %v2262 = vtanh.pop %v2261
    %v2263 = vmul.f32 %v2258, %v2262
    %2264 = vmatprep.subr.bf16.mxu0 %v800
    %2265 = vmatpush1.bf16.msra.mxu0 %v799
    %2266 = vmatprep.subr.bf16.mxu0 %v796
    %2267 = vmatpush1.bf16.msra.mxu0 %v795
    %2268 = vmatprep.subr.bf16.mxu0 %v792
    %2269 = vmatpush1.bf16.msra.mxu0 %v791
    %2270 = vmatprep.subr.bf16.mxu0 %v788
    %2271 = vmatpush1.bf16.msra.mxu0 %v787
    %2272 = vmatprep.subr.bf16.mxu0 %v784
    %2273 = vmatpush1.bf16.msra.mxu0 %v783
    %2274 = vmatprep.subr.bf16.mxu0 %v780
    %2275 = vmatpush1.bf16.msra.mxu0 %v779
    %2276 = vmatprep.subr.bf16.mxu0 %v776
    %2277 = vmatpush1.bf16.msra.mxu0 %v775
    %2278 = vmatprep.subr.bf16.mxu0 %v772
    %2279 = vmatpush1.bf16.msra.mxu0 %v771
    %2280 = vmatprep.subr.bf16.mxu0 0
    %2281 = vmatpush2.bf16.msra.mxu0 0
    %2282 = vmatprep.subr.bf16.mxu0 0
    %2283 = vmatpush2.bf16.msra.mxu0 0
    %2284 = vmatprep.subr.bf16.mxu0 0
    %2285 = vmatpush2.bf16.msra.mxu0 0
    %2286 = vmatprep.subr.bf16.mxu0 0
    %2287 = vmatpush2.bf16.msra.mxu0 0
    %2288 = vmatprep.subr.bf16.mxu0 0
    %2289 = vmatpush2.bf16.msra.mxu0 0
    %2290 = vmatprep.subr.bf16.mxu0 0
    %2291 = vmatpush2.bf16.msra.mxu0 0
    %2292 = vmatprep.subr.bf16.mxu0 0
    %2293 = vmatpush2.bf16.msra.mxu0 0
    %2294 = vmatprep.subr.bf16.mxu0 0
    %2295 = vmatpush2.bf16.msra.mxu0 0
    %2296 = vmatprep.mubr.bf16.mxu0 0
    %2297 = vmatmul.mubr.bf16.gmra.mxu0 %v2069
    %v2298 = vpop.f32.mrf.mxu0
    %v2299 = vadd.f32 0.0, %v2298
    %v2300 = vpop.f32.mrf.mxu0
    %v2301 = vadd.f32 0.0, %v2300
    %v2302 = vpop.f32.mrf.mxu0
    %v2303 = vpop.f32.mrf.mxu0
    %2304 = vdwg.mxu0
    %2305 = vmatprep.subr.bf16.mxu0 %v802
    %2306 = vmatpush1.bf16.msra.mxu0 %v801
    %2307 = vmatprep.subr.bf16.mxu0 %v798
    %2308 = vmatpush1.bf16.msra.mxu0 %v797
    %2309 = vmatprep.subr.bf16.mxu0 %v794
    %2310 = vmatpush1.bf16.msra.mxu0 %v793
    %2311 = vmatprep.subr.bf16.mxu0 %v790
    %2312 = vmatpush1.bf16.msra.mxu0 %v789
    %2313 = vmatprep.subr.bf16.mxu0 %v786
    %2314 = vmatpush1.bf16.msra.mxu0 %v785
    %2315 = vmatprep.subr.bf16.mxu0 %v782
    %2316 = vmatpush1.bf16.msra.mxu0 %v781
    %2317 = vmatprep.subr.bf16.mxu0 %v778
    %2318 = vmatpush1.bf16.msra.mxu0 %v777
    %2319 = vmatprep.subr.bf16.mxu0 %v774
    %2320 = vmatpush1.bf16.msra.mxu0 %v773
    %2321 = vmatprep.subr.bf16.mxu0 0
    %2322 = vmatpush2.bf16.msra.mxu0 0
    %2323 = vmatprep.subr.bf16.mxu0 0
    %2324 = vmatpush2.bf16.msra.mxu0 0
    %2325 = vmatprep.subr.bf16.mxu0 0
    %2326 = vmatpush2.bf16.msra.mxu0 0
    %2327 = vmatprep.subr.bf16.mxu0 0
    %2328 = vmatpush2.bf16.msra.mxu0 0
    %2329 = vmatprep.subr.bf16.mxu0 0
    %2330 = vmatpush2.bf16.msra.mxu0 0
    %2331 = vmatprep.subr.bf16.mxu0 0
    %2332 = vmatpush2.bf16.msra.mxu0 0
    %2333 = vmatprep.subr.bf16.mxu0 0
    %2334 = vmatpush2.bf16.msra.mxu0 0
    %2335 = vmatprep.subr.bf16.mxu0 0
    %2336 = vmatpush2.bf16.msra.mxu0 0
    %2337 = vmatprep.mubr.bf16.mxu0 0
    %2338 = vmatmul.mubr.bf16.gmra.mxu0 %v2069
    %v2339 = vpop.f32.mrf.mxu0
    %v2340 = vadd.f32 0.0, %v2339
    %v2341 = vpop.f32.mrf.mxu0
    %v2342 = vadd.f32 0.0, %v2341
    %v2343 = vpop.f32.mrf.mxu0
    %v2344 = vpop.f32.mrf.mxu0
    %2345 = vdwg.mxu0
    %v2350 = vrot.slane %v2299, 5
    %v2351 = vrot.slane %v2301, 5
    %v2352 = vrot.slane %v2340, 5
    %v2353 = vrot.slane %v2342, 5
    %v2354 = vrot.slane %v2299, 6
    %v2355 = vrot.slane %v2301, 6
    %v2356 = vrot.slane %v2340, 6
    %v2357 = vrot.slane %v2342, 6
    %v2366 = vadd.f32 %v659, %v2350
    %v2367 = vadd.f32 %v660, %v2351
    %v2368 = vadd.f32 %v661, %v2352
    %v2369 = vadd.f32 %v662, %v2353
    %v2370 = vadd.f32 %v667, %v2354
    %v2371 = vadd.f32 %v668, %v2355
    %v2372 = vadd.f32 %v669, %v2356
    %v2373 = vadd.f32 %v670, %v2357
    %v2374 = vxor.u32 %v2366, 2147483648
    %v2375 = vxor.u32 %v2370, 2147483648
    %v2376 = vmul.f32 %v2374, 1.442695
    %v2377 = vpow.pop %v2376
    %v2378 = vmul.f32 %v2375, 1.442695
    %v2379 = vpow.pop %v2378
    %v2380 = vadd.f32 %v2377, 1.0
    %v2381 = vadd.f32 %v2379, 1.0
    %v2382 = vrcp.pop %v2380
    %v2383 = vmul.f32 1.0, %v2382
    %v2384 = vrcp.pop %v2381
    %v2385 = vmul.f32 1.0, %v2384
    %v2386 = vxor.u32 %v2367, 2147483648
    %v2387 = vxor.u32 %v2371, 2147483648
    %v2388 = vmul.f32 %v2386, 1.442695
    %v2389 = vpow.pop %v2388
    %v2390 = vmul.f32 %v2387, 1.442695
    %v2391 = vpow.pop %v2390
    %v2392 = vadd.f32 %v2389, 1.0
    %v2393 = vadd.f32 %v2391, 1.0
    %v2394 = vrcp.pop %v2392
    %v2395 = vmul.f32 1.0, %v2394
    %v2396 = vrcp.pop %v2393
    %v2397 = vmul.f32 1.0, %v2396
    %v2398 = vtanh.pop %v2368
    %v2399 = vtanh.pop %v2372
    %v2400 = vxor.u32 %v2369, 2147483648
    %v2401 = vxor.u32 %v2373, 2147483648
    %v2402 = vmul.f32 %v2400, 1.442695
    %v2403 = vpow.pop %v2402
    %v2404 = vmul.f32 %v2401, 1.442695
    %v2405 = vpow.pop %v2404
    %v2406 = vadd.f32 %v2403, 1.0
    %v2407 = vadd.f32 %v2405, 1.0
    %v2408 = vrcp.pop %v2406
    %v2409 = vmul.f32 1.0, %v2408
    %v2410 = vrcp.pop %v2407
    %v2411 = vmul.f32 1.0, %v2410
    %v2414 = vrot.slane %v2054, 7
    %v2415 = vrot.slane %v2055, 7
    %v2418 = vmul.f32 %v2395, %v2414
    %v2419 = vmul.f32 %v2397, %v2415
    %v2420 = vmul.f32 %v2383, %v2398
    %v2421 = vmul.f32 %v2385, %v2399
    %v2422 = vadd.f32 %v2418, %v2420
    %v2423 = vadd.f32 %v2419, %v2421
    %v2424 = vtanh.pop %v2422
    %v2425 = vtanh.pop %v2423
    %v2426 = vmul.f32 %v2409, %v2424
    %v2427 = vmul.f32 %v2411, %v2425
    %v2428 = vpack.c.bf16 %v2426, %v2426
    %v2429 = vpack.c.bf16 %v2427, %v2427
    %v2432 = vunpack.c.l.b16 %v2428
    %v2433 = vunpack.c.l.b16 %v2429
    %v2434 = vrot.slane %v2432, 3
    %v2435 = vrot.slane %v2433, 2
    %v2436 = vsel %vm1017, %v2435, %v2434
    %v2437 = vpack.c.b16 %v2436, %v2436
    %2439 = vmatprep.subr.bf16.mxu0 %v1146
    %2440 = vmatpush1.bf16.msra.mxu0 %v1145
    %2441 = vmatprep.subr.bf16.mxu0 %v1142
    %2442 = vmatpush1.bf16.msra.mxu0 %v1141
    %2443 = vmatprep.subr.bf16.mxu0 %v1138
    %2444 = vmatpush1.bf16.msra.mxu0 %v1137
    %2445 = vmatprep.subr.bf16.mxu0 %v1134
    %2446 = vmatpush1.bf16.msra.mxu0 %v1133
    %2447 = vmatprep.subr.bf16.mxu0 %v1130
    %2448 = vmatpush1.bf16.msra.mxu0 %v1129
    %2449 = vmatprep.subr.bf16.mxu0 %v1126
    %2450 = vmatpush1.bf16.msra.mxu0 %v1125
    %2451 = vmatprep.subr.bf16.mxu0 %v1122
    %2452 = vmatpush1.bf16.msra.mxu0 %v1121
    %2453 = vmatprep.subr.bf16.mxu0 %v1118
    %2454 = vmatpush1.bf16.msra.mxu0 %v1117
    %2455 = vmatprep.subr.bf16.mxu0 0
    %2456 = vmatpush2.bf16.msra.mxu0 0
    %2457 = vmatprep.subr.bf16.mxu0 0
    %2458 = vmatpush2.bf16.msra.mxu0 0
    %2459 = vmatprep.subr.bf16.mxu0 0
    %2460 = vmatpush2.bf16.msra.mxu0 0
    %2461 = vmatprep.subr.bf16.mxu0 0
    %2462 = vmatpush2.bf16.msra.mxu0 0
    %2463 = vmatprep.subr.bf16.mxu0 0
    %2464 = vmatpush2.bf16.msra.mxu0 0
    %2465 = vmatprep.subr.bf16.mxu0 0
    %2466 = vmatpush2.bf16.msra.mxu0 0
    %2467 = vmatprep.subr.bf16.mxu0 0
    %2468 = vmatpush2.bf16.msra.mxu0 0
    %2469 = vmatprep.subr.bf16.mxu0 0
    %2470 = vmatpush2.bf16.msra.mxu0 0
    %2471 = vmatprep.mubr.bf16.mxu0 0
    %2472 = vmatmul.mubr.bf16.gmra.mxu0 %v2437
    %v2473 = vpop.f32.mrf.mxu0
    %v2474 = vadd.f32 %v995, %v2473
    %v2475 = vpop.f32.mrf.mxu0
    %v2476 = vadd.f32 %v999, %v2475
    %v2477 = vpop.f32.mrf.mxu0
    %v2478 = vpop.f32.mrf.mxu0
    %2479 = vdwg.mxu0
    %2480 = vmatprep.subr.bf16.mxu0 %v1148
    %2481 = vmatpush1.bf16.msra.mxu0 %v1147
    %2482 = vmatprep.subr.bf16.mxu0 %v1144
    %2483 = vmatpush1.bf16.msra.mxu0 %v1143
    %2484 = vmatprep.subr.bf16.mxu0 %v1140
    %2485 = vmatpush1.bf16.msra.mxu0 %v1139
    %2486 = vmatprep.subr.bf16.mxu0 %v1136
    %2487 = vmatpush1.bf16.msra.mxu0 %v1135
    %2488 = vmatprep.subr.bf16.mxu0 %v1132
    %2489 = vmatpush1.bf16.msra.mxu0 %v1131
    %2490 = vmatprep.subr.bf16.mxu0 %v1128
    %2491 = vmatpush1.bf16.msra.mxu0 %v1127
    %2492 = vmatprep.subr.bf16.mxu0 %v1124
    %2493 = vmatpush1.bf16.msra.mxu0 %v1123
    %2494 = vmatprep.subr.bf16.mxu0 %v1120
    %2495 = vmatpush1.bf16.msra.mxu0 %v1119
    %2496 = vmatprep.subr.bf16.mxu0 0
    %2497 = vmatpush2.bf16.msra.mxu0 0
    %2498 = vmatprep.subr.bf16.mxu0 0
    %2499 = vmatpush2.bf16.msra.mxu0 0
    %2500 = vmatprep.subr.bf16.mxu0 0
    %2501 = vmatpush2.bf16.msra.mxu0 0
    %2502 = vmatprep.subr.bf16.mxu0 0
    %2503 = vmatpush2.bf16.msra.mxu0 0
    %2504 = vmatprep.subr.bf16.mxu0 0
    %2505 = vmatpush2.bf16.msra.mxu0 0
    %2506 = vmatprep.subr.bf16.mxu0 0
    %2507 = vmatpush2.bf16.msra.mxu0 0
    %2508 = vmatprep.subr.bf16.mxu0 0
    %2509 = vmatpush2.bf16.msra.mxu0 0
    %2510 = vmatprep.subr.bf16.mxu0 0
    %2511 = vmatpush2.bf16.msra.mxu0 0
    %2512 = vmatprep.mubr.bf16.mxu0 0
    %2513 = vmatmul.mubr.bf16.gmra.mxu0 %v2437
    %v2514 = vpop.f32.mrf.mxu0
    %v2515 = vadd.f32 %v1003, %v2514
    %v2516 = vpop.f32.mrf.mxu0
    %v2517 = vadd.f32 %v1007, %v2516
    %v2518 = vpop.f32.mrf.mxu0
    %v2519 = vpop.f32.mrf.mxu0
    %2520 = vdwg.mxu0
    %v2521 = vpack.c.bf16 %v2263, %v2263
    %2522 = vmatprep.subr.bf16.mxu0 %v1388
    %2523 = vmatpush1.bf16.msra.mxu0 %v1387
    %2524 = vmatprep.subr.bf16.mxu0 %v1384
    %2525 = vmatpush1.bf16.msra.mxu0 %v1383
    %2526 = vmatprep.subr.bf16.mxu0 %v1380
    %2527 = vmatpush1.bf16.msra.mxu0 %v1379
    %2528 = vmatprep.subr.bf16.mxu0 %v1376
    %2529 = vmatpush1.bf16.msra.mxu0 %v1375
    %2530 = vmatprep.subr.bf16.mxu0 %v1372
    %2531 = vmatpush1.bf16.msra.mxu0 %v1371
    %2532 = vmatprep.subr.bf16.mxu0 %v1368
    %2533 = vmatpush1.bf16.msra.mxu0 %v1367
    %2534 = vmatprep.subr.bf16.mxu0 %v1364
    %2535 = vmatpush1.bf16.msra.mxu0 %v1363
    %2536 = vmatprep.subr.bf16.mxu0 %v1360
    %2537 = vmatpush1.bf16.msra.mxu0 %v1359
    %2538 = vmatprep.subr.bf16.mxu0 0
    %2539 = vmatpush2.bf16.msra.mxu0 0
    %2540 = vmatprep.subr.bf16.mxu0 0
    %2541 = vmatpush2.bf16.msra.mxu0 0
    %2542 = vmatprep.subr.bf16.mxu0 0
    %2543 = vmatpush2.bf16.msra.mxu0 0
    %2544 = vmatprep.subr.bf16.mxu0 0
    %2545 = vmatpush2.bf16.msra.mxu0 0
    %2546 = vmatprep.subr.bf16.mxu0 0
    %2547 = vmatpush2.bf16.msra.mxu0 0
    %2548 = vmatprep.subr.bf16.mxu0 0
    %2549 = vmatpush2.bf16.msra.mxu0 0
    %2550 = vmatprep.subr.bf16.mxu0 0
    %2551 = vmatpush2.bf16.msra.mxu0 0
    %2552 = vmatprep.subr.bf16.mxu0 0
    %2553 = vmatpush2.bf16.msra.mxu0 0
    %2554 = vmatprep.mubr.bf16.mxu0 0
    %2555 = vmatmul.mubr.bf16.gmra.mxu0 %v2521
    %v2556 = vpop.f32.mrf.mxu0
    %v2557 = vadd.f32 0.0, %v2556
    %v2558 = vpop.f32.mrf.mxu0
    %v2559 = vadd.f32 0.0, %v2558
    %v2560 = vpop.f32.mrf.mxu0
    %v2561 = vpop.f32.mrf.mxu0
    %2562 = vdwg.mxu0
    %2563 = vmatprep.subr.bf16.mxu0 %v1390
    %2564 = vmatpush1.bf16.msra.mxu0 %v1389
    %2565 = vmatprep.subr.bf16.mxu0 %v1386
    %2566 = vmatpush1.bf16.msra.mxu0 %v1385
    %2567 = vmatprep.subr.bf16.mxu0 %v1382
    %2568 = vmatpush1.bf16.msra.mxu0 %v1381
    %2569 = vmatprep.subr.bf16.mxu0 %v1378
    %2570 = vmatpush1.bf16.msra.mxu0 %v1377
    %2571 = vmatprep.subr.bf16.mxu0 %v1374
    %2572 = vmatpush1.bf16.msra.mxu0 %v1373
    %2573 = vmatprep.subr.bf16.mxu0 %v1370
    %2574 = vmatpush1.bf16.msra.mxu0 %v1369
    %2575 = vmatprep.subr.bf16.mxu0 %v1366
    %2576 = vmatpush1.bf16.msra.mxu0 %v1365
    %2577 = vmatprep.subr.bf16.mxu0 %v1362
    %2578 = vmatpush1.bf16.msra.mxu0 %v1361
    %2579 = vmatprep.subr.bf16.mxu0 0
    %2580 = vmatpush2.bf16.msra.mxu0 0
    %2581 = vmatprep.subr.bf16.mxu0 0
    %2582 = vmatpush2.bf16.msra.mxu0 0
    %2583 = vmatprep.subr.bf16.mxu0 0
    %2584 = vmatpush2.bf16.msra.mxu0 0
    %2585 = vmatprep.subr.bf16.mxu0 0
    %2586 = vmatpush2.bf16.msra.mxu0 0
    %2587 = vmatprep.subr.bf16.mxu0 0
    %2588 = vmatpush2.bf16.msra.mxu0 0
    %2589 = vmatprep.subr.bf16.mxu0 0
    %2590 = vmatpush2.bf16.msra.mxu0 0
    %2591 = vmatprep.subr.bf16.mxu0 0
    %2592 = vmatpush2.bf16.msra.mxu0 0
    %2593 = vmatprep.subr.bf16.mxu0 0
    %2594 = vmatpush2.bf16.msra.mxu0 0
    %2595 = vmatprep.mubr.bf16.mxu0 0
    %2596 = vmatmul.mubr.bf16.gmra.mxu0 %v2521
    %v2597 = vpop.f32.mrf.mxu0
    %v2598 = vadd.f32 0.0, %v2597
    %v2599 = vpop.f32.mrf.mxu0
    %v2600 = vadd.f32 0.0, %v2599
    %v2601 = vpop.f32.mrf.mxu0
    %v2602 = vpop.f32.mrf.mxu0
    %2603 = vdwg.mxu0
    %v2604 = vadd.f32 %v2474, %v2557
    %v2605 = vadd.f32 %v2476, %v2559
    %v2606 = vadd.f32 %v2515, %v2598
    %v2607 = vadd.f32 %v2517, %v2600
    %v2608 = vxor.u32 %v2604, 2147483648
    %v2609 = vmul.f32 %v2608, 1.442695
    %v2610 = vpow.pop %v2609
    %v2611 = vadd.f32 %v2610, 1.0
    %v2612 = vrcp.pop %v2611
    %v2613 = vmul.f32 1.0, %v2612
    %v2614 = vxor.u32 %v2605, 2147483648
    %v2615 = vmul.f32 %v2614, 1.442695
    %v2616 = vpow.pop %v2615
    %v2617 = vadd.f32 %v2616, 1.0
    %v2618 = vrcp.pop %v2617
    %v2619 = vmul.f32 1.0, %v2618
    %v2620 = vtanh.pop %v2606
    %v2621 = vxor.u32 %v2607, 2147483648
    %v2622 = vmul.f32 %v2621, 1.442695
    %v2623 = vpow.pop %v2622
    %v2624 = vadd.f32 %v2623, 1.0
    %v2625 = vrcp.pop %v2624
    %v2626 = vmul.f32 1.0, %v2625
    %v2627 = vmul.f32 %v2619, %v2261
    %v2628 = vmul.f32 %v2613, %v2620
    %v2629 = vadd.f32 %v2627, %v2628
    %v2630 = vtanh.pop %v2629
    %v2631 = vmul.f32 %v2626, %v2630
    %2632 = vmatprep.subr.bf16.mxu0 %v800
    %2633 = vmatpush1.bf16.msra.mxu0 %v799
    %2634 = vmatprep.subr.bf16.mxu0 %v796
    %2635 = vmatpush1.bf16.msra.mxu0 %v795
    %2636 = vmatprep.subr.bf16.mxu0 %v792
    %2637 = vmatpush1.bf16.msra.mxu0 %v791
    %2638 = vmatprep.subr.bf16.mxu0 %v788
    %2639 = vmatpush1.bf16.msra.mxu0 %v787
    %2640 = vmatprep.subr.bf16.mxu0 %v784
    %2641 = vmatpush1.bf16.msra.mxu0 %v783
    %2642 = vmatprep.subr.bf16.mxu0 %v780
    %2643 = vmatpush1.bf16.msra.mxu0 %v779
    %2644 = vmatprep.subr.bf16.mxu0 %v776
    %2645 = vmatpush1.bf16.msra.mxu0 %v775
    %2646 = vmatprep.subr.bf16.mxu0 %v772
    %2647 = vmatpush1.bf16.msra.mxu0 %v771
    %2648 = vmatprep.subr.bf16.mxu0 0
    %2649 = vmatpush2.bf16.msra.mxu0 0
    %2650 = vmatprep.subr.bf16.mxu0 0
    %2651 = vmatpush2.bf16.msra.mxu0 0
    %2652 = vmatprep.subr.bf16.mxu0 0
    %2653 = vmatpush2.bf16.msra.mxu0 0
    %2654 = vmatprep.subr.bf16.mxu0 0
    %2655 = vmatpush2.bf16.msra.mxu0 0
    %2656 = vmatprep.subr.bf16.mxu0 0
    %2657 = vmatpush2.bf16.msra.mxu0 0
    %2658 = vmatprep.subr.bf16.mxu0 0
    %2659 = vmatpush2.bf16.msra.mxu0 0
    %2660 = vmatprep.subr.bf16.mxu0 0
    %2661 = vmatpush2.bf16.msra.mxu0 0
    %2662 = vmatprep.subr.bf16.mxu0 0
    %2663 = vmatpush2.bf16.msra.mxu0 0
    %2664 = vmatprep.mubr.bf16.mxu0 0
    %2665 = vmatmul.mubr.bf16.gmra.mxu0 %v2437
    %v2666 = vpop.f32.mrf.mxu0
    %v2667 = vadd.f32 0.0, %v2666
    %v2668 = vpop.f32.mrf.mxu0
    %v2669 = vadd.f32 0.0, %v2668
    %v2670 = vpop.f32.mrf.mxu0
    %v2671 = vpop.f32.mrf.mxu0
    %2672 = vdwg.mxu0
    %2673 = vmatprep.subr.bf16.mxu0 %v802
    %2674 = vmatpush1.bf16.msra.mxu0 %v801
    %2675 = vmatprep.subr.bf16.mxu0 %v798
    %2676 = vmatpush1.bf16.msra.mxu0 %v797
    %2677 = vmatprep.subr.bf16.mxu0 %v794
    %2678 = vmatpush1.bf16.msra.mxu0 %v793
    %2679 = vmatprep.subr.bf16.mxu0 %v790
    %2680 = vmatpush1.bf16.msra.mxu0 %v789
    %2681 = vmatprep.subr.bf16.mxu0 %v786
    %2682 = vmatpush1.bf16.msra.mxu0 %v785
    %2683 = vmatprep.subr.bf16.mxu0 %v782
    %2684 = vmatpush1.bf16.msra.mxu0 %v781
    %2685 = vmatprep.subr.bf16.mxu0 %v778
    %2686 = vmatpush1.bf16.msra.mxu0 %v777
    %2687 = vmatprep.subr.bf16.mxu0 %v774
    %2688 = vmatpush1.bf16.msra.mxu0 %v773
    %2689 = vmatprep.subr.bf16.mxu0 0
    %2690 = vmatpush2.bf16.msra.mxu0 0
    %2691 = vmatprep.subr.bf16.mxu0 0
    %2692 = vmatpush2.bf16.msra.mxu0 0
    %2693 = vmatprep.subr.bf16.mxu0 0
    %2694 = vmatpush2.bf16.msra.mxu0 0
    %2695 = vmatprep.subr.bf16.mxu0 0
    %2696 = vmatpush2.bf16.msra.mxu0 0
    %2697 = vmatprep.subr.bf16.mxu0 0
    %2698 = vmatpush2.bf16.msra.mxu0 0
    %2699 = vmatprep.subr.bf16.mxu0 0
    %2700 = vmatpush2.bf16.msra.mxu0 0
    %2701 = vmatprep.subr.bf16.mxu0 0
    %2702 = vmatpush2.bf16.msra.mxu0 0
    %2703 = vmatprep.subr.bf16.mxu0 0
    %2704 = vmatpush2.bf16.msra.mxu0 0
    %2705 = vmatprep.mubr.bf16.mxu0 0
    %2706 = vmatmul.mubr.bf16.gmra.mxu0 %v2437
    %v2707 = vpop.f32.mrf.mxu0
    %v2708 = vadd.f32 0.0, %v2707
    %v2709 = vpop.f32.mrf.mxu0
    %v2710 = vadd.f32 0.0, %v2709
    %v2711 = vpop.f32.mrf.mxu0
    %v2712 = vpop.f32.mrf.mxu0
    %2713 = vdwg.mxu0
    %v2718 = vrot.slane %v2667, 4
    %v2719 = vrot.slane %v2669, 4
    %v2720 = vrot.slane %v2708, 4
    %v2721 = vrot.slane %v2710, 4
    %v2722 = vrot.slane %v2667, 5
    %v2723 = vrot.slane %v2669, 5
    %v2724 = vrot.slane %v2708, 5
    %v2725 = vrot.slane %v2710, 5
    %v2734 = vadd.f32 %v659, %v2718
    %v2735 = vadd.f32 %v660, %v2719
    %v2736 = vadd.f32 %v661, %v2720
    %v2737 = vadd.f32 %v662, %v2721
    %v2738 = vadd.f32 %v667, %v2722
    %v2739 = vadd.f32 %v668, %v2723
    %v2740 = vadd.f32 %v669, %v2724
    %v2741 = vadd.f32 %v670, %v2725
    %v2742 = vxor.u32 %v2734, 2147483648
    %v2743 = vxor.u32 %v2738, 2147483648
    %v2744 = vmul.f32 %v2742, 1.442695
    %v2745 = vpow.pop %v2744
    %v2746 = vmul.f32 %v2743, 1.442695
    %v2747 = vpow.pop %v2746
    %v2748 = vadd.f32 %v2745, 1.0
    %v2749 = vadd.f32 %v2747, 1.0
    %v2750 = vrcp.pop %v2748
    %v2751 = vmul.f32 1.0, %v2750
    %v2752 = vrcp.pop %v2749
    %v2753 = vmul.f32 1.0, %v2752
    %v2754 = vxor.u32 %v2735, 2147483648
    %v2755 = vxor.u32 %v2739, 2147483648
    %v2756 = vmul.f32 %v2754, 1.442695
    %v2757 = vpow.pop %v2756
    %v2758 = vmul.f32 %v2755, 1.442695
    %v2759 = vpow.pop %v2758
    %v2760 = vadd.f32 %v2757, 1.0
    %v2761 = vadd.f32 %v2759, 1.0
    %v2762 = vrcp.pop %v2760
    %v2763 = vmul.f32 1.0, %v2762
    %v2764 = vrcp.pop %v2761
    %v2765 = vmul.f32 1.0, %v2764
    %v2766 = vtanh.pop %v2736
    %v2767 = vtanh.pop %v2740
    %v2768 = vxor.u32 %v2737, 2147483648
    %v2769 = vxor.u32 %v2741, 2147483648
    %v2770 = vmul.f32 %v2768, 1.442695
    %v2771 = vpow.pop %v2770
    %v2772 = vmul.f32 %v2769, 1.442695
    %v2773 = vpow.pop %v2772
    %v2774 = vadd.f32 %v2771, 1.0
    %v2775 = vadd.f32 %v2773, 1.0
    %v2776 = vrcp.pop %v2774
    %v2777 = vmul.f32 1.0, %v2776
    %v2778 = vrcp.pop %v2775
    %v2779 = vmul.f32 1.0, %v2778
    %v2782 = vrot.slane %v2422, 7
    %v2783 = vrot.slane %v2423, 7
    %v2786 = vmul.f32 %v2763, %v2782
    %v2787 = vmul.f32 %v2765, %v2783
    %v2788 = vmul.f32 %v2751, %v2766
    %v2789 = vmul.f32 %v2753, %v2767
    %v2790 = vadd.f32 %v2786, %v2788
    %v2791 = vadd.f32 %v2787, %v2789
    %v2792 = vtanh.pop %v2790
    %v2793 = vtanh.pop %v2791
    %v2794 = vmul.f32 %v2777, %v2792
    %v2795 = vmul.f32 %v2779, %v2793
    %v2796 = vpack.c.bf16 %v2794, %v2794
    %v2797 = vpack.c.bf16 %v2795, %v2795
    %v2800 = vunpack.c.l.b16 %v2796
    %v2801 = vunpack.c.l.b16 %v2797
    %v2802 = vrot.slane %v2800, 4
    %v2803 = vrot.slane %v2801, 3
    %v2804 = vsel %vm1017, %v2803, %v2802
    %v2805 = vpack.c.b16 %v2804, %v2804
    %2807 = vmatprep.subr.bf16.mxu0 %v1146
    %2808 = vmatpush1.bf16.msra.mxu0 %v1145
    %2809 = vmatprep.subr.bf16.mxu0 %v1142
    %2810 = vmatpush1.bf16.msra.mxu0 %v1141
    %2811 = vmatprep.subr.bf16.mxu0 %v1138
    %2812 = vmatpush1.bf16.msra.mxu0 %v1137
    %2813 = vmatprep.subr.bf16.mxu0 %v1134
    %2814 = vmatpush1.bf16.msra.mxu0 %v1133
    %2815 = vmatprep.subr.bf16.mxu0 %v1130
    %2816 = vmatpush1.bf16.msra.mxu0 %v1129
    %2817 = vmatprep.subr.bf16.mxu0 %v1126
    %2818 = vmatpush1.bf16.msra.mxu0 %v1125
    %2819 = vmatprep.subr.bf16.mxu0 %v1122
    %2820 = vmatpush1.bf16.msra.mxu0 %v1121
    %2821 = vmatprep.subr.bf16.mxu0 %v1118
    %2822 = vmatpush1.bf16.msra.mxu0 %v1117
    %2823 = vmatprep.subr.bf16.mxu0 0
    %2824 = vmatpush2.bf16.msra.mxu0 0
    %2825 = vmatprep.subr.bf16.mxu0 0
    %2826 = vmatpush2.bf16.msra.mxu0 0
    %2827 = vmatprep.subr.bf16.mxu0 0
    %2828 = vmatpush2.bf16.msra.mxu0 0
    %2829 = vmatprep.subr.bf16.mxu0 0
    %2830 = vmatpush2.bf16.msra.mxu0 0
    %2831 = vmatprep.subr.bf16.mxu0 0
    %2832 = vmatpush2.bf16.msra.mxu0 0
    %2833 = vmatprep.subr.bf16.mxu0 0
    %2834 = vmatpush2.bf16.msra.mxu0 0
    %2835 = vmatprep.subr.bf16.mxu0 0
    %2836 = vmatpush2.bf16.msra.mxu0 0
    %2837 = vmatprep.subr.bf16.mxu0 0
    %2838 = vmatpush2.bf16.msra.mxu0 0
    %2839 = vmatprep.mubr.bf16.mxu0 0
    %2840 = vmatmul.mubr.bf16.gmra.mxu0 %v2805
    %v2841 = vpop.f32.mrf.mxu0
    %v2842 = vadd.f32 %v995, %v2841
    %v2843 = vpop.f32.mrf.mxu0
    %v2844 = vadd.f32 %v999, %v2843
    %v2845 = vpop.f32.mrf.mxu0
    %v2846 = vpop.f32.mrf.mxu0
    %2847 = vdwg.mxu0
    %2848 = vmatprep.subr.bf16.mxu0 %v1148
    %2849 = vmatpush1.bf16.msra.mxu0 %v1147
    %2850 = vmatprep.subr.bf16.mxu0 %v1144
    %2851 = vmatpush1.bf16.msra.mxu0 %v1143
    %2852 = vmatprep.subr.bf16.mxu0 %v1140
    %2853 = vmatpush1.bf16.msra.mxu0 %v1139
    %2854 = vmatprep.subr.bf16.mxu0 %v1136
    %2855 = vmatpush1.bf16.msra.mxu0 %v1135
    %2856 = vmatprep.subr.bf16.mxu0 %v1132
    %2857 = vmatpush1.bf16.msra.mxu0 %v1131
    %2858 = vmatprep.subr.bf16.mxu0 %v1128
    %2859 = vmatpush1.bf16.msra.mxu0 %v1127
    %2860 = vmatprep.subr.bf16.mxu0 %v1124
    %2861 = vmatpush1.bf16.msra.mxu0 %v1123
    %2862 = vmatprep.subr.bf16.mxu0 %v1120
    %2863 = vmatpush1.bf16.msra.mxu0 %v1119
    %2864 = vmatprep.subr.bf16.mxu0 0
    %2865 = vmatpush2.bf16.msra.mxu0 0
    %2866 = vmatprep.subr.bf16.mxu0 0
    %2867 = vmatpush2.bf16.msra.mxu0 0
    %2868 = vmatprep.subr.bf16.mxu0 0
    %2869 = vmatpush2.bf16.msra.mxu0 0
    %2870 = vmatprep.subr.bf16.mxu0 0
    %2871 = vmatpush2.bf16.msra.mxu0 0
    %2872 = vmatprep.subr.bf16.mxu0 0
    %2873 = vmatpush2.bf16.msra.mxu0 0
    %2874 = vmatprep.subr.bf16.mxu0 0
    %2875 = vmatpush2.bf16.msra.mxu0 0
    %2876 = vmatprep.subr.bf16.mxu0 0
    %2877 = vmatpush2.bf16.msra.mxu0 0
    %2878 = vmatprep.subr.bf16.mxu0 0
    %2879 = vmatpush2.bf16.msra.mxu0 0
    %2880 = vmatprep.mubr.bf16.mxu0 0
    %2881 = vmatmul.mubr.bf16.gmra.mxu0 %v2805
    %v2882 = vpop.f32.mrf.mxu0
    %v2883 = vadd.f32 %v1003, %v2882
    %v2884 = vpop.f32.mrf.mxu0
    %v2885 = vadd.f32 %v1007, %v2884
    %v2886 = vpop.f32.mrf.mxu0
    %v2887 = vpop.f32.mrf.mxu0
    %2888 = vdwg.mxu0
    %v2889 = vpack.c.bf16 %v2631, %v2631
    %2890 = vmatprep.subr.bf16.mxu0 %v1388
    %2891 = vmatpush1.bf16.msra.mxu0 %v1387
    %2892 = vmatprep.subr.bf16.mxu0 %v1384
    %2893 = vmatpush1.bf16.msra.mxu0 %v1383
    %2894 = vmatprep.subr.bf16.mxu0 %v1380
    %2895 = vmatpush1.bf16.msra.mxu0 %v1379
    %2896 = vmatprep.subr.bf16.mxu0 %v1376
    %2897 = vmatpush1.bf16.msra.mxu0 %v1375
    %2898 = vmatprep.subr.bf16.mxu0 %v1372
    %2899 = vmatpush1.bf16.msra.mxu0 %v1371
    %2900 = vmatprep.subr.bf16.mxu0 %v1368
    %2901 = vmatpush1.bf16.msra.mxu0 %v1367
    %2902 = vmatprep.subr.bf16.mxu0 %v1364
    %2903 = vmatpush1.bf16.msra.mxu0 %v1363
    %2904 = vmatprep.subr.bf16.mxu0 %v1360
    %2905 = vmatpush1.bf16.msra.mxu0 %v1359
    %2906 = vmatprep.subr.bf16.mxu0 0
    %2907 = vmatpush2.bf16.msra.mxu0 0
    %2908 = vmatprep.subr.bf16.mxu0 0
    %2909 = vmatpush2.bf16.msra.mxu0 0
    %2910 = vmatprep.subr.bf16.mxu0 0
    %2911 = vmatpush2.bf16.msra.mxu0 0
    %2912 = vmatprep.subr.bf16.mxu0 0
    %2913 = vmatpush2.bf16.msra.mxu0 0
    %2914 = vmatprep.subr.bf16.mxu0 0
    %2915 = vmatpush2.bf16.msra.mxu0 0
    %2916 = vmatprep.subr.bf16.mxu0 0
    %2917 = vmatpush2.bf16.msra.mxu0 0
    %2918 = vmatprep.subr.bf16.mxu0 0
    %2919 = vmatpush2.bf16.msra.mxu0 0
    %2920 = vmatprep.subr.bf16.mxu0 0
    %2921 = vmatpush2.bf16.msra.mxu0 0
    %2922 = vmatprep.mubr.bf16.mxu0 0
    %2923 = vmatmul.mubr.bf16.gmra.mxu0 %v2889
    %v2924 = vpop.f32.mrf.mxu0
    %v2925 = vadd.f32 0.0, %v2924
    %v2926 = vpop.f32.mrf.mxu0
    %v2927 = vadd.f32 0.0, %v2926
    %v2928 = vpop.f32.mrf.mxu0
    %v2929 = vpop.f32.mrf.mxu0
    %2930 = vdwg.mxu0
    %2931 = vmatprep.subr.bf16.mxu0 %v1390
    %2932 = vmatpush1.bf16.msra.mxu0 %v1389
    %2933 = vmatprep.subr.bf16.mxu0 %v1386
    %2934 = vmatpush1.bf16.msra.mxu0 %v1385
    %2935 = vmatprep.subr.bf16.mxu0 %v1382
    %2936 = vmatpush1.bf16.msra.mxu0 %v1381
    %2937 = vmatprep.subr.bf16.mxu0 %v1378
    %2938 = vmatpush1.bf16.msra.mxu0 %v1377
    %2939 = vmatprep.subr.bf16.mxu0 %v1374
    %2940 = vmatpush1.bf16.msra.mxu0 %v1373
    %2941 = vmatprep.subr.bf16.mxu0 %v1370
    %2942 = vmatpush1.bf16.msra.mxu0 %v1369
    %2943 = vmatprep.subr.bf16.mxu0 %v1366
    %2944 = vmatpush1.bf16.msra.mxu0 %v1365
    %2945 = vmatprep.subr.bf16.mxu0 %v1362
    %2946 = vmatpush1.bf16.msra.mxu0 %v1361
    %2947 = vmatprep.subr.bf16.mxu0 0
    %2948 = vmatpush2.bf16.msra.mxu0 0
    %2949 = vmatprep.subr.bf16.mxu0 0
    %2950 = vmatpush2.bf16.msra.mxu0 0
    %2951 = vmatprep.subr.bf16.mxu0 0
    %2952 = vmatpush2.bf16.msra.mxu0 0
    %2953 = vmatprep.subr.bf16.mxu0 0
    %2954 = vmatpush2.bf16.msra.mxu0 0
    %2955 = vmatprep.subr.bf16.mxu0 0
    %2956 = vmatpush2.bf16.msra.mxu0 0
    %2957 = vmatprep.subr.bf16.mxu0 0
    %2958 = vmatpush2.bf16.msra.mxu0 0
    %2959 = vmatprep.subr.bf16.mxu0 0
    %2960 = vmatpush2.bf16.msra.mxu0 0
    %2961 = vmatprep.subr.bf16.mxu0 0
    %2962 = vmatpush2.bf16.msra.mxu0 0
    %2963 = vmatprep.mubr.bf16.mxu0 0
    %2964 = vmatmul.mubr.bf16.gmra.mxu0 %v2889
    %v2965 = vpop.f32.mrf.mxu0
    %v2966 = vadd.f32 0.0, %v2965
    %v2967 = vpop.f32.mrf.mxu0
    %v2968 = vadd.f32 0.0, %v2967
    %v2969 = vpop.f32.mrf.mxu0
    %v2970 = vpop.f32.mrf.mxu0
    %2971 = vdwg.mxu0
    %v2972 = vadd.f32 %v2842, %v2925
    %v2973 = vadd.f32 %v2844, %v2927
    %v2974 = vadd.f32 %v2883, %v2966
    %v2975 = vadd.f32 %v2885, %v2968
    %v2976 = vxor.u32 %v2972, 2147483648
    %v2977 = vmul.f32 %v2976, 1.442695
    %v2978 = vpow.pop %v2977
    %v2979 = vadd.f32 %v2978, 1.0
    %v2980 = vrcp.pop %v2979
    %v2981 = vmul.f32 1.0, %v2980
    %v2982 = vxor.u32 %v2973, 2147483648
    %v2983 = vmul.f32 %v2982, 1.442695
    %v2984 = vpow.pop %v2983
    %v2985 = vadd.f32 %v2984, 1.0
    %v2986 = vrcp.pop %v2985
    %v2987 = vmul.f32 1.0, %v2986
    %v2988 = vtanh.pop %v2974
    %v2989 = vxor.u32 %v2975, 2147483648
    %v2990 = vmul.f32 %v2989, 1.442695
    %v2991 = vpow.pop %v2990
    %v2992 = vadd.f32 %v2991, 1.0
    %v2993 = vrcp.pop %v2992
    %v2994 = vmul.f32 1.0, %v2993
    %v2995 = vmul.f32 %v2987, %v2629
    %v2996 = vmul.f32 %v2981, %v2988
    %v2997 = vadd.f32 %v2995, %v2996
    %v2998 = vtanh.pop %v2997
    %v2999 = vmul.f32 %v2994, %v2998
    %3000 = vmatprep.subr.bf16.mxu0 %v800
    %3001 = vmatpush1.bf16.msra.mxu0 %v799
    %3002 = vmatprep.subr.bf16.mxu0 %v796
    %3003 = vmatpush1.bf16.msra.mxu0 %v795
    %3004 = vmatprep.subr.bf16.mxu0 %v792
    %3005 = vmatpush1.bf16.msra.mxu0 %v791
    %3006 = vmatprep.subr.bf16.mxu0 %v788
    %3007 = vmatpush1.bf16.msra.mxu0 %v787
    %3008 = vmatprep.subr.bf16.mxu0 %v784
    %3009 = vmatpush1.bf16.msra.mxu0 %v783
    %3010 = vmatprep.subr.bf16.mxu0 %v780
    %3011 = vmatpush1.bf16.msra.mxu0 %v779
    %3012 = vmatprep.subr.bf16.mxu0 %v776
    %3013 = vmatpush1.bf16.msra.mxu0 %v775
    %3014 = vmatprep.subr.bf16.mxu0 %v772
    %3015 = vmatpush1.bf16.msra.mxu0 %v771
    %3016 = vmatprep.subr.bf16.mxu0 0
    %3017 = vmatpush2.bf16.msra.mxu0 0
    %3018 = vmatprep.subr.bf16.mxu0 0
    %3019 = vmatpush2.bf16.msra.mxu0 0
    %3020 = vmatprep.subr.bf16.mxu0 0
    %3021 = vmatpush2.bf16.msra.mxu0 0
    %3022 = vmatprep.subr.bf16.mxu0 0
    %3023 = vmatpush2.bf16.msra.mxu0 0
    %3024 = vmatprep.subr.bf16.mxu0 0
    %3025 = vmatpush2.bf16.msra.mxu0 0
    %3026 = vmatprep.subr.bf16.mxu0 0
    %3027 = vmatpush2.bf16.msra.mxu0 0
    %3028 = vmatprep.subr.bf16.mxu0 0
    %3029 = vmatpush2.bf16.msra.mxu0 0
    %3030 = vmatprep.subr.bf16.mxu0 0
    %3031 = vmatpush2.bf16.msra.mxu0 0
    %3032 = vmatprep.mubr.bf16.mxu0 0
    %3033 = vmatmul.mubr.bf16.gmra.mxu0 %v2805
    %v3034 = vpop.f32.mrf.mxu0
    %v3035 = vadd.f32 0.0, %v3034
    %v3036 = vpop.f32.mrf.mxu0
    %v3037 = vadd.f32 0.0, %v3036
    %v3038 = vpop.f32.mrf.mxu0
    %v3039 = vpop.f32.mrf.mxu0
    %3040 = vdwg.mxu0
    %3041 = vmatprep.subr.bf16.mxu0 %v802
    %3042 = vmatpush1.bf16.msra.mxu0 %v801
    %3043 = vmatprep.subr.bf16.mxu0 %v798
    %3044 = vmatpush1.bf16.msra.mxu0 %v797
    %3045 = vmatprep.subr.bf16.mxu0 %v794
    %3046 = vmatpush1.bf16.msra.mxu0 %v793
    %3047 = vmatprep.subr.bf16.mxu0 %v790
    %3048 = vmatpush1.bf16.msra.mxu0 %v789
    %3049 = vmatprep.subr.bf16.mxu0 %v786
    %3050 = vmatpush1.bf16.msra.mxu0 %v785
    %3051 = vmatprep.subr.bf16.mxu0 %v782
    %3052 = vmatpush1.bf16.msra.mxu0 %v781
    %3053 = vmatprep.subr.bf16.mxu0 %v778
    %3054 = vmatpush1.bf16.msra.mxu0 %v777
    %3055 = vmatprep.subr.bf16.mxu0 %v774
    %3056 = vmatpush1.bf16.msra.mxu0 %v773
    %3057 = vmatprep.subr.bf16.mxu0 0
    %3058 = vmatpush2.bf16.msra.mxu0 0
    %3059 = vmatprep.subr.bf16.mxu0 0
    %3060 = vmatpush2.bf16.msra.mxu0 0
    %3061 = vmatprep.subr.bf16.mxu0 0
    %3062 = vmatpush2.bf16.msra.mxu0 0
    %3063 = vmatprep.subr.bf16.mxu0 0
    %3064 = vmatpush2.bf16.msra.mxu0 0
    %3065 = vmatprep.subr.bf16.mxu0 0
    %3066 = vmatpush2.bf16.msra.mxu0 0
    %3067 = vmatprep.subr.bf16.mxu0 0
    %3068 = vmatpush2.bf16.msra.mxu0 0
    %3069 = vmatprep.subr.bf16.mxu0 0
    %3070 = vmatpush2.bf16.msra.mxu0 0
    %3071 = vmatprep.subr.bf16.mxu0 0
    %3072 = vmatpush2.bf16.msra.mxu0 0
    %3073 = vmatprep.mubr.bf16.mxu0 0
    %3074 = vmatmul.mubr.bf16.gmra.mxu0 %v2805
    %v3075 = vpop.f32.mrf.mxu0
    %v3076 = vadd.f32 0.0, %v3075
    %v3077 = vpop.f32.mrf.mxu0
    %v3078 = vadd.f32 0.0, %v3077
    %v3079 = vpop.f32.mrf.mxu0
    %v3080 = vpop.f32.mrf.mxu0
    %3081 = vdwg.mxu0
    %v3086 = vrot.slane %v3035, 3
    %v3087 = vrot.slane %v3037, 3
    %v3088 = vrot.slane %v3076, 3
    %v3089 = vrot.slane %v3078, 3
    %v3090 = vrot.slane %v3035, 4
    %v3091 = vrot.slane %v3037, 4
    %v3092 = vrot.slane %v3076, 4
    %v3093 = vrot.slane %v3078, 4
    %v3102 = vadd.f32 %v659, %v3086
    %v3103 = vadd.f32 %v660, %v3087
    %v3104 = vadd.f32 %v661, %v3088
    %v3105 = vadd.f32 %v662, %v3089
    %v3106 = vadd.f32 %v667, %v3090
    %v3107 = vadd.f32 %v668, %v3091
    %v3108 = vadd.f32 %v669, %v3092
    %v3109 = vadd.f32 %v670, %v3093
    %v3110 = vxor.u32 %v3102, 2147483648
    %v3111 = vxor.u32 %v3106, 2147483648
    %v3112 = vmul.f32 %v3110, 1.442695
    %v3113 = vpow.pop %v3112
    %v3114 = vmul.f32 %v3111, 1.442695
    %v3115 = vpow.pop %v3114
    %v3116 = vadd.f32 %v3113, 1.0
    %v3117 = vadd.f32 %v3115, 1.0
    %v3118 = vrcp.pop %v3116
    %v3119 = vmul.f32 1.0, %v3118
    %v3120 = vrcp.pop %v3117
    %v3121 = vmul.f32 1.0, %v3120
    %v3122 = vxor.u32 %v3103, 2147483648
    %v3123 = vxor.u32 %v3107, 2147483648
    %v3124 = vmul.f32 %v3122, 1.442695
    %v3125 = vpow.pop %v3124
    %v3126 = vmul.f32 %v3123, 1.442695
    %v3127 = vpow.pop %v3126
    %v3128 = vadd.f32 %v3125, 1.0
    %v3129 = vadd.f32 %v3127, 1.0
    %v3130 = vrcp.pop %v3128
    %v3131 = vmul.f32 1.0, %v3130
    %v3132 = vrcp.pop %v3129
    %v3133 = vmul.f32 1.0, %v3132
    %v3134 = vtanh.pop %v3104
    %v3135 = vtanh.pop %v3108
    %v3136 = vxor.u32 %v3105, 2147483648
    %v3137 = vxor.u32 %v3109, 2147483648
    %v3138 = vmul.f32 %v3136, 1.442695
    %v3139 = vpow.pop %v3138
    %v3140 = vmul.f32 %v3137, 1.442695
    %v3141 = vpow.pop %v3140
    %v3142 = vadd.f32 %v3139, 1.0
    %v3143 = vadd.f32 %v3141, 1.0
    %v3144 = vrcp.pop %v3142
    %v3145 = vmul.f32 1.0, %v3144
    %v3146 = vrcp.pop %v3143
    %v3147 = vmul.f32 1.0, %v3146
    %v3150 = vrot.slane %v2790, 7
    %v3151 = vrot.slane %v2791, 7
    %v3154 = vmul.f32 %v3131, %v3150
    %v3155 = vmul.f32 %v3133, %v3151
    %v3156 = vmul.f32 %v3119, %v3134
    %v3157 = vmul.f32 %v3121, %v3135
    %v3158 = vadd.f32 %v3154, %v3156
    %v3159 = vadd.f32 %v3155, %v3157
    %v3160 = vtanh.pop %v3158
    %v3161 = vtanh.pop %v3159
    %v3162 = vmul.f32 %v3145, %v3160
    %v3163 = vmul.f32 %v3147, %v3161
    %v3164 = vpack.c.bf16 %v3162, %v3162
    %v3165 = vpack.c.bf16 %v3163, %v3163
    %v3168 = vunpack.c.l.b16 %v3164
    %v3169 = vunpack.c.l.b16 %v3165
    %v3170 = vrot.slane %v3168, 5
    %v3171 = vrot.slane %v3169, 4
    %v3172 = vsel %vm1017, %v3171, %v3170
    %v3173 = vpack.c.b16 %v3172, %v3172
    %3175 = vmatprep.subr.bf16.mxu0 %v1146
    %3176 = vmatpush1.bf16.msra.mxu0 %v1145
    %3177 = vmatprep.subr.bf16.mxu0 %v1142
    %3178 = vmatpush1.bf16.msra.mxu0 %v1141
    %3179 = vmatprep.subr.bf16.mxu0 %v1138
    %3180 = vmatpush1.bf16.msra.mxu0 %v1137
    %3181 = vmatprep.subr.bf16.mxu0 %v1134
    %3182 = vmatpush1.bf16.msra.mxu0 %v1133
    %3183 = vmatprep.subr.bf16.mxu0 %v1130
    %3184 = vmatpush1.bf16.msra.mxu0 %v1129
    %3185 = vmatprep.subr.bf16.mxu0 %v1126
    %3186 = vmatpush1.bf16.msra.mxu0 %v1125
    %3187 = vmatprep.subr.bf16.mxu0 %v1122
    %3188 = vmatpush1.bf16.msra.mxu0 %v1121
    %3189 = vmatprep.subr.bf16.mxu0 %v1118
    %3190 = vmatpush1.bf16.msra.mxu0 %v1117
    %3191 = vmatprep.subr.bf16.mxu0 0
    %3192 = vmatpush2.bf16.msra.mxu0 0
    %3193 = vmatprep.subr.bf16.mxu0 0
    %3194 = vmatpush2.bf16.msra.mxu0 0
    %3195 = vmatprep.subr.bf16.mxu0 0
    %3196 = vmatpush2.bf16.msra.mxu0 0
    %3197 = vmatprep.subr.bf16.mxu0 0
    %3198 = vmatpush2.bf16.msra.mxu0 0
    %3199 = vmatprep.subr.bf16.mxu0 0
    %3200 = vmatpush2.bf16.msra.mxu0 0
    %3201 = vmatprep.subr.bf16.mxu0 0
    %3202 = vmatpush2.bf16.msra.mxu0 0
    %3203 = vmatprep.subr.bf16.mxu0 0
    %3204 = vmatpush2.bf16.msra.mxu0 0
    %3205 = vmatprep.subr.bf16.mxu0 0
    %3206 = vmatpush2.bf16.msra.mxu0 0
    %3207 = vmatprep.mubr.bf16.mxu0 0
    %3208 = vmatmul.mubr.bf16.gmra.mxu0 %v3173
    %v3209 = vpop.f32.mrf.mxu0
    %v3210 = vadd.f32 %v995, %v3209
    %v3211 = vpop.f32.mrf.mxu0
    %v3212 = vadd.f32 %v999, %v3211
    %v3213 = vpop.f32.mrf.mxu0
    %v3214 = vpop.f32.mrf.mxu0
    %3215 = vdwg.mxu0
    %3216 = vmatprep.subr.bf16.mxu0 %v1148
    %3217 = vmatpush1.bf16.msra.mxu0 %v1147
    %3218 = vmatprep.subr.bf16.mxu0 %v1144
    %3219 = vmatpush1.bf16.msra.mxu0 %v1143
    %3220 = vmatprep.subr.bf16.mxu0 %v1140
    %3221 = vmatpush1.bf16.msra.mxu0 %v1139
    %3222 = vmatprep.subr.bf16.mxu0 %v1136
    %3223 = vmatpush1.bf16.msra.mxu0 %v1135
    %3224 = vmatprep.subr.bf16.mxu0 %v1132
    %3225 = vmatpush1.bf16.msra.mxu0 %v1131
    %3226 = vmatprep.subr.bf16.mxu0 %v1128
    %3227 = vmatpush1.bf16.msra.mxu0 %v1127
    %3228 = vmatprep.subr.bf16.mxu0 %v1124
    %3229 = vmatpush1.bf16.msra.mxu0 %v1123
    %3230 = vmatprep.subr.bf16.mxu0 %v1120
    %3231 = vmatpush1.bf16.msra.mxu0 %v1119
    %3232 = vmatprep.subr.bf16.mxu0 0
    %3233 = vmatpush2.bf16.msra.mxu0 0
    %3234 = vmatprep.subr.bf16.mxu0 0
    %3235 = vmatpush2.bf16.msra.mxu0 0
    %3236 = vmatprep.subr.bf16.mxu0 0
    %3237 = vmatpush2.bf16.msra.mxu0 0
    %3238 = vmatprep.subr.bf16.mxu0 0
    %3239 = vmatpush2.bf16.msra.mxu0 0
    %3240 = vmatprep.subr.bf16.mxu0 0
    %3241 = vmatpush2.bf16.msra.mxu0 0
    %3242 = vmatprep.subr.bf16.mxu0 0
    %3243 = vmatpush2.bf16.msra.mxu0 0
    %3244 = vmatprep.subr.bf16.mxu0 0
    %3245 = vmatpush2.bf16.msra.mxu0 0
    %3246 = vmatprep.subr.bf16.mxu0 0
    %3247 = vmatpush2.bf16.msra.mxu0 0
    %3248 = vmatprep.mubr.bf16.mxu0 0
    %3249 = vmatmul.mubr.bf16.gmra.mxu0 %v3173
    %v3250 = vpop.f32.mrf.mxu0
    %v3251 = vadd.f32 %v1003, %v3250
    %v3252 = vpop.f32.mrf.mxu0
    %v3253 = vadd.f32 %v1007, %v3252
    %v3254 = vpop.f32.mrf.mxu0
    %v3255 = vpop.f32.mrf.mxu0
    %3256 = vdwg.mxu0
    %v3257 = vpack.c.bf16 %v2999, %v2999
    %3258 = vmatprep.subr.bf16.mxu0 %v1388
    %3259 = vmatpush1.bf16.msra.mxu0 %v1387
    %3260 = vmatprep.subr.bf16.mxu0 %v1384
    %3261 = vmatpush1.bf16.msra.mxu0 %v1383
    %3262 = vmatprep.subr.bf16.mxu0 %v1380
    %3263 = vmatpush1.bf16.msra.mxu0 %v1379
    %3264 = vmatprep.subr.bf16.mxu0 %v1376
    %3265 = vmatpush1.bf16.msra.mxu0 %v1375
    %3266 = vmatprep.subr.bf16.mxu0 %v1372
    %3267 = vmatpush1.bf16.msra.mxu0 %v1371
    %3268 = vmatprep.subr.bf16.mxu0 %v1368
    %3269 = vmatpush1.bf16.msra.mxu0 %v1367
    %3270 = vmatprep.subr.bf16.mxu0 %v1364
    %3271 = vmatpush1.bf16.msra.mxu0 %v1363
    %3272 = vmatprep.subr.bf16.mxu0 %v1360
    %3273 = vmatpush1.bf16.msra.mxu0 %v1359
    %3274 = vmatprep.subr.bf16.mxu0 0
    %3275 = vmatpush2.bf16.msra.mxu0 0
    %3276 = vmatprep.subr.bf16.mxu0 0
    %3277 = vmatpush2.bf16.msra.mxu0 0
    %3278 = vmatprep.subr.bf16.mxu0 0
    %3279 = vmatpush2.bf16.msra.mxu0 0
    %3280 = vmatprep.subr.bf16.mxu0 0
    %3281 = vmatpush2.bf16.msra.mxu0 0
    %3282 = vmatprep.subr.bf16.mxu0 0
    %3283 = vmatpush2.bf16.msra.mxu0 0
    %3284 = vmatprep.subr.bf16.mxu0 0
    %3285 = vmatpush2.bf16.msra.mxu0 0
    %3286 = vmatprep.subr.bf16.mxu0 0
    %3287 = vmatpush2.bf16.msra.mxu0 0
    %3288 = vmatprep.subr.bf16.mxu0 0
    %3289 = vmatpush2.bf16.msra.mxu0 0
    %3290 = vmatprep.mubr.bf16.mxu0 0
    %3291 = vmatmul.mubr.bf16.gmra.mxu0 %v3257
    %v3292 = vpop.f32.mrf.mxu0
    %v3293 = vadd.f32 0.0, %v3292
    %v3294 = vpop.f32.mrf.mxu0
    %v3295 = vadd.f32 0.0, %v3294
    %v3296 = vpop.f32.mrf.mxu0
    %v3297 = vpop.f32.mrf.mxu0
    %3298 = vdwg.mxu0
    %3299 = vmatprep.subr.bf16.mxu0 %v1390
    %3300 = vmatpush1.bf16.msra.mxu0 %v1389
    %3301 = vmatprep.subr.bf16.mxu0 %v1386
    %3302 = vmatpush1.bf16.msra.mxu0 %v1385
    %3303 = vmatprep.subr.bf16.mxu0 %v1382
    %3304 = vmatpush1.bf16.msra.mxu0 %v1381
    %3305 = vmatprep.subr.bf16.mxu0 %v1378
    %3306 = vmatpush1.bf16.msra.mxu0 %v1377
    %3307 = vmatprep.subr.bf16.mxu0 %v1374
    %3308 = vmatpush1.bf16.msra.mxu0 %v1373
    %3309 = vmatprep.subr.bf16.mxu0 %v1370
    %3310 = vmatpush1.bf16.msra.mxu0 %v1369
    %3311 = vmatprep.subr.bf16.mxu0 %v1366
    %3312 = vmatpush1.bf16.msra.mxu0 %v1365
    %3313 = vmatprep.subr.bf16.mxu0 %v1362
    %3314 = vmatpush1.bf16.msra.mxu0 %v1361
    %3315 = vmatprep.subr.bf16.mxu0 0
    %3316 = vmatpush2.bf16.msra.mxu0 0
    %3317 = vmatprep.subr.bf16.mxu0 0
    %3318 = vmatpush2.bf16.msra.mxu0 0
    %3319 = vmatprep.subr.bf16.mxu0 0
    %3320 = vmatpush2.bf16.msra.mxu0 0
    %3321 = vmatprep.subr.bf16.mxu0 0
    %3322 = vmatpush2.bf16.msra.mxu0 0
    %3323 = vmatprep.subr.bf16.mxu0 0
    %3324 = vmatpush2.bf16.msra.mxu0 0
    %3325 = vmatprep.subr.bf16.mxu0 0
    %3326 = vmatpush2.bf16.msra.mxu0 0
    %3327 = vmatprep.subr.bf16.mxu0 0
    %3328 = vmatpush2.bf16.msra.mxu0 0
    %3329 = vmatprep.subr.bf16.mxu0 0
    %3330 = vmatpush2.bf16.msra.mxu0 0
    %3331 = vmatprep.mubr.bf16.mxu0 0
    %3332 = vmatmul.mubr.bf16.gmra.mxu0 %v3257
    %v3333 = vpop.f32.mrf.mxu0
    %v3334 = vadd.f32 0.0, %v3333
    %v3335 = vpop.f32.mrf.mxu0
    %v3336 = vadd.f32 0.0, %v3335
    %v3337 = vpop.f32.mrf.mxu0
    %v3338 = vpop.f32.mrf.mxu0
    %3339 = vdwg.mxu0
    %v3340 = vadd.f32 %v3210, %v3293
    %v3341 = vadd.f32 %v3212, %v3295
    %v3342 = vadd.f32 %v3251, %v3334
    %v3343 = vadd.f32 %v3253, %v3336
    %v3344 = vxor.u32 %v3340, 2147483648
    %v3345 = vmul.f32 %v3344, 1.442695
    %v3346 = vpow.pop %v3345
    %v3347 = vadd.f32 %v3346, 1.0
    %v3348 = vrcp.pop %v3347
    %v3349 = vmul.f32 1.0, %v3348
    %v3350 = vxor.u32 %v3341, 2147483648
    %v3351 = vmul.f32 %v3350, 1.442695
    %v3352 = vpow.pop %v3351
    %v3353 = vadd.f32 %v3352, 1.0
    %v3354 = vrcp.pop %v3353
    %v3355 = vmul.f32 1.0, %v3354
    %v3356 = vtanh.pop %v3342
    %v3357 = vxor.u32 %v3343, 2147483648
    %v3358 = vmul.f32 %v3357, 1.442695
    %v3359 = vpow.pop %v3358
    %v3360 = vadd.f32 %v3359, 1.0
    %v3361 = vrcp.pop %v3360
    %v3362 = vmul.f32 1.0, %v3361
    %v3363 = vmul.f32 %v3355, %v2997
    %v3364 = vmul.f32 %v3349, %v3356
    %v3365 = vadd.f32 %v3363, %v3364
    %v3366 = vtanh.pop %v3365
    %v3367 = vmul.f32 %v3362, %v3366
    %3368 = vmatprep.subr.bf16.mxu0 %v800
    %3369 = vmatpush1.bf16.msra.mxu0 %v799
    %3370 = vmatprep.subr.bf16.mxu0 %v796
    %3371 = vmatpush1.bf16.msra.mxu0 %v795
    %3372 = vmatprep.subr.bf16.mxu0 %v792
    %3373 = vmatpush1.bf16.msra.mxu0 %v791
    %3374 = vmatprep.subr.bf16.mxu0 %v788
    %3375 = vmatpush1.bf16.msra.mxu0 %v787
    %3376 = vmatprep.subr.bf16.mxu0 %v784
    %3377 = vmatpush1.bf16.msra.mxu0 %v783
    %3378 = vmatprep.subr.bf16.mxu0 %v780
    %3379 = vmatpush1.bf16.msra.mxu0 %v779
    %3380 = vmatprep.subr.bf16.mxu0 %v776
    %3381 = vmatpush1.bf16.msra.mxu0 %v775
    %3382 = vmatprep.subr.bf16.mxu0 %v772
    %3383 = vmatpush1.bf16.msra.mxu0 %v771
    %3384 = vmatprep.subr.bf16.mxu0 0
    %3385 = vmatpush2.bf16.msra.mxu0 0
    %3386 = vmatprep.subr.bf16.mxu0 0
    %3387 = vmatpush2.bf16.msra.mxu0 0
    %3388 = vmatprep.subr.bf16.mxu0 0
    %3389 = vmatpush2.bf16.msra.mxu0 0
    %3390 = vmatprep.subr.bf16.mxu0 0
    %3391 = vmatpush2.bf16.msra.mxu0 0
    %3392 = vmatprep.subr.bf16.mxu0 0
    %3393 = vmatpush2.bf16.msra.mxu0 0
    %3394 = vmatprep.subr.bf16.mxu0 0
    %3395 = vmatpush2.bf16.msra.mxu0 0
    %3396 = vmatprep.subr.bf16.mxu0 0
    %3397 = vmatpush2.bf16.msra.mxu0 0
    %3398 = vmatprep.subr.bf16.mxu0 0
    %3399 = vmatpush2.bf16.msra.mxu0 0
    %3400 = vmatprep.mubr.bf16.mxu0 0
    %3401 = vmatmul.mubr.bf16.gmra.mxu0 %v3173
    %v3402 = vpop.f32.mrf.mxu0
    %v3403 = vadd.f32 0.0, %v3402
    %v3404 = vpop.f32.mrf.mxu0
    %v3405 = vadd.f32 0.0, %v3404
    %v3406 = vpop.f32.mrf.mxu0
    %v3407 = vpop.f32.mrf.mxu0
    %3408 = vdwg.mxu0
    %3409 = vmatprep.subr.bf16.mxu0 %v802
    %3410 = vmatpush1.bf16.msra.mxu0 %v801
    %3411 = vmatprep.subr.bf16.mxu0 %v798
    %3412 = vmatpush1.bf16.msra.mxu0 %v797
    %3413 = vmatprep.subr.bf16.mxu0 %v794
    %3414 = vmatpush1.bf16.msra.mxu0 %v793
    %3415 = vmatprep.subr.bf16.mxu0 %v790
    %3416 = vmatpush1.bf16.msra.mxu0 %v789
    %3417 = vmatprep.subr.bf16.mxu0 %v786
    %3418 = vmatpush1.bf16.msra.mxu0 %v785
    %3419 = vmatprep.subr.bf16.mxu0 %v782
    %3420 = vmatpush1.bf16.msra.mxu0 %v781
    %3421 = vmatprep.subr.bf16.mxu0 %v778
    %3422 = vmatpush1.bf16.msra.mxu0 %v777
    %3423 = vmatprep.subr.bf16.mxu0 %v774
    %3424 = vmatpush1.bf16.msra.mxu0 %v773
    %3425 = vmatprep.subr.bf16.mxu0 0
    %3426 = vmatpush2.bf16.msra.mxu0 0
    %3427 = vmatprep.subr.bf16.mxu0 0
    %3428 = vmatpush2.bf16.msra.mxu0 0
    %3429 = vmatprep.subr.bf16.mxu0 0
    %3430 = vmatpush2.bf16.msra.mxu0 0
    %3431 = vmatprep.subr.bf16.mxu0 0
    %3432 = vmatpush2.bf16.msra.mxu0 0
    %3433 = vmatprep.subr.bf16.mxu0 0
    %3434 = vmatpush2.bf16.msra.mxu0 0
    %3435 = vmatprep.subr.bf16.mxu0 0
    %3436 = vmatpush2.bf16.msra.mxu0 0
    %3437 = vmatprep.subr.bf16.mxu0 0
    %3438 = vmatpush2.bf16.msra.mxu0 0
    %3439 = vmatprep.subr.bf16.mxu0 0
    %3440 = vmatpush2.bf16.msra.mxu0 0
    %3441 = vmatprep.mubr.bf16.mxu0 0
    %3442 = vmatmul.mubr.bf16.gmra.mxu0 %v3173
    %v3443 = vpop.f32.mrf.mxu0
    %v3444 = vadd.f32 0.0, %v3443
    %v3445 = vpop.f32.mrf.mxu0
    %v3446 = vadd.f32 0.0, %v3445
    %v3447 = vpop.f32.mrf.mxu0
    %v3448 = vpop.f32.mrf.mxu0
    %3449 = vdwg.mxu0
    %v3454 = vrot.slane %v3403, 2
    %v3455 = vrot.slane %v3405, 2
    %v3456 = vrot.slane %v3444, 2
    %v3457 = vrot.slane %v3446, 2
    %v3458 = vrot.slane %v3403, 3
    %v3459 = vrot.slane %v3405, 3
    %v3460 = vrot.slane %v3444, 3
    %v3461 = vrot.slane %v3446, 3
    %v3470 = vadd.f32 %v659, %v3454
    %v3471 = vadd.f32 %v660, %v3455
    %v3472 = vadd.f32 %v661, %v3456
    %v3473 = vadd.f32 %v662, %v3457
    %v3474 = vadd.f32 %v667, %v3458
    %v3475 = vadd.f32 %v668, %v3459
    %v3476 = vadd.f32 %v669, %v3460
    %v3477 = vadd.f32 %v670, %v3461
    %v3478 = vxor.u32 %v3470, 2147483648
    %v3479 = vxor.u32 %v3474, 2147483648
    %v3480 = vmul.f32 %v3478, 1.442695
    %v3481 = vpow.pop %v3480
    %v3482 = vmul.f32 %v3479, 1.442695
    %v3483 = vpow.pop %v3482
    %v3484 = vadd.f32 %v3481, 1.0
    %v3485 = vadd.f32 %v3483, 1.0
    %v3486 = vrcp.pop %v3484
    %v3487 = vmul.f32 1.0, %v3486
    %v3488 = vrcp.pop %v3485
    %v3489 = vmul.f32 1.0, %v3488
    %v3490 = vxor.u32 %v3471, 2147483648
    %v3491 = vxor.u32 %v3475, 2147483648
    %v3492 = vmul.f32 %v3490, 1.442695
    %v3493 = vpow.pop %v3492
    %v3494 = vmul.f32 %v3491, 1.442695
    %v3495 = vpow.pop %v3494
    %v3496 = vadd.f32 %v3493, 1.0
    %v3497 = vadd.f32 %v3495, 1.0
    %v3498 = vrcp.pop %v3496
    %v3499 = vmul.f32 1.0, %v3498
    %v3500 = vrcp.pop %v3497
    %v3501 = vmul.f32 1.0, %v3500
    %v3502 = vtanh.pop %v3472
    %v3503 = vtanh.pop %v3476
    %v3504 = vxor.u32 %v3473, 2147483648
    %v3505 = vxor.u32 %v3477, 2147483648
    %v3506 = vmul.f32 %v3504, 1.442695
    %v3507 = vpow.pop %v3506
    %v3508 = vmul.f32 %v3505, 1.442695
    %v3509 = vpow.pop %v3508
    %v3510 = vadd.f32 %v3507, 1.0
    %v3511 = vadd.f32 %v3509, 1.0
    %v3512 = vrcp.pop %v3510
    %v3513 = vmul.f32 1.0, %v3512
    %v3514 = vrcp.pop %v3511
    %v3515 = vmul.f32 1.0, %v3514
    %v3518 = vrot.slane %v3158, 7
    %v3519 = vrot.slane %v3159, 7
    %v3522 = vmul.f32 %v3499, %v3518
    %v3523 = vmul.f32 %v3501, %v3519
    %v3524 = vmul.f32 %v3487, %v3502
    %v3525 = vmul.f32 %v3489, %v3503
    %v3526 = vadd.f32 %v3522, %v3524
    %v3527 = vadd.f32 %v3523, %v3525
    %v3528 = vtanh.pop %v3526
    %v3529 = vtanh.pop %v3527
    %v3530 = vmul.f32 %v3513, %v3528
    %v3531 = vmul.f32 %v3515, %v3529
    %v3532 = vpack.c.bf16 %v3530, %v3530
    %v3533 = vpack.c.bf16 %v3531, %v3531
    %v3536 = vunpack.c.l.b16 %v3532
    %v3537 = vunpack.c.l.b16 %v3533
    %v3538 = vrot.slane %v3536, 6
    %v3539 = vrot.slane %v3537, 5
    %v3540 = vsel %vm1017, %v3539, %v3538
    %v3541 = vpack.c.b16 %v3540, %v3540
    %3543 = vmatprep.subr.bf16.mxu0 %v1146
    %3544 = vmatpush1.bf16.msra.mxu0 %v1145
    %3545 = vmatprep.subr.bf16.mxu0 %v1142
    %3546 = vmatpush1.bf16.msra.mxu0 %v1141
    %3547 = vmatprep.subr.bf16.mxu0 %v1138
    %3548 = vmatpush1.bf16.msra.mxu0 %v1137
    %3549 = vmatprep.subr.bf16.mxu0 %v1134
    %3550 = vmatpush1.bf16.msra.mxu0 %v1133
    %3551 = vmatprep.subr.bf16.mxu0 %v1130
    %3552 = vmatpush1.bf16.msra.mxu0 %v1129
    %3553 = vmatprep.subr.bf16.mxu0 %v1126
    %3554 = vmatpush1.bf16.msra.mxu0 %v1125
    %3555 = vmatprep.subr.bf16.mxu0 %v1122
    %3556 = vmatpush1.bf16.msra.mxu0 %v1121
    %3557 = vmatprep.subr.bf16.mxu0 %v1118
    %3558 = vmatpush1.bf16.msra.mxu0 %v1117
    %3559 = vmatprep.subr.bf16.mxu0 0
    %3560 = vmatpush2.bf16.msra.mxu0 0
    %3561 = vmatprep.subr.bf16.mxu0 0
    %3562 = vmatpush2.bf16.msra.mxu0 0
    %3563 = vmatprep.subr.bf16.mxu0 0
    %3564 = vmatpush2.bf16.msra.mxu0 0
    %3565 = vmatprep.subr.bf16.mxu0 0
    %3566 = vmatpush2.bf16.msra.mxu0 0
    %3567 = vmatprep.subr.bf16.mxu0 0
    %3568 = vmatpush2.bf16.msra.mxu0 0
    %3569 = vmatprep.subr.bf16.mxu0 0
    %3570 = vmatpush2.bf16.msra.mxu0 0
    %3571 = vmatprep.subr.bf16.mxu0 0
    %3572 = vmatpush2.bf16.msra.mxu0 0
    %3573 = vmatprep.subr.bf16.mxu0 0
    %3574 = vmatpush2.bf16.msra.mxu0 0
    %3575 = vmatprep.mubr.bf16.mxu0 0
    %3576 = vmatmul.mubr.bf16.gmra.mxu0 %v3541
    %v3577 = vpop.f32.mrf.mxu0
    %v3578 = vadd.f32 %v995, %v3577
    %v3579 = vpop.f32.mrf.mxu0
    %v3580 = vadd.f32 %v999, %v3579
    %v3581 = vpop.f32.mrf.mxu0
    %v3582 = vpop.f32.mrf.mxu0
    %3583 = vdwg.mxu0
    %3584 = vmatprep.subr.bf16.mxu0 %v1148
    %3585 = vmatpush1.bf16.msra.mxu0 %v1147
    %3586 = vmatprep.subr.bf16.mxu0 %v1144
    %3587 = vmatpush1.bf16.msra.mxu0 %v1143
    %3588 = vmatprep.subr.bf16.mxu0 %v1140
    %3589 = vmatpush1.bf16.msra.mxu0 %v1139
    %3590 = vmatprep.subr.bf16.mxu0 %v1136
    %3591 = vmatpush1.bf16.msra.mxu0 %v1135
    %3592 = vmatprep.subr.bf16.mxu0 %v1132
    %3593 = vmatpush1.bf16.msra.mxu0 %v1131
    %3594 = vmatprep.subr.bf16.mxu0 %v1128
    %3595 = vmatpush1.bf16.msra.mxu0 %v1127
    %3596 = vmatprep.subr.bf16.mxu0 %v1124
    %3597 = vmatpush1.bf16.msra.mxu0 %v1123
    %3598 = vmatprep.subr.bf16.mxu0 %v1120
    %3599 = vmatpush1.bf16.msra.mxu0 %v1119
    %3600 = vmatprep.subr.bf16.mxu0 0
    %3601 = vmatpush2.bf16.msra.mxu0 0
    %3602 = vmatprep.subr.bf16.mxu0 0
    %3603 = vmatpush2.bf16.msra.mxu0 0
    %3604 = vmatprep.subr.bf16.mxu0 0
    %3605 = vmatpush2.bf16.msra.mxu0 0
    %3606 = vmatprep.subr.bf16.mxu0 0
    %3607 = vmatpush2.bf16.msra.mxu0 0
    %3608 = vmatprep.subr.bf16.mxu0 0
    %3609 = vmatpush2.bf16.msra.mxu0 0
    %3610 = vmatprep.subr.bf16.mxu0 0
    %3611 = vmatpush2.bf16.msra.mxu0 0
    %3612 = vmatprep.subr.bf16.mxu0 0
    %3613 = vmatpush2.bf16.msra.mxu0 0
    %3614 = vmatprep.subr.bf16.mxu0 0
    %3615 = vmatpush2.bf16.msra.mxu0 0
    %3616 = vmatprep.mubr.bf16.mxu0 0
    %3617 = vmatmul.mubr.bf16.gmra.mxu0 %v3541
    %v3618 = vpop.f32.mrf.mxu0
    %v3619 = vadd.f32 %v1003, %v3618
    %v3620 = vpop.f32.mrf.mxu0
    %v3621 = vadd.f32 %v1007, %v3620
    %v3622 = vpop.f32.mrf.mxu0
    %v3623 = vpop.f32.mrf.mxu0
    %3624 = vdwg.mxu0
    %v3625 = vpack.c.bf16 %v3367, %v3367
    %3626 = vmatprep.subr.bf16.mxu0 %v1388
    %3627 = vmatpush1.bf16.msra.mxu0 %v1387
    %3628 = vmatprep.subr.bf16.mxu0 %v1384
    %3629 = vmatpush1.bf16.msra.mxu0 %v1383
    %3630 = vmatprep.subr.bf16.mxu0 %v1380
    %3631 = vmatpush1.bf16.msra.mxu0 %v1379
    %3632 = vmatprep.subr.bf16.mxu0 %v1376
    %3633 = vmatpush1.bf16.msra.mxu0 %v1375
    %3634 = vmatprep.subr.bf16.mxu0 %v1372
    %3635 = vmatpush1.bf16.msra.mxu0 %v1371
    %3636 = vmatprep.subr.bf16.mxu0 %v1368
    %3637 = vmatpush1.bf16.msra.mxu0 %v1367
    %3638 = vmatprep.subr.bf16.mxu0 %v1364
    %3639 = vmatpush1.bf16.msra.mxu0 %v1363
    %3640 = vmatprep.subr.bf16.mxu0 %v1360
    %3641 = vmatpush1.bf16.msra.mxu0 %v1359
    %3642 = vmatprep.subr.bf16.mxu0 0
    %3643 = vmatpush2.bf16.msra.mxu0 0
    %3644 = vmatprep.subr.bf16.mxu0 0
    %3645 = vmatpush2.bf16.msra.mxu0 0
    %3646 = vmatprep.subr.bf16.mxu0 0
    %3647 = vmatpush2.bf16.msra.mxu0 0
    %3648 = vmatprep.subr.bf16.mxu0 0
    %3649 = vmatpush2.bf16.msra.mxu0 0
    %3650 = vmatprep.subr.bf16.mxu0 0
    %3651 = vmatpush2.bf16.msra.mxu0 0
    %3652 = vmatprep.subr.bf16.mxu0 0
    %3653 = vmatpush2.bf16.msra.mxu0 0
    %3654 = vmatprep.subr.bf16.mxu0 0
    %3655 = vmatpush2.bf16.msra.mxu0 0
    %3656 = vmatprep.subr.bf16.mxu0 0
    %3657 = vmatpush2.bf16.msra.mxu0 0
    %3658 = vmatprep.mubr.bf16.mxu0 0
    %3659 = vmatmul.mubr.bf16.gmra.mxu0 %v3625
    %v3660 = vpop.f32.mrf.mxu0
    %v3661 = vadd.f32 0.0, %v3660
    %v3662 = vpop.f32.mrf.mxu0
    %v3663 = vadd.f32 0.0, %v3662
    %v3664 = vpop.f32.mrf.mxu0
    %v3665 = vpop.f32.mrf.mxu0
    %3666 = vdwg.mxu0
    %3667 = vmatprep.subr.bf16.mxu0 %v1390
    %3668 = vmatpush1.bf16.msra.mxu0 %v1389
    %3669 = vmatprep.subr.bf16.mxu0 %v1386
    %3670 = vmatpush1.bf16.msra.mxu0 %v1385
    %3671 = vmatprep.subr.bf16.mxu0 %v1382
    %3672 = vmatpush1.bf16.msra.mxu0 %v1381
    %3673 = vmatprep.subr.bf16.mxu0 %v1378
    %3674 = vmatpush1.bf16.msra.mxu0 %v1377
    %3675 = vmatprep.subr.bf16.mxu0 %v1374
    %3676 = vmatpush1.bf16.msra.mxu0 %v1373
    %3677 = vmatprep.subr.bf16.mxu0 %v1370
    %3678 = vmatpush1.bf16.msra.mxu0 %v1369
    %3679 = vmatprep.subr.bf16.mxu0 %v1366
    %3680 = vmatpush1.bf16.msra.mxu0 %v1365
    %3681 = vmatprep.subr.bf16.mxu0 %v1362
    %3682 = vmatpush1.bf16.msra.mxu0 %v1361
    %3683 = vmatprep.subr.bf16.mxu0 0
    %3684 = vmatpush2.bf16.msra.mxu0 0
    %3685 = vmatprep.subr.bf16.mxu0 0
    %3686 = vmatpush2.bf16.msra.mxu0 0
    %3687 = vmatprep.subr.bf16.mxu0 0
    %3688 = vmatpush2.bf16.msra.mxu0 0
    %3689 = vmatprep.subr.bf16.mxu0 0
    %3690 = vmatpush2.bf16.msra.mxu0 0
    %3691 = vmatprep.subr.bf16.mxu0 0
    %3692 = vmatpush2.bf16.msra.mxu0 0
    %3693 = vmatprep.subr.bf16.mxu0 0
    %3694 = vmatpush2.bf16.msra.mxu0 0
    %3695 = vmatprep.subr.bf16.mxu0 0
    %3696 = vmatpush2.bf16.msra.mxu0 0
    %3697 = vmatprep.subr.bf16.mxu0 0
    %3698 = vmatpush2.bf16.msra.mxu0 0
    %3699 = vmatprep.mubr.bf16.mxu0 0
    %3700 = vmatmul.mubr.bf16.gmra.mxu0 %v3625
    %v3701 = vpop.f32.mrf.mxu0
    %v3702 = vadd.f32 0.0, %v3701
    %v3703 = vpop.f32.mrf.mxu0
    %v3704 = vadd.f32 0.0, %v3703
    %v3705 = vpop.f32.mrf.mxu0
    %v3706 = vpop.f32.mrf.mxu0
    %3707 = vdwg.mxu0
    %v3708 = vadd.f32 %v3578, %v3661
    %v3709 = vadd.f32 %v3580, %v3663
    %v3710 = vadd.f32 %v3619, %v3702
    %v3711 = vadd.f32 %v3621, %v3704
    %v3712 = vxor.u32 %v3708, 2147483648
    %v3713 = vmul.f32 %v3712, 1.442695
    %v3714 = vpow.pop %v3713
    %v3715 = vadd.f32 %v3714, 1.0
    %v3716 = vrcp.pop %v3715
    %v3717 = vmul.f32 1.0, %v3716
    %v3718 = vxor.u32 %v3709, 2147483648
    %v3719 = vmul.f32 %v3718, 1.442695
    %v3720 = vpow.pop %v3719
    %v3721 = vadd.f32 %v3720, 1.0
    %v3722 = vrcp.pop %v3721
    %v3723 = vmul.f32 1.0, %v3722
    %v3724 = vtanh.pop %v3710
    %v3725 = vxor.u32 %v3711, 2147483648
    %v3726 = vmul.f32 %v3725, 1.442695
    %v3727 = vpow.pop %v3726
    %v3728 = vadd.f32 %v3727, 1.0
    %v3729 = vrcp.pop %v3728
    %v3730 = vmul.f32 1.0, %v3729
    %v3731 = vmul.f32 %v3723, %v3365
    %v3732 = vmul.f32 %v3717, %v3724
    %v3733 = vadd.f32 %v3731, %v3732
    %v3734 = vtanh.pop %v3733
    %v3735 = vmul.f32 %v3730, %v3734
    %3736 = vmatprep.subr.bf16.mxu0 %v800
    %3737 = vmatpush1.bf16.msra.mxu0 %v799
    %3738 = vmatprep.subr.bf16.mxu0 %v796
    %3739 = vmatpush1.bf16.msra.mxu0 %v795
    %3740 = vmatprep.subr.bf16.mxu0 %v792
    %3741 = vmatpush1.bf16.msra.mxu0 %v791
    %3742 = vmatprep.subr.bf16.mxu0 %v788
    %3743 = vmatpush1.bf16.msra.mxu0 %v787
    %3744 = vmatprep.subr.bf16.mxu0 %v784
    %3745 = vmatpush1.bf16.msra.mxu0 %v783
    %3746 = vmatprep.subr.bf16.mxu0 %v780
    %3747 = vmatpush1.bf16.msra.mxu0 %v779
    %3748 = vmatprep.subr.bf16.mxu0 %v776
    %3749 = vmatpush1.bf16.msra.mxu0 %v775
    %3750 = vmatprep.subr.bf16.mxu0 %v772
    %3751 = vmatpush1.bf16.msra.mxu0 %v771
    %3752 = vmatprep.subr.bf16.mxu0 0
    %3753 = vmatpush2.bf16.msra.mxu0 0
    %3754 = vmatprep.subr.bf16.mxu0 0
    %3755 = vmatpush2.bf16.msra.mxu0 0
    %3756 = vmatprep.subr.bf16.mxu0 0
    %3757 = vmatpush2.bf16.msra.mxu0 0
    %3758 = vmatprep.subr.bf16.mxu0 0
    %3759 = vmatpush2.bf16.msra.mxu0 0
    %3760 = vmatprep.subr.bf16.mxu0 0
    %3761 = vmatpush2.bf16.msra.mxu0 0
    %3762 = vmatprep.subr.bf16.mxu0 0
    %3763 = vmatpush2.bf16.msra.mxu0 0
    %3764 = vmatprep.subr.bf16.mxu0 0
    %3765 = vmatpush2.bf16.msra.mxu0 0
    %3766 = vmatprep.subr.bf16.mxu0 0
    %3767 = vmatpush2.bf16.msra.mxu0 0
    %3768 = vmatprep.mubr.bf16.mxu0 0
    %3769 = vmatmul.mubr.bf16.gmra.mxu0 %v3541
    %v3770 = vpop.f32.mrf.mxu0
    %v3771 = vadd.f32 0.0, %v3770
    %v3772 = vpop.f32.mrf.mxu0
    %v3773 = vadd.f32 0.0, %v3772
    %v3774 = vpop.f32.mrf.mxu0
    %v3775 = vpop.f32.mrf.mxu0
    %3776 = vdwg.mxu0
    %3777 = vmatprep.subr.bf16.mxu0 %v802
    %3778 = vmatpush1.bf16.msra.mxu0 %v801
    %3779 = vmatprep.subr.bf16.mxu0 %v798
    %3780 = vmatpush1.bf16.msra.mxu0 %v797
    %3781 = vmatprep.subr.bf16.mxu0 %v794
    %3782 = vmatpush1.bf16.msra.mxu0 %v793
    %3783 = vmatprep.subr.bf16.mxu0 %v790
    %3784 = vmatpush1.bf16.msra.mxu0 %v789
    %3785 = vmatprep.subr.bf16.mxu0 %v786
    %3786 = vmatpush1.bf16.msra.mxu0 %v785
    %3787 = vmatprep.subr.bf16.mxu0 %v782
    %3788 = vmatpush1.bf16.msra.mxu0 %v781
    %3789 = vmatprep.subr.bf16.mxu0 %v778
    %3790 = vmatpush1.bf16.msra.mxu0 %v777
    %3791 = vmatprep.subr.bf16.mxu0 %v774
    %3792 = vmatpush1.bf16.msra.mxu0 %v773
    %3793 = vmatprep.subr.bf16.mxu0 0
    %3794 = vmatpush2.bf16.msra.mxu0 0
    %3795 = vmatprep.subr.bf16.mxu0 0
    %3796 = vmatpush2.bf16.msra.mxu0 0
    %3797 = vmatprep.subr.bf16.mxu0 0
    %3798 = vmatpush2.bf16.msra.mxu0 0
    %3799 = vmatprep.subr.bf16.mxu0 0
    %3800 = vmatpush2.bf16.msra.mxu0 0
    %3801 = vmatprep.subr.bf16.mxu0 0
    %3802 = vmatpush2.bf16.msra.mxu0 0
    %3803 = vmatprep.subr.bf16.mxu0 0
    %3804 = vmatpush2.bf16.msra.mxu0 0
    %3805 = vmatprep.subr.bf16.mxu0 0
    %3806 = vmatpush2.bf16.msra.mxu0 0
    %3807 = vmatprep.subr.bf16.mxu0 0
    %3808 = vmatpush2.bf16.msra.mxu0 0
    %3809 = vmatprep.mubr.bf16.mxu0 0
    %3810 = vmatmul.mubr.bf16.gmra.mxu0 %v3541
    %v3811 = vpop.f32.mrf.mxu0
    %v3812 = vadd.f32 0.0, %v3811
    %v3813 = vpop.f32.mrf.mxu0
    %v3814 = vadd.f32 0.0, %v3813
    %v3815 = vpop.f32.mrf.mxu0
    %v3816 = vpop.f32.mrf.mxu0
    %3817 = vdwg.mxu0
    %v3822 = vrot.slane %v3771, 1
    %v3823 = vrot.slane %v3773, 1
    %v3824 = vrot.slane %v3812, 1
    %v3825 = vrot.slane %v3814, 1
    %v3826 = vrot.slane %v3771, 2
    %v3827 = vrot.slane %v3773, 2
    %v3828 = vrot.slane %v3812, 2
    %v3829 = vrot.slane %v3814, 2
    %v3838 = vadd.f32 %v659, %v3822
    %v3839 = vadd.f32 %v660, %v3823
    %v3840 = vadd.f32 %v661, %v3824
    %v3841 = vadd.f32 %v662, %v3825
    %v3842 = vadd.f32 %v667, %v3826
    %v3843 = vadd.f32 %v668, %v3827
    %v3844 = vadd.f32 %v669, %v3828
    %v3845 = vadd.f32 %v670, %v3829
    %v3846 = vxor.u32 %v3838, 2147483648
    %v3847 = vxor.u32 %v3842, 2147483648
    %v3848 = vmul.f32 %v3846, 1.442695
    %v3849 = vpow.pop %v3848
    %v3850 = vmul.f32 %v3847, 1.442695
    %v3851 = vpow.pop %v3850
    %v3852 = vadd.f32 %v3849, 1.0
    %v3853 = vadd.f32 %v3851, 1.0
    %v3854 = vrcp.pop %v3852
    %v3855 = vmul.f32 1.0, %v3854
    %v3856 = vrcp.pop %v3853
    %v3857 = vmul.f32 1.0, %v3856
    %v3858 = vxor.u32 %v3839, 2147483648
    %v3859 = vxor.u32 %v3843, 2147483648
    %v3860 = vmul.f32 %v3858, 1.442695
    %v3861 = vpow.pop %v3860
    %v3862 = vmul.f32 %v3859, 1.442695
    %v3863 = vpow.pop %v3862
    %v3864 = vadd.f32 %v3861, 1.0
    %v3865 = vadd.f32 %v3863, 1.0
    %v3866 = vrcp.pop %v3864
    %v3867 = vmul.f32 1.0, %v3866
    %v3868 = vrcp.pop %v3865
    %v3869 = vmul.f32 1.0, %v3868
    %v3870 = vtanh.pop %v3840
    %v3871 = vtanh.pop %v3844
    %v3872 = vxor.u32 %v3841, 2147483648
    %v3873 = vxor.u32 %v3845, 2147483648
    %v3874 = vmul.f32 %v3872, 1.442695
    %v3875 = vpow.pop %v3874
    %v3876 = vmul.f32 %v3873, 1.442695
    %v3877 = vpow.pop %v3876
    %v3878 = vadd.f32 %v3875, 1.0
    %v3879 = vadd.f32 %v3877, 1.0
    %v3880 = vrcp.pop %v3878
    %v3881 = vmul.f32 1.0, %v3880
    %v3882 = vrcp.pop %v3879
    %v3883 = vmul.f32 1.0, %v3882
    %v3886 = vrot.slane %v3526, 7
    %v3887 = vrot.slane %v3527, 7
    %v3890 = vmul.f32 %v3867, %v3886
    %v3891 = vmul.f32 %v3869, %v3887
    %v3892 = vmul.f32 %v3855, %v3870
    %v3893 = vmul.f32 %v3857, %v3871
    %v3894 = vadd.f32 %v3890, %v3892
    %v3895 = vadd.f32 %v3891, %v3893
    %v3896 = vtanh.pop %v3894
    %v3897 = vtanh.pop %v3895
    %v3898 = vmul.f32 %v3881, %v3896
    %v3899 = vmul.f32 %v3883, %v3897
    %v3900 = vpack.c.bf16 %v3898, %v3898
    %v3901 = vpack.c.bf16 %v3899, %v3899
    %v3904 = vunpack.c.l.b16 %v3900
    %v3905 = vunpack.c.l.b16 %v3901
    %v3906 = vrot.slane %v3904, 7
    %v3907 = vrot.slane %v3905, 6
    %v3908 = vsel %vm1017, %v3907, %v3906
    %v3909 = vpack.c.b16 %v3908, %v3908
    %3911 = vmatprep.subr.bf16.mxu0 %v1146
    %3912 = vmatpush1.bf16.msra.mxu0 %v1145
    %3913 = vmatprep.subr.bf16.mxu0 %v1142
    %3914 = vmatpush1.bf16.msra.mxu0 %v1141
    %3915 = vmatprep.subr.bf16.mxu0 %v1138
    %3916 = vmatpush1.bf16.msra.mxu0 %v1137
    %3917 = vmatprep.subr.bf16.mxu0 %v1134
    %3918 = vmatpush1.bf16.msra.mxu0 %v1133
    %3919 = vmatprep.subr.bf16.mxu0 %v1130
    %3920 = vmatpush1.bf16.msra.mxu0 %v1129
    %3921 = vmatprep.subr.bf16.mxu0 %v1126
    %3922 = vmatpush1.bf16.msra.mxu0 %v1125
    %3923 = vmatprep.subr.bf16.mxu0 %v1122
    %3924 = vmatpush1.bf16.msra.mxu0 %v1121
    %3925 = vmatprep.subr.bf16.mxu0 %v1118
    %3926 = vmatpush1.bf16.msra.mxu0 %v1117
    %3927 = vmatprep.subr.bf16.mxu0 0
    %3928 = vmatpush2.bf16.msra.mxu0 0
    %3929 = vmatprep.subr.bf16.mxu0 0
    %3930 = vmatpush2.bf16.msra.mxu0 0
    %3931 = vmatprep.subr.bf16.mxu0 0
    %3932 = vmatpush2.bf16.msra.mxu0 0
    %3933 = vmatprep.subr.bf16.mxu0 0
    %3934 = vmatpush2.bf16.msra.mxu0 0
    %3935 = vmatprep.subr.bf16.mxu0 0
    %3936 = vmatpush2.bf16.msra.mxu0 0
    %3937 = vmatprep.subr.bf16.mxu0 0
    %3938 = vmatpush2.bf16.msra.mxu0 0
    %3939 = vmatprep.subr.bf16.mxu0 0
    %3940 = vmatpush2.bf16.msra.mxu0 0
    %3941 = vmatprep.subr.bf16.mxu0 0
    %3942 = vmatpush2.bf16.msra.mxu0 0
    %3943 = vmatprep.mubr.bf16.mxu0 0
    %3944 = vmatmul.mubr.bf16.gmra.mxu0 %v3909
    %v3945 = vpop.f32.mrf.mxu0
    %v3946 = vadd.f32 %v995, %v3945
    %v3947 = vpop.f32.mrf.mxu0
    %v3948 = vadd.f32 %v999, %v3947
    %v3949 = vpop.f32.mrf.mxu0
    %v3950 = vpop.f32.mrf.mxu0
    %3951 = vdwg.mxu0
    %3952 = vmatprep.subr.bf16.mxu0 %v1148
    %3953 = vmatpush1.bf16.msra.mxu0 %v1147
    %3954 = vmatprep.subr.bf16.mxu0 %v1144
    %3955 = vmatpush1.bf16.msra.mxu0 %v1143
    %3956 = vmatprep.subr.bf16.mxu0 %v1140
    %3957 = vmatpush1.bf16.msra.mxu0 %v1139
    %3958 = vmatprep.subr.bf16.mxu0 %v1136
    %3959 = vmatpush1.bf16.msra.mxu0 %v1135
    %3960 = vmatprep.subr.bf16.mxu0 %v1132
    %3961 = vmatpush1.bf16.msra.mxu0 %v1131
    %3962 = vmatprep.subr.bf16.mxu0 %v1128
    %3963 = vmatpush1.bf16.msra.mxu0 %v1127
    %3964 = vmatprep.subr.bf16.mxu0 %v1124
    %3965 = vmatpush1.bf16.msra.mxu0 %v1123
    %3966 = vmatprep.subr.bf16.mxu0 %v1120
    %3967 = vmatpush1.bf16.msra.mxu0 %v1119
    %3968 = vmatprep.subr.bf16.mxu0 0
    %3969 = vmatpush2.bf16.msra.mxu0 0
    %3970 = vmatprep.subr.bf16.mxu0 0
    %3971 = vmatpush2.bf16.msra.mxu0 0
    %3972 = vmatprep.subr.bf16.mxu0 0
    %3973 = vmatpush2.bf16.msra.mxu0 0
    %3974 = vmatprep.subr.bf16.mxu0 0
    %3975 = vmatpush2.bf16.msra.mxu0 0
    %3976 = vmatprep.subr.bf16.mxu0 0
    %3977 = vmatpush2.bf16.msra.mxu0 0
    %3978 = vmatprep.subr.bf16.mxu0 0
    %3979 = vmatpush2.bf16.msra.mxu0 0
    %3980 = vmatprep.subr.bf16.mxu0 0
    %3981 = vmatpush2.bf16.msra.mxu0 0
    %3982 = vmatprep.subr.bf16.mxu0 0
    %3983 = vmatpush2.bf16.msra.mxu0 0
    %3984 = vmatprep.mubr.bf16.mxu0 0
    %3985 = vmatmul.mubr.bf16.gmra.mxu0 %v3909
    %v3986 = vpop.f32.mrf.mxu0
    %v3987 = vadd.f32 %v1003, %v3986
    %v3988 = vpop.f32.mrf.mxu0
    %v3989 = vadd.f32 %v1007, %v3988
    %v3990 = vpop.f32.mrf.mxu0
    %v3991 = vpop.f32.mrf.mxu0
    %3992 = vdwg.mxu0
    %v3993 = vpack.c.bf16 %v3735, %v3735
    %3994 = vmatprep.subr.bf16.mxu0 %v1388
    %3995 = vmatpush1.bf16.msra.mxu0 %v1387
    %3996 = vmatprep.subr.bf16.mxu0 %v1384
    %3997 = vmatpush1.bf16.msra.mxu0 %v1383
    %3998 = vmatprep.subr.bf16.mxu0 %v1380
    %3999 = vmatpush1.bf16.msra.mxu0 %v1379
    %4000 = vmatprep.subr.bf16.mxu0 %v1376
    %4001 = vmatpush1.bf16.msra.mxu0 %v1375
    %4002 = vmatprep.subr.bf16.mxu0 %v1372
    %4003 = vmatpush1.bf16.msra.mxu0 %v1371
    %4004 = vmatprep.subr.bf16.mxu0 %v1368
    %4005 = vmatpush1.bf16.msra.mxu0 %v1367
    %4006 = vmatprep.subr.bf16.mxu0 %v1364
    %4007 = vmatpush1.bf16.msra.mxu0 %v1363
    %4008 = vmatprep.subr.bf16.mxu0 %v1360
    %4009 = vmatpush1.bf16.msra.mxu0 %v1359
    %4010 = vmatprep.subr.bf16.mxu0 0
    %4011 = vmatpush2.bf16.msra.mxu0 0
    %4012 = vmatprep.subr.bf16.mxu0 0
    %4013 = vmatpush2.bf16.msra.mxu0 0
    %4014 = vmatprep.subr.bf16.mxu0 0
    %4015 = vmatpush2.bf16.msra.mxu0 0
    %4016 = vmatprep.subr.bf16.mxu0 0
    %4017 = vmatpush2.bf16.msra.mxu0 0
    %4018 = vmatprep.subr.bf16.mxu0 0
    %4019 = vmatpush2.bf16.msra.mxu0 0
    %4020 = vmatprep.subr.bf16.mxu0 0
    %4021 = vmatpush2.bf16.msra.mxu0 0
    %4022 = vmatprep.subr.bf16.mxu0 0
    %4023 = vmatpush2.bf16.msra.mxu0 0
    %4024 = vmatprep.subr.bf16.mxu0 0
    %4025 = vmatpush2.bf16.msra.mxu0 0
    %4026 = vmatprep.mubr.bf16.mxu0 0
    %4027 = vmatmul.mubr.bf16.gmra.mxu0 %v3993
    %v4028 = vpop.f32.mrf.mxu0
    %v4029 = vadd.f32 0.0, %v4028
    %v4030 = vpop.f32.mrf.mxu0
    %v4031 = vadd.f32 0.0, %v4030
    %v4032 = vpop.f32.mrf.mxu0
    %v4033 = vpop.f32.mrf.mxu0
    %4034 = vdwg.mxu0
    %4035 = vmatprep.subr.bf16.mxu0 %v1390
    %4036 = vmatpush1.bf16.msra.mxu0 %v1389
    %4037 = vmatprep.subr.bf16.mxu0 %v1386
    %4038 = vmatpush1.bf16.msra.mxu0 %v1385
    %4039 = vmatprep.subr.bf16.mxu0 %v1382
    %4040 = vmatpush1.bf16.msra.mxu0 %v1381
    %4041 = vmatprep.subr.bf16.mxu0 %v1378
    %4042 = vmatpush1.bf16.msra.mxu0 %v1377
    %4043 = vmatprep.subr.bf16.mxu0 %v1374
    %4044 = vmatpush1.bf16.msra.mxu0 %v1373
    %4045 = vmatprep.subr.bf16.mxu0 %v1370
    %4046 = vmatpush1.bf16.msra.mxu0 %v1369
    %4047 = vmatprep.subr.bf16.mxu0 %v1366
    %4048 = vmatpush1.bf16.msra.mxu0 %v1365
    %4049 = vmatprep.subr.bf16.mxu0 %v1362
    %4050 = vmatpush1.bf16.msra.mxu0 %v1361
    %4051 = vmatprep.subr.bf16.mxu0 0
    %4052 = vmatpush2.bf16.msra.mxu0 0
    %4053 = vmatprep.subr.bf16.mxu0 0
    %4054 = vmatpush2.bf16.msra.mxu0 0
    %4055 = vmatprep.subr.bf16.mxu0 0
    %4056 = vmatpush2.bf16.msra.mxu0 0
    %4057 = vmatprep.subr.bf16.mxu0 0
    %4058 = vmatpush2.bf16.msra.mxu0 0
    %4059 = vmatprep.subr.bf16.mxu0 0
    %4060 = vmatpush2.bf16.msra.mxu0 0
    %4061 = vmatprep.subr.bf16.mxu0 0
    %4062 = vmatpush2.bf16.msra.mxu0 0
    %4063 = vmatprep.subr.bf16.mxu0 0
    %4064 = vmatpush2.bf16.msra.mxu0 0
    %4065 = vmatprep.subr.bf16.mxu0 0
    %4066 = vmatpush2.bf16.msra.mxu0 0
    %4067 = vmatprep.mubr.bf16.mxu0 0
    %4068 = vmatmul.mubr.bf16.gmra.mxu0 %v3993
    %v4069 = vpop.f32.mrf.mxu0
    %v4070 = vadd.f32 0.0, %v4069
    %v4071 = vpop.f32.mrf.mxu0
    %v4072 = vadd.f32 0.0, %v4071
    %v4073 = vpop.f32.mrf.mxu0
    %v4074 = vpop.f32.mrf.mxu0
    %4075 = vdwg.mxu0
    %v4076 = vadd.f32 %v3946, %v4029
    %v4077 = vadd.f32 %v3948, %v4031
    %v4078 = vadd.f32 %v3987, %v4070
    %v4079 = vadd.f32 %v3989, %v4072
    %v4080 = vxor.u32 %v4076, 2147483648
    %v4081 = vmul.f32 %v4080, 1.442695
    %v4082 = vpow.pop %v4081
    %v4083 = vadd.f32 %v4082, 1.0
    %v4084 = vrcp.pop %v4083
    %v4085 = vmul.f32 1.0, %v4084
    %v4086 = vxor.u32 %v4077, 2147483648
    %v4087 = vmul.f32 %v4086, 1.442695
    %v4088 = vpow.pop %v4087
    %v4089 = vadd.f32 %v4088, 1.0
    %v4090 = vrcp.pop %v4089
    %v4091 = vmul.f32 1.0, %v4090
    %v4092 = vtanh.pop %v4078
    %v4093 = vxor.u32 %v4079, 2147483648
    %v4094 = vmul.f32 %v4093, 1.442695
    %v4095 = vpow.pop %v4094
    %v4096 = vadd.f32 %v4095, 1.0
    %v4097 = vrcp.pop %v4096
    %v4098 = vmul.f32 1.0, %v4097
    %v4099 = vmul.f32 %v4091, %v3733
    %v4100 = vmul.f32 %v4085, %v4092
    %v4101 = vadd.f32 %v4099, %v4100
    %v4102 = vtanh.pop %v4101
    %v4103 = vmul.f32 %v4098, %v4102
    %4104 = vmatprep.subr.bf16.mxu0 %v800
    %4105 = vmatpush1.bf16.msra.mxu0 %v799
    %4106 = vmatprep.subr.bf16.mxu0 %v796
    %4107 = vmatpush1.bf16.msra.mxu0 %v795
    %4108 = vmatprep.subr.bf16.mxu0 %v792
    %4109 = vmatpush1.bf16.msra.mxu0 %v791
    %4110 = vmatprep.subr.bf16.mxu0 %v788
    %4111 = vmatpush1.bf16.msra.mxu0 %v787
    %4112 = vmatprep.subr.bf16.mxu0 %v784
    %4113 = vmatpush1.bf16.msra.mxu0 %v783
    %4114 = vmatprep.subr.bf16.mxu0 %v780
    %4115 = vmatpush1.bf16.msra.mxu0 %v779
    %4116 = vmatprep.subr.bf16.mxu0 %v776
    %4117 = vmatpush1.bf16.msra.mxu0 %v775
    %4118 = vmatprep.subr.bf16.mxu0 %v772
    %4119 = vmatpush1.bf16.msra.mxu0 %v771
    %4120 = vmatprep.subr.bf16.mxu0 0
    %4121 = vmatpush2.bf16.msra.mxu0 0
    %4122 = vmatprep.subr.bf16.mxu0 0
    %4123 = vmatpush2.bf16.msra.mxu0 0
    %4124 = vmatprep.subr.bf16.mxu0 0
    %4125 = vmatpush2.bf16.msra.mxu0 0
    %4126 = vmatprep.subr.bf16.mxu0 0
    %4127 = vmatpush2.bf16.msra.mxu0 0
    %4128 = vmatprep.subr.bf16.mxu0 0
    %4129 = vmatpush2.bf16.msra.mxu0 0
    %4130 = vmatprep.subr.bf16.mxu0 0
    %4131 = vmatpush2.bf16.msra.mxu0 0
    %4132 = vmatprep.subr.bf16.mxu0 0
    %4133 = vmatpush2.bf16.msra.mxu0 0
    %4134 = vmatprep.subr.bf16.mxu0 0
    %4135 = vmatpush2.bf16.msra.mxu0 0
    %4136 = vmatprep.mubr.bf16.mxu0 0
    %4137 = vmatmul.mubr.bf16.gmra.mxu0 %v3909
    %v4138 = vpop.f32.mrf.mxu0
    %v4139 = vadd.f32 0.0, %v4138
    %v4140 = vpop.f32.mrf.mxu0
    %v4141 = vadd.f32 0.0, %v4140
    %v4142 = vpop.f32.mrf.mxu0
    %v4143 = vpop.f32.mrf.mxu0
    %4144 = vdwg.mxu0
    %4145 = vmatprep.subr.bf16.mxu0 %v802
    %4146 = vmatpush1.bf16.msra.mxu0 %v801
    %4147 = vmatprep.subr.bf16.mxu0 %v798
    %4148 = vmatpush1.bf16.msra.mxu0 %v797
    %4149 = vmatprep.subr.bf16.mxu0 %v794
    %4150 = vmatpush1.bf16.msra.mxu0 %v793
    %4151 = vmatprep.subr.bf16.mxu0 %v790
    %4152 = vmatpush1.bf16.msra.mxu0 %v789
    %4153 = vmatprep.subr.bf16.mxu0 %v786
    %4154 = vmatpush1.bf16.msra.mxu0 %v785
    %4155 = vmatprep.subr.bf16.mxu0 %v782
    %4156 = vmatpush1.bf16.msra.mxu0 %v781
    %4157 = vmatprep.subr.bf16.mxu0 %v778
    %4158 = vmatpush1.bf16.msra.mxu0 %v777
    %4159 = vmatprep.subr.bf16.mxu0 %v774
    %4160 = vmatpush1.bf16.msra.mxu0 %v773
    %4161 = vmatprep.subr.bf16.mxu0 0
    %4162 = vmatpush2.bf16.msra.mxu0 0
    %4163 = vmatprep.subr.bf16.mxu0 0
    %4164 = vmatpush2.bf16.msra.mxu0 0
    %4165 = vmatprep.subr.bf16.mxu0 0
    %4166 = vmatpush2.bf16.msra.mxu0 0
    %4167 = vmatprep.subr.bf16.mxu0 0
    %4168 = vmatpush2.bf16.msra.mxu0 0
    %4169 = vmatprep.subr.bf16.mxu0 0
    %4170 = vmatpush2.bf16.msra.mxu0 0
    %4171 = vmatprep.subr.bf16.mxu0 0
    %4172 = vmatpush2.bf16.msra.mxu0 0
    %4173 = vmatprep.subr.bf16.mxu0 0
    %4174 = vmatpush2.bf16.msra.mxu0 0
    %4175 = vmatprep.subr.bf16.mxu0 0
    %4176 = vmatpush2.bf16.msra.mxu0 0
    %4177 = vmatprep.mubr.bf16.mxu0 0
    %4178 = vmatmul.mubr.bf16.gmra.mxu0 %v3909
    %v4179 = vpop.f32.mrf.mxu0
    %v4180 = vadd.f32 0.0, %v4179
    %v4181 = vpop.f32.mrf.mxu0
    %v4182 = vadd.f32 0.0, %v4181
    %v4183 = vpop.f32.mrf.mxu0
    %v4184 = vpop.f32.mrf.mxu0
    %4185 = vdwg.mxu0
    %v4190 = vrot.slane %v4139, 1
    %v4191 = vrot.slane %v4141, 1
    %v4192 = vrot.slane %v4180, 1
    %v4193 = vrot.slane %v4182, 1
    %v4202 = vadd.f32 %v663, %v4139
    %v4203 = vadd.f32 %v664, %v4141
    %v4204 = vadd.f32 %v665, %v4180
    %v4205 = vadd.f32 %v666, %v4182
    %v4206 = vadd.f32 %v671, %v4190
    %v4207 = vadd.f32 %v672, %v4191
    %v4208 = vadd.f32 %v673, %v4192
    %v4209 = vadd.f32 %v674, %v4193
    %v4210 = vxor.u32 %v4202, 2147483648
    %v4211 = vxor.u32 %v4206, 2147483648
    %v4212 = vmul.f32 %v4210, 1.442695
    %v4213 = vpow.pop %v4212
    %v4214 = vmul.f32 %v4211, 1.442695
    %v4215 = vpow.pop %v4214
    %v4216 = vadd.f32 %v4213, 1.0
    %v4217 = vadd.f32 %v4215, 1.0
    %v4218 = vrcp.pop %v4216
    %v4219 = vmul.f32 1.0, %v4218
    %v4220 = vrcp.pop %v4217
    %v4221 = vmul.f32 1.0, %v4220
    %v4222 = vxor.u32 %v4203, 2147483648
    %v4223 = vxor.u32 %v4207, 2147483648
    %v4224 = vmul.f32 %v4222, 1.442695
    %v4225 = vpow.pop %v4224
    %v4226 = vmul.f32 %v4223, 1.442695
    %v4227 = vpow.pop %v4226
    %v4228 = vadd.f32 %v4225, 1.0
    %v4229 = vadd.f32 %v4227, 1.0
    %v4230 = vrcp.pop %v4228
    %v4231 = vmul.f32 1.0, %v4230
    %v4232 = vrcp.pop %v4229
    %v4233 = vmul.f32 1.0, %v4232
    %v4234 = vtanh.pop %v4204
    %v4235 = vtanh.pop %v4208
    %v4236 = vxor.u32 %v4205, 2147483648
    %v4237 = vxor.u32 %v4209, 2147483648
    %v4238 = vmul.f32 %v4236, 1.442695
    %v4239 = vpow.pop %v4238
    %v4240 = vmul.f32 %v4237, 1.442695
    %v4241 = vpow.pop %v4240
    %v4242 = vadd.f32 %v4239, 1.0
    %v4243 = vadd.f32 %v4241, 1.0
    %v4244 = vrcp.pop %v4242
    %v4245 = vmul.f32 1.0, %v4244
    %v4246 = vrcp.pop %v4243
    %v4247 = vmul.f32 1.0, %v4246
    %v4250 = vrot.slane %v3894, 7
    %v4251 = vrot.slane %v3895, 7
    %v4254 = vmul.f32 %v4231, %v4250
    %v4255 = vmul.f32 %v4233, %v4251
    %v4256 = vmul.f32 %v4219, %v4234
    %v4257 = vmul.f32 %v4221, %v4235
    %v4258 = vadd.f32 %v4254, %v4256
    %v4259 = vadd.f32 %v4255, %v4257
    %v4260 = vtanh.pop %v4258
    %v4261 = vtanh.pop %v4259
    %v4262 = vmul.f32 %v4245, %v4260
    %v4263 = vmul.f32 %v4247, %v4261
    %v4264 = vpack.c.bf16 %v4262, %v4262
    %v4265 = vpack.c.bf16 %v4263, %v4263
    %v4268 = vunpack.c.l.b16 %v4264
    %v4269 = vunpack.c.l.b16 %v4265
    %v4270 = vrot.slane %v4269, 7
    %v4271 = vsel %vm1017, %v4270, %v4268
    %v4272 = vpack.c.b16 %v4271, %v4271
    %4274 = vmatprep.subr.bf16.mxu0 %v1146
    %4275 = vmatpush1.bf16.msra.mxu0 %v1145
    %4276 = vmatprep.subr.bf16.mxu0 %v1142
    %4277 = vmatpush1.bf16.msra.mxu0 %v1141
    %4278 = vmatprep.subr.bf16.mxu0 %v1138
    %4279 = vmatpush1.bf16.msra.mxu0 %v1137
    %4280 = vmatprep.subr.bf16.mxu0 %v1134
    %4281 = vmatpush1.bf16.msra.mxu0 %v1133
    %4282 = vmatprep.subr.bf16.mxu0 %v1130
    %4283 = vmatpush1.bf16.msra.mxu0 %v1129
    %4284 = vmatprep.subr.bf16.mxu0 %v1126
    %4285 = vmatpush1.bf16.msra.mxu0 %v1125
    %4286 = vmatprep.subr.bf16.mxu0 %v1122
    %4287 = vmatpush1.bf16.msra.mxu0 %v1121
    %4288 = vmatprep.subr.bf16.mxu0 %v1118
    %4289 = vmatpush1.bf16.msra.mxu0 %v1117
    %4290 = vmatprep.subr.bf16.mxu0 0
    %4291 = vmatpush2.bf16.msra.mxu0 0
    %4292 = vmatprep.subr.bf16.mxu0 0
    %4293 = vmatpush2.bf16.msra.mxu0 0
    %4294 = vmatprep.subr.bf16.mxu0 0
    %4295 = vmatpush2.bf16.msra.mxu0 0
    %4296 = vmatprep.subr.bf16.mxu0 0
    %4297 = vmatpush2.bf16.msra.mxu0 0
    %4298 = vmatprep.subr.bf16.mxu0 0
    %4299 = vmatpush2.bf16.msra.mxu0 0
    %4300 = vmatprep.subr.bf16.mxu0 0
    %4301 = vmatpush2.bf16.msra.mxu0 0
    %4302 = vmatprep.subr.bf16.mxu0 0
    %4303 = vmatpush2.bf16.msra.mxu0 0
    %4304 = vmatprep.subr.bf16.mxu0 0
    %4305 = vmatpush2.bf16.msra.mxu0 0
    %4306 = vmatprep.mubr.bf16.mxu0 0
    %4307 = vmatmul.mubr.bf16.gmra.mxu0 %v4272
    %v4308 = vpop.f32.mrf.mxu0
    %v4309 = vadd.f32 %v995, %v4308
    %v4310 = vpop.f32.mrf.mxu0
    %v4311 = vadd.f32 %v999, %v4310
    %v4312 = vpop.f32.mrf.mxu0
    %v4313 = vpop.f32.mrf.mxu0
    %4314 = vdwg.mxu0
    %4315 = vmatprep.subr.bf16.mxu0 %v1148
    %4316 = vmatpush1.bf16.msra.mxu0 %v1147
    %4317 = vmatprep.subr.bf16.mxu0 %v1144
    %4318 = vmatpush1.bf16.msra.mxu0 %v1143
    %4319 = vmatprep.subr.bf16.mxu0 %v1140
    %4320 = vmatpush1.bf16.msra.mxu0 %v1139
    %4321 = vmatprep.subr.bf16.mxu0 %v1136
    %4322 = vmatpush1.bf16.msra.mxu0 %v1135
    %4323 = vmatprep.subr.bf16.mxu0 %v1132
    %4324 = vmatpush1.bf16.msra.mxu0 %v1131
    %4325 = vmatprep.subr.bf16.mxu0 %v1128
    %4326 = vmatpush1.bf16.msra.mxu0 %v1127
    %4327 = vmatprep.subr.bf16.mxu0 %v1124
    %4328 = vmatpush1.bf16.msra.mxu0 %v1123
    %4329 = vmatprep.subr.bf16.mxu0 %v1120
    %4330 = vmatpush1.bf16.msra.mxu0 %v1119
    %4331 = vmatprep.subr.bf16.mxu0 0
    %4332 = vmatpush2.bf16.msra.mxu0 0
    %4333 = vmatprep.subr.bf16.mxu0 0
    %4334 = vmatpush2.bf16.msra.mxu0 0
    %4335 = vmatprep.subr.bf16.mxu0 0
    %4336 = vmatpush2.bf16.msra.mxu0 0
    %4337 = vmatprep.subr.bf16.mxu0 0
    %4338 = vmatpush2.bf16.msra.mxu0 0
    %4339 = vmatprep.subr.bf16.mxu0 0
    %4340 = vmatpush2.bf16.msra.mxu0 0
    %4341 = vmatprep.subr.bf16.mxu0 0
    %4342 = vmatpush2.bf16.msra.mxu0 0
    %4343 = vmatprep.subr.bf16.mxu0 0
    %4344 = vmatpush2.bf16.msra.mxu0 0
    %4345 = vmatprep.subr.bf16.mxu0 0
    %4346 = vmatpush2.bf16.msra.mxu0 0
    %4347 = vmatprep.mubr.bf16.mxu0 0
    %4348 = vmatmul.mubr.bf16.gmra.mxu0 %v4272
    %v4349 = vpop.f32.mrf.mxu0
    %v4350 = vadd.f32 %v1003, %v4349
    %v4351 = vpop.f32.mrf.mxu0
    %v4352 = vadd.f32 %v1007, %v4351
    %v4353 = vpop.f32.mrf.mxu0
    %v4354 = vpop.f32.mrf.mxu0
    %4355 = vdwg.mxu0
    %v4356 = vpack.c.bf16 %v4103, %v4103
    %4357 = vmatprep.subr.bf16.mxu0 %v1388
    %4358 = vmatpush1.bf16.msra.mxu0 %v1387
    %4359 = vmatprep.subr.bf16.mxu0 %v1384
    %4360 = vmatpush1.bf16.msra.mxu0 %v1383
    %4361 = vmatprep.subr.bf16.mxu0 %v1380
    %4362 = vmatpush1.bf16.msra.mxu0 %v1379
    %4363 = vmatprep.subr.bf16.mxu0 %v1376
    %4364 = vmatpush1.bf16.msra.mxu0 %v1375
    %4365 = vmatprep.subr.bf16.mxu0 %v1372
    %4366 = vmatpush1.bf16.msra.mxu0 %v1371
    %4367 = vmatprep.subr.bf16.mxu0 %v1368
    %4368 = vmatpush1.bf16.msra.mxu0 %v1367
    %4369 = vmatprep.subr.bf16.mxu0 %v1364
    %4370 = vmatpush1.bf16.msra.mxu0 %v1363
    %4371 = vmatprep.subr.bf16.mxu0 %v1360
    %4372 = vmatpush1.bf16.msra.mxu0 %v1359
    %4373 = vmatprep.subr.bf16.mxu0 0
    %4374 = vmatpush2.bf16.msra.mxu0 0
    %4375 = vmatprep.subr.bf16.mxu0 0
    %4376 = vmatpush2.bf16.msra.mxu0 0
    %4377 = vmatprep.subr.bf16.mxu0 0
    %4378 = vmatpush2.bf16.msra.mxu0 0
    %4379 = vmatprep.subr.bf16.mxu0 0
    %4380 = vmatpush2.bf16.msra.mxu0 0
    %4381 = vmatprep.subr.bf16.mxu0 0
    %4382 = vmatpush2.bf16.msra.mxu0 0
    %4383 = vmatprep.subr.bf16.mxu0 0
    %4384 = vmatpush2.bf16.msra.mxu0 0
    %4385 = vmatprep.subr.bf16.mxu0 0
    %4386 = vmatpush2.bf16.msra.mxu0 0
    %4387 = vmatprep.subr.bf16.mxu0 0
    %4388 = vmatpush2.bf16.msra.mxu0 0
    %4389 = vmatprep.mubr.bf16.mxu0 0
    %4390 = vmatmul.mubr.bf16.gmra.mxu0 %v4356
    %v4391 = vpop.f32.mrf.mxu0
    %v4392 = vadd.f32 0.0, %v4391
    %v4393 = vpop.f32.mrf.mxu0
    %v4394 = vadd.f32 0.0, %v4393
    %v4395 = vpop.f32.mrf.mxu0
    %v4396 = vpop.f32.mrf.mxu0
    %4397 = vdwg.mxu0
    %4398 = vmatprep.subr.bf16.mxu0 %v1390
    %4399 = vmatpush1.bf16.msra.mxu0 %v1389
    %4400 = vmatprep.subr.bf16.mxu0 %v1386
    %4401 = vmatpush1.bf16.msra.mxu0 %v1385
    %4402 = vmatprep.subr.bf16.mxu0 %v1382
    %4403 = vmatpush1.bf16.msra.mxu0 %v1381
    %4404 = vmatprep.subr.bf16.mxu0 %v1378
    %4405 = vmatpush1.bf16.msra.mxu0 %v1377
    %4406 = vmatprep.subr.bf16.mxu0 %v1374
    %4407 = vmatpush1.bf16.msra.mxu0 %v1373
    %4408 = vmatprep.subr.bf16.mxu0 %v1370
    %4409 = vmatpush1.bf16.msra.mxu0 %v1369
    %4410 = vmatprep.subr.bf16.mxu0 %v1366
    %4411 = vmatpush1.bf16.msra.mxu0 %v1365
    %4412 = vmatprep.subr.bf16.mxu0 %v1362
    %4413 = vmatpush1.bf16.msra.mxu0 %v1361
    %4414 = vmatprep.subr.bf16.mxu0 0
    %4415 = vmatpush2.bf16.msra.mxu0 0
    %4416 = vmatprep.subr.bf16.mxu0 0
    %4417 = vmatpush2.bf16.msra.mxu0 0
    %4418 = vmatprep.subr.bf16.mxu0 0
    %4419 = vmatpush2.bf16.msra.mxu0 0
    %4420 = vmatprep.subr.bf16.mxu0 0
    %4421 = vmatpush2.bf16.msra.mxu0 0
    %4422 = vmatprep.subr.bf16.mxu0 0
    %4423 = vmatpush2.bf16.msra.mxu0 0
    %4424 = vmatprep.subr.bf16.mxu0 0
    %4425 = vmatpush2.bf16.msra.mxu0 0
    %4426 = vmatprep.subr.bf16.mxu0 0
    %4427 = vmatpush2.bf16.msra.mxu0 0
    %4428 = vmatprep.subr.bf16.mxu0 0
    %4429 = vmatpush2.bf16.msra.mxu0 0
    %4430 = vmatprep.mubr.bf16.mxu0 0
    %4431 = vmatmul.mubr.bf16.gmra.mxu0 %v4356
    %v4432 = vpop.f32.mrf.mxu0
    %v4433 = vadd.f32 0.0, %v4432
    %v4434 = vpop.f32.mrf.mxu0
    %v4435 = vadd.f32 0.0, %v4434
    %v4436 = vpop.f32.mrf.mxu0
    %v4437 = vpop.f32.mrf.mxu0
    %4438 = vdwg.mxu0
    %v4439 = vadd.f32 %v4309, %v4392
    %v4440 = vadd.f32 %v4311, %v4394
    %v4441 = vadd.f32 %v4350, %v4433
    %v4442 = vadd.f32 %v4352, %v4435
    %v4443 = vxor.u32 %v4439, 2147483648
    %v4444 = vmul.f32 %v4443, 1.442695
    %v4445 = vpow.pop %v4444
    %v4446 = vadd.f32 %v4445, 1.0
    %v4447 = vrcp.pop %v4446
    %v4448 = vmul.f32 1.0, %v4447
    %v4449 = vxor.u32 %v4440, 2147483648
    %v4450 = vmul.f32 %v4449, 1.442695
    %v4451 = vpow.pop %v4450
    %v4452 = vadd.f32 %v4451, 1.0
    %v4453 = vrcp.pop %v4452
    %v4454 = vmul.f32 1.0, %v4453
    %v4455 = vtanh.pop %v4441
    %v4456 = vxor.u32 %v4442, 2147483648
    %v4457 = vmul.f32 %v4456, 1.442695
    %v4458 = vpow.pop %v4457
    %v4459 = vadd.f32 %v4458, 1.0
    %v4460 = vrcp.pop %v4459
    %v4461 = vmul.f32 1.0, %v4460
    %v4462 = vmul.f32 %v4454, %v4101
    %v4463 = vmul.f32 %v4448, %v4455
    %v4464 = vadd.f32 %v4462, %v4463
    %v4465 = vtanh.pop %v4464
    %v4466 = vmul.f32 %v4461, %v4465
    %4467 = vmatprep.subr.bf16.mxu0 %v800
    %4468 = vmatpush1.bf16.msra.mxu0 %v799
    %4469 = vmatprep.subr.bf16.mxu0 %v796
    %4470 = vmatpush1.bf16.msra.mxu0 %v795
    %4471 = vmatprep.subr.bf16.mxu0 %v792
    %4472 = vmatpush1.bf16.msra.mxu0 %v791
    %4473 = vmatprep.subr.bf16.mxu0 %v788
    %4474 = vmatpush1.bf16.msra.mxu0 %v787
    %4475 = vmatprep.subr.bf16.mxu0 %v784
    %4476 = vmatpush1.bf16.msra.mxu0 %v783
    %4477 = vmatprep.subr.bf16.mxu0 %v780
    %4478 = vmatpush1.bf16.msra.mxu0 %v779
    %4479 = vmatprep.subr.bf16.mxu0 %v776
    %4480 = vmatpush1.bf16.msra.mxu0 %v775
    %4481 = vmatprep.subr.bf16.mxu0 %v772
    %4482 = vmatpush1.bf16.msra.mxu0 %v771
    %4483 = vmatprep.subr.bf16.mxu0 0
    %4484 = vmatpush2.bf16.msra.mxu0 0
    %4485 = vmatprep.subr.bf16.mxu0 0
    %4486 = vmatpush2.bf16.msra.mxu0 0
    %4487 = vmatprep.subr.bf16.mxu0 0
    %4488 = vmatpush2.bf16.msra.mxu0 0
    %4489 = vmatprep.subr.bf16.mxu0 0
    %4490 = vmatpush2.bf16.msra.mxu0 0
    %4491 = vmatprep.subr.bf16.mxu0 0
    %4492 = vmatpush2.bf16.msra.mxu0 0
    %4493 = vmatprep.subr.bf16.mxu0 0
    %4494 = vmatpush2.bf16.msra.mxu0 0
    %4495 = vmatprep.subr.bf16.mxu0 0
    %4496 = vmatpush2.bf16.msra.mxu0 0
    %4497 = vmatprep.subr.bf16.mxu0 0
    %4498 = vmatpush2.bf16.msra.mxu0 0
    %4499 = vmatprep.mubr.bf16.mxu0 0
    %4500 = vmatmul.mubr.bf16.gmra.mxu0 %v4272
    %v4501 = vpop.f32.mrf.mxu0
    %v4502 = vadd.f32 0.0, %v4501
    %v4503 = vpop.f32.mrf.mxu0
    %v4504 = vadd.f32 0.0, %v4503
    %v4505 = vpop.f32.mrf.mxu0
    %v4506 = vpop.f32.mrf.mxu0
    %4507 = vdwg.mxu0
    %4508 = vmatprep.subr.bf16.mxu0 %v802
    %4509 = vmatpush1.bf16.msra.mxu0 %v801
    %4510 = vmatprep.subr.bf16.mxu0 %v798
    %4511 = vmatpush1.bf16.msra.mxu0 %v797
    %4512 = vmatprep.subr.bf16.mxu0 %v794
    %4513 = vmatpush1.bf16.msra.mxu0 %v793
    %4514 = vmatprep.subr.bf16.mxu0 %v790
    %4515 = vmatpush1.bf16.msra.mxu0 %v789
    %4516 = vmatprep.subr.bf16.mxu0 %v786
    %4517 = vmatpush1.bf16.msra.mxu0 %v785
    %4518 = vmatprep.subr.bf16.mxu0 %v782
    %4519 = vmatpush1.bf16.msra.mxu0 %v781
    %4520 = vmatprep.subr.bf16.mxu0 %v778
    %4521 = vmatpush1.bf16.msra.mxu0 %v777
    %4522 = vmatprep.subr.bf16.mxu0 %v774
    %4523 = vmatpush1.bf16.msra.mxu0 %v773
    %4524 = vmatprep.subr.bf16.mxu0 0
    %4525 = vmatpush2.bf16.msra.mxu0 0
    %4526 = vmatprep.subr.bf16.mxu0 0
    %4527 = vmatpush2.bf16.msra.mxu0 0
    %4528 = vmatprep.subr.bf16.mxu0 0
    %4529 = vmatpush2.bf16.msra.mxu0 0
    %4530 = vmatprep.subr.bf16.mxu0 0
    %4531 = vmatpush2.bf16.msra.mxu0 0
    %4532 = vmatprep.subr.bf16.mxu0 0
    %4533 = vmatpush2.bf16.msra.mxu0 0
    %4534 = vmatprep.subr.bf16.mxu0 0
    %4535 = vmatpush2.bf16.msra.mxu0 0
    %4536 = vmatprep.subr.bf16.mxu0 0
    %4537 = vmatpush2.bf16.msra.mxu0 0
    %4538 = vmatprep.subr.bf16.mxu0 0
    %4539 = vmatpush2.bf16.msra.mxu0 0
    %4540 = vmatprep.mubr.bf16.mxu0 0
    %4541 = vmatmul.mubr.bf16.gmra.mxu0 %v4272
    %v4542 = vpop.f32.mrf.mxu0
    %v4543 = vadd.f32 0.0, %v4542
    %v4544 = vpop.f32.mrf.mxu0
    %v4545 = vadd.f32 0.0, %v4544
    %v4546 = vpop.f32.mrf.mxu0
    %v4547 = vpop.f32.mrf.mxu0
    %4548 = vdwg.mxu0
    %v4553 = vrot.slane %v4502, 7
    %v4554 = vrot.slane %v4504, 7
    %v4555 = vrot.slane %v4543, 7
    %v4556 = vrot.slane %v4545, 7
    %v4565 = vadd.f32 %v663, %v4553
    %v4566 = vadd.f32 %v664, %v4554
    %v4567 = vadd.f32 %v665, %v4555
    %v4568 = vadd.f32 %v666, %v4556
    %v4569 = vadd.f32 %v671, %v4502
    %v4570 = vadd.f32 %v672, %v4504
    %v4571 = vadd.f32 %v673, %v4543
    %v4572 = vadd.f32 %v674, %v4545
    %v4573 = vxor.u32 %v4565, 2147483648
    %v4574 = vxor.u32 %v4569, 2147483648
    %v4575 = vmul.f32 %v4573, 1.442695
    %v4576 = vpow.pop %v4575
    %v4577 = vmul.f32 %v4574, 1.442695
    %v4578 = vpow.pop %v4577
    %v4579 = vadd.f32 %v4576, 1.0
    %v4580 = vadd.f32 %v4578, 1.0
    %v4581 = vrcp.pop %v4579
    %v4582 = vmul.f32 1.0, %v4581
    %v4583 = vrcp.pop %v4580
    %v4584 = vmul.f32 1.0, %v4583
    %v4585 = vxor.u32 %v4566, 2147483648
    %v4586 = vxor.u32 %v4570, 2147483648
    %v4587 = vmul.f32 %v4585, 1.442695
    %v4588 = vpow.pop %v4587
    %v4589 = vmul.f32 %v4586, 1.442695
    %v4590 = vpow.pop %v4589
    %v4591 = vadd.f32 %v4588, 1.0
    %v4592 = vadd.f32 %v4590, 1.0
    %v4593 = vrcp.pop %v4591
    %v4594 = vmul.f32 1.0, %v4593
    %v4595 = vrcp.pop %v4592
    %v4596 = vmul.f32 1.0, %v4595
    %v4597 = vtanh.pop %v4567
    %v4598 = vtanh.pop %v4571
    %v4599 = vxor.u32 %v4568, 2147483648
    %v4600 = vxor.u32 %v4572, 2147483648
    %v4601 = vmul.f32 %v4599, 1.442695
    %v4602 = vpow.pop %v4601
    %v4603 = vmul.f32 %v4600, 1.442695
    %v4604 = vpow.pop %v4603
    %v4605 = vadd.f32 %v4602, 1.0
    %v4606 = vadd.f32 %v4604, 1.0
    %v4607 = vrcp.pop %v4605
    %v4608 = vmul.f32 1.0, %v4607
    %v4609 = vrcp.pop %v4606
    %v4610 = vmul.f32 1.0, %v4609
    %v4613 = vrot.slane %v4258, 7
    %v4614 = vrot.slane %v4259, 7
    %v4617 = vmul.f32 %v4594, %v4613
    %v4618 = vmul.f32 %v4596, %v4614
    %v4619 = vmul.f32 %v4582, %v4597
    %v4620 = vmul.f32 %v4584, %v4598
    %v4621 = vadd.f32 %v4617, %v4619
    %v4622 = vadd.f32 %v4618, %v4620
    %v4623 = vtanh.pop %v4621
    %v4624 = vtanh.pop %v4622
    %v4625 = vmul.f32 %v4608, %v4623
    %v4626 = vmul.f32 %v4610, %v4624
    %v4627 = vpack.c.bf16 %v4625, %v4625
    %v4628 = vpack.c.bf16 %v4626, %v4626
    %v4631 = vunpack.c.l.b16 %v4627
    %v4632 = vunpack.c.l.b16 %v4628
    %v4633 = vrot.slane %v4631, 1
    %v4634 = vsel %vm1017, %v4632, %v4633
    %v4635 = vpack.c.b16 %v4634, %v4634
    %4637 = vmatprep.subr.bf16.mxu0 %v1146
    %4638 = vmatpush1.bf16.msra.mxu0 %v1145
    %4639 = vmatprep.subr.bf16.mxu0 %v1142
    %4640 = vmatpush1.bf16.msra.mxu0 %v1141
    %4641 = vmatprep.subr.bf16.mxu0 %v1138
    %4642 = vmatpush1.bf16.msra.mxu0 %v1137
    %4643 = vmatprep.subr.bf16.mxu0 %v1134
    %4644 = vmatpush1.bf16.msra.mxu0 %v1133
    %4645 = vmatprep.subr.bf16.mxu0 %v1130
    %4646 = vmatpush1.bf16.msra.mxu0 %v1129
    %4647 = vmatprep.subr.bf16.mxu0 %v1126
    %4648 = vmatpush1.bf16.msra.mxu0 %v1125
    %4649 = vmatprep.subr.bf16.mxu0 %v1122
    %4650 = vmatpush1.bf16.msra.mxu0 %v1121
    %4651 = vmatprep.subr.bf16.mxu0 %v1118
    %4652 = vmatpush1.bf16.msra.mxu0 %v1117
    %4653 = vmatprep.subr.bf16.mxu0 0
    %4654 = vmatpush2.bf16.msra.mxu0 0
    %4655 = vmatprep.subr.bf16.mxu0 0
    %4656 = vmatpush2.bf16.msra.mxu0 0
    %4657 = vmatprep.subr.bf16.mxu0 0
    %4658 = vmatpush2.bf16.msra.mxu0 0
    %4659 = vmatprep.subr.bf16.mxu0 0
    %4660 = vmatpush2.bf16.msra.mxu0 0
    %4661 = vmatprep.subr.bf16.mxu0 0
    %4662 = vmatpush2.bf16.msra.mxu0 0
    %4663 = vmatprep.subr.bf16.mxu0 0
    %4664 = vmatpush2.bf16.msra.mxu0 0
    %4665 = vmatprep.subr.bf16.mxu0 0
    %4666 = vmatpush2.bf16.msra.mxu0 0
    %4667 = vmatprep.subr.bf16.mxu0 0
    %4668 = vmatpush2.bf16.msra.mxu0 0
    %4669 = vmatprep.mubr.bf16.mxu0 0
    %4670 = vmatmul.mubr.bf16.gmra.mxu0 %v4635
    %v4671 = vpop.f32.mrf.mxu0
    %v4672 = vadd.f32 %v995, %v4671
    %v4673 = vpop.f32.mrf.mxu0
    %v4674 = vadd.f32 %v999, %v4673
    %v4675 = vpop.f32.mrf.mxu0
    %v4676 = vpop.f32.mrf.mxu0
    %4677 = vdwg.mxu0
    %4678 = vmatprep.subr.bf16.mxu0 %v1148
    %4679 = vmatpush1.bf16.msra.mxu0 %v1147
    %4680 = vmatprep.subr.bf16.mxu0 %v1144
    %4681 = vmatpush1.bf16.msra.mxu0 %v1143
    %4682 = vmatprep.subr.bf16.mxu0 %v1140
    %4683 = vmatpush1.bf16.msra.mxu0 %v1139
    %4684 = vmatprep.subr.bf16.mxu0 %v1136
    %4685 = vmatpush1.bf16.msra.mxu0 %v1135
    %4686 = vmatprep.subr.bf16.mxu0 %v1132
    %4687 = vmatpush1.bf16.msra.mxu0 %v1131
    %4688 = vmatprep.subr.bf16.mxu0 %v1128
    %4689 = vmatpush1.bf16.msra.mxu0 %v1127
    %4690 = vmatprep.subr.bf16.mxu0 %v1124
    %4691 = vmatpush1.bf16.msra.mxu0 %v1123
    %4692 = vmatprep.subr.bf16.mxu0 %v1120
    %4693 = vmatpush1.bf16.msra.mxu0 %v1119
    %4694 = vmatprep.subr.bf16.mxu0 0
    %4695 = vmatpush2.bf16.msra.mxu0 0
    %4696 = vmatprep.subr.bf16.mxu0 0
    %4697 = vmatpush2.bf16.msra.mxu0 0
    %4698 = vmatprep.subr.bf16.mxu0 0
    %4699 = vmatpush2.bf16.msra.mxu0 0
    %4700 = vmatprep.subr.bf16.mxu0 0
    %4701 = vmatpush2.bf16.msra.mxu0 0
    %4702 = vmatprep.subr.bf16.mxu0 0
    %4703 = vmatpush2.bf16.msra.mxu0 0
    %4704 = vmatprep.subr.bf16.mxu0 0
    %4705 = vmatpush2.bf16.msra.mxu0 0
    %4706 = vmatprep.subr.bf16.mxu0 0
    %4707 = vmatpush2.bf16.msra.mxu0 0
    %4708 = vmatprep.subr.bf16.mxu0 0
    %4709 = vmatpush2.bf16.msra.mxu0 0
    %4710 = vmatprep.mubr.bf16.mxu0 0
    %4711 = vmatmul.mubr.bf16.gmra.mxu0 %v4635
    %v4712 = vpop.f32.mrf.mxu0
    %v4713 = vadd.f32 %v1003, %v4712
    %v4714 = vpop.f32.mrf.mxu0
    %v4715 = vadd.f32 %v1007, %v4714
    %v4716 = vpop.f32.mrf.mxu0
    %v4717 = vpop.f32.mrf.mxu0
    %4718 = vdwg.mxu0
    %v4719 = vpack.c.bf16 %v4466, %v4466
    %4720 = vmatprep.subr.bf16.mxu0 %v1388
    %4721 = vmatpush1.bf16.msra.mxu0 %v1387
    %4722 = vmatprep.subr.bf16.mxu0 %v1384
    %4723 = vmatpush1.bf16.msra.mxu0 %v1383
    %4724 = vmatprep.subr.bf16.mxu0 %v1380
    %4725 = vmatpush1.bf16.msra.mxu0 %v1379
    %4726 = vmatprep.subr.bf16.mxu0 %v1376
    %4727 = vmatpush1.bf16.msra.mxu0 %v1375
    %4728 = vmatprep.subr.bf16.mxu0 %v1372
    %4729 = vmatpush1.bf16.msra.mxu0 %v1371
    %4730 = vmatprep.subr.bf16.mxu0 %v1368
    %4731 = vmatpush1.bf16.msra.mxu0 %v1367
    %4732 = vmatprep.subr.bf16.mxu0 %v1364
    %4733 = vmatpush1.bf16.msra.mxu0 %v1363
    %4734 = vmatprep.subr.bf16.mxu0 %v1360
    %4735 = vmatpush1.bf16.msra.mxu0 %v1359
    %4736 = vmatprep.subr.bf16.mxu0 0
    %4737 = vmatpush2.bf16.msra.mxu0 0
    %4738 = vmatprep.subr.bf16.mxu0 0
    %4739 = vmatpush2.bf16.msra.mxu0 0
    %4740 = vmatprep.subr.bf16.mxu0 0
    %4741 = vmatpush2.bf16.msra.mxu0 0
    %4742 = vmatprep.subr.bf16.mxu0 0
    %4743 = vmatpush2.bf16.msra.mxu0 0
    %4744 = vmatprep.subr.bf16.mxu0 0
    %4745 = vmatpush2.bf16.msra.mxu0 0
    %4746 = vmatprep.subr.bf16.mxu0 0
    %4747 = vmatpush2.bf16.msra.mxu0 0
    %4748 = vmatprep.subr.bf16.mxu0 0
    %4749 = vmatpush2.bf16.msra.mxu0 0
    %4750 = vmatprep.subr.bf16.mxu0 0
    %4751 = vmatpush2.bf16.msra.mxu0 0
    %4752 = vmatprep.mubr.bf16.mxu0 0
    %4753 = vmatmul.mubr.bf16.gmra.mxu0 %v4719
    %v4754 = vpop.f32.mrf.mxu0
    %v4755 = vadd.f32 0.0, %v4754
    %v4756 = vpop.f32.mrf.mxu0
    %v4757 = vadd.f32 0.0, %v4756
    %v4758 = vpop.f32.mrf.mxu0
    %v4759 = vpop.f32.mrf.mxu0
    %4760 = vdwg.mxu0
    %4761 = vmatprep.subr.bf16.mxu0 %v1390
    %4762 = vmatpush1.bf16.msra.mxu0 %v1389
    %4763 = vmatprep.subr.bf16.mxu0 %v1386
    %4764 = vmatpush1.bf16.msra.mxu0 %v1385
    %4765 = vmatprep.subr.bf16.mxu0 %v1382
    %4766 = vmatpush1.bf16.msra.mxu0 %v1381
    %4767 = vmatprep.subr.bf16.mxu0 %v1378
    %4768 = vmatpush1.bf16.msra.mxu0 %v1377
    %4769 = vmatprep.subr.bf16.mxu0 %v1374
    %4770 = vmatpush1.bf16.msra.mxu0 %v1373
    %4771 = vmatprep.subr.bf16.mxu0 %v1370
    %4772 = vmatpush1.bf16.msra.mxu0 %v1369
    %4773 = vmatprep.subr.bf16.mxu0 %v1366
    %4774 = vmatpush1.bf16.msra.mxu0 %v1365
    %4775 = vmatprep.subr.bf16.mxu0 %v1362
    %4776 = vmatpush1.bf16.msra.mxu0 %v1361
    %4777 = vmatprep.subr.bf16.mxu0 0
    %4778 = vmatpush2.bf16.msra.mxu0 0
    %4779 = vmatprep.subr.bf16.mxu0 0
    %4780 = vmatpush2.bf16.msra.mxu0 0
    %4781 = vmatprep.subr.bf16.mxu0 0
    %4782 = vmatpush2.bf16.msra.mxu0 0
    %4783 = vmatprep.subr.bf16.mxu0 0
    %4784 = vmatpush2.bf16.msra.mxu0 0
    %4785 = vmatprep.subr.bf16.mxu0 0
    %4786 = vmatpush2.bf16.msra.mxu0 0
    %4787 = vmatprep.subr.bf16.mxu0 0
    %4788 = vmatpush2.bf16.msra.mxu0 0
    %4789 = vmatprep.subr.bf16.mxu0 0
    %4790 = vmatpush2.bf16.msra.mxu0 0
    %4791 = vmatprep.subr.bf16.mxu0 0
    %4792 = vmatpush2.bf16.msra.mxu0 0
    %4793 = vmatprep.mubr.bf16.mxu0 0
    %4794 = vmatmul.mubr.bf16.gmra.mxu0 %v4719
    %v4795 = vpop.f32.mrf.mxu0
    %v4796 = vadd.f32 0.0, %v4795
    %v4797 = vpop.f32.mrf.mxu0
    %v4798 = vadd.f32 0.0, %v4797
    %v4799 = vpop.f32.mrf.mxu0
    %v4800 = vpop.f32.mrf.mxu0
    %4801 = vdwg.mxu0
    %v4802 = vadd.f32 %v4672, %v4755
    %v4803 = vadd.f32 %v4674, %v4757
    %v4804 = vadd.f32 %v4713, %v4796
    %v4805 = vadd.f32 %v4715, %v4798
    %v4806 = vxor.u32 %v4802, 2147483648
    %v4807 = vmul.f32 %v4806, 1.442695
    %v4808 = vpow.pop %v4807
    %v4809 = vadd.f32 %v4808, 1.0
    %v4810 = vrcp.pop %v4809
    %v4811 = vmul.f32 1.0, %v4810
    %v4812 = vxor.u32 %v4803, 2147483648
    %v4813 = vmul.f32 %v4812, 1.442695
    %v4814 = vpow.pop %v4813
    %v4815 = vadd.f32 %v4814, 1.0
    %v4816 = vrcp.pop %v4815
    %v4817 = vmul.f32 1.0, %v4816
    %v4818 = vtanh.pop %v4804
    %v4819 = vxor.u32 %v4805, 2147483648
    %v4820 = vmul.f32 %v4819, 1.442695
    %v4821 = vpow.pop %v4820
    %v4822 = vadd.f32 %v4821, 1.0
    %v4823 = vrcp.pop %v4822
    %v4824 = vmul.f32 1.0, %v4823
    %v4825 = vmul.f32 %v4817, %v4464
    %v4826 = vmul.f32 %v4811, %v4818
    %v4827 = vadd.f32 %v4825, %v4826
    %v4828 = vtanh.pop %v4827
    %v4829 = vmul.f32 %v4824, %v4828
    %4830 = vmatprep.subr.bf16.mxu0 %v800
    %4831 = vmatpush1.bf16.msra.mxu0 %v799
    %4832 = vmatprep.subr.bf16.mxu0 %v796
    %4833 = vmatpush1.bf16.msra.mxu0 %v795
    %4834 = vmatprep.subr.bf16.mxu0 %v792
    %4835 = vmatpush1.bf16.msra.mxu0 %v791
    %4836 = vmatprep.subr.bf16.mxu0 %v788
    %4837 = vmatpush1.bf16.msra.mxu0 %v787
    %4838 = vmatprep.subr.bf16.mxu0 %v784
    %4839 = vmatpush1.bf16.msra.mxu0 %v783
    %4840 = vmatprep.subr.bf16.mxu0 %v780
    %4841 = vmatpush1.bf16.msra.mxu0 %v779
    %4842 = vmatprep.subr.bf16.mxu0 %v776
    %4843 = vmatpush1.bf16.msra.mxu0 %v775
    %4844 = vmatprep.subr.bf16.mxu0 %v772
    %4845 = vmatpush1.bf16.msra.mxu0 %v771
    %4846 = vmatprep.subr.bf16.mxu0 0
    %4847 = vmatpush2.bf16.msra.mxu0 0
    %4848 = vmatprep.subr.bf16.mxu0 0
    %4849 = vmatpush2.bf16.msra.mxu0 0
    %4850 = vmatprep.subr.bf16.mxu0 0
    %4851 = vmatpush2.bf16.msra.mxu0 0
    %4852 = vmatprep.subr.bf16.mxu0 0
    %4853 = vmatpush2.bf16.msra.mxu0 0
    %4854 = vmatprep.subr.bf16.mxu0 0
    %4855 = vmatpush2.bf16.msra.mxu0 0
    %4856 = vmatprep.subr.bf16.mxu0 0
    %4857 = vmatpush2.bf16.msra.mxu0 0
    %4858 = vmatprep.subr.bf16.mxu0 0
    %4859 = vmatpush2.bf16.msra.mxu0 0
    %4860 = vmatprep.subr.bf16.mxu0 0
    %4861 = vmatpush2.bf16.msra.mxu0 0
    %4862 = vmatprep.mubr.bf16.mxu0 0
    %4863 = vmatmul.mubr.bf16.gmra.mxu0 %v4635
    %v4864 = vpop.f32.mrf.mxu0
    %v4865 = vadd.f32 0.0, %v4864
    %v4866 = vpop.f32.mrf.mxu0
    %v4867 = vadd.f32 0.0, %v4866
    %v4868 = vpop.f32.mrf.mxu0
    %v4869 = vpop.f32.mrf.mxu0
    %4870 = vdwg.mxu0
    %4871 = vmatprep.subr.bf16.mxu0 %v802
    %4872 = vmatpush1.bf16.msra.mxu0 %v801
    %4873 = vmatprep.subr.bf16.mxu0 %v798
    %4874 = vmatpush1.bf16.msra.mxu0 %v797
    %4875 = vmatprep.subr.bf16.mxu0 %v794
    %4876 = vmatpush1.bf16.msra.mxu0 %v793
    %4877 = vmatprep.subr.bf16.mxu0 %v790
    %4878 = vmatpush1.bf16.msra.mxu0 %v789
    %4879 = vmatprep.subr.bf16.mxu0 %v786
    %4880 = vmatpush1.bf16.msra.mxu0 %v785
    %4881 = vmatprep.subr.bf16.mxu0 %v782
    %4882 = vmatpush1.bf16.msra.mxu0 %v781
    %4883 = vmatprep.subr.bf16.mxu0 %v778
    %4884 = vmatpush1.bf16.msra.mxu0 %v777
    %4885 = vmatprep.subr.bf16.mxu0 %v774
    %4886 = vmatpush1.bf16.msra.mxu0 %v773
    %4887 = vmatprep.subr.bf16.mxu0 0
    %4888 = vmatpush2.bf16.msra.mxu0 0
    %4889 = vmatprep.subr.bf16.mxu0 0
    %4890 = vmatpush2.bf16.msra.mxu0 0
    %4891 = vmatprep.subr.bf16.mxu0 0
    %4892 = vmatpush2.bf16.msra.mxu0 0
    %4893 = vmatprep.subr.bf16.mxu0 0
    %4894 = vmatpush2.bf16.msra.mxu0 0
    %4895 = vmatprep.subr.bf16.mxu0 0
    %4896 = vmatpush2.bf16.msra.mxu0 0
    %4897 = vmatprep.subr.bf16.mxu0 0
    %4898 = vmatpush2.bf16.msra.mxu0 0
    %4899 = vmatprep.subr.bf16.mxu0 0
    %4900 = vmatpush2.bf16.msra.mxu0 0
    %4901 = vmatprep.subr.bf16.mxu0 0
    %4902 = vmatpush2.bf16.msra.mxu0 0
    %4903 = vmatprep.mubr.bf16.mxu0 0
    %4904 = vmatmul.mubr.bf16.gmra.mxu0 %v4635
    %v4905 = vpop.f32.mrf.mxu0
    %v4906 = vadd.f32 0.0, %v4905
    %v4907 = vpop.f32.mrf.mxu0
    %v4908 = vadd.f32 0.0, %v4907
    %v4909 = vpop.f32.mrf.mxu0
    %v4910 = vpop.f32.mrf.mxu0
    %4911 = vdwg.mxu0
    %v4916 = vrot.slane %v4865, 6
    %v4917 = vrot.slane %v4867, 6
    %v4918 = vrot.slane %v4906, 6
    %v4919 = vrot.slane %v4908, 6
    %v4920 = vrot.slane %v4865, 7
    %v4921 = vrot.slane %v4867, 7
    %v4922 = vrot.slane %v4906, 7
    %v4923 = vrot.slane %v4908, 7
    %v4932 = vadd.f32 %v663, %v4916
    %v4933 = vadd.f32 %v664, %v4917
    %v4934 = vadd.f32 %v665, %v4918
    %v4935 = vadd.f32 %v666, %v4919
    %v4936 = vadd.f32 %v671, %v4920
    %v4937 = vadd.f32 %v672, %v4921
    %v4938 = vadd.f32 %v673, %v4922
    %v4939 = vadd.f32 %v674, %v4923
    %v4940 = vxor.u32 %v4932, 2147483648
    %v4941 = vxor.u32 %v4936, 2147483648
    %v4942 = vmul.f32 %v4940, 1.442695
    %v4943 = vpow.pop %v4942
    %v4944 = vmul.f32 %v4941, 1.442695
    %v4945 = vpow.pop %v4944
    %v4946 = vadd.f32 %v4943, 1.0
    %v4947 = vadd.f32 %v4945, 1.0
    %v4948 = vrcp.pop %v4946
    %v4949 = vmul.f32 1.0, %v4948
    %v4950 = vrcp.pop %v4947
    %v4951 = vmul.f32 1.0, %v4950
    %v4952 = vxor.u32 %v4933, 2147483648
    %v4953 = vxor.u32 %v4937, 2147483648
    %v4954 = vmul.f32 %v4952, 1.442695
    %v4955 = vpow.pop %v4954
    %v4956 = vmul.f32 %v4953, 1.442695
    %v4957 = vpow.pop %v4956
    %v4958 = vadd.f32 %v4955, 1.0
    %v4959 = vadd.f32 %v4957, 1.0
    %v4960 = vrcp.pop %v4958
    %v4961 = vmul.f32 1.0, %v4960
    %v4962 = vrcp.pop %v4959
    %v4963 = vmul.f32 1.0, %v4962
    %v4964 = vtanh.pop %v4934
    %v4965 = vtanh.pop %v4938
    %v4966 = vxor.u32 %v4935, 2147483648
    %v4967 = vxor.u32 %v4939, 2147483648
    %v4968 = vmul.f32 %v4966, 1.442695
    %v4969 = vpow.pop %v4968
    %v4970 = vmul.f32 %v4967, 1.442695
    %v4971 = vpow.pop %v4970
    %v4972 = vadd.f32 %v4969, 1.0
    %v4973 = vadd.f32 %v4971, 1.0
    %v4974 = vrcp.pop %v4972
    %v4975 = vmul.f32 1.0, %v4974
    %v4976 = vrcp.pop %v4973
    %v4977 = vmul.f32 1.0, %v4976
    %v4980 = vrot.slane %v4621, 7
    %v4981 = vrot.slane %v4622, 7
    %v4984 = vmul.f32 %v4961, %v4980
    %v4985 = vmul.f32 %v4963, %v4981
    %v4986 = vmul.f32 %v4949, %v4964
    %v4987 = vmul.f32 %v4951, %v4965
    %v4988 = vadd.f32 %v4984, %v4986
    %v4989 = vadd.f32 %v4985, %v4987
    %v4990 = vtanh.pop %v4988
    %v4991 = vtanh.pop %v4989
    %v4992 = vmul.f32 %v4975, %v4990
    %v4993 = vmul.f32 %v4977, %v4991
    %v4994 = vpack.c.bf16 %v4992, %v4992
    %v4995 = vpack.c.bf16 %v4993, %v4993
    %v4998 = vunpack.c.l.b16 %v4994
    %v4999 = vunpack.c.l.b16 %v4995
    %v5000 = vrot.slane %v4998, 2
    %v5001 = vrot.slane %v4999, 1
    %v5002 = vsel %vm1017, %v5001, %v5000
    %v5003 = vpack.c.b16 %v5002, %v5002
    %5005 = vmatprep.subr.bf16.mxu0 %v1146
    %5006 = vmatpush1.bf16.msra.mxu0 %v1145
    %5007 = vmatprep.subr.bf16.mxu0 %v1142
    %5008 = vmatpush1.bf16.msra.mxu0 %v1141
    %5009 = vmatprep.subr.bf16.mxu0 %v1138
    %5010 = vmatpush1.bf16.msra.mxu0 %v1137
    %5011 = vmatprep.subr.bf16.mxu0 %v1134
    %5012 = vmatpush1.bf16.msra.mxu0 %v1133
    %5013 = vmatprep.subr.bf16.mxu0 %v1130
    %5014 = vmatpush1.bf16.msra.mxu0 %v1129
    %5015 = vmatprep.subr.bf16.mxu0 %v1126
    %5016 = vmatpush1.bf16.msra.mxu0 %v1125
    %5017 = vmatprep.subr.bf16.mxu0 %v1122
    %5018 = vmatpush1.bf16.msra.mxu0 %v1121
    %5019 = vmatprep.subr.bf16.mxu0 %v1118
    %5020 = vmatpush1.bf16.msra.mxu0 %v1117
    %5021 = vmatprep.subr.bf16.mxu0 0
    %5022 = vmatpush2.bf16.msra.mxu0 0
    %5023 = vmatprep.subr.bf16.mxu0 0
    %5024 = vmatpush2.bf16.msra.mxu0 0
    %5025 = vmatprep.subr.bf16.mxu0 0
    %5026 = vmatpush2.bf16.msra.mxu0 0
    %5027 = vmatprep.subr.bf16.mxu0 0
    %5028 = vmatpush2.bf16.msra.mxu0 0
    %5029 = vmatprep.subr.bf16.mxu0 0
    %5030 = vmatpush2.bf16.msra.mxu0 0
    %5031 = vmatprep.subr.bf16.mxu0 0
    %5032 = vmatpush2.bf16.msra.mxu0 0
    %5033 = vmatprep.subr.bf16.mxu0 0
    %5034 = vmatpush2.bf16.msra.mxu0 0
    %5035 = vmatprep.subr.bf16.mxu0 0
    %5036 = vmatpush2.bf16.msra.mxu0 0
    %5037 = vmatprep.mubr.bf16.mxu0 0
    %5038 = vmatmul.mubr.bf16.gmra.mxu0 %v5003
    %v5039 = vpop.f32.mrf.mxu0
    %v5040 = vadd.f32 %v995, %v5039
    %v5041 = vpop.f32.mrf.mxu0
    %v5042 = vadd.f32 %v999, %v5041
    %v5043 = vpop.f32.mrf.mxu0
    %v5044 = vpop.f32.mrf.mxu0
    %5045 = vdwg.mxu0
    %5046 = vmatprep.subr.bf16.mxu0 %v1148
    %5047 = vmatpush1.bf16.msra.mxu0 %v1147
    %5048 = vmatprep.subr.bf16.mxu0 %v1144
    %5049 = vmatpush1.bf16.msra.mxu0 %v1143
    %5050 = vmatprep.subr.bf16.mxu0 %v1140
    %5051 = vmatpush1.bf16.msra.mxu0 %v1139
    %5052 = vmatprep.subr.bf16.mxu0 %v1136
    %5053 = vmatpush1.bf16.msra.mxu0 %v1135
    %5054 = vmatprep.subr.bf16.mxu0 %v1132
    %5055 = vmatpush1.bf16.msra.mxu0 %v1131
    %5056 = vmatprep.subr.bf16.mxu0 %v1128
    %5057 = vmatpush1.bf16.msra.mxu0 %v1127
    %5058 = vmatprep.subr.bf16.mxu0 %v1124
    %5059 = vmatpush1.bf16.msra.mxu0 %v1123
    %5060 = vmatprep.subr.bf16.mxu0 %v1120
    %5061 = vmatpush1.bf16.msra.mxu0 %v1119
    %5062 = vmatprep.subr.bf16.mxu0 0
    %5063 = vmatpush2.bf16.msra.mxu0 0
    %5064 = vmatprep.subr.bf16.mxu0 0
    %5065 = vmatpush2.bf16.msra.mxu0 0
    %5066 = vmatprep.subr.bf16.mxu0 0
    %5067 = vmatpush2.bf16.msra.mxu0 0
    %5068 = vmatprep.subr.bf16.mxu0 0
    %5069 = vmatpush2.bf16.msra.mxu0 0
    %5070 = vmatprep.subr.bf16.mxu0 0
    %5071 = vmatpush2.bf16.msra.mxu0 0
    %5072 = vmatprep.subr.bf16.mxu0 0
    %5073 = vmatpush2.bf16.msra.mxu0 0
    %5074 = vmatprep.subr.bf16.mxu0 0
    %5075 = vmatpush2.bf16.msra.mxu0 0
    %5076 = vmatprep.subr.bf16.mxu0 0
    %5077 = vmatpush2.bf16.msra.mxu0 0
    %5078 = vmatprep.mubr.bf16.mxu0 0
    %5079 = vmatmul.mubr.bf16.gmra.mxu0 %v5003
    %v5080 = vpop.f32.mrf.mxu0
    %v5081 = vadd.f32 %v1003, %v5080
    %v5082 = vpop.f32.mrf.mxu0
    %v5083 = vadd.f32 %v1007, %v5082
    %v5084 = vpop.f32.mrf.mxu0
    %v5085 = vpop.f32.mrf.mxu0
    %5086 = vdwg.mxu0
    %v5087 = vpack.c.bf16 %v4829, %v4829
    %5088 = vmatprep.subr.bf16.mxu0 %v1388
    %5089 = vmatpush1.bf16.msra.mxu0 %v1387
    %5090 = vmatprep.subr.bf16.mxu0 %v1384
    %5091 = vmatpush1.bf16.msra.mxu0 %v1383
    %5092 = vmatprep.subr.bf16.mxu0 %v1380
    %5093 = vmatpush1.bf16.msra.mxu0 %v1379
    %5094 = vmatprep.subr.bf16.mxu0 %v1376
    %5095 = vmatpush1.bf16.msra.mxu0 %v1375
    %5096 = vmatprep.subr.bf16.mxu0 %v1372
    %5097 = vmatpush1.bf16.msra.mxu0 %v1371
    %5098 = vmatprep.subr.bf16.mxu0 %v1368
    %5099 = vmatpush1.bf16.msra.mxu0 %v1367
    %5100 = vmatprep.subr.bf16.mxu0 %v1364
    %5101 = vmatpush1.bf16.msra.mxu0 %v1363
    %5102 = vmatprep.subr.bf16.mxu0 %v1360
    %5103 = vmatpush1.bf16.msra.mxu0 %v1359
    %5104 = vmatprep.subr.bf16.mxu0 0
    %5105 = vmatpush2.bf16.msra.mxu0 0
    %5106 = vmatprep.subr.bf16.mxu0 0
    %5107 = vmatpush2.bf16.msra.mxu0 0
    %5108 = vmatprep.subr.bf16.mxu0 0
    %5109 = vmatpush2.bf16.msra.mxu0 0
    %5110 = vmatprep.subr.bf16.mxu0 0
    %5111 = vmatpush2.bf16.msra.mxu0 0
    %5112 = vmatprep.subr.bf16.mxu0 0
    %5113 = vmatpush2.bf16.msra.mxu0 0
    %5114 = vmatprep.subr.bf16.mxu0 0
    %5115 = vmatpush2.bf16.msra.mxu0 0
    %5116 = vmatprep.subr.bf16.mxu0 0
    %5117 = vmatpush2.bf16.msra.mxu0 0
    %5118 = vmatprep.subr.bf16.mxu0 0
    %5119 = vmatpush2.bf16.msra.mxu0 0
    %5120 = vmatprep.mubr.bf16.mxu0 0
    %5121 = vmatmul.mubr.bf16.gmra.mxu0 %v5087
    %v5122 = vpop.f32.mrf.mxu0
    %v5123 = vadd.f32 0.0, %v5122
    %v5124 = vpop.f32.mrf.mxu0
    %v5125 = vadd.f32 0.0, %v5124
    %v5126 = vpop.f32.mrf.mxu0
    %v5127 = vpop.f32.mrf.mxu0
    %5128 = vdwg.mxu0
    %5129 = vmatprep.subr.bf16.mxu0 %v1390
    %5130 = vmatpush1.bf16.msra.mxu0 %v1389
    %5131 = vmatprep.subr.bf16.mxu0 %v1386
    %5132 = vmatpush1.bf16.msra.mxu0 %v1385
    %5133 = vmatprep.subr.bf16.mxu0 %v1382
    %5134 = vmatpush1.bf16.msra.mxu0 %v1381
    %5135 = vmatprep.subr.bf16.mxu0 %v1378
    %5136 = vmatpush1.bf16.msra.mxu0 %v1377
    %5137 = vmatprep.subr.bf16.mxu0 %v1374
    %5138 = vmatpush1.bf16.msra.mxu0 %v1373
    %5139 = vmatprep.subr.bf16.mxu0 %v1370
    %5140 = vmatpush1.bf16.msra.mxu0 %v1369
    %5141 = vmatprep.subr.bf16.mxu0 %v1366
    %5142 = vmatpush1.bf16.msra.mxu0 %v1365
    %5143 = vmatprep.subr.bf16.mxu0 %v1362
    %5144 = vmatpush1.bf16.msra.mxu0 %v1361
    %5145 = vmatprep.subr.bf16.mxu0 0
    %5146 = vmatpush2.bf16.msra.mxu0 0
    %5147 = vmatprep.subr.bf16.mxu0 0
    %5148 = vmatpush2.bf16.msra.mxu0 0
    %5149 = vmatprep.subr.bf16.mxu0 0
    %5150 = vmatpush2.bf16.msra.mxu0 0
    %5151 = vmatprep.subr.bf16.mxu0 0
    %5152 = vmatpush2.bf16.msra.mxu0 0
    %5153 = vmatprep.subr.bf16.mxu0 0
    %5154 = vmatpush2.bf16.msra.mxu0 0
    %5155 = vmatprep.subr.bf16.mxu0 0
    %5156 = vmatpush2.bf16.msra.mxu0 0
    %5157 = vmatprep.subr.bf16.mxu0 0
    %5158 = vmatpush2.bf16.msra.mxu0 0
    %5159 = vmatprep.subr.bf16.mxu0 0
    %5160 = vmatpush2.bf16.msra.mxu0 0
    %5161 = vmatprep.mubr.bf16.mxu0 0
    %5162 = vmatmul.mubr.bf16.gmra.mxu0 %v5087
    %v5163 = vpop.f32.mrf.mxu0
    %v5164 = vadd.f32 0.0, %v5163
    %v5165 = vpop.f32.mrf.mxu0
    %v5166 = vadd.f32 0.0, %v5165
    %v5167 = vpop.f32.mrf.mxu0
    %v5168 = vpop.f32.mrf.mxu0
    %5169 = vdwg.mxu0
    %v5170 = vadd.f32 %v5040, %v5123
    %v5171 = vadd.f32 %v5042, %v5125
    %v5172 = vadd.f32 %v5081, %v5164
    %v5173 = vadd.f32 %v5083, %v5166
    %v5174 = vxor.u32 %v5170, 2147483648
    %v5175 = vmul.f32 %v5174, 1.442695
    %v5176 = vpow.pop %v5175
    %v5177 = vadd.f32 %v5176, 1.0
    %v5178 = vrcp.pop %v5177
    %v5179 = vmul.f32 1.0, %v5178
    %v5180 = vxor.u32 %v5171, 2147483648
    %v5181 = vmul.f32 %v5180, 1.442695
    %v5182 = vpow.pop %v5181
    %v5183 = vadd.f32 %v5182, 1.0
    %v5184 = vrcp.pop %v5183
    %v5185 = vmul.f32 1.0, %v5184
    %v5186 = vtanh.pop %v5172
    %v5187 = vxor.u32 %v5173, 2147483648
    %v5188 = vmul.f32 %v5187, 1.442695
    %v5189 = vpow.pop %v5188
    %v5190 = vadd.f32 %v5189, 1.0
    %v5191 = vrcp.pop %v5190
    %v5192 = vmul.f32 1.0, %v5191
    %v5193 = vmul.f32 %v5185, %v4827
    %v5194 = vmul.f32 %v5179, %v5186
    %v5195 = vadd.f32 %v5193, %v5194
    %v5196 = vtanh.pop %v5195
    %v5197 = vmul.f32 %v5192, %v5196
    %5198 = vmatprep.subr.bf16.mxu0 %v800
    %5199 = vmatpush1.bf16.msra.mxu0 %v799
    %5200 = vmatprep.subr.bf16.mxu0 %v796
    %5201 = vmatpush1.bf16.msra.mxu0 %v795
    %5202 = vmatprep.subr.bf16.mxu0 %v792
    %5203 = vmatpush1.bf16.msra.mxu0 %v791
    %5204 = vmatprep.subr.bf16.mxu0 %v788
    %5205 = vmatpush1.bf16.msra.mxu0 %v787
    %5206 = vmatprep.subr.bf16.mxu0 %v784
    %5207 = vmatpush1.bf16.msra.mxu0 %v783
    %5208 = vmatprep.subr.bf16.mxu0 %v780
    %5209 = vmatpush1.bf16.msra.mxu0 %v779
    %5210 = vmatprep.subr.bf16.mxu0 %v776
    %5211 = vmatpush1.bf16.msra.mxu0 %v775
    %5212 = vmatprep.subr.bf16.mxu0 %v772
    %5213 = vmatpush1.bf16.msra.mxu0 %v771
    %5214 = vmatprep.subr.bf16.mxu0 0
    %5215 = vmatpush2.bf16.msra.mxu0 0
    %5216 = vmatprep.subr.bf16.mxu0 0
    %5217 = vmatpush2.bf16.msra.mxu0 0
    %5218 = vmatprep.subr.bf16.mxu0 0
    %5219 = vmatpush2.bf16.msra.mxu0 0
    %5220 = vmatprep.subr.bf16.mxu0 0
    %5221 = vmatpush2.bf16.msra.mxu0 0
    %5222 = vmatprep.subr.bf16.mxu0 0
    %5223 = vmatpush2.bf16.msra.mxu0 0
    %5224 = vmatprep.subr.bf16.mxu0 0
    %5225 = vmatpush2.bf16.msra.mxu0 0
    %5226 = vmatprep.subr.bf16.mxu0 0
    %5227 = vmatpush2.bf16.msra.mxu0 0
    %5228 = vmatprep.subr.bf16.mxu0 0
    %5229 = vmatpush2.bf16.msra.mxu0 0
    %5230 = vmatprep.mubr.bf16.mxu0 0
    %5231 = vmatmul.mubr.bf16.gmra.mxu0 %v5003
    %v5232 = vpop.f32.mrf.mxu0
    %v5233 = vadd.f32 0.0, %v5232
    %v5234 = vpop.f32.mrf.mxu0
    %v5235 = vadd.f32 0.0, %v5234
    %v5236 = vpop.f32.mrf.mxu0
    %v5237 = vpop.f32.mrf.mxu0
    %5238 = vdwg.mxu0
    %5239 = vmatprep.subr.bf16.mxu0 %v802
    %5240 = vmatpush1.bf16.msra.mxu0 %v801
    %5241 = vmatprep.subr.bf16.mxu0 %v798
    %5242 = vmatpush1.bf16.msra.mxu0 %v797
    %5243 = vmatprep.subr.bf16.mxu0 %v794
    %5244 = vmatpush1.bf16.msra.mxu0 %v793
    %5245 = vmatprep.subr.bf16.mxu0 %v790
    %5246 = vmatpush1.bf16.msra.mxu0 %v789
    %5247 = vmatprep.subr.bf16.mxu0 %v786
    %5248 = vmatpush1.bf16.msra.mxu0 %v785
    %5249 = vmatprep.subr.bf16.mxu0 %v782
    %5250 = vmatpush1.bf16.msra.mxu0 %v781
    %5251 = vmatprep.subr.bf16.mxu0 %v778
    %5252 = vmatpush1.bf16.msra.mxu0 %v777
    %5253 = vmatprep.subr.bf16.mxu0 %v774
    %5254 = vmatpush1.bf16.msra.mxu0 %v773
    %5255 = vmatprep.subr.bf16.mxu0 0
    %5256 = vmatpush2.bf16.msra.mxu0 0
    %5257 = vmatprep.subr.bf16.mxu0 0
    %5258 = vmatpush2.bf16.msra.mxu0 0
    %5259 = vmatprep.subr.bf16.mxu0 0
    %5260 = vmatpush2.bf16.msra.mxu0 0
    %5261 = vmatprep.subr.bf16.mxu0 0
    %5262 = vmatpush2.bf16.msra.mxu0 0
    %5263 = vmatprep.subr.bf16.mxu0 0
    %5264 = vmatpush2.bf16.msra.mxu0 0
    %5265 = vmatprep.subr.bf16.mxu0 0
    %5266 = vmatpush2.bf16.msra.mxu0 0
    %5267 = vmatprep.subr.bf16.mxu0 0
    %5268 = vmatpush2.bf16.msra.mxu0 0
    %5269 = vmatprep.subr.bf16.mxu0 0
    %5270 = vmatpush2.bf16.msra.mxu0 0
    %5271 = vmatprep.mubr.bf16.mxu0 0
    %5272 = vmatmul.mubr.bf16.gmra.mxu0 %v5003
    %v5273 = vpop.f32.mrf.mxu0
    %v5274 = vadd.f32 0.0, %v5273
    %v5275 = vpop.f32.mrf.mxu0
    %v5276 = vadd.f32 0.0, %v5275
    %v5277 = vpop.f32.mrf.mxu0
    %v5278 = vpop.f32.mrf.mxu0
    %5279 = vdwg.mxu0
    %v5284 = vrot.slane %v5233, 5
    %v5285 = vrot.slane %v5235, 5
    %v5286 = vrot.slane %v5274, 5
    %v5287 = vrot.slane %v5276, 5
    %v5288 = vrot.slane %v5233, 6
    %v5289 = vrot.slane %v5235, 6
    %v5290 = vrot.slane %v5274, 6
    %v5291 = vrot.slane %v5276, 6
    %v5300 = vadd.f32 %v663, %v5284
    %v5301 = vadd.f32 %v664, %v5285
    %v5302 = vadd.f32 %v665, %v5286
    %v5303 = vadd.f32 %v666, %v5287
    %v5304 = vadd.f32 %v671, %v5288
    %v5305 = vadd.f32 %v672, %v5289
    %v5306 = vadd.f32 %v673, %v5290
    %v5307 = vadd.f32 %v674, %v5291
    %v5308 = vxor.u32 %v5300, 2147483648
    %v5309 = vxor.u32 %v5304, 2147483648
    %v5310 = vmul.f32 %v5308, 1.442695
    %v5311 = vpow.pop %v5310
    %v5312 = vmul.f32 %v5309, 1.442695
    %v5313 = vpow.pop %v5312
    %v5314 = vadd.f32 %v5311, 1.0
    %v5315 = vadd.f32 %v5313, 1.0
    %v5316 = vrcp.pop %v5314
    %v5317 = vmul.f32 1.0, %v5316
    %v5318 = vrcp.pop %v5315
    %v5319 = vmul.f32 1.0, %v5318
    %v5320 = vxor.u32 %v5301, 2147483648
    %v5321 = vxor.u32 %v5305, 2147483648
    %v5322 = vmul.f32 %v5320, 1.442695
    %v5323 = vpow.pop %v5322
    %v5324 = vmul.f32 %v5321, 1.442695
    %v5325 = vpow.pop %v5324
    %v5326 = vadd.f32 %v5323, 1.0
    %v5327 = vadd.f32 %v5325, 1.0
    %v5328 = vrcp.pop %v5326
    %v5329 = vmul.f32 1.0, %v5328
    %v5330 = vrcp.pop %v5327
    %v5331 = vmul.f32 1.0, %v5330
    %v5332 = vtanh.pop %v5302
    %v5333 = vtanh.pop %v5306
    %v5334 = vxor.u32 %v5303, 2147483648
    %v5335 = vxor.u32 %v5307, 2147483648
    %v5336 = vmul.f32 %v5334, 1.442695
    %v5337 = vpow.pop %v5336
    %v5338 = vmul.f32 %v5335, 1.442695
    %v5339 = vpow.pop %v5338
    %v5340 = vadd.f32 %v5337, 1.0
    %v5341 = vadd.f32 %v5339, 1.0
    %v5342 = vrcp.pop %v5340
    %v5343 = vmul.f32 1.0, %v5342
    %v5344 = vrcp.pop %v5341
    %v5345 = vmul.f32 1.0, %v5344
    %v5348 = vrot.slane %v4988, 7
    %v5349 = vrot.slane %v4989, 7
    %v5352 = vmul.f32 %v5329, %v5348
    %v5353 = vmul.f32 %v5331, %v5349
    %v5354 = vmul.f32 %v5317, %v5332
    %v5355 = vmul.f32 %v5319, %v5333
    %v5356 = vadd.f32 %v5352, %v5354
    %v5357 = vadd.f32 %v5353, %v5355
    %v5358 = vtanh.pop %v5356
    %v5359 = vtanh.pop %v5357
    %v5360 = vmul.f32 %v5343, %v5358
    %v5361 = vmul.f32 %v5345, %v5359
    %v5362 = vpack.c.bf16 %v5360, %v5360
    %v5363 = vpack.c.bf16 %v5361, %v5361
    %v5366 = vunpack.c.l.b16 %v5362
    %v5367 = vunpack.c.l.b16 %v5363
    %v5368 = vrot.slane %v5366, 3
    %v5369 = vrot.slane %v5367, 2
    %v5370 = vsel %vm1017, %v5369, %v5368
    %v5371 = vpack.c.b16 %v5370, %v5370
    %5373 = vmatprep.subr.bf16.mxu0 %v1146
    %5374 = vmatpush1.bf16.msra.mxu0 %v1145
    %5375 = vmatprep.subr.bf16.mxu0 %v1142
    %5376 = vmatpush1.bf16.msra.mxu0 %v1141
    %5377 = vmatprep.subr.bf16.mxu0 %v1138
    %5378 = vmatpush1.bf16.msra.mxu0 %v1137
    %5379 = vmatprep.subr.bf16.mxu0 %v1134
    %5380 = vmatpush1.bf16.msra.mxu0 %v1133
    %5381 = vmatprep.subr.bf16.mxu0 %v1130
    %5382 = vmatpush1.bf16.msra.mxu0 %v1129
    %5383 = vmatprep.subr.bf16.mxu0 %v1126
    %5384 = vmatpush1.bf16.msra.mxu0 %v1125
    %5385 = vmatprep.subr.bf16.mxu0 %v1122
    %5386 = vmatpush1.bf16.msra.mxu0 %v1121
    %5387 = vmatprep.subr.bf16.mxu0 %v1118
    %5388 = vmatpush1.bf16.msra.mxu0 %v1117
    %5389 = vmatprep.subr.bf16.mxu0 0
    %5390 = vmatpush2.bf16.msra.mxu0 0
    %5391 = vmatprep.subr.bf16.mxu0 0
    %5392 = vmatpush2.bf16.msra.mxu0 0
    %5393 = vmatprep.subr.bf16.mxu0 0
    %5394 = vmatpush2.bf16.msra.mxu0 0
    %5395 = vmatprep.subr.bf16.mxu0 0
    %5396 = vmatpush2.bf16.msra.mxu0 0
    %5397 = vmatprep.subr.bf16.mxu0 0
    %5398 = vmatpush2.bf16.msra.mxu0 0
    %5399 = vmatprep.subr.bf16.mxu0 0
    %5400 = vmatpush2.bf16.msra.mxu0 0
    %5401 = vmatprep.subr.bf16.mxu0 0
    %5402 = vmatpush2.bf16.msra.mxu0 0
    %5403 = vmatprep.subr.bf16.mxu0 0
    %5404 = vmatpush2.bf16.msra.mxu0 0
    %5405 = vmatprep.mubr.bf16.mxu0 0
    %5406 = vmatmul.mubr.bf16.gmra.mxu0 %v5371
    %v5407 = vpop.f32.mrf.mxu0
    %v5408 = vadd.f32 %v995, %v5407
    %v5409 = vpop.f32.mrf.mxu0
    %v5410 = vadd.f32 %v999, %v5409
    %v5411 = vpop.f32.mrf.mxu0
    %v5412 = vpop.f32.mrf.mxu0
    %5413 = vdwg.mxu0
    %5414 = vmatprep.subr.bf16.mxu0 %v1148
    %5415 = vmatpush1.bf16.msra.mxu0 %v1147
    %5416 = vmatprep.subr.bf16.mxu0 %v1144
    %5417 = vmatpush1.bf16.msra.mxu0 %v1143
    %5418 = vmatprep.subr.bf16.mxu0 %v1140
    %5419 = vmatpush1.bf16.msra.mxu0 %v1139
    %5420 = vmatprep.subr.bf16.mxu0 %v1136
    %5421 = vmatpush1.bf16.msra.mxu0 %v1135
    %5422 = vmatprep.subr.bf16.mxu0 %v1132
    %5423 = vmatpush1.bf16.msra.mxu0 %v1131
    %5424 = vmatprep.subr.bf16.mxu0 %v1128
    %5425 = vmatpush1.bf16.msra.mxu0 %v1127
    %5426 = vmatprep.subr.bf16.mxu0 %v1124
    %5427 = vmatpush1.bf16.msra.mxu0 %v1123
    %5428 = vmatprep.subr.bf16.mxu0 %v1120
    %5429 = vmatpush1.bf16.msra.mxu0 %v1119
    %5430 = vmatprep.subr.bf16.mxu0 0
    %5431 = vmatpush2.bf16.msra.mxu0 0
    %5432 = vmatprep.subr.bf16.mxu0 0
    %5433 = vmatpush2.bf16.msra.mxu0 0
    %5434 = vmatprep.subr.bf16.mxu0 0
    %5435 = vmatpush2.bf16.msra.mxu0 0
    %5436 = vmatprep.subr.bf16.mxu0 0
    %5437 = vmatpush2.bf16.msra.mxu0 0
    %5438 = vmatprep.subr.bf16.mxu0 0
    %5439 = vmatpush2.bf16.msra.mxu0 0
    %5440 = vmatprep.subr.bf16.mxu0 0
    %5441 = vmatpush2.bf16.msra.mxu0 0
    %5442 = vmatprep.subr.bf16.mxu0 0
    %5443 = vmatpush2.bf16.msra.mxu0 0
    %5444 = vmatprep.subr.bf16.mxu0 0
    %5445 = vmatpush2.bf16.msra.mxu0 0
    %5446 = vmatprep.mubr.bf16.mxu0 0
    %5447 = vmatmul.mubr.bf16.gmra.mxu0 %v5371
    %v5448 = vpop.f32.mrf.mxu0
    %v5449 = vadd.f32 %v1003, %v5448
    %v5450 = vpop.f32.mrf.mxu0
    %v5451 = vadd.f32 %v1007, %v5450
    %v5452 = vpop.f32.mrf.mxu0
    %v5453 = vpop.f32.mrf.mxu0
    %5454 = vdwg.mxu0
    %v5455 = vpack.c.bf16 %v5197, %v5197
    %5456 = vmatprep.subr.bf16.mxu0 %v1388
    %5457 = vmatpush1.bf16.msra.mxu0 %v1387
    %5458 = vmatprep.subr.bf16.mxu0 %v1384
    %5459 = vmatpush1.bf16.msra.mxu0 %v1383
    %5460 = vmatprep.subr.bf16.mxu0 %v1380
    %5461 = vmatpush1.bf16.msra.mxu0 %v1379
    %5462 = vmatprep.subr.bf16.mxu0 %v1376
    %5463 = vmatpush1.bf16.msra.mxu0 %v1375
    %5464 = vmatprep.subr.bf16.mxu0 %v1372
    %5465 = vmatpush1.bf16.msra.mxu0 %v1371
    %5466 = vmatprep.subr.bf16.mxu0 %v1368
    %5467 = vmatpush1.bf16.msra.mxu0 %v1367
    %5468 = vmatprep.subr.bf16.mxu0 %v1364
    %5469 = vmatpush1.bf16.msra.mxu0 %v1363
    %5470 = vmatprep.subr.bf16.mxu0 %v1360
    %5471 = vmatpush1.bf16.msra.mxu0 %v1359
    %5472 = vmatprep.subr.bf16.mxu0 0
    %5473 = vmatpush2.bf16.msra.mxu0 0
    %5474 = vmatprep.subr.bf16.mxu0 0
    %5475 = vmatpush2.bf16.msra.mxu0 0
    %5476 = vmatprep.subr.bf16.mxu0 0
    %5477 = vmatpush2.bf16.msra.mxu0 0
    %5478 = vmatprep.subr.bf16.mxu0 0
    %5479 = vmatpush2.bf16.msra.mxu0 0
    %5480 = vmatprep.subr.bf16.mxu0 0
    %5481 = vmatpush2.bf16.msra.mxu0 0
    %5482 = vmatprep.subr.bf16.mxu0 0
    %5483 = vmatpush2.bf16.msra.mxu0 0
    %5484 = vmatprep.subr.bf16.mxu0 0
    %5485 = vmatpush2.bf16.msra.mxu0 0
    %5486 = vmatprep.subr.bf16.mxu0 0
    %5487 = vmatpush2.bf16.msra.mxu0 0
    %5488 = vmatprep.mubr.bf16.mxu0 0
    %5489 = vmatmul.mubr.bf16.gmra.mxu0 %v5455
    %v5490 = vpop.f32.mrf.mxu0
    %v5491 = vadd.f32 0.0, %v5490
    %v5492 = vpop.f32.mrf.mxu0
    %v5493 = vadd.f32 0.0, %v5492
    %v5494 = vpop.f32.mrf.mxu0
    %v5495 = vpop.f32.mrf.mxu0
    %5496 = vdwg.mxu0
    %5497 = vmatprep.subr.bf16.mxu0 %v1390
    %5498 = vmatpush1.bf16.msra.mxu0 %v1389
    %5499 = vmatprep.subr.bf16.mxu0 %v1386
    %5500 = vmatpush1.bf16.msra.mxu0 %v1385
    %5501 = vmatprep.subr.bf16.mxu0 %v1382
    %5502 = vmatpush1.bf16.msra.mxu0 %v1381
    %5503 = vmatprep.subr.bf16.mxu0 %v1378
    %5504 = vmatpush1.bf16.msra.mxu0 %v1377
    %5505 = vmatprep.subr.bf16.mxu0 %v1374
    %5506 = vmatpush1.bf16.msra.mxu0 %v1373
    %5507 = vmatprep.subr.bf16.mxu0 %v1370
    %5508 = vmatpush1.bf16.msra.mxu0 %v1369
    %5509 = vmatprep.subr.bf16.mxu0 %v1366
    %5510 = vmatpush1.bf16.msra.mxu0 %v1365
    %5511 = vmatprep.subr.bf16.mxu0 %v1362
    %5512 = vmatpush1.bf16.msra.mxu0 %v1361
    %5513 = vmatprep.subr.bf16.mxu0 0
    %5514 = vmatpush2.bf16.msra.mxu0 0
    %5515 = vmatprep.subr.bf16.mxu0 0
    %5516 = vmatpush2.bf16.msra.mxu0 0
    %5517 = vmatprep.subr.bf16.mxu0 0
    %5518 = vmatpush2.bf16.msra.mxu0 0
    %5519 = vmatprep.subr.bf16.mxu0 0
    %5520 = vmatpush2.bf16.msra.mxu0 0
    %5521 = vmatprep.subr.bf16.mxu0 0
    %5522 = vmatpush2.bf16.msra.mxu0 0
    %5523 = vmatprep.subr.bf16.mxu0 0
    %5524 = vmatpush2.bf16.msra.mxu0 0
    %5525 = vmatprep.subr.bf16.mxu0 0
    %5526 = vmatpush2.bf16.msra.mxu0 0
    %5527 = vmatprep.subr.bf16.mxu0 0
    %5528 = vmatpush2.bf16.msra.mxu0 0
    %5529 = vmatprep.mubr.bf16.mxu0 0
    %5530 = vmatmul.mubr.bf16.gmra.mxu0 %v5455
    %v5531 = vpop.f32.mrf.mxu0
    %v5532 = vadd.f32 0.0, %v5531
    %v5533 = vpop.f32.mrf.mxu0
    %v5534 = vadd.f32 0.0, %v5533
    %v5535 = vpop.f32.mrf.mxu0
    %v5536 = vpop.f32.mrf.mxu0
    %5537 = vdwg.mxu0
    %v5538 = vadd.f32 %v5408, %v5491
    %v5539 = vadd.f32 %v5410, %v5493
    %v5540 = vadd.f32 %v5449, %v5532
    %v5541 = vadd.f32 %v5451, %v5534
    %v5542 = vxor.u32 %v5538, 2147483648
    %v5543 = vmul.f32 %v5542, 1.442695
    %v5544 = vpow.pop %v5543
    %v5545 = vadd.f32 %v5544, 1.0
    %v5546 = vrcp.pop %v5545
    %v5547 = vmul.f32 1.0, %v5546
    %v5548 = vxor.u32 %v5539, 2147483648
    %v5549 = vmul.f32 %v5548, 1.442695
    %v5550 = vpow.pop %v5549
    %v5551 = vadd.f32 %v5550, 1.0
    %v5552 = vrcp.pop %v5551
    %v5553 = vmul.f32 1.0, %v5552
    %v5554 = vtanh.pop %v5540
    %v5555 = vxor.u32 %v5541, 2147483648
    %v5556 = vmul.f32 %v5555, 1.442695
    %v5557 = vpow.pop %v5556
    %v5558 = vadd.f32 %v5557, 1.0
    %v5559 = vrcp.pop %v5558
    %v5560 = vmul.f32 1.0, %v5559
    %v5561 = vmul.f32 %v5553, %v5195
    %v5562 = vmul.f32 %v5547, %v5554
    %v5563 = vadd.f32 %v5561, %v5562
    %v5564 = vtanh.pop %v5563
    %v5565 = vmul.f32 %v5560, %v5564
    %5566 = vmatprep.subr.bf16.mxu0 %v800
    %5567 = vmatpush1.bf16.msra.mxu0 %v799
    %5568 = vmatprep.subr.bf16.mxu0 %v796
    %5569 = vmatpush1.bf16.msra.mxu0 %v795
    %5570 = vmatprep.subr.bf16.mxu0 %v792
    %5571 = vmatpush1.bf16.msra.mxu0 %v791
    %5572 = vmatprep.subr.bf16.mxu0 %v788
    %5573 = vmatpush1.bf16.msra.mxu0 %v787
    %5574 = vmatprep.subr.bf16.mxu0 %v784
    %5575 = vmatpush1.bf16.msra.mxu0 %v783
    %5576 = vmatprep.subr.bf16.mxu0 %v780
    %5577 = vmatpush1.bf16.msra.mxu0 %v779
    %5578 = vmatprep.subr.bf16.mxu0 %v776
    %5579 = vmatpush1.bf16.msra.mxu0 %v775
    %5580 = vmatprep.subr.bf16.mxu0 %v772
    %5581 = vmatpush1.bf16.msra.mxu0 %v771
    %5582 = vmatprep.subr.bf16.mxu0 0
    %5583 = vmatpush2.bf16.msra.mxu0 0
    %5584 = vmatprep.subr.bf16.mxu0 0
    %5585 = vmatpush2.bf16.msra.mxu0 0
    %5586 = vmatprep.subr.bf16.mxu0 0
    %5587 = vmatpush2.bf16.msra.mxu0 0
    %5588 = vmatprep.subr.bf16.mxu0 0
    %5589 = vmatpush2.bf16.msra.mxu0 0
    %5590 = vmatprep.subr.bf16.mxu0 0
    %5591 = vmatpush2.bf16.msra.mxu0 0
    %5592 = vmatprep.subr.bf16.mxu0 0
    %5593 = vmatpush2.bf16.msra.mxu0 0
    %5594 = vmatprep.subr.bf16.mxu0 0
    %5595 = vmatpush2.bf16.msra.mxu0 0
    %5596 = vmatprep.subr.bf16.mxu0 0
    %5597 = vmatpush2.bf16.msra.mxu0 0
    %5598 = vmatprep.mubr.bf16.mxu0 0
    %5599 = vmatmul.mubr.bf16.gmra.mxu0 %v5371
    %v5600 = vpop.f32.mrf.mxu0
    %v5601 = vadd.f32 0.0, %v5600
    %v5602 = vpop.f32.mrf.mxu0
    %v5603 = vadd.f32 0.0, %v5602
    %v5604 = vpop.f32.mrf.mxu0
    %v5605 = vpop.f32.mrf.mxu0
    %5606 = vdwg.mxu0
    %5607 = vmatprep.subr.bf16.mxu0 %v802
    %5608 = vmatpush1.bf16.msra.mxu0 %v801
    %5609 = vmatprep.subr.bf16.mxu0 %v798
    %5610 = vmatpush1.bf16.msra.mxu0 %v797
    %5611 = vmatprep.subr.bf16.mxu0 %v794
    %5612 = vmatpush1.bf16.msra.mxu0 %v793
    %5613 = vmatprep.subr.bf16.mxu0 %v790
    %5614 = vmatpush1.bf16.msra.mxu0 %v789
    %5615 = vmatprep.subr.bf16.mxu0 %v786
    %5616 = vmatpush1.bf16.msra.mxu0 %v785
    %5617 = vmatprep.subr.bf16.mxu0 %v782
    %5618 = vmatpush1.bf16.msra.mxu0 %v781
    %5619 = vmatprep.subr.bf16.mxu0 %v778
    %5620 = vmatpush1.bf16.msra.mxu0 %v777
    %5621 = vmatprep.subr.bf16.mxu0 %v774
    %5622 = vmatpush1.bf16.msra.mxu0 %v773
    %5623 = vmatprep.subr.bf16.mxu0 0
    %5624 = vmatpush2.bf16.msra.mxu0 0
    %5625 = vmatprep.subr.bf16.mxu0 0
    %5626 = vmatpush2.bf16.msra.mxu0 0
    %5627 = vmatprep.subr.bf16.mxu0 0
    %5628 = vmatpush2.bf16.msra.mxu0 0
    %5629 = vmatprep.subr.bf16.mxu0 0
    %5630 = vmatpush2.bf16.msra.mxu0 0
    %5631 = vmatprep.subr.bf16.mxu0 0
    %5632 = vmatpush2.bf16.msra.mxu0 0
    %5633 = vmatprep.subr.bf16.mxu0 0
    %5634 = vmatpush2.bf16.msra.mxu0 0
    %5635 = vmatprep.subr.bf16.mxu0 0
    %5636 = vmatpush2.bf16.msra.mxu0 0
    %5637 = vmatprep.subr.bf16.mxu0 0
    %5638 = vmatpush2.bf16.msra.mxu0 0
    %5639 = vmatprep.mubr.bf16.mxu0 0
    %5640 = vmatmul.mubr.bf16.gmra.mxu0 %v5371
    %v5641 = vpop.f32.mrf.mxu0
    %v5642 = vadd.f32 0.0, %v5641
    %v5643 = vpop.f32.mrf.mxu0
    %v5644 = vadd.f32 0.0, %v5643
    %v5645 = vpop.f32.mrf.mxu0
    %v5646 = vpop.f32.mrf.mxu0
    %5647 = vdwg.mxu0
    %v5652 = vrot.slane %v5601, 4
    %v5653 = vrot.slane %v5603, 4
    %v5654 = vrot.slane %v5642, 4
    %v5655 = vrot.slane %v5644, 4
    %v5656 = vrot.slane %v5601, 5
    %v5657 = vrot.slane %v5603, 5
    %v5658 = vrot.slane %v5642, 5
    %v5659 = vrot.slane %v5644, 5
    %v5668 = vadd.f32 %v663, %v5652
    %v5669 = vadd.f32 %v664, %v5653
    %v5670 = vadd.f32 %v665, %v5654
    %v5671 = vadd.f32 %v666, %v5655
    %v5672 = vadd.f32 %v671, %v5656
    %v5673 = vadd.f32 %v672, %v5657
    %v5674 = vadd.f32 %v673, %v5658
    %v5675 = vadd.f32 %v674, %v5659
    %v5676 = vxor.u32 %v5668, 2147483648
    %v5677 = vxor.u32 %v5672, 2147483648
    %v5678 = vmul.f32 %v5676, 1.442695
    %v5679 = vpow.pop %v5678
    %v5680 = vmul.f32 %v5677, 1.442695
    %v5681 = vpow.pop %v5680
    %v5682 = vadd.f32 %v5679, 1.0
    %v5683 = vadd.f32 %v5681, 1.0
    %v5684 = vrcp.pop %v5682
    %v5685 = vmul.f32 1.0, %v5684
    %v5686 = vrcp.pop %v5683
    %v5687 = vmul.f32 1.0, %v5686
    %v5688 = vxor.u32 %v5669, 2147483648
    %v5689 = vxor.u32 %v5673, 2147483648
    %v5690 = vmul.f32 %v5688, 1.442695
    %v5691 = vpow.pop %v5690
    %v5692 = vmul.f32 %v5689, 1.442695
    %v5693 = vpow.pop %v5692
    %v5694 = vadd.f32 %v5691, 1.0
    %v5695 = vadd.f32 %v5693, 1.0
    %v5696 = vrcp.pop %v5694
    %v5697 = vmul.f32 1.0, %v5696
    %v5698 = vrcp.pop %v5695
    %v5699 = vmul.f32 1.0, %v5698
    %v5700 = vtanh.pop %v5670
    %v5701 = vtanh.pop %v5674
    %v5702 = vxor.u32 %v5671, 2147483648
    %v5703 = vxor.u32 %v5675, 2147483648
    %v5704 = vmul.f32 %v5702, 1.442695
    %v5705 = vpow.pop %v5704
    %v5706 = vmul.f32 %v5703, 1.442695
    %v5707 = vpow.pop %v5706
    %v5708 = vadd.f32 %v5705, 1.0
    %v5709 = vadd.f32 %v5707, 1.0
    %v5710 = vrcp.pop %v5708
    %v5711 = vmul.f32 1.0, %v5710
    %v5712 = vrcp.pop %v5709
    %v5713 = vmul.f32 1.0, %v5712
    %v5716 = vrot.slane %v5356, 7
    %v5717 = vrot.slane %v5357, 7
    %v5720 = vmul.f32 %v5697, %v5716
    %v5721 = vmul.f32 %v5699, %v5717
    %v5722 = vmul.f32 %v5685, %v5700
    %v5723 = vmul.f32 %v5687, %v5701
    %v5724 = vadd.f32 %v5720, %v5722
    %v5725 = vadd.f32 %v5721, %v5723
    %v5726 = vtanh.pop %v5724
    %v5727 = vtanh.pop %v5725
    %v5728 = vmul.f32 %v5711, %v5726
    %v5729 = vmul.f32 %v5713, %v5727
    %v5730 = vpack.c.bf16 %v5728, %v5728
    %v5731 = vpack.c.bf16 %v5729, %v5729
    %v5734 = vunpack.c.l.b16 %v5730
    %v5735 = vunpack.c.l.b16 %v5731
    %v5736 = vrot.slane %v5734, 4
    %v5737 = vrot.slane %v5735, 3
    %v5738 = vsel %vm1017, %v5737, %v5736
    %v5739 = vpack.c.b16 %v5738, %v5738
    %5741 = vmatprep.subr.bf16.mxu0 %v1146
    %5742 = vmatpush1.bf16.msra.mxu0 %v1145
    %5743 = vmatprep.subr.bf16.mxu0 %v1142
    %5744 = vmatpush1.bf16.msra.mxu0 %v1141
    %5745 = vmatprep.subr.bf16.mxu0 %v1138
    %5746 = vmatpush1.bf16.msra.mxu0 %v1137
    %5747 = vmatprep.subr.bf16.mxu0 %v1134
    %5748 = vmatpush1.bf16.msra.mxu0 %v1133
    %5749 = vmatprep.subr.bf16.mxu0 %v1130
    %5750 = vmatpush1.bf16.msra.mxu0 %v1129
    %5751 = vmatprep.subr.bf16.mxu0 %v1126
    %5752 = vmatpush1.bf16.msra.mxu0 %v1125
    %5753 = vmatprep.subr.bf16.mxu0 %v1122
    %5754 = vmatpush1.bf16.msra.mxu0 %v1121
    %5755 = vmatprep.subr.bf16.mxu0 %v1118
    %5756 = vmatpush1.bf16.msra.mxu0 %v1117
    %5757 = vmatprep.subr.bf16.mxu0 0
    %5758 = vmatpush2.bf16.msra.mxu0 0
    %5759 = vmatprep.subr.bf16.mxu0 0
    %5760 = vmatpush2.bf16.msra.mxu0 0
    %5761 = vmatprep.subr.bf16.mxu0 0
    %5762 = vmatpush2.bf16.msra.mxu0 0
    %5763 = vmatprep.subr.bf16.mxu0 0
    %5764 = vmatpush2.bf16.msra.mxu0 0
    %5765 = vmatprep.subr.bf16.mxu0 0
    %5766 = vmatpush2.bf16.msra.mxu0 0
    %5767 = vmatprep.subr.bf16.mxu0 0
    %5768 = vmatpush2.bf16.msra.mxu0 0
    %5769 = vmatprep.subr.bf16.mxu0 0
    %5770 = vmatpush2.bf16.msra.mxu0 0
    %5771 = vmatprep.subr.bf16.mxu0 0
    %5772 = vmatpush2.bf16.msra.mxu0 0
    %5773 = vmatprep.mubr.bf16.mxu0 0
    %5774 = vmatmul.mubr.bf16.gmra.mxu0 %v5739
    %v5775 = vpop.f32.mrf.mxu0
    %v5776 = vadd.f32 %v995, %v5775
    %v5777 = vpop.f32.mrf.mxu0
    %v5778 = vadd.f32 %v999, %v5777
    %v5779 = vpop.f32.mrf.mxu0
    %v5780 = vpop.f32.mrf.mxu0
    %5781 = vdwg.mxu0
    %5782 = vmatprep.subr.bf16.mxu0 %v1148
    %5783 = vmatpush1.bf16.msra.mxu0 %v1147
    %5784 = vmatprep.subr.bf16.mxu0 %v1144
    %5785 = vmatpush1.bf16.msra.mxu0 %v1143
    %5786 = vmatprep.subr.bf16.mxu0 %v1140
    %5787 = vmatpush1.bf16.msra.mxu0 %v1139
    %5788 = vmatprep.subr.bf16.mxu0 %v1136
    %5789 = vmatpush1.bf16.msra.mxu0 %v1135
    %5790 = vmatprep.subr.bf16.mxu0 %v1132
    %5791 = vmatpush1.bf16.msra.mxu0 %v1131
    %5792 = vmatprep.subr.bf16.mxu0 %v1128
    %5793 = vmatpush1.bf16.msra.mxu0 %v1127
    %5794 = vmatprep.subr.bf16.mxu0 %v1124
    %5795 = vmatpush1.bf16.msra.mxu0 %v1123
    %5796 = vmatprep.subr.bf16.mxu0 %v1120
    %5797 = vmatpush1.bf16.msra.mxu0 %v1119
    %5798 = vmatprep.subr.bf16.mxu0 0
    %5799 = vmatpush2.bf16.msra.mxu0 0
    %5800 = vmatprep.subr.bf16.mxu0 0
    %5801 = vmatpush2.bf16.msra.mxu0 0
    %5802 = vmatprep.subr.bf16.mxu0 0
    %5803 = vmatpush2.bf16.msra.mxu0 0
    %5804 = vmatprep.subr.bf16.mxu0 0
    %5805 = vmatpush2.bf16.msra.mxu0 0
    %5806 = vmatprep.subr.bf16.mxu0 0
    %5807 = vmatpush2.bf16.msra.mxu0 0
    %5808 = vmatprep.subr.bf16.mxu0 0
    %5809 = vmatpush2.bf16.msra.mxu0 0
    %5810 = vmatprep.subr.bf16.mxu0 0
    %5811 = vmatpush2.bf16.msra.mxu0 0
    %5812 = vmatprep.subr.bf16.mxu0 0
    %5813 = vmatpush2.bf16.msra.mxu0 0
    %5814 = vmatprep.mubr.bf16.mxu0 0
    %5815 = vmatmul.mubr.bf16.gmra.mxu0 %v5739
    %v5816 = vpop.f32.mrf.mxu0
    %v5817 = vadd.f32 %v1003, %v5816
    %v5818 = vpop.f32.mrf.mxu0
    %v5819 = vadd.f32 %v1007, %v5818
    %v5820 = vpop.f32.mrf.mxu0
    %v5821 = vpop.f32.mrf.mxu0
    %5822 = vdwg.mxu0
    %v5823 = vpack.c.bf16 %v5565, %v5565
    %5824 = vmatprep.subr.bf16.mxu0 %v1388
    %5825 = vmatpush1.bf16.msra.mxu0 %v1387
    %5826 = vmatprep.subr.bf16.mxu0 %v1384
    %5827 = vmatpush1.bf16.msra.mxu0 %v1383
    %5828 = vmatprep.subr.bf16.mxu0 %v1380
    %5829 = vmatpush1.bf16.msra.mxu0 %v1379
    %5830 = vmatprep.subr.bf16.mxu0 %v1376
    %5831 = vmatpush1.bf16.msra.mxu0 %v1375
    %5832 = vmatprep.subr.bf16.mxu0 %v1372
    %5833 = vmatpush1.bf16.msra.mxu0 %v1371
    %5834 = vmatprep.subr.bf16.mxu0 %v1368
    %5835 = vmatpush1.bf16.msra.mxu0 %v1367
    %5836 = vmatprep.subr.bf16.mxu0 %v1364
    %5837 = vmatpush1.bf16.msra.mxu0 %v1363
    %5838 = vmatprep.subr.bf16.mxu0 %v1360
    %5839 = vmatpush1.bf16.msra.mxu0 %v1359
    %5840 = vmatprep.subr.bf16.mxu0 0
    %5841 = vmatpush2.bf16.msra.mxu0 0
    %5842 = vmatprep.subr.bf16.mxu0 0
    %5843 = vmatpush2.bf16.msra.mxu0 0
    %5844 = vmatprep.subr.bf16.mxu0 0
    %5845 = vmatpush2.bf16.msra.mxu0 0
    %5846 = vmatprep.subr.bf16.mxu0 0
    %5847 = vmatpush2.bf16.msra.mxu0 0
    %5848 = vmatprep.subr.bf16.mxu0 0
    %5849 = vmatpush2.bf16.msra.mxu0 0
    %5850 = vmatprep.subr.bf16.mxu0 0
    %5851 = vmatpush2.bf16.msra.mxu0 0
    %5852 = vmatprep.subr.bf16.mxu0 0
    %5853 = vmatpush2.bf16.msra.mxu0 0
    %5854 = vmatprep.subr.bf16.mxu0 0
    %5855 = vmatpush2.bf16.msra.mxu0 0
    %5856 = vmatprep.mubr.bf16.mxu0 0
    %5857 = vmatmul.mubr.bf16.gmra.mxu0 %v5823
    %v5858 = vpop.f32.mrf.mxu0
    %v5859 = vadd.f32 0.0, %v5858
    %v5860 = vpop.f32.mrf.mxu0
    %v5861 = vadd.f32 0.0, %v5860
    %v5862 = vpop.f32.mrf.mxu0
    %v5863 = vpop.f32.mrf.mxu0
    %5864 = vdwg.mxu0
    %5865 = vmatprep.subr.bf16.mxu0 %v1390
    %5866 = vmatpush1.bf16.msra.mxu0 %v1389
    %5867 = vmatprep.subr.bf16.mxu0 %v1386
    %5868 = vmatpush1.bf16.msra.mxu0 %v1385
    %5869 = vmatprep.subr.bf16.mxu0 %v1382
    %5870 = vmatpush1.bf16.msra.mxu0 %v1381
    %5871 = vmatprep.subr.bf16.mxu0 %v1378
    %5872 = vmatpush1.bf16.msra.mxu0 %v1377
    %5873 = vmatprep.subr.bf16.mxu0 %v1374
    %5874 = vmatpush1.bf16.msra.mxu0 %v1373
    %5875 = vmatprep.subr.bf16.mxu0 %v1370
    %5876 = vmatpush1.bf16.msra.mxu0 %v1369
    %5877 = vmatprep.subr.bf16.mxu0 %v1366
    %5878 = vmatpush1.bf16.msra.mxu0 %v1365
    %5879 = vmatprep.subr.bf16.mxu0 %v1362
    %5880 = vmatpush1.bf16.msra.mxu0 %v1361
    %5881 = vmatprep.subr.bf16.mxu0 0
    %5882 = vmatpush2.bf16.msra.mxu0 0
    %5883 = vmatprep.subr.bf16.mxu0 0
    %5884 = vmatpush2.bf16.msra.mxu0 0
    %5885 = vmatprep.subr.bf16.mxu0 0
    %5886 = vmatpush2.bf16.msra.mxu0 0
    %5887 = vmatprep.subr.bf16.mxu0 0
    %5888 = vmatpush2.bf16.msra.mxu0 0
    %5889 = vmatprep.subr.bf16.mxu0 0
    %5890 = vmatpush2.bf16.msra.mxu0 0
    %5891 = vmatprep.subr.bf16.mxu0 0
    %5892 = vmatpush2.bf16.msra.mxu0 0
    %5893 = vmatprep.subr.bf16.mxu0 0
    %5894 = vmatpush2.bf16.msra.mxu0 0
    %5895 = vmatprep.subr.bf16.mxu0 0
    %5896 = vmatpush2.bf16.msra.mxu0 0
    %5897 = vmatprep.mubr.bf16.mxu0 0
    %5898 = vmatmul.mubr.bf16.gmra.mxu0 %v5823
    %v5899 = vpop.f32.mrf.mxu0
    %v5900 = vadd.f32 0.0, %v5899
    %v5901 = vpop.f32.mrf.mxu0
    %v5902 = vadd.f32 0.0, %v5901
    %v5903 = vpop.f32.mrf.mxu0
    %v5904 = vpop.f32.mrf.mxu0
    %5905 = vdwg.mxu0
    %v5906 = vadd.f32 %v5776, %v5859
    %v5907 = vadd.f32 %v5778, %v5861
    %v5908 = vadd.f32 %v5817, %v5900
    %v5909 = vadd.f32 %v5819, %v5902
    %v5910 = vxor.u32 %v5906, 2147483648
    %v5911 = vmul.f32 %v5910, 1.442695
    %v5912 = vpow.pop %v5911
    %v5913 = vadd.f32 %v5912, 1.0
    %v5914 = vrcp.pop %v5913
    %v5915 = vmul.f32 1.0, %v5914
    %v5916 = vxor.u32 %v5907, 2147483648
    %v5917 = vmul.f32 %v5916, 1.442695
    %v5918 = vpow.pop %v5917
    %v5919 = vadd.f32 %v5918, 1.0
    %v5920 = vrcp.pop %v5919
    %v5921 = vmul.f32 1.0, %v5920
    %v5922 = vtanh.pop %v5908
    %v5923 = vxor.u32 %v5909, 2147483648
    %v5924 = vmul.f32 %v5923, 1.442695
    %v5925 = vpow.pop %v5924
    %v5926 = vadd.f32 %v5925, 1.0
    %v5927 = vrcp.pop %v5926
    %v5928 = vmul.f32 1.0, %v5927
    %v5929 = vmul.f32 %v5921, %v5563
    %v5930 = vmul.f32 %v5915, %v5922
    %v5931 = vadd.f32 %v5929, %v5930
    %v5932 = vtanh.pop %v5931
    %v5933 = vmul.f32 %v5928, %v5932
    %5934 = vmatprep.subr.bf16.mxu0 %v800
    %5935 = vmatpush1.bf16.msra.mxu0 %v799
    %5936 = vmatprep.subr.bf16.mxu0 %v796
    %5937 = vmatpush1.bf16.msra.mxu0 %v795
    %5938 = vmatprep.subr.bf16.mxu0 %v792
    %5939 = vmatpush1.bf16.msra.mxu0 %v791
    %5940 = vmatprep.subr.bf16.mxu0 %v788
    %5941 = vmatpush1.bf16.msra.mxu0 %v787
    %5942 = vmatprep.subr.bf16.mxu0 %v784
    %5943 = vmatpush1.bf16.msra.mxu0 %v783
    %5944 = vmatprep.subr.bf16.mxu0 %v780
    %5945 = vmatpush1.bf16.msra.mxu0 %v779
    %5946 = vmatprep.subr.bf16.mxu0 %v776
    %5947 = vmatpush1.bf16.msra.mxu0 %v775
    %5948 = vmatprep.subr.bf16.mxu0 %v772
    %5949 = vmatpush1.bf16.msra.mxu0 %v771
    %5950 = vmatprep.subr.bf16.mxu0 0
    %5951 = vmatpush2.bf16.msra.mxu0 0
    %5952 = vmatprep.subr.bf16.mxu0 0
    %5953 = vmatpush2.bf16.msra.mxu0 0
    %5954 = vmatprep.subr.bf16.mxu0 0
    %5955 = vmatpush2.bf16.msra.mxu0 0
    %5956 = vmatprep.subr.bf16.mxu0 0
    %5957 = vmatpush2.bf16.msra.mxu0 0
    %5958 = vmatprep.subr.bf16.mxu0 0
    %5959 = vmatpush2.bf16.msra.mxu0 0
    %5960 = vmatprep.subr.bf16.mxu0 0
    %5961 = vmatpush2.bf16.msra.mxu0 0
    %5962 = vmatprep.subr.bf16.mxu0 0
    %5963 = vmatpush2.bf16.msra.mxu0 0
    %5964 = vmatprep.subr.bf16.mxu0 0
    %5965 = vmatpush2.bf16.msra.mxu0 0
    %5966 = vmatprep.mubr.bf16.mxu0 0
    %5967 = vmatmul.mubr.bf16.gmra.mxu0 %v5739
    %v5968 = vpop.f32.mrf.mxu0
    %v5969 = vadd.f32 0.0, %v5968
    %v5970 = vpop.f32.mrf.mxu0
    %v5971 = vadd.f32 0.0, %v5970
    %v5972 = vpop.f32.mrf.mxu0
    %v5973 = vpop.f32.mrf.mxu0
    %5974 = vdwg.mxu0
    %5975 = vmatprep.subr.bf16.mxu0 %v802
    %5976 = vmatpush1.bf16.msra.mxu0 %v801
    %5977 = vmatprep.subr.bf16.mxu0 %v798
    %5978 = vmatpush1.bf16.msra.mxu0 %v797
    %5979 = vmatprep.subr.bf16.mxu0 %v794
    %5980 = vmatpush1.bf16.msra.mxu0 %v793
    %5981 = vmatprep.subr.bf16.mxu0 %v790
    %5982 = vmatpush1.bf16.msra.mxu0 %v789
    %5983 = vmatprep.subr.bf16.mxu0 %v786
    %5984 = vmatpush1.bf16.msra.mxu0 %v785
    %5985 = vmatprep.subr.bf16.mxu0 %v782
    %5986 = vmatpush1.bf16.msra.mxu0 %v781
    %5987 = vmatprep.subr.bf16.mxu0 %v778
    %5988 = vmatpush1.bf16.msra.mxu0 %v777
    %5989 = vmatprep.subr.bf16.mxu0 %v774
    %5990 = vmatpush1.bf16.msra.mxu0 %v773
    %5991 = vmatprep.subr.bf16.mxu0 0
    %5992 = vmatpush2.bf16.msra.mxu0 0
    %5993 = vmatprep.subr.bf16.mxu0 0
    %5994 = vmatpush2.bf16.msra.mxu0 0
    %5995 = vmatprep.subr.bf16.mxu0 0
    %5996 = vmatpush2.bf16.msra.mxu0 0
    %5997 = vmatprep.subr.bf16.mxu0 0
    %5998 = vmatpush2.bf16.msra.mxu0 0
    %5999 = vmatprep.subr.bf16.mxu0 0
    %6000 = vmatpush2.bf16.msra.mxu0 0
    %6001 = vmatprep.subr.bf16.mxu0 0
    %6002 = vmatpush2.bf16.msra.mxu0 0
    %6003 = vmatprep.subr.bf16.mxu0 0
    %6004 = vmatpush2.bf16.msra.mxu0 0
    %6005 = vmatprep.subr.bf16.mxu0 0
    %6006 = vmatpush2.bf16.msra.mxu0 0
    %6007 = vmatprep.mubr.bf16.mxu0 0
    %6008 = vmatmul.mubr.bf16.gmra.mxu0 %v5739
    %v6009 = vpop.f32.mrf.mxu0
    %v6010 = vadd.f32 0.0, %v6009
    %v6011 = vpop.f32.mrf.mxu0
    %v6012 = vadd.f32 0.0, %v6011
    %v6013 = vpop.f32.mrf.mxu0
    %v6014 = vpop.f32.mrf.mxu0
    %6015 = vdwg.mxu0
    %v6020 = vrot.slane %v5969, 3
    %v6021 = vrot.slane %v5971, 3
    %v6022 = vrot.slane %v6010, 3
    %v6023 = vrot.slane %v6012, 3
    %v6024 = vrot.slane %v5969, 4
    %v6025 = vrot.slane %v5971, 4
    %v6026 = vrot.slane %v6010, 4
    %v6027 = vrot.slane %v6012, 4
    %v6036 = vadd.f32 %v663, %v6020
    %v6037 = vadd.f32 %v664, %v6021
    %v6038 = vadd.f32 %v665, %v6022
    %v6039 = vadd.f32 %v666, %v6023
    %v6040 = vadd.f32 %v671, %v6024
    %v6041 = vadd.f32 %v672, %v6025
    %v6042 = vadd.f32 %v673, %v6026
    %v6043 = vadd.f32 %v674, %v6027
    %v6044 = vxor.u32 %v6036, 2147483648
    %v6045 = vxor.u32 %v6040, 2147483648
    %v6046 = vmul.f32 %v6044, 1.442695
    %v6047 = vpow.pop %v6046
    %v6048 = vmul.f32 %v6045, 1.442695
    %v6049 = vpow.pop %v6048
    %v6050 = vadd.f32 %v6047, 1.0
    %v6051 = vadd.f32 %v6049, 1.0
    %v6052 = vrcp.pop %v6050
    %v6053 = vmul.f32 1.0, %v6052
    %v6054 = vrcp.pop %v6051
    %v6055 = vmul.f32 1.0, %v6054
    %v6056 = vxor.u32 %v6037, 2147483648
    %v6057 = vxor.u32 %v6041, 2147483648
    %v6058 = vmul.f32 %v6056, 1.442695
    %v6059 = vpow.pop %v6058
    %v6060 = vmul.f32 %v6057, 1.442695
    %v6061 = vpow.pop %v6060
    %v6062 = vadd.f32 %v6059, 1.0
    %v6063 = vadd.f32 %v6061, 1.0
    %v6064 = vrcp.pop %v6062
    %v6065 = vmul.f32 1.0, %v6064
    %v6066 = vrcp.pop %v6063
    %v6067 = vmul.f32 1.0, %v6066
    %v6068 = vtanh.pop %v6038
    %v6069 = vtanh.pop %v6042
    %v6070 = vxor.u32 %v6039, 2147483648
    %v6071 = vxor.u32 %v6043, 2147483648
    %v6072 = vmul.f32 %v6070, 1.442695
    %v6073 = vpow.pop %v6072
    %v6074 = vmul.f32 %v6071, 1.442695
    %v6075 = vpow.pop %v6074
    %v6076 = vadd.f32 %v6073, 1.0
    %v6077 = vadd.f32 %v6075, 1.0
    %v6078 = vrcp.pop %v6076
    %v6079 = vmul.f32 1.0, %v6078
    %v6080 = vrcp.pop %v6077
    %v6081 = vmul.f32 1.0, %v6080
    %v6084 = vrot.slane %v5724, 7
    %v6085 = vrot.slane %v5725, 7
    %v6088 = vmul.f32 %v6065, %v6084
    %v6089 = vmul.f32 %v6067, %v6085
    %v6090 = vmul.f32 %v6053, %v6068
    %v6091 = vmul.f32 %v6055, %v6069
    %v6092 = vadd.f32 %v6088, %v6090
    %v6093 = vadd.f32 %v6089, %v6091
    %v6094 = vtanh.pop %v6092
    %v6095 = vtanh.pop %v6093
    %v6096 = vmul.f32 %v6079, %v6094
    %v6097 = vmul.f32 %v6081, %v6095
    %v6098 = vpack.c.bf16 %v6096, %v6096
    %v6099 = vpack.c.bf16 %v6097, %v6097
    %v6102 = vunpack.c.l.b16 %v6098
    %v6103 = vunpack.c.l.b16 %v6099
    %v6104 = vrot.slane %v6102, 5
    %v6105 = vrot.slane %v6103, 4
    %v6106 = vsel %vm1017, %v6105, %v6104
    %v6107 = vpack.c.b16 %v6106, %v6106
    %6109 = vmatprep.subr.bf16.mxu0 %v1146
    %6110 = vmatpush1.bf16.msra.mxu0 %v1145
    %6111 = vmatprep.subr.bf16.mxu0 %v1142
    %6112 = vmatpush1.bf16.msra.mxu0 %v1141
    %6113 = vmatprep.subr.bf16.mxu0 %v1138
    %6114 = vmatpush1.bf16.msra.mxu0 %v1137
    %6115 = vmatprep.subr.bf16.mxu0 %v1134
    %6116 = vmatpush1.bf16.msra.mxu0 %v1133
    %6117 = vmatprep.subr.bf16.mxu0 %v1130
    %6118 = vmatpush1.bf16.msra.mxu0 %v1129
    %6119 = vmatprep.subr.bf16.mxu0 %v1126
    %6120 = vmatpush1.bf16.msra.mxu0 %v1125
    %6121 = vmatprep.subr.bf16.mxu0 %v1122
    %6122 = vmatpush1.bf16.msra.mxu0 %v1121
    %6123 = vmatprep.subr.bf16.mxu0 %v1118
    %6124 = vmatpush1.bf16.msra.mxu0 %v1117
    %6125 = vmatprep.subr.bf16.mxu0 0
    %6126 = vmatpush2.bf16.msra.mxu0 0
    %6127 = vmatprep.subr.bf16.mxu0 0
    %6128 = vmatpush2.bf16.msra.mxu0 0
    %6129 = vmatprep.subr.bf16.mxu0 0
    %6130 = vmatpush2.bf16.msra.mxu0 0
    %6131 = vmatprep.subr.bf16.mxu0 0
    %6132 = vmatpush2.bf16.msra.mxu0 0
    %6133 = vmatprep.subr.bf16.mxu0 0
    %6134 = vmatpush2.bf16.msra.mxu0 0
    %6135 = vmatprep.subr.bf16.mxu0 0
    %6136 = vmatpush2.bf16.msra.mxu0 0
    %6137 = vmatprep.subr.bf16.mxu0 0
    %6138 = vmatpush2.bf16.msra.mxu0 0
    %6139 = vmatprep.subr.bf16.mxu0 0
    %6140 = vmatpush2.bf16.msra.mxu0 0
    %6141 = vmatprep.mubr.bf16.mxu0 0
    %6142 = vmatmul.mubr.bf16.gmra.mxu0 %v6107
    %v6143 = vpop.f32.mrf.mxu0
    %v6144 = vadd.f32 %v995, %v6143
    %v6145 = vpop.f32.mrf.mxu0
    %v6146 = vadd.f32 %v999, %v6145
    %v6147 = vpop.f32.mrf.mxu0
    %v6148 = vpop.f32.mrf.mxu0
    %6149 = vdwg.mxu0
    %6150 = vmatprep.subr.bf16.mxu0 %v1148
    %6151 = vmatpush1.bf16.msra.mxu0 %v1147
    %6152 = vmatprep.subr.bf16.mxu0 %v1144
    %6153 = vmatpush1.bf16.msra.mxu0 %v1143
    %6154 = vmatprep.subr.bf16.mxu0 %v1140
    %6155 = vmatpush1.bf16.msra.mxu0 %v1139
    %6156 = vmatprep.subr.bf16.mxu0 %v1136
    %6157 = vmatpush1.bf16.msra.mxu0 %v1135
    %6158 = vmatprep.subr.bf16.mxu0 %v1132
    %6159 = vmatpush1.bf16.msra.mxu0 %v1131
    %6160 = vmatprep.subr.bf16.mxu0 %v1128
    %6161 = vmatpush1.bf16.msra.mxu0 %v1127
    %6162 = vmatprep.subr.bf16.mxu0 %v1124
    %6163 = vmatpush1.bf16.msra.mxu0 %v1123
    %6164 = vmatprep.subr.bf16.mxu0 %v1120
    %6165 = vmatpush1.bf16.msra.mxu0 %v1119
    %6166 = vmatprep.subr.bf16.mxu0 0
    %6167 = vmatpush2.bf16.msra.mxu0 0
    %6168 = vmatprep.subr.bf16.mxu0 0
    %6169 = vmatpush2.bf16.msra.mxu0 0
    %6170 = vmatprep.subr.bf16.mxu0 0
    %6171 = vmatpush2.bf16.msra.mxu0 0
    %6172 = vmatprep.subr.bf16.mxu0 0
    %6173 = vmatpush2.bf16.msra.mxu0 0
    %6174 = vmatprep.subr.bf16.mxu0 0
    %6175 = vmatpush2.bf16.msra.mxu0 0
    %6176 = vmatprep.subr.bf16.mxu0 0
    %6177 = vmatpush2.bf16.msra.mxu0 0
    %6178 = vmatprep.subr.bf16.mxu0 0
    %6179 = vmatpush2.bf16.msra.mxu0 0
    %6180 = vmatprep.subr.bf16.mxu0 0
    %6181 = vmatpush2.bf16.msra.mxu0 0
    %6182 = vmatprep.mubr.bf16.mxu0 0
    %6183 = vmatmul.mubr.bf16.gmra.mxu0 %v6107
    %v6184 = vpop.f32.mrf.mxu0
    %v6185 = vadd.f32 %v1003, %v6184
    %v6186 = vpop.f32.mrf.mxu0
    %v6187 = vadd.f32 %v1007, %v6186
    %v6188 = vpop.f32.mrf.mxu0
    %v6189 = vpop.f32.mrf.mxu0
    %6190 = vdwg.mxu0
    %v6191 = vpack.c.bf16 %v5933, %v5933
    %6192 = vmatprep.subr.bf16.mxu0 %v1388
    %6193 = vmatpush1.bf16.msra.mxu0 %v1387
    %6194 = vmatprep.subr.bf16.mxu0 %v1384
    %6195 = vmatpush1.bf16.msra.mxu0 %v1383
    %6196 = vmatprep.subr.bf16.mxu0 %v1380
    %6197 = vmatpush1.bf16.msra.mxu0 %v1379
    %6198 = vmatprep.subr.bf16.mxu0 %v1376
    %6199 = vmatpush1.bf16.msra.mxu0 %v1375
    %6200 = vmatprep.subr.bf16.mxu0 %v1372
    %6201 = vmatpush1.bf16.msra.mxu0 %v1371
    %6202 = vmatprep.subr.bf16.mxu0 %v1368
    %6203 = vmatpush1.bf16.msra.mxu0 %v1367
    %6204 = vmatprep.subr.bf16.mxu0 %v1364
    %6205 = vmatpush1.bf16.msra.mxu0 %v1363
    %6206 = vmatprep.subr.bf16.mxu0 %v1360
    %6207 = vmatpush1.bf16.msra.mxu0 %v1359
    %6208 = vmatprep.subr.bf16.mxu0 0
    %6209 = vmatpush2.bf16.msra.mxu0 0
    %6210 = vmatprep.subr.bf16.mxu0 0
    %6211 = vmatpush2.bf16.msra.mxu0 0
    %6212 = vmatprep.subr.bf16.mxu0 0
    %6213 = vmatpush2.bf16.msra.mxu0 0
    %6214 = vmatprep.subr.bf16.mxu0 0
    %6215 = vmatpush2.bf16.msra.mxu0 0
    %6216 = vmatprep.subr.bf16.mxu0 0
    %6217 = vmatpush2.bf16.msra.mxu0 0
    %6218 = vmatprep.subr.bf16.mxu0 0
    %6219 = vmatpush2.bf16.msra.mxu0 0
    %6220 = vmatprep.subr.bf16.mxu0 0
    %6221 = vmatpush2.bf16.msra.mxu0 0
    %6222 = vmatprep.subr.bf16.mxu0 0
    %6223 = vmatpush2.bf16.msra.mxu0 0
    %6224 = vmatprep.mubr.bf16.mxu0 0
    %6225 = vmatmul.mubr.bf16.gmra.mxu0 %v6191
    %v6226 = vpop.f32.mrf.mxu0
    %v6227 = vadd.f32 0.0, %v6226
    %v6228 = vpop.f32.mrf.mxu0
    %v6229 = vadd.f32 0.0, %v6228
    %v6230 = vpop.f32.mrf.mxu0
    %v6231 = vpop.f32.mrf.mxu0
    %6232 = vdwg.mxu0
    %6233 = vmatprep.subr.bf16.mxu0 %v1390
    %6234 = vmatpush1.bf16.msra.mxu0 %v1389
    %6235 = vmatprep.subr.bf16.mxu0 %v1386
    %6236 = vmatpush1.bf16.msra.mxu0 %v1385
    %6237 = vmatprep.subr.bf16.mxu0 %v1382
    %6238 = vmatpush1.bf16.msra.mxu0 %v1381
    %6239 = vmatprep.subr.bf16.mxu0 %v1378
    %6240 = vmatpush1.bf16.msra.mxu0 %v1377
    %6241 = vmatprep.subr.bf16.mxu0 %v1374
    %6242 = vmatpush1.bf16.msra.mxu0 %v1373
    %6243 = vmatprep.subr.bf16.mxu0 %v1370
    %6244 = vmatpush1.bf16.msra.mxu0 %v1369
    %6245 = vmatprep.subr.bf16.mxu0 %v1366
    %6246 = vmatpush1.bf16.msra.mxu0 %v1365
    %6247 = vmatprep.subr.bf16.mxu0 %v1362
    %6248 = vmatpush1.bf16.msra.mxu0 %v1361
    %6249 = vmatprep.subr.bf16.mxu0 0
    %6250 = vmatpush2.bf16.msra.mxu0 0
    %6251 = vmatprep.subr.bf16.mxu0 0
    %6252 = vmatpush2.bf16.msra.mxu0 0
    %6253 = vmatprep.subr.bf16.mxu0 0
    %6254 = vmatpush2.bf16.msra.mxu0 0
    %6255 = vmatprep.subr.bf16.mxu0 0
    %6256 = vmatpush2.bf16.msra.mxu0 0
    %6257 = vmatprep.subr.bf16.mxu0 0
    %6258 = vmatpush2.bf16.msra.mxu0 0
    %6259 = vmatprep.subr.bf16.mxu0 0
    %6260 = vmatpush2.bf16.msra.mxu0 0
    %6261 = vmatprep.subr.bf16.mxu0 0
    %6262 = vmatpush2.bf16.msra.mxu0 0
    %6263 = vmatprep.subr.bf16.mxu0 0
    %6264 = vmatpush2.bf16.msra.mxu0 0
    %6265 = vmatprep.mubr.bf16.mxu0 0
    %6266 = vmatmul.mubr.bf16.gmra.mxu0 %v6191
    %v6267 = vpop.f32.mrf.mxu0
    %v6268 = vadd.f32 0.0, %v6267
    %v6269 = vpop.f32.mrf.mxu0
    %v6270 = vadd.f32 0.0, %v6269
    %v6271 = vpop.f32.mrf.mxu0
    %v6272 = vpop.f32.mrf.mxu0
    %6273 = vdwg.mxu0
    %v6274 = vadd.f32 %v6144, %v6227
    %v6275 = vadd.f32 %v6146, %v6229
    %v6276 = vadd.f32 %v6185, %v6268
    %v6277 = vadd.f32 %v6187, %v6270
    %v6278 = vxor.u32 %v6274, 2147483648
    %v6279 = vmul.f32 %v6278, 1.442695
    %v6280 = vpow.pop %v6279
    %v6281 = vadd.f32 %v6280, 1.0
    %v6282 = vrcp.pop %v6281
    %v6283 = vmul.f32 1.0, %v6282
    %v6284 = vxor.u32 %v6275, 2147483648
    %v6285 = vmul.f32 %v6284, 1.442695
    %v6286 = vpow.pop %v6285
    %v6287 = vadd.f32 %v6286, 1.0
    %v6288 = vrcp.pop %v6287
    %v6289 = vmul.f32 1.0, %v6288
    %v6290 = vtanh.pop %v6276
    %v6291 = vxor.u32 %v6277, 2147483648
    %v6292 = vmul.f32 %v6291, 1.442695
    %v6293 = vpow.pop %v6292
    %v6294 = vadd.f32 %v6293, 1.0
    %v6295 = vrcp.pop %v6294
    %v6296 = vmul.f32 1.0, %v6295
    %v6297 = vmul.f32 %v6289, %v5931
    %v6298 = vmul.f32 %v6283, %v6290
    %v6299 = vadd.f32 %v6297, %v6298
    %v6300 = vtanh.pop %v6299
    %v6301 = vmul.f32 %v6296, %v6300
    %6302 = vmatprep.subr.bf16.mxu0 %v800
    %6303 = vmatpush1.bf16.msra.mxu0 %v799
    %6304 = vmatprep.subr.bf16.mxu0 %v796
    %6305 = vmatpush1.bf16.msra.mxu0 %v795
    %6306 = vmatprep.subr.bf16.mxu0 %v792
    %6307 = vmatpush1.bf16.msra.mxu0 %v791
    %6308 = vmatprep.subr.bf16.mxu0 %v788
    %6309 = vmatpush1.bf16.msra.mxu0 %v787
    %6310 = vmatprep.subr.bf16.mxu0 %v784
    %6311 = vmatpush1.bf16.msra.mxu0 %v783
    %6312 = vmatprep.subr.bf16.mxu0 %v780
    %6313 = vmatpush1.bf16.msra.mxu0 %v779
    %6314 = vmatprep.subr.bf16.mxu0 %v776
    %6315 = vmatpush1.bf16.msra.mxu0 %v775
    %6316 = vmatprep.subr.bf16.mxu0 %v772
    %6317 = vmatpush1.bf16.msra.mxu0 %v771
    %6318 = vmatprep.subr.bf16.mxu0 0
    %6319 = vmatpush2.bf16.msra.mxu0 0
    %6320 = vmatprep.subr.bf16.mxu0 0
    %6321 = vmatpush2.bf16.msra.mxu0 0
    %6322 = vmatprep.subr.bf16.mxu0 0
    %6323 = vmatpush2.bf16.msra.mxu0 0
    %6324 = vmatprep.subr.bf16.mxu0 0
    %6325 = vmatpush2.bf16.msra.mxu0 0
    %6326 = vmatprep.subr.bf16.mxu0 0
    %6327 = vmatpush2.bf16.msra.mxu0 0
    %6328 = vmatprep.subr.bf16.mxu0 0
    %6329 = vmatpush2.bf16.msra.mxu0 0
    %6330 = vmatprep.subr.bf16.mxu0 0
    %6331 = vmatpush2.bf16.msra.mxu0 0
    %6332 = vmatprep.subr.bf16.mxu0 0
    %6333 = vmatpush2.bf16.msra.mxu0 0
    %6334 = vmatprep.mubr.bf16.mxu0 0
    %6335 = vmatmul.mubr.bf16.gmra.mxu0 %v6107
    %v6336 = vpop.f32.mrf.mxu0
    %v6337 = vadd.f32 0.0, %v6336
    %v6338 = vpop.f32.mrf.mxu0
    %v6339 = vadd.f32 0.0, %v6338
    %v6340 = vpop.f32.mrf.mxu0
    %v6341 = vpop.f32.mrf.mxu0
    %6342 = vdwg.mxu0
    %6343 = vmatprep.subr.bf16.mxu0 %v802
    %6344 = vmatpush1.bf16.msra.mxu0 %v801
    %6345 = vmatprep.subr.bf16.mxu0 %v798
    %6346 = vmatpush1.bf16.msra.mxu0 %v797
    %6347 = vmatprep.subr.bf16.mxu0 %v794
    %6348 = vmatpush1.bf16.msra.mxu0 %v793
    %6349 = vmatprep.subr.bf16.mxu0 %v790
    %6350 = vmatpush1.bf16.msra.mxu0 %v789
    %6351 = vmatprep.subr.bf16.mxu0 %v786
    %6352 = vmatpush1.bf16.msra.mxu0 %v785
    %6353 = vmatprep.subr.bf16.mxu0 %v782
    %6354 = vmatpush1.bf16.msra.mxu0 %v781
    %6355 = vmatprep.subr.bf16.mxu0 %v778
    %6356 = vmatpush1.bf16.msra.mxu0 %v777
    %6357 = vmatprep.subr.bf16.mxu0 %v774
    %6358 = vmatpush1.bf16.msra.mxu0 %v773
    %6359 = vmatprep.subr.bf16.mxu0 0
    %6360 = vmatpush2.bf16.msra.mxu0 0
    %6361 = vmatprep.subr.bf16.mxu0 0
    %6362 = vmatpush2.bf16.msra.mxu0 0
    %6363 = vmatprep.subr.bf16.mxu0 0
    %6364 = vmatpush2.bf16.msra.mxu0 0
    %6365 = vmatprep.subr.bf16.mxu0 0
    %6366 = vmatpush2.bf16.msra.mxu0 0
    %6367 = vmatprep.subr.bf16.mxu0 0
    %6368 = vmatpush2.bf16.msra.mxu0 0
    %6369 = vmatprep.subr.bf16.mxu0 0
    %6370 = vmatpush2.bf16.msra.mxu0 0
    %6371 = vmatprep.subr.bf16.mxu0 0
    %6372 = vmatpush2.bf16.msra.mxu0 0
    %6373 = vmatprep.subr.bf16.mxu0 0
    %6374 = vmatpush2.bf16.msra.mxu0 0
    %6375 = vmatprep.mubr.bf16.mxu0 0
    %6376 = vmatmul.mubr.bf16.gmra.mxu0 %v6107
    %v6377 = vpop.f32.mrf.mxu0
    %v6378 = vadd.f32 0.0, %v6377
    %v6379 = vpop.f32.mrf.mxu0
    %v6380 = vadd.f32 0.0, %v6379
    %v6381 = vpop.f32.mrf.mxu0
    %v6382 = vpop.f32.mrf.mxu0
    %6383 = vdwg.mxu0
    %v6388 = vrot.slane %v6337, 2
    %v6389 = vrot.slane %v6339, 2
    %v6390 = vrot.slane %v6378, 2
    %v6391 = vrot.slane %v6380, 2
    %v6392 = vrot.slane %v6337, 3
    %v6393 = vrot.slane %v6339, 3
    %v6394 = vrot.slane %v6378, 3
    %v6395 = vrot.slane %v6380, 3
    %v6404 = vadd.f32 %v663, %v6388
    %v6405 = vadd.f32 %v664, %v6389
    %v6406 = vadd.f32 %v665, %v6390
    %v6407 = vadd.f32 %v666, %v6391
    %v6408 = vadd.f32 %v671, %v6392
    %v6409 = vadd.f32 %v672, %v6393
    %v6410 = vadd.f32 %v673, %v6394
    %v6411 = vadd.f32 %v674, %v6395
    %v6412 = vxor.u32 %v6404, 2147483648
    %v6413 = vxor.u32 %v6408, 2147483648
    %v6414 = vmul.f32 %v6412, 1.442695
    %v6415 = vpow.pop %v6414
    %v6416 = vmul.f32 %v6413, 1.442695
    %v6417 = vpow.pop %v6416
    %v6418 = vadd.f32 %v6415, 1.0
    %v6419 = vadd.f32 %v6417, 1.0
    %v6420 = vrcp.pop %v6418
    %v6421 = vmul.f32 1.0, %v6420
    %v6422 = vrcp.pop %v6419
    %v6423 = vmul.f32 1.0, %v6422
    %v6424 = vxor.u32 %v6405, 2147483648
    %v6425 = vxor.u32 %v6409, 2147483648
    %v6426 = vmul.f32 %v6424, 1.442695
    %v6427 = vpow.pop %v6426
    %v6428 = vmul.f32 %v6425, 1.442695
    %v6429 = vpow.pop %v6428
    %v6430 = vadd.f32 %v6427, 1.0
    %v6431 = vadd.f32 %v6429, 1.0
    %v6432 = vrcp.pop %v6430
    %v6433 = vmul.f32 1.0, %v6432
    %v6434 = vrcp.pop %v6431
    %v6435 = vmul.f32 1.0, %v6434
    %v6436 = vtanh.pop %v6406
    %v6437 = vtanh.pop %v6410
    %v6438 = vxor.u32 %v6407, 2147483648
    %v6439 = vxor.u32 %v6411, 2147483648
    %v6440 = vmul.f32 %v6438, 1.442695
    %v6441 = vpow.pop %v6440
    %v6442 = vmul.f32 %v6439, 1.442695
    %v6443 = vpow.pop %v6442
    %v6444 = vadd.f32 %v6441, 1.0
    %v6445 = vadd.f32 %v6443, 1.0
    %v6446 = vrcp.pop %v6444
    %v6447 = vmul.f32 1.0, %v6446
    %v6448 = vrcp.pop %v6445
    %v6449 = vmul.f32 1.0, %v6448
    %v6452 = vrot.slane %v6092, 7
    %v6453 = vrot.slane %v6093, 7
    %v6456 = vmul.f32 %v6433, %v6452
    %v6457 = vmul.f32 %v6435, %v6453
    %v6458 = vmul.f32 %v6421, %v6436
    %v6459 = vmul.f32 %v6423, %v6437
    %v6460 = vadd.f32 %v6456, %v6458
    %v6461 = vadd.f32 %v6457, %v6459
    %v6462 = vtanh.pop %v6460
    %v6463 = vtanh.pop %v6461
    %v6464 = vmul.f32 %v6447, %v6462
    %v6465 = vmul.f32 %v6449, %v6463
    %v6466 = vpack.c.bf16 %v6464, %v6464
    %v6467 = vpack.c.bf16 %v6465, %v6465
    %v6470 = vunpack.c.l.b16 %v6466
    %v6471 = vunpack.c.l.b16 %v6467
    %v6472 = vrot.slane %v6470, 6
    %v6473 = vrot.slane %v6471, 5
    %v6474 = vsel %vm1017, %v6473, %v6472
    %v6475 = vpack.c.b16 %v6474, %v6474
    %6477 = vmatprep.subr.bf16.mxu0 %v1146
    %6478 = vmatpush1.bf16.msra.mxu0 %v1145
    %6479 = vmatprep.subr.bf16.mxu0 %v1142
    %6480 = vmatpush1.bf16.msra.mxu0 %v1141
    %6481 = vmatprep.subr.bf16.mxu0 %v1138
    %6482 = vmatpush1.bf16.msra.mxu0 %v1137
    %6483 = vmatprep.subr.bf16.mxu0 %v1134
    %6484 = vmatpush1.bf16.msra.mxu0 %v1133
    %6485 = vmatprep.subr.bf16.mxu0 %v1130
    %6486 = vmatpush1.bf16.msra.mxu0 %v1129
    %6487 = vmatprep.subr.bf16.mxu0 %v1126
    %6488 = vmatpush1.bf16.msra.mxu0 %v1125
    %6489 = vmatprep.subr.bf16.mxu0 %v1122
    %6490 = vmatpush1.bf16.msra.mxu0 %v1121
    %6491 = vmatprep.subr.bf16.mxu0 %v1118
    %6492 = vmatpush1.bf16.msra.mxu0 %v1117
    %6493 = vmatprep.subr.bf16.mxu0 0
    %6494 = vmatpush2.bf16.msra.mxu0 0
    %6495 = vmatprep.subr.bf16.mxu0 0
    %6496 = vmatpush2.bf16.msra.mxu0 0
    %6497 = vmatprep.subr.bf16.mxu0 0
    %6498 = vmatpush2.bf16.msra.mxu0 0
    %6499 = vmatprep.subr.bf16.mxu0 0
    %6500 = vmatpush2.bf16.msra.mxu0 0
    %6501 = vmatprep.subr.bf16.mxu0 0
    %6502 = vmatpush2.bf16.msra.mxu0 0
    %6503 = vmatprep.subr.bf16.mxu0 0
    %6504 = vmatpush2.bf16.msra.mxu0 0
    %6505 = vmatprep.subr.bf16.mxu0 0
    %6506 = vmatpush2.bf16.msra.mxu0 0
    %6507 = vmatprep.subr.bf16.mxu0 0
    %6508 = vmatpush2.bf16.msra.mxu0 0
    %6509 = vmatprep.mubr.bf16.mxu0 0
    %6510 = vmatmul.mubr.bf16.gmra.mxu0 %v6475
    %v6511 = vpop.f32.mrf.mxu0
    %v6512 = vadd.f32 %v995, %v6511
    %v6513 = vpop.f32.mrf.mxu0
    %v6514 = vadd.f32 %v999, %v6513
    %v6515 = vpop.f32.mrf.mxu0
    %v6516 = vpop.f32.mrf.mxu0
    %6517 = vdwg.mxu0
    %6518 = vmatprep.subr.bf16.mxu0 %v1148
    %6519 = vmatpush1.bf16.msra.mxu0 %v1147
    %6520 = vmatprep.subr.bf16.mxu0 %v1144
    %6521 = vmatpush1.bf16.msra.mxu0 %v1143
    %6522 = vmatprep.subr.bf16.mxu0 %v1140
    %6523 = vmatpush1.bf16.msra.mxu0 %v1139
    %6524 = vmatprep.subr.bf16.mxu0 %v1136
    %6525 = vmatpush1.bf16.msra.mxu0 %v1135
    %6526 = vmatprep.subr.bf16.mxu0 %v1132
    %6527 = vmatpush1.bf16.msra.mxu0 %v1131
    %6528 = vmatprep.subr.bf16.mxu0 %v1128
    %6529 = vmatpush1.bf16.msra.mxu0 %v1127
    %6530 = vmatprep.subr.bf16.mxu0 %v1124
    %6531 = vmatpush1.bf16.msra.mxu0 %v1123
    %6532 = vmatprep.subr.bf16.mxu0 %v1120
    %6533 = vmatpush1.bf16.msra.mxu0 %v1119
    %6534 = vmatprep.subr.bf16.mxu0 0
    %6535 = vmatpush2.bf16.msra.mxu0 0
    %6536 = vmatprep.subr.bf16.mxu0 0
    %6537 = vmatpush2.bf16.msra.mxu0 0
    %6538 = vmatprep.subr.bf16.mxu0 0
    %6539 = vmatpush2.bf16.msra.mxu0 0
    %6540 = vmatprep.subr.bf16.mxu0 0
    %6541 = vmatpush2.bf16.msra.mxu0 0
    %6542 = vmatprep.subr.bf16.mxu0 0
    %6543 = vmatpush2.bf16.msra.mxu0 0
    %6544 = vmatprep.subr.bf16.mxu0 0
    %6545 = vmatpush2.bf16.msra.mxu0 0
    %6546 = vmatprep.subr.bf16.mxu0 0
    %6547 = vmatpush2.bf16.msra.mxu0 0
    %6548 = vmatprep.subr.bf16.mxu0 0
    %6549 = vmatpush2.bf16.msra.mxu0 0
    %6550 = vmatprep.mubr.bf16.mxu0 0
    %6551 = vmatmul.mubr.bf16.gmra.mxu0 %v6475
    %v6552 = vpop.f32.mrf.mxu0
    %v6553 = vadd.f32 %v1003, %v6552
    %v6554 = vpop.f32.mrf.mxu0
    %v6555 = vadd.f32 %v1007, %v6554
    %v6556 = vpop.f32.mrf.mxu0
    %v6557 = vpop.f32.mrf.mxu0
    %6558 = vdwg.mxu0
    %v6559 = vpack.c.bf16 %v6301, %v6301
    %6560 = vmatprep.subr.bf16.mxu0 %v1388
    %6561 = vmatpush1.bf16.msra.mxu0 %v1387
    %6562 = vmatprep.subr.bf16.mxu0 %v1384
    %6563 = vmatpush1.bf16.msra.mxu0 %v1383
    %6564 = vmatprep.subr.bf16.mxu0 %v1380
    %6565 = vmatpush1.bf16.msra.mxu0 %v1379
    %6566 = vmatprep.subr.bf16.mxu0 %v1376
    %6567 = vmatpush1.bf16.msra.mxu0 %v1375
    %6568 = vmatprep.subr.bf16.mxu0 %v1372
    %6569 = vmatpush1.bf16.msra.mxu0 %v1371
    %6570 = vmatprep.subr.bf16.mxu0 %v1368
    %6571 = vmatpush1.bf16.msra.mxu0 %v1367
    %6572 = vmatprep.subr.bf16.mxu0 %v1364
    %6573 = vmatpush1.bf16.msra.mxu0 %v1363
    %6574 = vmatprep.subr.bf16.mxu0 %v1360
    %6575 = vmatpush1.bf16.msra.mxu0 %v1359
    %6576 = vmatprep.subr.bf16.mxu0 0
    %6577 = vmatpush2.bf16.msra.mxu0 0
    %6578 = vmatprep.subr.bf16.mxu0 0
    %6579 = vmatpush2.bf16.msra.mxu0 0
    %6580 = vmatprep.subr.bf16.mxu0 0
    %6581 = vmatpush2.bf16.msra.mxu0 0
    %6582 = vmatprep.subr.bf16.mxu0 0
    %6583 = vmatpush2.bf16.msra.mxu0 0
    %6584 = vmatprep.subr.bf16.mxu0 0
    %6585 = vmatpush2.bf16.msra.mxu0 0
    %6586 = vmatprep.subr.bf16.mxu0 0
    %6587 = vmatpush2.bf16.msra.mxu0 0
    %6588 = vmatprep.subr.bf16.mxu0 0
    %6589 = vmatpush2.bf16.msra.mxu0 0
    %6590 = vmatprep.subr.bf16.mxu0 0
    %6591 = vmatpush2.bf16.msra.mxu0 0
    %6592 = vmatprep.mubr.bf16.mxu0 0
    %6593 = vmatmul.mubr.bf16.gmra.mxu0 %v6559
    %v6594 = vpop.f32.mrf.mxu0
    %v6595 = vadd.f32 0.0, %v6594
    %v6596 = vpop.f32.mrf.mxu0
    %v6597 = vadd.f32 0.0, %v6596
    %v6598 = vpop.f32.mrf.mxu0
    %v6599 = vpop.f32.mrf.mxu0
    %6600 = vdwg.mxu0
    %6601 = vmatprep.subr.bf16.mxu0 %v1390
    %6602 = vmatpush1.bf16.msra.mxu0 %v1389
    %6603 = vmatprep.subr.bf16.mxu0 %v1386
    %6604 = vmatpush1.bf16.msra.mxu0 %v1385
    %6605 = vmatprep.subr.bf16.mxu0 %v1382
    %6606 = vmatpush1.bf16.msra.mxu0 %v1381
    %6607 = vmatprep.subr.bf16.mxu0 %v1378
    %6608 = vmatpush1.bf16.msra.mxu0 %v1377
    %6609 = vmatprep.subr.bf16.mxu0 %v1374
    %6610 = vmatpush1.bf16.msra.mxu0 %v1373
    %6611 = vmatprep.subr.bf16.mxu0 %v1370
    %6612 = vmatpush1.bf16.msra.mxu0 %v1369
    %6613 = vmatprep.subr.bf16.mxu0 %v1366
    %6614 = vmatpush1.bf16.msra.mxu0 %v1365
    %6615 = vmatprep.subr.bf16.mxu0 %v1362
    %6616 = vmatpush1.bf16.msra.mxu0 %v1361
    %6617 = vmatprep.subr.bf16.mxu0 0
    %6618 = vmatpush2.bf16.msra.mxu0 0
    %6619 = vmatprep.subr.bf16.mxu0 0
    %6620 = vmatpush2.bf16.msra.mxu0 0
    %6621 = vmatprep.subr.bf16.mxu0 0
    %6622 = vmatpush2.bf16.msra.mxu0 0
    %6623 = vmatprep.subr.bf16.mxu0 0
    %6624 = vmatpush2.bf16.msra.mxu0 0
    %6625 = vmatprep.subr.bf16.mxu0 0
    %6626 = vmatpush2.bf16.msra.mxu0 0
    %6627 = vmatprep.subr.bf16.mxu0 0
    %6628 = vmatpush2.bf16.msra.mxu0 0
    %6629 = vmatprep.subr.bf16.mxu0 0
    %6630 = vmatpush2.bf16.msra.mxu0 0
    %6631 = vmatprep.subr.bf16.mxu0 0
    %6632 = vmatpush2.bf16.msra.mxu0 0
    %6633 = vmatprep.mubr.bf16.mxu0 0
    %6634 = vmatmul.mubr.bf16.gmra.mxu0 %v6559
    %v6635 = vpop.f32.mrf.mxu0
    %v6636 = vadd.f32 0.0, %v6635
    %v6637 = vpop.f32.mrf.mxu0
    %v6638 = vadd.f32 0.0, %v6637
    %v6639 = vpop.f32.mrf.mxu0
    %v6640 = vpop.f32.mrf.mxu0
    %6641 = vdwg.mxu0
    %v6642 = vadd.f32 %v6512, %v6595
    %v6643 = vadd.f32 %v6514, %v6597
    %v6644 = vadd.f32 %v6553, %v6636
    %v6645 = vadd.f32 %v6555, %v6638
    %v6646 = vxor.u32 %v6642, 2147483648
    %v6647 = vmul.f32 %v6646, 1.442695
    %v6648 = vpow.pop %v6647
    %v6649 = vadd.f32 %v6648, 1.0
    %v6650 = vrcp.pop %v6649
    %v6651 = vmul.f32 1.0, %v6650
    %v6652 = vxor.u32 %v6643, 2147483648
    %v6653 = vmul.f32 %v6652, 1.442695
    %v6654 = vpow.pop %v6653
    %v6655 = vadd.f32 %v6654, 1.0
    %v6656 = vrcp.pop %v6655
    %v6657 = vmul.f32 1.0, %v6656
    %v6658 = vtanh.pop %v6644
    %v6659 = vxor.u32 %v6645, 2147483648
    %v6660 = vmul.f32 %v6659, 1.442695
    %v6661 = vpow.pop %v6660
    %v6662 = vadd.f32 %v6661, 1.0
    %v6663 = vrcp.pop %v6662
    %v6664 = vmul.f32 1.0, %v6663
    %v6665 = vmul.f32 %v6657, %v6299
    %v6666 = vmul.f32 %v6651, %v6658
    %v6667 = vadd.f32 %v6665, %v6666
    %v6668 = vtanh.pop %v6667
    %v6669 = vmul.f32 %v6664, %v6668
    %6670 = vmatprep.subr.bf16.mxu0 %v800
    %6671 = vmatpush1.bf16.msra.mxu0 %v799
    %6672 = vmatprep.subr.bf16.mxu0 %v796
    %6673 = vmatpush1.bf16.msra.mxu0 %v795
    %6674 = vmatprep.subr.bf16.mxu0 %v792
    %6675 = vmatpush1.bf16.msra.mxu0 %v791
    %6676 = vmatprep.subr.bf16.mxu0 %v788
    %6677 = vmatpush1.bf16.msra.mxu0 %v787
    %6678 = vmatprep.subr.bf16.mxu0 %v784
    %6679 = vmatpush1.bf16.msra.mxu0 %v783
    %6680 = vmatprep.subr.bf16.mxu0 %v780
    %6681 = vmatpush1.bf16.msra.mxu0 %v779
    %6682 = vmatprep.subr.bf16.mxu0 %v776
    %6683 = vmatpush1.bf16.msra.mxu0 %v775
    %6684 = vmatprep.subr.bf16.mxu0 %v772
    %6685 = vmatpush1.bf16.msra.mxu0 %v771
    %6686 = vmatprep.subr.bf16.mxu0 0
    %6687 = vmatpush2.bf16.msra.mxu0 0
    %6688 = vmatprep.subr.bf16.mxu0 0
    %6689 = vmatpush2.bf16.msra.mxu0 0
    %6690 = vmatprep.subr.bf16.mxu0 0
    %6691 = vmatpush2.bf16.msra.mxu0 0
    %6692 = vmatprep.subr.bf16.mxu0 0
    %6693 = vmatpush2.bf16.msra.mxu0 0
    %6694 = vmatprep.subr.bf16.mxu0 0
    %6695 = vmatpush2.bf16.msra.mxu0 0
    %6696 = vmatprep.subr.bf16.mxu0 0
    %6697 = vmatpush2.bf16.msra.mxu0 0
    %6698 = vmatprep.subr.bf16.mxu0 0
    %6699 = vmatpush2.bf16.msra.mxu0 0
    %6700 = vmatprep.subr.bf16.mxu0 0
    %6701 = vmatpush2.bf16.msra.mxu0 0
    %6702 = vmatprep.mubr.bf16.mxu0 0
    %6703 = vmatmul.mubr.bf16.gmra.mxu0 %v6475
    %v6704 = vpop.f32.mrf.mxu0
    %v6705 = vadd.f32 0.0, %v6704
    %v6706 = vpop.f32.mrf.mxu0
    %v6707 = vadd.f32 0.0, %v6706
    %v6708 = vpop.f32.mrf.mxu0
    %v6709 = vpop.f32.mrf.mxu0
    %6710 = vdwg.mxu0
    %6711 = vmatprep.subr.bf16.mxu0 %v802
    %6712 = vmatpush1.bf16.msra.mxu0 %v801
    %6713 = vmatprep.subr.bf16.mxu0 %v798
    %6714 = vmatpush1.bf16.msra.mxu0 %v797
    %6715 = vmatprep.subr.bf16.mxu0 %v794
    %6716 = vmatpush1.bf16.msra.mxu0 %v793
    %6717 = vmatprep.subr.bf16.mxu0 %v790
    %6718 = vmatpush1.bf16.msra.mxu0 %v789
    %6719 = vmatprep.subr.bf16.mxu0 %v786
    %6720 = vmatpush1.bf16.msra.mxu0 %v785
    %6721 = vmatprep.subr.bf16.mxu0 %v782
    %6722 = vmatpush1.bf16.msra.mxu0 %v781
    %6723 = vmatprep.subr.bf16.mxu0 %v778
    %6724 = vmatpush1.bf16.msra.mxu0 %v777
    %6725 = vmatprep.subr.bf16.mxu0 %v774
    %6726 = vmatpush1.bf16.msra.mxu0 %v773
    %6727 = vmatprep.subr.bf16.mxu0 0
    %6728 = vmatpush2.bf16.msra.mxu0 0
    %6729 = vmatprep.subr.bf16.mxu0 0
    %6730 = vmatpush2.bf16.msra.mxu0 0
    %6731 = vmatprep.subr.bf16.mxu0 0
    %6732 = vmatpush2.bf16.msra.mxu0 0
    %6733 = vmatprep.subr.bf16.mxu0 0
    %6734 = vmatpush2.bf16.msra.mxu0 0
    %6735 = vmatprep.subr.bf16.mxu0 0
    %6736 = vmatpush2.bf16.msra.mxu0 0
    %6737 = vmatprep.subr.bf16.mxu0 0
    %6738 = vmatpush2.bf16.msra.mxu0 0
    %6739 = vmatprep.subr.bf16.mxu0 0
    %6740 = vmatpush2.bf16.msra.mxu0 0
    %6741 = vmatprep.subr.bf16.mxu0 0
    %6742 = vmatpush2.bf16.msra.mxu0 0
    %6743 = vmatprep.mubr.bf16.mxu0 0
    %6744 = vmatmul.mubr.bf16.gmra.mxu0 %v6475
    %v6745 = vpop.f32.mrf.mxu0
    %v6746 = vadd.f32 0.0, %v6745
    %v6747 = vpop.f32.mrf.mxu0
    %v6748 = vadd.f32 0.0, %v6747
    %v6749 = vpop.f32.mrf.mxu0
    %v6750 = vpop.f32.mrf.mxu0
    %6751 = vdwg.mxu0
    %v6756 = vrot.slane %v6705, 1
    %v6757 = vrot.slane %v6707, 1
    %v6758 = vrot.slane %v6746, 1
    %v6759 = vrot.slane %v6748, 1
    %v6760 = vrot.slane %v6705, 2
    %v6761 = vrot.slane %v6707, 2
    %v6762 = vrot.slane %v6746, 2
    %v6763 = vrot.slane %v6748, 2
    %v6772 = vadd.f32 %v663, %v6756
    %v6773 = vadd.f32 %v664, %v6757
    %v6774 = vadd.f32 %v665, %v6758
    %v6775 = vadd.f32 %v666, %v6759
    %v6776 = vadd.f32 %v671, %v6760
    %v6777 = vadd.f32 %v672, %v6761
    %v6778 = vadd.f32 %v673, %v6762
    %v6779 = vadd.f32 %v674, %v6763
    %v6780 = vxor.u32 %v6772, 2147483648
    %v6781 = vxor.u32 %v6776, 2147483648
    %v6782 = vmul.f32 %v6780, 1.442695
    %v6783 = vpow.pop %v6782
    %v6784 = vmul.f32 %v6781, 1.442695
    %v6785 = vpow.pop %v6784
    %v6786 = vadd.f32 %v6783, 1.0
    %v6787 = vadd.f32 %v6785, 1.0
    %v6788 = vrcp.pop %v6786
    %v6789 = vmul.f32 1.0, %v6788
    %v6790 = vrcp.pop %v6787
    %v6791 = vmul.f32 1.0, %v6790
    %v6792 = vxor.u32 %v6773, 2147483648
    %v6793 = vxor.u32 %v6777, 2147483648
    %v6794 = vmul.f32 %v6792, 1.442695
    %v6795 = vpow.pop %v6794
    %v6796 = vmul.f32 %v6793, 1.442695
    %v6797 = vpow.pop %v6796
    %v6798 = vadd.f32 %v6795, 1.0
    %v6799 = vadd.f32 %v6797, 1.0
    %v6800 = vrcp.pop %v6798
    %v6801 = vmul.f32 1.0, %v6800
    %v6802 = vrcp.pop %v6799
    %v6803 = vmul.f32 1.0, %v6802
    %v6804 = vtanh.pop %v6774
    %v6805 = vtanh.pop %v6778
    %v6806 = vxor.u32 %v6775, 2147483648
    %v6807 = vxor.u32 %v6779, 2147483648
    %v6808 = vmul.f32 %v6806, 1.442695
    %v6809 = vpow.pop %v6808
    %v6810 = vmul.f32 %v6807, 1.442695
    %v6811 = vpow.pop %v6810
    %v6812 = vadd.f32 %v6809, 1.0
    %v6813 = vadd.f32 %v6811, 1.0
    %v6814 = vrcp.pop %v6812
    %v6815 = vmul.f32 1.0, %v6814
    %v6816 = vrcp.pop %v6813
    %v6817 = vmul.f32 1.0, %v6816
    %v6820 = vrot.slane %v6460, 7
    %v6821 = vrot.slane %v6461, 7
    %v6824 = vmul.f32 %v6801, %v6820
    %v6825 = vmul.f32 %v6803, %v6821
    %v6826 = vmul.f32 %v6789, %v6804
    %v6827 = vmul.f32 %v6791, %v6805
    %v6828 = vadd.f32 %v6824, %v6826
    %v6829 = vadd.f32 %v6825, %v6827
    %v6830 = vtanh.pop %v6828
    %v6831 = vtanh.pop %v6829
    %v6832 = vmul.f32 %v6815, %v6830
    %v6833 = vmul.f32 %v6817, %v6831
    %v6834 = vpack.c.bf16 %v6832, %v6832
    %v6835 = vpack.c.bf16 %v6833, %v6833
    %v6838 = vunpack.c.l.b16 %v6834
    %v6839 = vunpack.c.l.b16 %v6835
    %v6840 = vrot.slane %v6838, 7
    %v6841 = vrot.slane %v6839, 6
    %v6842 = vsel %vm1017, %v6841, %v6840
    %v6843 = vpack.c.b16 %v6842, %v6842
    %6845 = vmatprep.subr.bf16.mxu0 %v1146
    %6846 = vmatpush1.bf16.msra.mxu0 %v1145
    %6847 = vmatprep.subr.bf16.mxu0 %v1142
    %6848 = vmatpush1.bf16.msra.mxu0 %v1141
    %6849 = vmatprep.subr.bf16.mxu0 %v1138
    %6850 = vmatpush1.bf16.msra.mxu0 %v1137
    %6851 = vmatprep.subr.bf16.mxu0 %v1134
    %6852 = vmatpush1.bf16.msra.mxu0 %v1133
    %6853 = vmatprep.subr.bf16.mxu0 %v1130
    %6854 = vmatpush1.bf16.msra.mxu0 %v1129
    %6855 = vmatprep.subr.bf16.mxu0 %v1126
    %6856 = vmatpush1.bf16.msra.mxu0 %v1125
    %6857 = vmatprep.subr.bf16.mxu0 %v1122
    %6858 = vmatpush1.bf16.msra.mxu0 %v1121
    %6859 = vmatprep.subr.bf16.mxu0 %v1118
    %6860 = vmatpush1.bf16.msra.mxu0 %v1117
    %6861 = vmatprep.subr.bf16.mxu0 0
    %6862 = vmatpush2.bf16.msra.mxu0 0
    %6863 = vmatprep.subr.bf16.mxu0 0
    %6864 = vmatpush2.bf16.msra.mxu0 0
    %6865 = vmatprep.subr.bf16.mxu0 0
    %6866 = vmatpush2.bf16.msra.mxu0 0
    %6867 = vmatprep.subr.bf16.mxu0 0
    %6868 = vmatpush2.bf16.msra.mxu0 0
    %6869 = vmatprep.subr.bf16.mxu0 0
    %6870 = vmatpush2.bf16.msra.mxu0 0
    %6871 = vmatprep.subr.bf16.mxu0 0
    %6872 = vmatpush2.bf16.msra.mxu0 0
    %6873 = vmatprep.subr.bf16.mxu0 0
    %6874 = vmatpush2.bf16.msra.mxu0 0
    %6875 = vmatprep.subr.bf16.mxu0 0
    %6876 = vmatpush2.bf16.msra.mxu0 0
    %6877 = vmatprep.mubr.bf16.mxu0 0
    %6878 = vmatmul.mubr.bf16.gmra.mxu0 %v6843
    %v6879 = vpop.f32.mrf.mxu0
    %v6880 = vadd.f32 %v995, %v6879
    %v6881 = vpop.f32.mrf.mxu0
    %v6882 = vadd.f32 %v999, %v6881
    %v6883 = vpop.f32.mrf.mxu0
    %v6884 = vpop.f32.mrf.mxu0
    %6885 = vdwg.mxu0
    %6886 = vmatprep.subr.bf16.mxu0 %v1148
    %6887 = vmatpush1.bf16.msra.mxu0 %v1147
    %6888 = vmatprep.subr.bf16.mxu0 %v1144
    %6889 = vmatpush1.bf16.msra.mxu0 %v1143
    %6890 = vmatprep.subr.bf16.mxu0 %v1140
    %6891 = vmatpush1.bf16.msra.mxu0 %v1139
    %6892 = vmatprep.subr.bf16.mxu0 %v1136
    %6893 = vmatpush1.bf16.msra.mxu0 %v1135
    %6894 = vmatprep.subr.bf16.mxu0 %v1132
    %6895 = vmatpush1.bf16.msra.mxu0 %v1131
    %6896 = vmatprep.subr.bf16.mxu0 %v1128
    %6897 = vmatpush1.bf16.msra.mxu0 %v1127
    %6898 = vmatprep.subr.bf16.mxu0 %v1124
    %6899 = vmatpush1.bf16.msra.mxu0 %v1123
    %6900 = vmatprep.subr.bf16.mxu0 %v1120
    %6901 = vmatpush1.bf16.msra.mxu0 %v1119
    %6902 = vmatprep.subr.bf16.mxu0 0
    %6903 = vmatpush2.bf16.msra.mxu0 0
    %6904 = vmatprep.subr.bf16.mxu0 0
    %6905 = vmatpush2.bf16.msra.mxu0 0
    %6906 = vmatprep.subr.bf16.mxu0 0
    %6907 = vmatpush2.bf16.msra.mxu0 0
    %6908 = vmatprep.subr.bf16.mxu0 0
    %6909 = vmatpush2.bf16.msra.mxu0 0
    %6910 = vmatprep.subr.bf16.mxu0 0
    %6911 = vmatpush2.bf16.msra.mxu0 0
    %6912 = vmatprep.subr.bf16.mxu0 0
    %6913 = vmatpush2.bf16.msra.mxu0 0
    %6914 = vmatprep.subr.bf16.mxu0 0
    %6915 = vmatpush2.bf16.msra.mxu0 0
    %6916 = vmatprep.subr.bf16.mxu0 0
    %6917 = vmatpush2.bf16.msra.mxu0 0
    %6918 = vmatprep.mubr.bf16.mxu0 0
    %6919 = vmatmul.mubr.bf16.gmra.mxu0 %v6843
    %v6920 = vpop.f32.mrf.mxu0
    %v6921 = vadd.f32 %v1003, %v6920
    %v6922 = vpop.f32.mrf.mxu0
    %v6923 = vadd.f32 %v1007, %v6922
    %v6924 = vpop.f32.mrf.mxu0
    %v6925 = vpop.f32.mrf.mxu0
    %6926 = vdwg.mxu0
    %v6927 = vpack.c.bf16 %v6669, %v6669
    %6928 = vmatprep.subr.bf16.mxu0 %v1388
    %6929 = vmatpush1.bf16.msra.mxu0 %v1387
    %6930 = vmatprep.subr.bf16.mxu0 %v1384
    %6931 = vmatpush1.bf16.msra.mxu0 %v1383
    %6932 = vmatprep.subr.bf16.mxu0 %v1380
    %6933 = vmatpush1.bf16.msra.mxu0 %v1379
    %6934 = vmatprep.subr.bf16.mxu0 %v1376
    %6935 = vmatpush1.bf16.msra.mxu0 %v1375
    %6936 = vmatprep.subr.bf16.mxu0 %v1372
    %6937 = vmatpush1.bf16.msra.mxu0 %v1371
    %6938 = vmatprep.subr.bf16.mxu0 %v1368
    %6939 = vmatpush1.bf16.msra.mxu0 %v1367
    %6940 = vmatprep.subr.bf16.mxu0 %v1364
    %6941 = vmatpush1.bf16.msra.mxu0 %v1363
    %6942 = vmatprep.subr.bf16.mxu0 %v1360
    %6943 = vmatpush1.bf16.msra.mxu0 %v1359
    %6944 = vmatprep.subr.bf16.mxu0 0
    %6945 = vmatpush2.bf16.msra.mxu0 0
    %6946 = vmatprep.subr.bf16.mxu0 0
    %6947 = vmatpush2.bf16.msra.mxu0 0
    %6948 = vmatprep.subr.bf16.mxu0 0
    %6949 = vmatpush2.bf16.msra.mxu0 0
    %6950 = vmatprep.subr.bf16.mxu0 0
    %6951 = vmatpush2.bf16.msra.mxu0 0
    %6952 = vmatprep.subr.bf16.mxu0 0
    %6953 = vmatpush2.bf16.msra.mxu0 0
    %6954 = vmatprep.subr.bf16.mxu0 0
    %6955 = vmatpush2.bf16.msra.mxu0 0
    %6956 = vmatprep.subr.bf16.mxu0 0
    %6957 = vmatpush2.bf16.msra.mxu0 0
    %6958 = vmatprep.subr.bf16.mxu0 0
    %6959 = vmatpush2.bf16.msra.mxu0 0
    %6960 = vmatprep.mubr.bf16.mxu0 0
    %6961 = vmatmul.mubr.bf16.gmra.mxu0 %v6927
    %v6962 = vpop.f32.mrf.mxu0
    %v6963 = vadd.f32 0.0, %v6962
    %v6964 = vpop.f32.mrf.mxu0
    %v6965 = vadd.f32 0.0, %v6964
    %v6966 = vpop.f32.mrf.mxu0
    %v6967 = vpop.f32.mrf.mxu0
    %6968 = vdwg.mxu0
    %6969 = vmatprep.subr.bf16.mxu0 %v1390
    %6970 = vmatpush1.bf16.msra.mxu0 %v1389
    %6971 = vmatprep.subr.bf16.mxu0 %v1386
    %6972 = vmatpush1.bf16.msra.mxu0 %v1385
    %6973 = vmatprep.subr.bf16.mxu0 %v1382
    %6974 = vmatpush1.bf16.msra.mxu0 %v1381
    %6975 = vmatprep.subr.bf16.mxu0 %v1378
    %6976 = vmatpush1.bf16.msra.mxu0 %v1377
    %6977 = vmatprep.subr.bf16.mxu0 %v1374
    %6978 = vmatpush1.bf16.msra.mxu0 %v1373
    %6979 = vmatprep.subr.bf16.mxu0 %v1370
    %6980 = vmatpush1.bf16.msra.mxu0 %v1369
    %6981 = vmatprep.subr.bf16.mxu0 %v1366
    %6982 = vmatpush1.bf16.msra.mxu0 %v1365
    %6983 = vmatprep.subr.bf16.mxu0 %v1362
    %6984 = vmatpush1.bf16.msra.mxu0 %v1361
    %6985 = vmatprep.subr.bf16.mxu0 0
    %6986 = vmatpush2.bf16.msra.mxu0 0
    %6987 = vmatprep.subr.bf16.mxu0 0
    %6988 = vmatpush2.bf16.msra.mxu0 0
    %6989 = vmatprep.subr.bf16.mxu0 0
    %6990 = vmatpush2.bf16.msra.mxu0 0
    %6991 = vmatprep.subr.bf16.mxu0 0
    %6992 = vmatpush2.bf16.msra.mxu0 0
    %6993 = vmatprep.subr.bf16.mxu0 0
    %6994 = vmatpush2.bf16.msra.mxu0 0
    %6995 = vmatprep.subr.bf16.mxu0 0
    %6996 = vmatpush2.bf16.msra.mxu0 0
    %6997 = vmatprep.subr.bf16.mxu0 0
    %6998 = vmatpush2.bf16.msra.mxu0 0
    %6999 = vmatprep.subr.bf16.mxu0 0
    %7000 = vmatpush2.bf16.msra.mxu0 0
    %7001 = vmatprep.mubr.bf16.mxu0 0
    %7002 = vmatmul.mubr.bf16.gmra.mxu0 %v6927
    %v7003 = vpop.f32.mrf.mxu0
    %v7004 = vadd.f32 0.0, %v7003
    %v7005 = vpop.f32.mrf.mxu0
    %v7006 = vadd.f32 0.0, %v7005
    %v7007 = vpop.f32.mrf.mxu0
    %v7008 = vpop.f32.mrf.mxu0
    %7009 = vdwg.mxu0
    %v7010 = vadd.f32 %v6880, %v6963
    %v7011 = vadd.f32 %v6882, %v6965
    %v7012 = vadd.f32 %v6921, %v7004
    %v7013 = vadd.f32 %v6923, %v7006
    %v7014 = vxor.u32 %v7010, 2147483648
    %v7015 = vmul.f32 %v7014, 1.442695
    %v7016 = vpow.pop %v7015
    %v7017 = vadd.f32 %v7016, 1.0
    %v7018 = vrcp.pop %v7017
    %v7019 = vmul.f32 1.0, %v7018
    %v7020 = vxor.u32 %v7011, 2147483648
    %v7021 = vmul.f32 %v7020, 1.442695
    %v7022 = vpow.pop %v7021
    %v7023 = vadd.f32 %v7022, 1.0
    %v7024 = vrcp.pop %v7023
    %v7025 = vmul.f32 1.0, %v7024
    %v7026 = vtanh.pop %v7012
    %v7027 = vxor.u32 %v7013, 2147483648
    %v7028 = vmul.f32 %v7027, 1.442695
    %v7029 = vpow.pop %v7028
    %v7030 = vadd.f32 %v7029, 1.0
    %v7031 = vrcp.pop %v7030
    %v7032 = vmul.f32 1.0, %v7031
    %v7033 = vmul.f32 %v7025, %v6667
    %v7034 = vmul.f32 %v7019, %v7026
    %v7035 = vadd.f32 %v7033, %v7034
    %v7036 = vtanh.pop %v7035
    %v7037 = vmul.f32 %v7032, %v7036
    %v7040 = vunpack.c.l.s4 1966171168
    %v7041 = vunpack.c.0.s8 %v7040
    %v7042 = vlaneseq
    %v7043 = vshrl.u32 %v7042, 7
    %v7044 = vsub.s32 %v7041, %v7043
    %v7045 = vrot.slane %v7037, %v7044
    %v7046 = vcombine.high %v7045, %v7045
    %v7048 = vunpack.c.l.s4 1966171168
    %v7049 = vunpack.c.0.s8 %v7048
    %v7050 = vlaneseq
    %v7051 = vshrl.u32 %v7050, 7
    %v7052 = vsub.s32 %v7049, %v7051
    %v7053 = vrot.slane %v7045, %v7052
    %v7055 = vunpack.c.l.s4 1966171168
    %v7056 = vunpack.c.0.s8 %v7055
    %v7057 = vlaneseq
    %v7058 = vshrl.u32 %v7057, 7
    %v7059 = vsub.s32 %v7056, %v7058
    %v7060 = vrot.slane %v7046, %v7059
    %v7061 = vlaneseq
    %v7062 = vshrl.u32 %v7061, 7
    %v7063 = vsub.s32 0, %v7062
    %v7064 = vrot.slane %v7053, %v7063
    %v7065 = vlaneseq
    %v7066 = vshrl.u32 %v7065, 7
    %v7067 = vsub.s32 0, %v7066
    %v7068 = vrot.slane %v7060, %v7067
    %v7071 = vpack.c.bf16 %v238, %v238
    %v7072 = vpack.c.bf16 %v239, %v239
    %v7073 = vld [vmem:[%s8] sm:$0xf]
    %v7074 = vld [vmem:[%s9] sm:$0x1]
    %v7076 = vlaneseq
    %v7077 = vshrl.u32 %v7076, 7
    %v7078 = vsub.s32 0, %v7077
    %v7079 = vrot.slane %v7074, %v7078
    %v7083 = vunpack.c.l.b16 %v7071
    %v7084 = vunpack.c.l.b16 %v7072
    %v7085 = vpack.c.b16 %v7084, %v7083
    %vm7086 = vcmask 64512
    %v7088 = vsel %vm7086, %v7085, 0
    %vm7090 = vcmask 1043456
    %v7092 = vsel %vm7090, %v7073, 0
    %7094 = vmatprep.subr.bf16.mxu0 0
    %7095 = vmatpush1.bf16.msra.mxu0 0
    %7096 = vmatprep.subr.bf16.mxu0 0
    %7097 = vmatpush1.bf16.msra.mxu0 0
    %7098 = vmatprep.subr.bf16.mxu0 0
    %7099 = vmatpush1.bf16.msra.mxu0 0
    %7100 = vmatprep.subr.bf16.mxu0 0
    %7101 = vmatpush1.bf16.msra.mxu0 0
    %7102 = vmatprep.subr.bf16.mxu0 0
    %7103 = vmatpush1.bf16.msra.mxu0 0
    %7104 = vmatprep.subr.bf16.mxu0 0
    %7105 = vmatpush1.bf16.msra.mxu0 0
    %7106 = vmatprep.subr.bf16.mxu0 0
    %7107 = vmatpush1.bf16.msra.mxu0 0
    %7108 = vmatprep.subr.bf16.mxu0 0
    %7109 = vmatpush1.bf16.msra.mxu0 %v7092
    %7110 = vmatprep.subr.bf16.mxu0 0
    %7111 = vmatpush2.bf16.msra.mxu0 0
    %7112 = vmatprep.subr.bf16.mxu0 0
    %7113 = vmatpush2.bf16.msra.mxu0 0
    %7114 = vmatprep.subr.bf16.mxu0 0
    %7115 = vmatpush2.bf16.msra.mxu0 0
    %7116 = vmatprep.subr.bf16.mxu0 0
    %7117 = vmatpush2.bf16.msra.mxu0 0
    %7118 = vmatprep.subr.bf16.mxu0 0
    %7119 = vmatpush2.bf16.msra.mxu0 0
    %7120 = vmatprep.subr.bf16.mxu0 0
    %7121 = vmatpush2.bf16.msra.mxu0 0
    %7122 = vmatprep.subr.bf16.mxu0 0
    %7123 = vmatpush2.bf16.msra.mxu0 0
    %7124 = vmatprep.subr.bf16.mxu0 0
    %7125 = vmatpush2.bf16.msra.mxu0 0
    %7126 = vmatprep.mubr.bf16.mxu0 0
    %7127 = vmatmul.mubr.bf16.gmra.mxu0 %v7088
    %v7128 = vpop.f32.mrf.mxu0
    %v7129 = vadd.f32 %v7079, %v7128
    %v7130 = vpop.f32.mrf.mxu0
    %v7131 = vpop.f32.mrf.mxu0
    %v7132 = vadd.f32 %v7079, %v7131
    %v7133 = vpop.f32.mrf.mxu0
    %7134 = vdwg.mxu0
    %v7135 = vadd.f32 %v234, %v235
    %v7136 = vrot.slane %v7135, 4
    %v7137 = vadd.f32 %v7135, %v7136
    %v7138 = vrot.slane %v7137, 2
    %v7139 = vadd.f32 %v7137, %v7138
    %v7140 = vrot.slane %v7139, 1
    %v7141 = vadd.f32 %v7139, %v7140
    %v7142 = vadd.f32 %v236, %v237
    %v7143 = vrot.slane %v7142, 4
    %v7144 = vadd.f32 %v7142, %v7143
    %v7145 = vrot.slane %v7144, 2
    %v7146 = vadd.f32 %v7144, %v7145
    %v7147 = vrot.slane %v7146, 1
    %v7148 = vadd.f32 %v7146, %v7147
    %v7149 = vrcp.pop 16.0
    %v7150 = vmul.f32 %v7141, %v7149
    %v7151 = vmul.f32 %v7148, %v7149
    %v7152 = vpack.c.bf16 %v7150, %v7150
    %v7153 = vpack.c.bf16 %v7151, %v7151
    %v7154 = vld [vmem:[%s10] sm:$0xf]
    %v7155 = vld [vmem:[%s10 + $0x4] sm:$0xf]
    %v7156 = vld [vmem:[%s10 + $0x8] sm:$0xf]
    %v7157 = vld [vmem:[%s10 + $0xc] sm:$0xf]
    %v7158 = vld [vmem:[%s10 + $0x10] sm:$0xf]
    %v7159 = vld [vmem:[%s10 + $0x14] sm:$0xf]
    %v7160 = vld [vmem:[%s10 + $0x18] sm:$0xf]
    %v7161 = vld [vmem:[%s10 + $0x1c] sm:$0xf]
    %v7162 = vld [vmem:[%s10 + $0x20] sm:$0xf]
    %v7163 = vld [vmem:[%s10 + $0x24] sm:$0xf]
    %v7164 = vld [vmem:[%s10 + $0x28] sm:$0xf]
    %v7165 = vld [vmem:[%s10 + $0x2c] sm:$0xf]
    %v7166 = vld [vmem:[%s10 + $0x30] sm:$0xf]
    %v7167 = vld [vmem:[%s10 + $0x34] sm:$0xf]
    %v7168 = vld [vmem:[%s10 + $0x38] sm:$0xf]
    %v7169 = vld [vmem:[%s10 + $0x3c] sm:$0xf]
    %v7172 = vunpack.c.l.b16 %v7152
    %v7173 = vunpack.c.l.b16 %v7153
    %v7174 = vsel %vm1017, %v7173, %v7172
    %v7175 = vpack.c.b16 %v7174, %v7174
    %v7193 = vunpack.c.l.b16 %v7154
    %v7194 = vunpack.c.l.b16 %v7155
    %v7195 = vunpack.c.l.b16 %v7156
    %v7196 = vunpack.c.l.b16 %v7157
    %v7197 = vunpack.c.l.b16 %v7158
    %v7198 = vunpack.c.l.b16 %v7159
    %v7199 = vunpack.c.l.b16 %v7160
    %v7200 = vunpack.c.l.b16 %v7161
    %v7201 = vunpack.c.l.b16 %v7162
    %v7202 = vunpack.c.l.b16 %v7163
    %v7203 = vunpack.c.l.b16 %v7164
    %v7204 = vunpack.c.l.b16 %v7165
    %v7205 = vunpack.c.l.b16 %v7166
    %v7206 = vunpack.c.l.b16 %v7167
    %v7207 = vunpack.c.l.b16 %v7168
    %v7208 = vunpack.c.l.b16 %v7169
    %v7209 = vpack.c.b16 %v7194, %v7193
    %v7210 = vpack.c.b16 %v7196, %v7195
    %v7211 = vpack.c.b16 %v7198, %v7197
    %v7212 = vpack.c.b16 %v7200, %v7199
    %v7213 = vpack.c.b16 %v7202, %v7201
    %v7214 = vpack.c.b16 %v7204, %v7203
    %v7215 = vpack.c.b16 %v7206, %v7205
    %v7216 = vpack.c.b16 %v7208, %v7207
    %7225 = vmatprep.subr.bf16.mxu0 0
    %7226 = vmatpush1.bf16.msra.mxu0 %v7216
    %7227 = vmatprep.subr.bf16.mxu0 0
    %7228 = vmatpush1.bf16.msra.mxu0 %v7215
    %7229 = vmatprep.subr.bf16.mxu0 0
    %7230 = vmatpush1.bf16.msra.mxu0 %v7214
    %7231 = vmatprep.subr.bf16.mxu0 0
    %7232 = vmatpush1.bf16.msra.mxu0 %v7213
    %7233 = vmatprep.subr.bf16.mxu0 0
    %7234 = vmatpush1.bf16.msra.mxu0 %v7212
    %7235 = vmatprep.subr.bf16.mxu0 0
    %7236 = vmatpush1.bf16.msra.mxu0 %v7211
    %7237 = vmatprep.subr.bf16.mxu0 0
    %7238 = vmatpush1.bf16.msra.mxu0 %v7210
    %7239 = vmatprep.subr.bf16.mxu0 0
    %7240 = vmatpush1.bf16.msra.mxu0 %v7209
    %7241 = vmatprep.subr.bf16.mxu0 0
    %7242 = vmatpush2.bf16.msra.mxu0 0
    %7243 = vmatprep.subr.bf16.mxu0 0
    %7244 = vmatpush2.bf16.msra.mxu0 0
    %7245 = vmatprep.subr.bf16.mxu0 0
    %7246 = vmatpush2.bf16.msra.mxu0 0
    %7247 = vmatprep.subr.bf16.mxu0 0
    %7248 = vmatpush2.bf16.msra.mxu0 0
    %7249 = vmatprep.subr.bf16.mxu0 0
    %7250 = vmatpush2.bf16.msra.mxu0 0
    %7251 = vmatprep.subr.bf16.mxu0 0
    %7252 = vmatpush2.bf16.msra.mxu0 0
    %7253 = vmatprep.subr.bf16.mxu0 0
    %7254 = vmatpush2.bf16.msra.mxu0 0
    %7255 = vmatprep.subr.bf16.mxu0 0
    %7256 = vmatpush2.bf16.msra.mxu0 0
    %7257 = vmatprep.mubr.bf16.mxu0 0
    %7258 = vmatmul.mubr.bf16.gmra.mxu0 %v7175
    %v7259 = vpop.f32.mrf.mxu0
    %v7260 = vadd.f32 0.0, %v7259
    %v7261 = vpop.f32.mrf.mxu0
    %v7262 = vpop.f32.mrf.mxu0
    %v7263 = vpop.f32.mrf.mxu0
    %7264 = vdwg.mxu0
    %v7267 = vunpack.c.l.s4 1966171168
    %v7268 = vunpack.c.0.s8 %v7267
    %v7269 = vlaneseq
    %v7270 = vshrl.u32 %v7269, 7
    %v7271 = vsub.s32 %v7268, %v7270
    %v7272 = vrot.slane %v7260, %v7271
    %v7273 = vcombine.high %v7272, %v7272
    %v7275 = vunpack.c.l.s4 1966171168
    %v7276 = vunpack.c.0.s8 %v7275
    %v7277 = vlaneseq
    %v7278 = vshrl.u32 %v7277, 7
    %v7279 = vsub.s32 %v7276, %v7278
    %v7280 = vrot.slane %v7272, %v7279
    %v7282 = vunpack.c.l.s4 1966171168
    %v7283 = vunpack.c.0.s8 %v7282
    %v7284 = vlaneseq
    %v7285 = vshrl.u32 %v7284, 7
    %v7286 = vsub.s32 %v7283, %v7285
    %v7287 = vrot.slane %v7273, %v7286
    %v7288 = vlaneseq
    %v7289 = vshrl.u32 %v7288, 7
    %v7290 = vsub.s32 0, %v7289
    %v7291 = vrot.slane %v7280, %v7290
    %v7292 = vlaneseq
    %v7293 = vshrl.u32 %v7292, 7
    %v7294 = vsub.s32 0, %v7293
    %v7295 = vrot.slane %v7287, %v7294
    %v7298 = vadd.f32 %v7129, %v7291
    %v7299 = vadd.f32 %v7132, %v7295
    %v7300 = vmax.f32 %v7298, 0.0
    %v7301 = vmax.f32 %v7299, 0.0
    %v7302 = vpack.c.bf16 %v7300, %v7300
    %v7303 = vpack.c.bf16 %v7301, %v7301
    %7304 = vmatprep.subr.bf16.mxu0 0
    %7305 = vmatpush1.bf16.xpose.msra.mxu0 0
    %7306 = vmatprep.subr.bf16.mxu0 0
    %7307 = vmatpush1.bf16.xpose.msra.mxu0 0
    %7308 = vmatprep.subr.bf16.mxu0 0
    %7309 = vmatpush1.bf16.xpose.msra.mxu0 0
    %7310 = vmatprep.subr.bf16.mxu0 0
    %7311 = vmatpush1.bf16.xpose.msra.mxu0 0
    %7312 = vmatprep.subr.bf16.mxu0 0
    %7313 = vmatpush1.bf16.xpose.msra.mxu0 0
    %7314 = vmatprep.subr.bf16.mxu0 0
    %7315 = vmatpush1.bf16.xpose.msra.mxu0 0
    %7316 = vmatprep.subr.bf16.mxu0 0
    %7317 = vmatpush1.bf16.xpose.msra.mxu0 0
    %7318 = vmatprep.subr.bf16.mxu0 0
    %7319 = vmatpush1.bf16.xpose.msra.mxu0 %v7302
    %7320 = vmatprep.subr.bf16.mxu0 0
    %7321 = vmatpush2.bf16.xpose.msra.mxu0 0
    %7322 = vmatprep.subr.bf16.mxu0 0
    %7323 = vmatpush2.bf16.xpose.msra.mxu0 0
    %7324 = vmatprep.subr.bf16.mxu0 0
    %7325 = vmatpush2.bf16.xpose.msra.mxu0 0
    %7326 = vmatprep.subr.bf16.mxu0 0
    %7327 = vmatpush2.bf16.xpose.msra.mxu0 0
    %7328 = vmatprep.subr.bf16.mxu0 0
    %7329 = vmatpush2.bf16.xpose.msra.mxu0 0
    %7330 = vmatprep.subr.bf16.mxu0 0
    %7331 = vmatpush2.bf16.xpose.msra.mxu0 0
    %7332 = vmatprep.subr.bf16.mxu0 0
    %7333 = vmatpush2.bf16.xpose.msra.mxu0 0
    %7334 = vmatprep.subr.bf16.mxu0 0
    %7335 = vmatpush2.bf16.xpose.msra.mxu0 0
    %7336 = vmatprep.mubr.bf16.mxu0 0
    %7337 = vmatmul.mubr.bf16.gmra.mxu0 %v7302
    %v7338 = vpop.f32.mrf.mxu0
    %v7339 = vadd.f32 0.0, %v7338
    %v7340 = vpop.f32.mrf.mxu0
    %v7341 = vpop.f32.mrf.mxu0
    %v7342 = vpop.f32.mrf.mxu0
    %7343 = vdwg.mxu0
    %7344 = vmatprep.subr.bf16.mxu0 0
    %7345 = vmatpush1.bf16.xpose.msra.mxu0 0
    %7346 = vmatprep.subr.bf16.mxu0 0
    %7347 = vmatpush1.bf16.xpose.msra.mxu0 0
    %7348 = vmatprep.subr.bf16.mxu0 0
    %7349 = vmatpush1.bf16.xpose.msra.mxu0 0
    %7350 = vmatprep.subr.bf16.mxu0 0
    %7351 = vmatpush1.bf16.xpose.msra.mxu0 0
    %7352 = vmatprep.subr.bf16.mxu0 0
    %7353 = vmatpush1.bf16.xpose.msra.mxu0 0
    %7354 = vmatprep.subr.bf16.mxu0 0
    %7355 = vmatpush1.bf16.xpose.msra.mxu0 0
    %7356 = vmatprep.subr.bf16.mxu0 0
    %7357 = vmatpush1.bf16.xpose.msra.mxu0 0
    %7358 = vmatprep.subr.bf16.mxu0 0
    %7359 = vmatpush1.bf16.xpose.msra.mxu0 %v7303
    %7360 = vmatprep.subr.bf16.mxu0 0
    %7361 = vmatpush2.bf16.xpose.msra.mxu0 0
    %7362 = vmatprep.subr.bf16.mxu0 0
    %7363 = vmatpush2.bf16.xpose.msra.mxu0 0
    %7364 = vmatprep.subr.bf16.mxu0 0
    %7365 = vmatpush2.bf16.xpose.msra.mxu0 0
    %7366 = vmatprep.subr.bf16.mxu0 0
    %7367 = vmatpush2.bf16.xpose.msra.mxu0 0
    %7368 = vmatprep.subr.bf16.mxu0 0
    %7369 = vmatpush2.bf16.xpose.msra.mxu0 0
    %7370 = vmatprep.subr.bf16.mxu0 0
    %7371 = vmatpush2.bf16.xpose.msra.mxu0 0
    %7372 = vmatprep.subr.bf16.mxu0 0
    %7373 = vmatpush2.bf16.xpose.msra.mxu0 0
    %7374 = vmatprep.subr.bf16.mxu0 0
    %7375 = vmatpush2.bf16.xpose.msra.mxu0 0
    %7376 = vmatprep.mubr.bf16.mxu0 0
    %7377 = vmatmul.mubr.bf16.gmra.mxu0 %v7303
    %v7378 = vpop.f32.mrf.mxu0
    %v7379 = vadd.f32 0.0, %v7378
    %v7380 = vpop.f32.mrf.mxu0
    %v7381 = vpop.f32.mrf.mxu0
    %v7382 = vpop.f32.mrf.mxu0
    %7383 = vdwg.mxu0
    %v7384 = vmul.f32 %v7339, 0.088388346
    %v7385 = vmul.f32 %v7379, 0.088388346
    %v7386 = vxor.u32 %v7384, 2147483648
    %v7387 = vxor.u32 %v7385, 2147483648
    %v7388 = vmul.f32 %v7386, 1.442695
    %v7389 = vpow.pop %v7388
    %v7390 = vmul.f32 %v7387, 1.442695
    %v7391 = vpow.pop %v7390
    %v7392 = vadd.f32 %v7389, 1.0
    %v7393 = vadd.f32 %v7391, 1.0
    %v7394 = vrcp.pop %v7392
    %v7395 = vmul.f32 1.0, %v7394
    %v7396 = vrcp.pop %v7393
    %v7397 = vmul.f32 1.0, %v7396
    %v7398 = vpack.c.bf16 %v7064, %v7064
    %v7399 = vpack.c.bf16 %v7068, %v7068
    %v7400 = vld [vmem:[%s11] sm:$0xf]
    %v7401 = vld [vmem:[%s11 + $0x4] sm:$0xf]
    %v7402 = vld [vmem:[%s11 + $0x8] sm:$0xf]
    %v7403 = vld [vmem:[%s11 + $0xc] sm:$0xf]
    %v7404 = vld [vmem:[%s11 + $0x10] sm:$0xf]
    %v7405 = vld [vmem:[%s11 + $0x14] sm:$0xf]
    %v7406 = vld [vmem:[%s11 + $0x18] sm:$0xf]
    %v7407 = vld [vmem:[%s11 + $0x1c] sm:$0xf]
    %v7408 = vld [vmem:[%s11 + $0x20] sm:$0xf]
    %v7409 = vld [vmem:[%s11 + $0x24] sm:$0xf]
    %v7410 = vld [vmem:[%s11 + $0x28] sm:$0xf]
    %v7411 = vld [vmem:[%s11 + $0x2c] sm:$0xf]
    %v7412 = vld [vmem:[%s11 + $0x30] sm:$0xf]
    %v7413 = vld [vmem:[%s11 + $0x34] sm:$0xf]
    %v7414 = vld [vmem:[%s11 + $0x38] sm:$0xf]
    %v7415 = vld [vmem:[%s11 + $0x3c] sm:$0xf]
    %v7418 = vunpack.c.l.b16 %v7398
    %v7419 = vunpack.c.l.b16 %v7399
    %v7420 = vpack.c.b16 %v7419, %v7418
    %v7438 = vunpack.c.l.b16 %v7400
    %v7439 = vunpack.c.l.b16 %v7401
    %v7440 = vunpack.c.l.b16 %v7402
    %v7441 = vunpack.c.l.b16 %v7403
    %v7442 = vunpack.c.l.b16 %v7404
    %v7443 = vunpack.c.l.b16 %v7405
    %v7444 = vunpack.c.l.b16 %v7406
    %v7445 = vunpack.c.l.b16 %v7407
    %v7446 = vunpack.c.l.b16 %v7408
    %v7447 = vunpack.c.l.b16 %v7409
    %v7448 = vunpack.c.l.b16 %v7410
    %v7449 = vunpack.c.l.b16 %v7411
    %v7450 = vunpack.c.l.b16 %v7412
    %v7451 = vunpack.c.l.b16 %v7413
    %v7452 = vunpack.c.l.b16 %v7414
    %v7453 = vunpack.c.l.b16 %v7415
    %v7454 = vpack.c.b16 %v7439, %v7438
    %v7455 = vpack.c.b16 %v7441, %v7440
    %v7456 = vpack.c.b16 %v7443, %v7442
    %v7457 = vpack.c.b16 %v7445, %v7444
    %v7458 = vpack.c.b16 %v7447, %v7446
    %v7459 = vpack.c.b16 %v7449, %v7448
    %v7460 = vpack.c.b16 %v7451, %v7450
    %v7461 = vpack.c.b16 %v7453, %v7452
    %7470 = vmatprep.subr.bf16.mxu0 0
    %7471 = vmatpush1.bf16.msra.mxu0 %v7461
    %7472 = vmatprep.subr.bf16.mxu0 0
    %7473 = vmatpush1.bf16.msra.mxu0 %v7460
    %7474 = vmatprep.subr.bf16.mxu0 0
    %7475 = vmatpush1.bf16.msra.mxu0 %v7459
    %7476 = vmatprep.subr.bf16.mxu0 0
    %7477 = vmatpush1.bf16.msra.mxu0 %v7458
    %7478 = vmatprep.subr.bf16.mxu0 0
    %7479 = vmatpush1.bf16.msra.mxu0 %v7457
    %7480 = vmatprep.subr.bf16.mxu0 0
    %7481 = vmatpush1.bf16.msra.mxu0 %v7456
    %7482 = vmatprep.subr.bf16.mxu0 0
    %7483 = vmatpush1.bf16.msra.mxu0 %v7455
    %7484 = vmatprep.subr.bf16.mxu0 0
    %7485 = vmatpush1.bf16.msra.mxu0 %v7454
    %7486 = vmatprep.subr.bf16.mxu0 0
    %7487 = vmatpush2.bf16.msra.mxu0 0
    %7488 = vmatprep.subr.bf16.mxu0 0
    %7489 = vmatpush2.bf16.msra.mxu0 0
    %7490 = vmatprep.subr.bf16.mxu0 0
    %7491 = vmatpush2.bf16.msra.mxu0 0
    %7492 = vmatprep.subr.bf16.mxu0 0
    %7493 = vmatpush2.bf16.msra.mxu0 0
    %7494 = vmatprep.subr.bf16.mxu0 0
    %7495 = vmatpush2.bf16.msra.mxu0 0
    %7496 = vmatprep.subr.bf16.mxu0 0
    %7497 = vmatpush2.bf16.msra.mxu0 0
    %7498 = vmatprep.subr.bf16.mxu0 0
    %7499 = vmatpush2.bf16.msra.mxu0 0
    %7500 = vmatprep.subr.bf16.mxu0 0
    %7501 = vmatpush2.bf16.msra.mxu0 0
    %7502 = vmatprep.mubr.bf16.mxu0 0
    %7503 = vmatmul.mubr.bf16.gmra.mxu0 %v7420
    %v7504 = vpop.f32.mrf.mxu0
    %v7505 = vadd.f32 0.0, %v7504
    %v7506 = vpop.f32.mrf.mxu0
    %v7507 = vpop.f32.mrf.mxu0
    %v7508 = vadd.f32 0.0, %v7507
    %v7509 = vpop.f32.mrf.mxu0
    %7510 = vdwg.mxu0
    %v7511 = vld [vmem:[#allocation13] sm:$0xf]
    %v7512 = vld [vmem:[#allocation14] sm:$0xf]
    %v7513 = vld [vmem:[%s14] sm:$0xf]
    %v7514 = vld [vmem:[%s14 + $0x4] sm:$0xf]
    %v7515 = vld [vmem:[%s14 + $0x8] sm:$0xf]
    %v7516 = vld [vmem:[%s14 + $0xc] sm:$0xf]
    %v7517 = vld [vmem:[%s14 + $0x10] sm:$0xf]
    %v7518 = vld [vmem:[%s14 + $0x14] sm:$0xf]
    %v7519 = vld [vmem:[%s14 + $0x18] sm:$0xf]
    %v7520 = vld [vmem:[%s14 + $0x1c] sm:$0xf]
    %v7521 = vld [vmem:[%s14 + $0x20] sm:$0xf]
    %v7522 = vld [vmem:[%s14 + $0x24] sm:$0xf]
    %v7523 = vld [vmem:[%s14 + $0x28] sm:$0xf]
    %v7524 = vld [vmem:[%s14 + $0x2c] sm:$0xf]
    %v7525 = vld [vmem:[%s14 + $0x30] sm:$0xf]
    %v7526 = vld [vmem:[%s14 + $0x34] sm:$0xf]
    %v7527 = vld [vmem:[%s14 + $0x38] sm:$0xf]
    %v7528 = vld [vmem:[%s14 + $0x3c] sm:$0xf]
    %v7529 = vlaneseq
    %v7530 = vshrl.u32 %v7529, 7
    %v7531 = vsub.s32 0, %v7530
    %v7532 = vrot.slane %v7511, %v7531
    %v7533 = vmul.f32 %v7505, %v7532
    %v7534 = vmul.f32 %v7508, %v7532
    %vm7535 = vcmask 261120
    %v7536 = vsel %vm7535, %v7533, 0.0
    %7537 = vadd.xlane.f32.xlu0 %v7536
    %v7538 = vpop.xlane.xlu0 %7537
    %v7539 = vsel %vm7535, %v7534, 0.0
    %7540 = vadd.xlane.f32.xlu0 %v7539
    %v7541 = vpop.xlane.xlu0 %7540
    %v7542 = vlaneseq
    %v7543 = vshrl.u32 %v7542, 7
    %v7544 = vsub.s32 0, %v7543
    %v7545 = vrot.slane %v7512, %v7544
    %v7546 = vmul.f32 %v7505, %v7545
    %v7547 = vmul.f32 %v7508, %v7545
    %v7548 = vsel %vm7535, %v7546, 0.0
    %7549 = vadd.xlane.f32.xlu0 %v7548
    %v7550 = vpop.xlane.xlu0 %7549
    %v7551 = vsel %vm7535, %v7547, 0.0
    %7552 = vadd.xlane.f32.xlu0 %v7551
    %v7553 = vpop.xlane.xlu0 %7552
    %v7556 = vlaneseq
    %v7557 = vand.u32 %v7556, 127
    %v7558 = vlaneseq
    %v7559 = vshrl.u32 %v7558, 7
    %v7560 = vsub.s32 %v7557, %v7559
    %v7561 = vrot.slane %v7550, %v7560
    %v7562 = vlaneseq
    %v7563 = vshrl.u32 %v7562, 7
    %v7564 = vsub.s32 %v7557, %v7563
    %v7565 = vrot.slane %v7553, %v7564
    %vm7566 = vcmask 1042434
    %v7567 = vsel %vm7566, %v7561, %v7561
    %vm7568 = vcmask 1043459
    %v7569 = vsel %vm7568, %v7561, %v7567
    %vm7570 = vcmask 1044484
    %v7571 = vsel %vm7570, %v7561, %v7569
    %vm7572 = vcmask 1045509
    %v7573 = vsel %vm7572, %v7561, %v7571
    %vm7574 = vcmask 1046534
    %v7575 = vsel %vm7574, %v7561, %v7573
    %vm7576 = vcmask 1047559
    %v7577 = vsel %vm7576, %v7561, %v7575
    %v7578 = vsel %vm7566, %v7565, %v7565
    %v7579 = vsel %vm7568, %v7565, %v7578
    %v7580 = vsel %vm7570, %v7565, %v7579
    %v7581 = vsel %vm7572, %v7565, %v7580
    %v7582 = vsel %vm7574, %v7565, %v7581
    %v7583 = vsel %vm7576, %v7565, %v7582
    %v7586 = vadd.f32 %v7538, %v7577
    %v7587 = vadd.f32 %v7541, %v7583
    %vm7588 = vcmp.gt.f32.partialorder %v7586, 0.0
    %vm7589 = vcmp.gt.f32.partialorder %v7587, 0.0
    %v7590 = vmul.f32 %v7586, 0.2
    %v7591 = vmul.f32 %v7587, 0.2
    %v7592 = vsel %vm7588, %v7586, %v7590
    %v7593 = vsel %vm7589, %v7587, %v7591
    %v7594 = vsel %vm7086, %v7592, -inf
    %7595 = vmax.xlane.f32.xlu0 %v7594
    %v7596 = vpop.xlane.xlu0 %7595
    %v7597 = vsel %vm7086, %v7593, -inf
    %7598 = vmax.xlane.f32.xlu0 %v7597
    %v7599 = vpop.xlane.xlu0 %7598
    %v7600 = vsub.f32 %v7592, %v7596
    %v7601 = vsub.f32 %v7593, %v7599
    %v7602 = vmul.f32 %v7600, 1.442695
    %v7603 = vpow.pop %v7602
    %v7604 = vmul.f32 %v7601, 1.442695
    %v7605 = vpow.pop %v7604
    %v7606 = vmul.f32 %v7603, %v7395
    %v7607 = vmul.f32 %v7605, %v7397
    %v7608 = vsel %vm7086, %v7606, 0.0
    %7609 = vadd.xlane.f32.xlu0 %v7608
    %v7610 = vpop.xlane.xlu0 %7609
    %v7611 = vsel %vm7086, %v7607, 0.0
    %7612 = vadd.xlane.f32.xlu0 %v7611
    %v7613 = vpop.xlane.xlu0 %7612
    %v7614 = vadd.f32 %v7610, 1e-09
    %v7615 = vadd.f32 %v7613, 1e-09
    %v7616 = vrcp.pop %v7614
    %v7617 = vrcp.pop %v7615
    %v7618 = vmul.f32 %v7606, %v7616
    %v7619 = vmul.f32 %v7607, %v7617
    %v7620 = vpack.c.bf16 %v7618, %v7618
    %v7621 = vpack.c.bf16 %v7619, %v7619
    %v7622 = vpack.c.bf16 %v7505, %v7505
    %v7623 = vpack.c.bf16 %v7508, %v7508
    %v7625 = vsel %vm7086, %v7620, 0
    %v7628 = vsel %vm7090, %v7622, 0
    %7630 = vmatprep.subr.bf16.mxu0 0
    %7631 = vmatpush1.bf16.msra.mxu0 0
    %7632 = vmatprep.subr.bf16.mxu0 0
    %7633 = vmatpush1.bf16.msra.mxu0 0
    %7634 = vmatprep.subr.bf16.mxu0 0
    %7635 = vmatpush1.bf16.msra.mxu0 0
    %7636 = vmatprep.subr.bf16.mxu0 0
    %7637 = vmatpush1.bf16.msra.mxu0 0
    %7638 = vmatprep.subr.bf16.mxu0 0
    %7639 = vmatpush1.bf16.msra.mxu0 0
    %7640 = vmatprep.subr.bf16.mxu0 0
    %7641 = vmatpush1.bf16.msra.mxu0 0
    %7642 = vmatprep.subr.bf16.mxu0 0
    %7643 = vmatpush1.bf16.msra.mxu0 0
    %7644 = vmatprep.subr.bf16.mxu0 0
    %7645 = vmatpush1.bf16.msra.mxu0 %v7628
    %7646 = vmatprep.subr.bf16.mxu0 0
    %7647 = vmatpush2.bf16.msra.mxu0 0
    %7648 = vmatprep.subr.bf16.mxu0 0
    %7649 = vmatpush2.bf16.msra.mxu0 0
    %7650 = vmatprep.subr.bf16.mxu0 0
    %7651 = vmatpush2.bf16.msra.mxu0 0
    %7652 = vmatprep.subr.bf16.mxu0 0
    %7653 = vmatpush2.bf16.msra.mxu0 0
    %7654 = vmatprep.subr.bf16.mxu0 0
    %7655 = vmatpush2.bf16.msra.mxu0 0
    %7656 = vmatprep.subr.bf16.mxu0 0
    %7657 = vmatpush2.bf16.msra.mxu0 0
    %7658 = vmatprep.subr.bf16.mxu0 0
    %7659 = vmatpush2.bf16.msra.mxu0 0
    %7660 = vmatprep.subr.bf16.mxu0 0
    %7661 = vmatpush2.bf16.msra.mxu0 0
    %7662 = vmatprep.mubr.bf16.mxu0 0
    %7663 = vmatmul.mubr.bf16.gmra.mxu0 %v7625
    %v7664 = vpop.f32.mrf.mxu0
    %v7665 = vadd.f32 0.0, %v7664
    %v7666 = vpop.f32.mrf.mxu0
    %v7667 = vpop.f32.mrf.mxu0
    %v7668 = vpop.f32.mrf.mxu0
    %7669 = vdwg.mxu0
    %v7671 = vsel %vm7086, %v7621, 0
    %v7674 = vsel %vm7090, %v7623, 0
    %7676 = vmatprep.subr.bf16.mxu0 0
    %7677 = vmatpush1.bf16.msra.mxu0 0
    %7678 = vmatprep.subr.bf16.mxu0 0
    %7679 = vmatpush1.bf16.msra.mxu0 0
    %7680 = vmatprep.subr.bf16.mxu0 0
    %7681 = vmatpush1.bf16.msra.mxu0 0
    %7682 = vmatprep.subr.bf16.mxu0 0
    %7683 = vmatpush1.bf16.msra.mxu0 0
    %7684 = vmatprep.subr.bf16.mxu0 0
    %7685 = vmatpush1.bf16.msra.mxu0 0
    %7686 = vmatprep.subr.bf16.mxu0 0
    %7687 = vmatpush1.bf16.msra.mxu0 0
    %7688 = vmatprep.subr.bf16.mxu0 0
    %7689 = vmatpush1.bf16.msra.mxu0 0
    %7690 = vmatprep.subr.bf16.mxu0 0
    %7691 = vmatpush1.bf16.msra.mxu0 %v7674
    %7692 = vmatprep.subr.bf16.mxu0 0
    %7693 = vmatpush2.bf16.msra.mxu0 0
    %7694 = vmatprep.subr.bf16.mxu0 0
    %7695 = vmatpush2.bf16.msra.mxu0 0
    %7696 = vmatprep.subr.bf16.mxu0 0
    %7697 = vmatpush2.bf16.msra.mxu0 0
    %7698 = vmatprep.subr.bf16.mxu0 0
    %7699 = vmatpush2.bf16.msra.mxu0 0
    %7700 = vmatprep.subr.bf16.mxu0 0
    %7701 = vmatpush2.bf16.msra.mxu0 0
    %7702 = vmatprep.subr.bf16.mxu0 0
    %7703 = vmatpush2.bf16.msra.mxu0 0
    %7704 = vmatprep.subr.bf16.mxu0 0
    %7705 = vmatpush2.bf16.msra.mxu0 0
    %7706 = vmatprep.subr.bf16.mxu0 0
    %7707 = vmatpush2.bf16.msra.mxu0 0
    %7708 = vmatprep.mubr.bf16.mxu0 0
    %7709 = vmatmul.mubr.bf16.gmra.mxu0 %v7671
    %v7710 = vpop.f32.mrf.mxu0
    %v7711 = vadd.f32 0.0, %v7710
    %v7712 = vpop.f32.mrf.mxu0
    %v7713 = vpop.f32.mrf.mxu0
    %v7714 = vpop.f32.mrf.mxu0
    %7715 = vdwg.mxu0
    %vm7716 = vcmp.gt.f32.partialorder %v7665, 0.0
    %vm7717 = vcmp.gt.f32.partialorder %v7711, 0.0
    %v7718 = vmin.f32 %v7665, 0.0
    %v7719 = vmin.f32 %v7711, 0.0
    %v7720 = vmul.f32 %v7718, 1.442695
    %v7721 = vpow.pop %v7720
    %v7722 = vmul.f32 %v7719, 1.442695
    %v7723 = vpow.pop %v7722
    %v7724 = vsub.f32 %v7721, 1.0
    %v7725 = vsub.f32 %v7723, 1.0
    %v7726 = vsel %vm7716, %v7665, %v7724
    %v7727 = vsel %vm7717, %v7711, %v7725
    %v7728 = vpack.c.bf16 %v7726, %v7726
    %v7729 = vpack.c.bf16 %v7727, %v7727
    %v7730 = vlaneseq
    %v7731 = vshrl.u32 %v7730, 7
    %v7732 = vsub.s32 1, %v7731
    %v7733 = vrot.slane %v7511, %v7732
    %7735 = vrot.lane.b32.xlu0 %v7733, 32
    %v7736 = vpop.permute.xlu0 %7735
    %v7738 = vmul.f32 %v7505, %v7736
    %v7739 = vmul.f32 %v7508, %v7736
    %7742 = vrot.lane.b32.xlu0 %v7738, 96
    %v7743 = vpop.permute.xlu0 %7742
    %7744 = vrot.lane.b32.xlu0 %v7739, 96
    %v7745 = vpop.permute.xlu0 %7744
    %v7748 = vsel %vm7535, %v7743, 0.0
    %7749 = vadd.xlane.f32.xlu0 %v7748
    %v7750 = vpop.xlane.xlu0 %7749
    %v7751 = vsel %vm7535, %v7745, 0.0
    %7752 = vadd.xlane.f32.xlu0 %v7751
    %v7753 = vpop.xlane.xlu0 %7752
    %v7754 = vlaneseq
    %v7755 = vshrl.u32 %v7754, 7
    %v7756 = vsub.s32 1, %v7755
    %v7757 = vrot.slane %v7512, %v7756
    %7759 = vrot.lane.b32.xlu0 %v7757, 32
    %v7760 = vpop.permute.xlu0 %7759
    %v7762 = vmul.f32 %v7505, %v7760
    %v7763 = vmul.f32 %v7508, %v7760
    %7766 = vrot.lane.b32.xlu0 %v7762, 96
    %v7767 = vpop.permute.xlu0 %7766
    %7768 = vrot.lane.b32.xlu0 %v7763, 96
    %v7769 = vpop.permute.xlu0 %7768
    %v7772 = vsel %vm7535, %v7767, 0.0
    %7773 = vadd.xlane.f32.xlu0 %v7772
    %v7774 = vpop.xlane.xlu0 %7773
    %v7775 = vsel %vm7535, %v7769, 0.0
    %7776 = vadd.xlane.f32.xlu0 %v7775
    %v7777 = vpop.xlane.xlu0 %7776
    %v7780 = vlaneseq
    %v7781 = vshrl.u32 %v7780, 7
    %v7782 = vsub.s32 %v7557, %v7781
    %v7783 = vrot.slane %v7774, %v7782
    %v7784 = vlaneseq
    %v7785 = vshrl.u32 %v7784, 7
    %v7786 = vsub.s32 %v7557, %v7785
    %v7787 = vrot.slane %v7777, %v7786
    %v7788 = vsel %vm7566, %v7783, %v7783
    %v7789 = vsel %vm7568, %v7783, %v7788
    %v7790 = vsel %vm7570, %v7783, %v7789
    %v7791 = vsel %vm7572, %v7783, %v7790
    %v7792 = vsel %vm7574, %v7783, %v7791
    %v7793 = vsel %vm7576, %v7783, %v7792
    %v7794 = vsel %vm7566, %v7787, %v7787
    %v7795 = vsel %vm7568, %v7787, %v7794
    %v7796 = vsel %vm7570, %v7787, %v7795
    %v7797 = vsel %vm7572, %v7787, %v7796
    %v7798 = vsel %vm7574, %v7787, %v7797
    %v7799 = vsel %vm7576, %v7787, %v7798
    %v7802 = vadd.f32 %v7750, %v7793
    %v7803 = vadd.f32 %v7753, %v7799
    %vm7804 = vcmp.gt.f32.partialorder %v7802, 0.0
    %vm7805 = vcmp.gt.f32.partialorder %v7803, 0.0
    %v7806 = vmul.f32 %v7802, 0.2
    %v7807 = vmul.f32 %v7803, 0.2
    %v7808 = vsel %vm7804, %v7802, %v7806
    %v7809 = vsel %vm7805, %v7803, %v7807
    %v7810 = vsel %vm7086, %v7808, -inf
    %7811 = vmax.xlane.f32.xlu0 %v7810
    %v7812 = vpop.xlane.xlu0 %7811
    %v7813 = vsel %vm7086, %v7809, -inf
    %7814 = vmax.xlane.f32.xlu0 %v7813
    %v7815 = vpop.xlane.xlu0 %7814
    %v7816 = vsub.f32 %v7808, %v7812
    %v7817 = vsub.f32 %v7809, %v7815
    %v7818 = vmul.f32 %v7816, 1.442695
    %v7819 = vpow.pop %v7818
    %v7820 = vmul.f32 %v7817, 1.442695
    %v7821 = vpow.pop %v7820
    %v7822 = vmul.f32 %v7819, %v7395
    %v7823 = vmul.f32 %v7821, %v7397
    %v7824 = vsel %vm7086, %v7822, 0.0
    %7825 = vadd.xlane.f32.xlu0 %v7824
    %v7826 = vpop.xlane.xlu0 %7825
    %v7827 = vsel %vm7086, %v7823, 0.0
    %7828 = vadd.xlane.f32.xlu0 %v7827
    %v7829 = vpop.xlane.xlu0 %7828
    %v7830 = vadd.f32 %v7826, 1e-09
    %v7831 = vadd.f32 %v7829, 1e-09
    %v7832 = vrcp.pop %v7830
    %v7833 = vrcp.pop %v7831
    %v7834 = vmul.f32 %v7822, %v7832
    %v7835 = vmul.f32 %v7823, %v7833
    %v7836 = vpack.c.bf16 %v7834, %v7834
    %v7837 = vpack.c.bf16 %v7835, %v7835
    %7839 = vrot.lane.b32.xlu0 %v7622, 96
    %v7840 = vpop.permute.xlu0 %7839
    %v7842 = vsel %vm7086, %v7836, 0
    %v7845 = vsel %vm7090, %v7840, 0
    %7847 = vmatprep.subr.bf16.mxu0 0
    %7848 = vmatpush1.bf16.msra.mxu0 0
    %7849 = vmatprep.subr.bf16.mxu0 0
    %7850 = vmatpush1.bf16.msra.mxu0 0
    %7851 = vmatprep.subr.bf16.mxu0 0
    %7852 = vmatpush1.bf16.msra.mxu0 0
    %7853 = vmatprep.subr.bf16.mxu0 0
    %7854 = vmatpush1.bf16.msra.mxu0 0
    %7855 = vmatprep.subr.bf16.mxu0 0
    %7856 = vmatpush1.bf16.msra.mxu0 0
    %7857 = vmatprep.subr.bf16.mxu0 0
    %7858 = vmatpush1.bf16.msra.mxu0 0
    %7859 = vmatprep.subr.bf16.mxu0 0
    %7860 = vmatpush1.bf16.msra.mxu0 0
    %7861 = vmatprep.subr.bf16.mxu0 0
    %7862 = vmatpush1.bf16.msra.mxu0 %v7845
    %7863 = vmatprep.subr.bf16.mxu0 0
    %7864 = vmatpush2.bf16.msra.mxu0 0
    %7865 = vmatprep.subr.bf16.mxu0 0
    %7866 = vmatpush2.bf16.msra.mxu0 0
    %7867 = vmatprep.subr.bf16.mxu0 0
    %7868 = vmatpush2.bf16.msra.mxu0 0
    %7869 = vmatprep.subr.bf16.mxu0 0
    %7870 = vmatpush2.bf16.msra.mxu0 0
    %7871 = vmatprep.subr.bf16.mxu0 0
    %7872 = vmatpush2.bf16.msra.mxu0 0
    %7873 = vmatprep.subr.bf16.mxu0 0
    %7874 = vmatpush2.bf16.msra.mxu0 0
    %7875 = vmatprep.subr.bf16.mxu0 0
    %7876 = vmatpush2.bf16.msra.mxu0 0
    %7877 = vmatprep.subr.bf16.mxu0 0
    %7878 = vmatpush2.bf16.msra.mxu0 0
    %7879 = vmatprep.mubr.bf16.mxu0 0
    %7880 = vmatmul.mubr.bf16.gmra.mxu0 %v7842
    %v7881 = vpop.f32.mrf.mxu0
    %v7882 = vadd.f32 0.0, %v7881
    %v7883 = vpop.f32.mrf.mxu0
    %v7884 = vpop.f32.mrf.mxu0
    %v7885 = vpop.f32.mrf.mxu0
    %7886 = vdwg.mxu0
    %7888 = vrot.lane.b32.xlu0 %v7623, 96
    %v7889 = vpop.permute.xlu0 %7888
    %v7891 = vsel %vm7086, %v7837, 0
    %v7894 = vsel %vm7090, %v7889, 0
    %7896 = vmatprep.subr.bf16.mxu0 0
    %7897 = vmatpush1.bf16.msra.mxu0 0
    %7898 = vmatprep.subr.bf16.mxu0 0
    %7899 = vmatpush1.bf16.msra.mxu0 0
    %7900 = vmatprep.subr.bf16.mxu0 0
    %7901 = vmatpush1.bf16.msra.mxu0 0
    %7902 = vmatprep.subr.bf16.mxu0 0
    %7903 = vmatpush1.bf16.msra.mxu0 0
    %7904 = vmatprep.subr.bf16.mxu0 0
    %7905 = vmatpush1.bf16.msra.mxu0 0
    %7906 = vmatprep.subr.bf16.mxu0 0
    %7907 = vmatpush1.bf16.msra.mxu0 0
    %7908 = vmatprep.subr.bf16.mxu0 0
    %7909 = vmatpush1.bf16.msra.mxu0 0
    %7910 = vmatprep.subr.bf16.mxu0 0
    %7911 = vmatpush1.bf16.msra.mxu0 %v7894
    %7912 = vmatprep.subr.bf16.mxu0 0
    %7913 = vmatpush2.bf16.msra.mxu0 0
    %7914 = vmatprep.subr.bf16.mxu0 0
    %7915 = vmatpush2.bf16.msra.mxu0 0
    %7916 = vmatprep.subr.bf16.mxu0 0
    %7917 = vmatpush2.bf16.msra.mxu0 0
    %7918 = vmatprep.subr.bf16.mxu0 0
    %7919 = vmatpush2.bf16.msra.mxu0 0
    %7920 = vmatprep.subr.bf16.mxu0 0
    %7921 = vmatpush2.bf16.msra.mxu0 0
    %7922 = vmatprep.subr.bf16.mxu0 0
    %7923 = vmatpush2.bf16.msra.mxu0 0
    %7924 = vmatprep.subr.bf16.mxu0 0
    %7925 = vmatpush2.bf16.msra.mxu0 0
    %7926 = vmatprep.subr.bf16.mxu0 0
    %7927 = vmatpush2.bf16.msra.mxu0 0
    %7928 = vmatprep.mubr.bf16.mxu0 0
    %7929 = vmatmul.mubr.bf16.gmra.mxu0 %v7891
    %v7930 = vpop.f32.mrf.mxu0
    %v7931 = vadd.f32 0.0, %v7930
    %v7932 = vpop.f32.mrf.mxu0
    %v7933 = vpop.f32.mrf.mxu0
    %v7934 = vpop.f32.mrf.mxu0
    %7935 = vdwg.mxu0
    %vm7936 = vcmp.gt.f32.partialorder %v7882, 0.0
    %vm7937 = vcmp.gt.f32.partialorder %v7931, 0.0
    %v7938 = vmin.f32 %v7882, 0.0
    %v7939 = vmin.f32 %v7931, 0.0
    %v7940 = vmul.f32 %v7938, 1.442695
    %v7941 = vpow.pop %v7940
    %v7942 = vmul.f32 %v7939, 1.442695
    %v7943 = vpow.pop %v7942
    %v7944 = vsub.f32 %v7941, 1.0
    %v7945 = vsub.f32 %v7943, 1.0
    %v7946 = vsel %vm7936, %v7882, %v7944
    %v7947 = vsel %vm7937, %v7931, %v7945
    %v7948 = vpack.c.bf16 %v7946, %v7946
    %v7949 = vpack.c.bf16 %v7947, %v7947
    %v7952 = vunpack.c.l.b16 %v7948
    %v7953 = vunpack.c.l.b16 %v7949
    %v7954 = vpack.c.b16 %v7953, %v7952
    %v7959 = vunpack.c.l.b16 %v7517
    %v7960 = vunpack.c.l.b16 %v7518
    %v7961 = vunpack.c.l.b16 %v7519
    %v7962 = vunpack.c.l.b16 %v7520
    %v7963 = vpack.c.b16 %v7960, %v7959
    %v7964 = vpack.c.b16 %v7962, %v7961
    %v7968 = vsel %vm7535, %v7954, 0
    %7970 = vmatprep.subr.bf16.mxu0 0
    %7971 = vmatpush1.bf16.msra.mxu0 0
    %7972 = vmatprep.subr.bf16.mxu0 0
    %7973 = vmatpush1.bf16.msra.mxu0 0
    %7974 = vmatprep.subr.bf16.mxu0 0
    %7975 = vmatpush1.bf16.msra.mxu0 0
    %7976 = vmatprep.subr.bf16.mxu0 0
    %7977 = vmatpush1.bf16.msra.mxu0 0
    %7978 = vmatprep.subr.bf16.mxu0 0
    %7979 = vmatpush1.bf16.msra.mxu0 0
    %7980 = vmatprep.subr.bf16.mxu0 0
    %7981 = vmatpush1.bf16.msra.mxu0 0
    %7982 = vmatprep.subr.bf16.mxu0 0
    %7983 = vmatpush1.bf16.msra.mxu0 %v7964
    %7984 = vmatprep.subr.bf16.mxu0 0
    %7985 = vmatpush1.bf16.msra.mxu0 %v7963
    %7986 = vmatprep.subr.bf16.mxu0 0
    %7987 = vmatpush2.bf16.msra.mxu0 0
    %7988 = vmatprep.subr.bf16.mxu0 0
    %7989 = vmatpush2.bf16.msra.mxu0 0
    %7990 = vmatprep.subr.bf16.mxu0 0
    %7991 = vmatpush2.bf16.msra.mxu0 0
    %7992 = vmatprep.subr.bf16.mxu0 0
    %7993 = vmatpush2.bf16.msra.mxu0 0
    %7994 = vmatprep.subr.bf16.mxu0 0
    %7995 = vmatpush2.bf16.msra.mxu0 0
    %7996 = vmatprep.subr.bf16.mxu0 0
    %7997 = vmatpush2.bf16.msra.mxu0 0
    %7998 = vmatprep.subr.bf16.mxu0 0
    %7999 = vmatpush2.bf16.msra.mxu0 0
    %8000 = vmatprep.subr.bf16.mxu0 0
    %8001 = vmatpush2.bf16.msra.mxu0 0
    %8002 = vmatprep.mubr.bf16.mxu0 0
    %8003 = vmatmul.mubr.bf16.gmra.mxu0 %v7968
    %v8004 = vpop.f32.mrf.mxu0
    %v8005 = vadd.f32 0.0, %v8004
    %v8006 = vpop.f32.mrf.mxu0
    %v8007 = vpop.f32.mrf.mxu0
    %v8008 = vadd.f32 0.0, %v8007
    %v8009 = vpop.f32.mrf.mxu0
    %8010 = vdwg.mxu0
    %v8013 = vunpack.c.l.b16 %v7728
    %v8014 = vunpack.c.l.b16 %v7729
    %v8015 = vpack.c.b16 %v8014, %v8013
    %v8020 = vunpack.c.l.b16 %v7513
    %v8021 = vunpack.c.l.b16 %v7514
    %v8022 = vunpack.c.l.b16 %v7515
    %v8023 = vunpack.c.l.b16 %v7516
    %v8024 = vpack.c.b16 %v8021, %v8020
    %v8025 = vpack.c.b16 %v8023, %v8022
    %v8029 = vsel %vm7535, %v8015, 0
    %8031 = vmatprep.subr.bf16.mxu0 0
    %8032 = vmatpush1.bf16.msra.mxu0 0
    %8033 = vmatprep.subr.bf16.mxu0 0
    %8034 = vmatpush1.bf16.msra.mxu0 0
    %8035 = vmatprep.subr.bf16.mxu0 0
    %8036 = vmatpush1.bf16.msra.mxu0 0
    %8037 = vmatprep.subr.bf16.mxu0 0
    %8038 = vmatpush1.bf16.msra.mxu0 0
    %8039 = vmatprep.subr.bf16.mxu0 0
    %8040 = vmatpush1.bf16.msra.mxu0 0
    %8041 = vmatprep.subr.bf16.mxu0 0
    %8042 = vmatpush1.bf16.msra.mxu0 0
    %8043 = vmatprep.subr.bf16.mxu0 0
    %8044 = vmatpush1.bf16.msra.mxu0 %v8025
    %8045 = vmatprep.subr.bf16.mxu0 0
    %8046 = vmatpush1.bf16.msra.mxu0 %v8024
    %8047 = vmatprep.subr.bf16.mxu0 0
    %8048 = vmatpush2.bf16.msra.mxu0 0
    %8049 = vmatprep.subr.bf16.mxu0 0
    %8050 = vmatpush2.bf16.msra.mxu0 0
    %8051 = vmatprep.subr.bf16.mxu0 0
    %8052 = vmatpush2.bf16.msra.mxu0 0
    %8053 = vmatprep.subr.bf16.mxu0 0
    %8054 = vmatpush2.bf16.msra.mxu0 0
    %8055 = vmatprep.subr.bf16.mxu0 0
    %8056 = vmatpush2.bf16.msra.mxu0 0
    %8057 = vmatprep.subr.bf16.mxu0 0
    %8058 = vmatpush2.bf16.msra.mxu0 0
    %8059 = vmatprep.subr.bf16.mxu0 0
    %8060 = vmatpush2.bf16.msra.mxu0 0
    %8061 = vmatprep.subr.bf16.mxu0 0
    %8062 = vmatpush2.bf16.msra.mxu0 0
    %8063 = vmatprep.mubr.bf16.mxu0 0
    %8064 = vmatmul.mubr.bf16.gmra.mxu0 %v8029
    %v8065 = vpop.f32.mrf.mxu0
    %v8066 = vadd.f32 %v8005, %v8065
    %v8067 = vpop.f32.mrf.mxu0
    %v8068 = vpop.f32.mrf.mxu0
    %v8069 = vadd.f32 %v8008, %v8068
    %v8070 = vpop.f32.mrf.mxu0
    %8071 = vdwg.mxu0
    %v8072 = vlaneseq
    %v8073 = vshrl.u32 %v8072, 7
    %v8074 = vsub.s32 2, %v8073
    %v8075 = vrot.slane %v7511, %v8074
    %8077 = vrot.lane.b32.xlu0 %v8075, 64
    %v8078 = vpop.permute.xlu0 %8077
    %v8080 = vmul.f32 %v7505, %v8078
    %v8081 = vmul.f32 %v7508, %v8078
    %8084 = vrot.lane.b32.xlu0 %v8080, 64
    %v8085 = vpop.permute.xlu0 %8084
    %8086 = vrot.lane.b32.xlu0 %v8081, 64
    %v8087 = vpop.permute.xlu0 %8086
    %v8090 = vsel %vm7535, %v8085, 0.0
    %8091 = vadd.xlane.f32.xlu0 %v8090
    %v8092 = vpop.xlane.xlu0 %8091
    %v8093 = vsel %vm7535, %v8087, 0.0
    %8094 = vadd.xlane.f32.xlu0 %v8093
    %v8095 = vpop.xlane.xlu0 %8094
    %v8096 = vlaneseq
    %v8097 = vshrl.u32 %v8096, 7
    %v8098 = vsub.s32 2, %v8097
    %v8099 = vrot.slane %v7512, %v8098
    %8101 = vrot.lane.b32.xlu0 %v8099, 64
    %v8102 = vpop.permute.xlu0 %8101
    %v8104 = vmul.f32 %v7505, %v8102
    %v8105 = vmul.f32 %v7508, %v8102
    %8108 = vrot.lane.b32.xlu0 %v8104, 64
    %v8109 = vpop.permute.xlu0 %8108
    %8110 = vrot.lane.b32.xlu0 %v8105, 64
    %v8111 = vpop.permute.xlu0 %8110
    %v8114 = vsel %vm7535, %v8109, 0.0
    %8115 = vadd.xlane.f32.xlu0 %v8114
    %v8116 = vpop.xlane.xlu0 %8115
    %v8117 = vsel %vm7535, %v8111, 0.0
    %8118 = vadd.xlane.f32.xlu0 %v8117
    %v8119 = vpop.xlane.xlu0 %8118
    %v8122 = vlaneseq
    %v8123 = vshrl.u32 %v8122, 7
    %v8124 = vsub.s32 %v7557, %v8123
    %v8125 = vrot.slane %v8116, %v8124
    %v8126 = vlaneseq
    %v8127 = vshrl.u32 %v8126, 7
    %v8128 = vsub.s32 %v7557, %v8127
    %v8129 = vrot.slane %v8119, %v8128
    %v8130 = vsel %vm7566, %v8125, %v8125
    %v8131 = vsel %vm7568, %v8125, %v8130
    %v8132 = vsel %vm7570, %v8125, %v8131
    %v8133 = vsel %vm7572, %v8125, %v8132
    %v8134 = vsel %vm7574, %v8125, %v8133
    %v8135 = vsel %vm7576, %v8125, %v8134
    %v8136 = vsel %vm7566, %v8129, %v8129
    %v8137 = vsel %vm7568, %v8129, %v8136
    %v8138 = vsel %vm7570, %v8129, %v8137
    %v8139 = vsel %vm7572, %v8129, %v8138
    %v8140 = vsel %vm7574, %v8129, %v8139
    %v8141 = vsel %vm7576, %v8129, %v8140
    %v8144 = vadd.f32 %v8092, %v8135
    %v8145 = vadd.f32 %v8095, %v8141
    %vm8146 = vcmp.gt.f32.partialorder %v8144, 0.0
    %vm8147 = vcmp.gt.f32.partialorder %v8145, 0.0
    %v8148 = vmul.f32 %v8144, 0.2
    %v8149 = vmul.f32 %v8145, 0.2
    %v8150 = vsel %vm8146, %v8144, %v8148
    %v8151 = vsel %vm8147, %v8145, %v8149
    %v8152 = vsel %vm7086, %v8150, -inf
    %8153 = vmax.xlane.f32.xlu0 %v8152
    %v8154 = vpop.xlane.xlu0 %8153
    %v8155 = vsel %vm7086, %v8151, -inf
    %8156 = vmax.xlane.f32.xlu0 %v8155
    %v8157 = vpop.xlane.xlu0 %8156
    %v8158 = vsub.f32 %v8150, %v8154
    %v8159 = vsub.f32 %v8151, %v8157
    %v8160 = vmul.f32 %v8158, 1.442695
    %v8161 = vpow.pop %v8160
    %v8162 = vmul.f32 %v8159, 1.442695
    %v8163 = vpow.pop %v8162
    %v8164 = vmul.f32 %v8161, %v7395
    %v8165 = vmul.f32 %v8163, %v7397
    %v8166 = vsel %vm7086, %v8164, 0.0
    %8167 = vadd.xlane.f32.xlu0 %v8166
    %v8168 = vpop.xlane.xlu0 %8167
    %v8169 = vsel %vm7086, %v8165, 0.0
    %8170 = vadd.xlane.f32.xlu0 %v8169
    %v8171 = vpop.xlane.xlu0 %8170
    %v8172 = vadd.f32 %v8168, 1e-09
    %v8173 = vadd.f32 %v8171, 1e-09
    %v8174 = vrcp.pop %v8172
    %v8175 = vrcp.pop %v8173
    %v8176 = vmul.f32 %v8164, %v8174
    %v8177 = vmul.f32 %v8165, %v8175
    %v8178 = vpack.c.bf16 %v8176, %v8176
    %v8179 = vpack.c.bf16 %v8177, %v8177
    %8180 = vrot.lane.b32.xlu0 %v7622, 64
    %v8181 = vpop.permute.xlu0 %8180
    %v8183 = vsel %vm7086, %v8178, 0
    %v8186 = vsel %vm7090, %v8181, 0
    %8188 = vmatprep.subr.bf16.mxu0 0
    %8189 = vmatpush1.bf16.msra.mxu0 0
    %8190 = vmatprep.subr.bf16.mxu0 0
    %8191 = vmatpush1.bf16.msra.mxu0 0
    %8192 = vmatprep.subr.bf16.mxu0 0
    %8193 = vmatpush1.bf16.msra.mxu0 0
    %8194 = vmatprep.subr.bf16.mxu0 0
    %8195 = vmatpush1.bf16.msra.mxu0 0
    %8196 = vmatprep.subr.bf16.mxu0 0
    %8197 = vmatpush1.bf16.msra.mxu0 0
    %8198 = vmatprep.subr.bf16.mxu0 0
    %8199 = vmatpush1.bf16.msra.mxu0 0
    %8200 = vmatprep.subr.bf16.mxu0 0
    %8201 = vmatpush1.bf16.msra.mxu0 0
    %8202 = vmatprep.subr.bf16.mxu0 0
    %8203 = vmatpush1.bf16.msra.mxu0 %v8186
    %8204 = vmatprep.subr.bf16.mxu0 0
    %8205 = vmatpush2.bf16.msra.mxu0 0
    %8206 = vmatprep.subr.bf16.mxu0 0
    %8207 = vmatpush2.bf16.msra.mxu0 0
    %8208 = vmatprep.subr.bf16.mxu0 0
    %8209 = vmatpush2.bf16.msra.mxu0 0
    %8210 = vmatprep.subr.bf16.mxu0 0
    %8211 = vmatpush2.bf16.msra.mxu0 0
    %8212 = vmatprep.subr.bf16.mxu0 0
    %8213 = vmatpush2.bf16.msra.mxu0 0
    %8214 = vmatprep.subr.bf16.mxu0 0
    %8215 = vmatpush2.bf16.msra.mxu0 0
    %8216 = vmatprep.subr.bf16.mxu0 0
    %8217 = vmatpush2.bf16.msra.mxu0 0
    %8218 = vmatprep.subr.bf16.mxu0 0
    %8219 = vmatpush2.bf16.msra.mxu0 0
    %8220 = vmatprep.mubr.bf16.mxu0 0
    %8221 = vmatmul.mubr.bf16.gmra.mxu0 %v8183
    %v8222 = vpop.f32.mrf.mxu0
    %v8223 = vadd.f32 0.0, %v8222
    %v8224 = vpop.f32.mrf.mxu0
    %v8225 = vpop.f32.mrf.mxu0
    %v8226 = vpop.f32.mrf.mxu0
    %8227 = vdwg.mxu0
    %8228 = vrot.lane.b32.xlu0 %v7623, 64
    %v8229 = vpop.permute.xlu0 %8228
    %v8231 = vsel %vm7086, %v8179, 0
    %v8234 = vsel %vm7090, %v8229, 0
    %8236 = vmatprep.subr.bf16.mxu0 0
    %8237 = vmatpush1.bf16.msra.mxu0 0
    %8238 = vmatprep.subr.bf16.mxu0 0
    %8239 = vmatpush1.bf16.msra.mxu0 0
    %8240 = vmatprep.subr.bf16.mxu0 0
    %8241 = vmatpush1.bf16.msra.mxu0 0
    %8242 = vmatprep.subr.bf16.mxu0 0
    %8243 = vmatpush1.bf16.msra.mxu0 0
    %8244 = vmatprep.subr.bf16.mxu0 0
    %8245 = vmatpush1.bf16.msra.mxu0 0
    %8246 = vmatprep.subr.bf16.mxu0 0
    %8247 = vmatpush1.bf16.msra.mxu0 0
    %8248 = vmatprep.subr.bf16.mxu0 0
    %8249 = vmatpush1.bf16.msra.mxu0 0
    %8250 = vmatprep.subr.bf16.mxu0 0
    %8251 = vmatpush1.bf16.msra.mxu0 %v8234
    %8252 = vmatprep.subr.bf16.mxu0 0
    %8253 = vmatpush2.bf16.msra.mxu0 0
    %8254 = vmatprep.subr.bf16.mxu0 0
    %8255 = vmatpush2.bf16.msra.mxu0 0
    %8256 = vmatprep.subr.bf16.mxu0 0
    %8257 = vmatpush2.bf16.msra.mxu0 0
    %8258 = vmatprep.subr.bf16.mxu0 0
    %8259 = vmatpush2.bf16.msra.mxu0 0
    %8260 = vmatprep.subr.bf16.mxu0 0
    %8261 = vmatpush2.bf16.msra.mxu0 0
    %8262 = vmatprep.subr.bf16.mxu0 0
    %8263 = vmatpush2.bf16.msra.mxu0 0
    %8264 = vmatprep.subr.bf16.mxu0 0
    %8265 = vmatpush2.bf16.msra.mxu0 0
    %8266 = vmatprep.subr.bf16.mxu0 0
    %8267 = vmatpush2.bf16.msra.mxu0 0
    %8268 = vmatprep.mubr.bf16.mxu0 0
    %8269 = vmatmul.mubr.bf16.gmra.mxu0 %v8231
    %v8270 = vpop.f32.mrf.mxu0
    %v8271 = vadd.f32 0.0, %v8270
    %v8272 = vpop.f32.mrf.mxu0
    %v8273 = vpop.f32.mrf.mxu0
    %v8274 = vpop.f32.mrf.mxu0
    %8275 = vdwg.mxu0
    %vm8276 = vcmp.gt.f32.partialorder %v8223, 0.0
    %vm8277 = vcmp.gt.f32.partialorder %v8271, 0.0
    %v8278 = vmin.f32 %v8223, 0.0
    %v8279 = vmin.f32 %v8271, 0.0
    %v8280 = vmul.f32 %v8278, 1.442695
    %v8281 = vpow.pop %v8280
    %v8282 = vmul.f32 %v8279, 1.442695
    %v8283 = vpow.pop %v8282
    %v8284 = vsub.f32 %v8281, 1.0
    %v8285 = vsub.f32 %v8283, 1.0
    %v8286 = vsel %vm8276, %v8223, %v8284
    %v8287 = vsel %vm8277, %v8271, %v8285
    %v8288 = vpack.c.bf16 %v8286, %v8286
    %v8289 = vpack.c.bf16 %v8287, %v8287
    %v8292 = vunpack.c.l.b16 %v8288
    %v8293 = vunpack.c.l.b16 %v8289
    %v8294 = vpack.c.b16 %v8293, %v8292
    %v8299 = vunpack.c.l.b16 %v7521
    %v8300 = vunpack.c.l.b16 %v7522
    %v8301 = vunpack.c.l.b16 %v7523
    %v8302 = vunpack.c.l.b16 %v7524
    %v8303 = vpack.c.b16 %v8300, %v8299
    %v8304 = vpack.c.b16 %v8302, %v8301
    %v8308 = vsel %vm7535, %v8294, 0
    %8310 = vmatprep.subr.bf16.mxu0 0
    %8311 = vmatpush1.bf16.msra.mxu0 0
    %8312 = vmatprep.subr.bf16.mxu0 0
    %8313 = vmatpush1.bf16.msra.mxu0 0
    %8314 = vmatprep.subr.bf16.mxu0 0
    %8315 = vmatpush1.bf16.msra.mxu0 0
    %8316 = vmatprep.subr.bf16.mxu0 0
    %8317 = vmatpush1.bf16.msra.mxu0 0
    %8318 = vmatprep.subr.bf16.mxu0 0
    %8319 = vmatpush1.bf16.msra.mxu0 0
    %8320 = vmatprep.subr.bf16.mxu0 0
    %8321 = vmatpush1.bf16.msra.mxu0 0
    %8322 = vmatprep.subr.bf16.mxu0 0
    %8323 = vmatpush1.bf16.msra.mxu0 %v8304
    %8324 = vmatprep.subr.bf16.mxu0 0
    %8325 = vmatpush1.bf16.msra.mxu0 %v8303
    %8326 = vmatprep.subr.bf16.mxu0 0
    %8327 = vmatpush2.bf16.msra.mxu0 0
    %8328 = vmatprep.subr.bf16.mxu0 0
    %8329 = vmatpush2.bf16.msra.mxu0 0
    %8330 = vmatprep.subr.bf16.mxu0 0
    %8331 = vmatpush2.bf16.msra.mxu0 0
    %8332 = vmatprep.subr.bf16.mxu0 0
    %8333 = vmatpush2.bf16.msra.mxu0 0
    %8334 = vmatprep.subr.bf16.mxu0 0
    %8335 = vmatpush2.bf16.msra.mxu0 0
    %8336 = vmatprep.subr.bf16.mxu0 0
    %8337 = vmatpush2.bf16.msra.mxu0 0
    %8338 = vmatprep.subr.bf16.mxu0 0
    %8339 = vmatpush2.bf16.msra.mxu0 0
    %8340 = vmatprep.subr.bf16.mxu0 0
    %8341 = vmatpush2.bf16.msra.mxu0 0
    %8342 = vmatprep.mubr.bf16.mxu0 0
    %8343 = vmatmul.mubr.bf16.gmra.mxu0 %v8308
    %v8344 = vpop.f32.mrf.mxu0
    %v8345 = vadd.f32 0.0, %v8344
    %v8346 = vpop.f32.mrf.mxu0
    %v8347 = vpop.f32.mrf.mxu0
    %v8348 = vadd.f32 0.0, %v8347
    %v8349 = vpop.f32.mrf.mxu0
    %8350 = vdwg.mxu0
    %v8351 = vadd.f32 %v8066, %v8345
    %v8352 = vadd.f32 %v8069, %v8348
    %v8353 = vlaneseq
    %v8354 = vshrl.u32 %v8353, 7
    %v8355 = vsub.s32 3, %v8354
    %v8356 = vrot.slane %v7511, %v8355
    %8358 = vrot.lane.b32.xlu0 %v8356, 96
    %v8359 = vpop.permute.xlu0 %8358
    %v8361 = vmul.f32 %v7505, %v8359
    %v8362 = vmul.f32 %v7508, %v8359
    %8365 = vrot.lane.b32.xlu0 %v8361, 32
    %v8366 = vpop.permute.xlu0 %8365
    %8367 = vrot.lane.b32.xlu0 %v8362, 32
    %v8368 = vpop.permute.xlu0 %8367
    %v8371 = vsel %vm7535, %v8366, 0.0
    %8372 = vadd.xlane.f32.xlu0 %v8371
    %v8373 = vpop.xlane.xlu0 %8372
    %v8374 = vsel %vm7535, %v8368, 0.0
    %8375 = vadd.xlane.f32.xlu0 %v8374
    %v8376 = vpop.xlane.xlu0 %8375
    %v8377 = vlaneseq
    %v8378 = vshrl.u32 %v8377, 7
    %v8379 = vsub.s32 3, %v8378
    %v8380 = vrot.slane %v7512, %v8379
    %8382 = vrot.lane.b32.xlu0 %v8380, 96
    %v8383 = vpop.permute.xlu0 %8382
    %v8385 = vmul.f32 %v7505, %v8383
    %v8386 = vmul.f32 %v7508, %v8383
    %8389 = vrot.lane.b32.xlu0 %v8385, 32
    %v8390 = vpop.permute.xlu0 %8389
    %8391 = vrot.lane.b32.xlu0 %v8386, 32
    %v8392 = vpop.permute.xlu0 %8391
    %v8395 = vsel %vm7535, %v8390, 0.0
    %8396 = vadd.xlane.f32.xlu0 %v8395
    %v8397 = vpop.xlane.xlu0 %8396
    %v8398 = vsel %vm7535, %v8392, 0.0
    %8399 = vadd.xlane.f32.xlu0 %v8398
    %v8400 = vpop.xlane.xlu0 %8399
    %v8403 = vlaneseq
    %v8404 = vshrl.u32 %v8403, 7
    %v8405 = vsub.s32 %v7557, %v8404
    %v8406 = vrot.slane %v8397, %v8405
    %v8407 = vlaneseq
    %v8408 = vshrl.u32 %v8407, 7
    %v8409 = vsub.s32 %v7557, %v8408
    %v8410 = vrot.slane %v8400, %v8409
    %v8411 = vsel %vm7566, %v8406, %v8406
    %v8412 = vsel %vm7568, %v8406, %v8411
    %v8413 = vsel %vm7570, %v8406, %v8412
    %v8414 = vsel %vm7572, %v8406, %v8413
    %v8415 = vsel %vm7574, %v8406, %v8414
    %v8416 = vsel %vm7576, %v8406, %v8415
    %v8417 = vsel %vm7566, %v8410, %v8410
    %v8418 = vsel %vm7568, %v8410, %v8417
    %v8419 = vsel %vm7570, %v8410, %v8418
    %v8420 = vsel %vm7572, %v8410, %v8419
    %v8421 = vsel %vm7574, %v8410, %v8420
    %v8422 = vsel %vm7576, %v8410, %v8421
    %v8425 = vadd.f32 %v8373, %v8416
    %v8426 = vadd.f32 %v8376, %v8422
    %vm8427 = vcmp.gt.f32.partialorder %v8425, 0.0
    %vm8428 = vcmp.gt.f32.partialorder %v8426, 0.0
    %v8429 = vmul.f32 %v8425, 0.2
    %v8430 = vmul.f32 %v8426, 0.2
    %v8431 = vsel %vm8427, %v8425, %v8429
    %v8432 = vsel %vm8428, %v8426, %v8430
    %v8433 = vsel %vm7086, %v8431, -inf
    %8434 = vmax.xlane.f32.xlu0 %v8433
    %v8435 = vpop.xlane.xlu0 %8434
    %v8436 = vsel %vm7086, %v8432, -inf
    %8437 = vmax.xlane.f32.xlu0 %v8436
    %v8438 = vpop.xlane.xlu0 %8437
    %v8439 = vsub.f32 %v8431, %v8435
    %v8440 = vsub.f32 %v8432, %v8438
    %v8441 = vmul.f32 %v8439, 1.442695
    %v8442 = vpow.pop %v8441
    %v8443 = vmul.f32 %v8440, 1.442695
    %v8444 = vpow.pop %v8443
    %v8445 = vmul.f32 %v8442, %v7395
    %v8446 = vmul.f32 %v8444, %v7397
    %v8447 = vsel %vm7086, %v8445, 0.0
    %8448 = vadd.xlane.f32.xlu0 %v8447
    %v8449 = vpop.xlane.xlu0 %8448
    %v8450 = vsel %vm7086, %v8446, 0.0
    %8451 = vadd.xlane.f32.xlu0 %v8450
    %v8452 = vpop.xlane.xlu0 %8451
    %v8453 = vadd.f32 %v8449, 1e-09
    %v8454 = vadd.f32 %v8452, 1e-09
    %v8455 = vrcp.pop %v8453
    %v8456 = vrcp.pop %v8454
    %v8457 = vmul.f32 %v8445, %v8455
    %v8458 = vmul.f32 %v8446, %v8456
    %v8459 = vpack.c.bf16 %v8457, %v8457
    %v8460 = vpack.c.bf16 %v8458, %v8458
    %8461 = vrot.lane.b32.xlu0 %v7622, 32
    %v8462 = vpop.permute.xlu0 %8461
    %v8464 = vsel %vm7086, %v8459, 0
    %v8467 = vsel %vm7090, %v8462, 0
    %8469 = vmatprep.subr.bf16.mxu0 0
    %8470 = vmatpush1.bf16.msra.mxu0 0
    %8471 = vmatprep.subr.bf16.mxu0 0
    %8472 = vmatpush1.bf16.msra.mxu0 0
    %8473 = vmatprep.subr.bf16.mxu0 0
    %8474 = vmatpush1.bf16.msra.mxu0 0
    %8475 = vmatprep.subr.bf16.mxu0 0
    %8476 = vmatpush1.bf16.msra.mxu0 0
    %8477 = vmatprep.subr.bf16.mxu0 0
    %8478 = vmatpush1.bf16.msra.mxu0 0
    %8479 = vmatprep.subr.bf16.mxu0 0
    %8480 = vmatpush1.bf16.msra.mxu0 0
    %8481 = vmatprep.subr.bf16.mxu0 0
    %8482 = vmatpush1.bf16.msra.mxu0 0
    %8483 = vmatprep.subr.bf16.mxu0 0
    %8484 = vmatpush1.bf16.msra.mxu0 %v8467
    %8485 = vmatprep.subr.bf16.mxu0 0
    %8486 = vmatpush2.bf16.msra.mxu0 0
    %8487 = vmatprep.subr.bf16.mxu0 0
    %8488 = vmatpush2.bf16.msra.mxu0 0
    %8489 = vmatprep.subr.bf16.mxu0 0
    %8490 = vmatpush2.bf16.msra.mxu0 0
    %8491 = vmatprep.subr.bf16.mxu0 0
    %8492 = vmatpush2.bf16.msra.mxu0 0
    %8493 = vmatprep.subr.bf16.mxu0 0
    %8494 = vmatpush2.bf16.msra.mxu0 0
    %8495 = vmatprep.subr.bf16.mxu0 0
    %8496 = vmatpush2.bf16.msra.mxu0 0
    %8497 = vmatprep.subr.bf16.mxu0 0
    %8498 = vmatpush2.bf16.msra.mxu0 0
    %8499 = vmatprep.subr.bf16.mxu0 0
    %8500 = vmatpush2.bf16.msra.mxu0 0
    %8501 = vmatprep.mubr.bf16.mxu0 0
    %8502 = vmatmul.mubr.bf16.gmra.mxu0 %v8464
    %v8503 = vpop.f32.mrf.mxu0
    %v8504 = vadd.f32 0.0, %v8503
    %v8505 = vpop.f32.mrf.mxu0
    %v8506 = vpop.f32.mrf.mxu0
    %v8507 = vpop.f32.mrf.mxu0
    %8508 = vdwg.mxu0
    %8509 = vrot.lane.b32.xlu0 %v7623, 32
    %v8510 = vpop.permute.xlu0 %8509
    %v8512 = vsel %vm7086, %v8460, 0
    %v8515 = vsel %vm7090, %v8510, 0
    %8517 = vmatprep.subr.bf16.mxu0 0
    %8518 = vmatpush1.bf16.msra.mxu0 0
    %8519 = vmatprep.subr.bf16.mxu0 0
    %8520 = vmatpush1.bf16.msra.mxu0 0
    %8521 = vmatprep.subr.bf16.mxu0 0
    %8522 = vmatpush1.bf16.msra.mxu0 0
    %8523 = vmatprep.subr.bf16.mxu0 0
    %8524 = vmatpush1.bf16.msra.mxu0 0
    %8525 = vmatprep.subr.bf16.mxu0 0
    %8526 = vmatpush1.bf16.msra.mxu0 0
    %8527 = vmatprep.subr.bf16.mxu0 0
    %8528 = vmatpush1.bf16.msra.mxu0 0
    %8529 = vmatprep.subr.bf16.mxu0 0
    %8530 = vmatpush1.bf16.msra.mxu0 0
    %8531 = vmatprep.subr.bf16.mxu0 0
    %8532 = vmatpush1.bf16.msra.mxu0 %v8515
    %8533 = vmatprep.subr.bf16.mxu0 0
    %8534 = vmatpush2.bf16.msra.mxu0 0
    %8535 = vmatprep.subr.bf16.mxu0 0
    %8536 = vmatpush2.bf16.msra.mxu0 0
    %8537 = vmatprep.subr.bf16.mxu0 0
    %8538 = vmatpush2.bf16.msra.mxu0 0
    %8539 = vmatprep.subr.bf16.mxu0 0
    %8540 = vmatpush2.bf16.msra.mxu0 0
    %8541 = vmatprep.subr.bf16.mxu0 0
    %8542 = vmatpush2.bf16.msra.mxu0 0
    %8543 = vmatprep.subr.bf16.mxu0 0
    %8544 = vmatpush2.bf16.msra.mxu0 0
    %8545 = vmatprep.subr.bf16.mxu0 0
    %8546 = vmatpush2.bf16.msra.mxu0 0
    %8547 = vmatprep.subr.bf16.mxu0 0
    %8548 = vmatpush2.bf16.msra.mxu0 0
    %8549 = vmatprep.mubr.bf16.mxu0 0
    %8550 = vmatmul.mubr.bf16.gmra.mxu0 %v8512
    %v8551 = vpop.f32.mrf.mxu0
    %v8552 = vadd.f32 0.0, %v8551
    %v8553 = vpop.f32.mrf.mxu0
    %v8554 = vpop.f32.mrf.mxu0
    %v8555 = vpop.f32.mrf.mxu0
    %8556 = vdwg.mxu0
    %vm8557 = vcmp.gt.f32.partialorder %v8504, 0.0
    %vm8558 = vcmp.gt.f32.partialorder %v8552, 0.0
    %v8559 = vmin.f32 %v8504, 0.0
    %v8560 = vmin.f32 %v8552, 0.0
    %v8561 = vmul.f32 %v8559, 1.442695
    %v8562 = vpow.pop %v8561
    %v8563 = vmul.f32 %v8560, 1.442695
    %v8564 = vpow.pop %v8563
    %v8565 = vsub.f32 %v8562, 1.0
    %v8566 = vsub.f32 %v8564, 1.0
    %v8567 = vsel %vm8557, %v8504, %v8565
    %v8568 = vsel %vm8558, %v8552, %v8566
    %v8569 = vpack.c.bf16 %v8567, %v8567
    %v8570 = vpack.c.bf16 %v8568, %v8568
    %v8573 = vunpack.c.l.b16 %v8569
    %v8574 = vunpack.c.l.b16 %v8570
    %v8575 = vpack.c.b16 %v8574, %v8573
    %v8580 = vunpack.c.l.b16 %v7525
    %v8581 = vunpack.c.l.b16 %v7526
    %v8582 = vunpack.c.l.b16 %v7527
    %v8583 = vunpack.c.l.b16 %v7528
    %v8584 = vpack.c.b16 %v8581, %v8580
    %v8585 = vpack.c.b16 %v8583, %v8582
    %v8589 = vsel %vm7535, %v8575, 0
    %8591 = vmatprep.subr.bf16.mxu0 0
    %8592 = vmatpush1.bf16.msra.mxu0 0
    %8593 = vmatprep.subr.bf16.mxu0 0
    %8594 = vmatpush1.bf16.msra.mxu0 0
    %8595 = vmatprep.subr.bf16.mxu0 0
    %8596 = vmatpush1.bf16.msra.mxu0 0
    %8597 = vmatprep.subr.bf16.mxu0 0
    %8598 = vmatpush1.bf16.msra.mxu0 0
    %8599 = vmatprep.subr.bf16.mxu0 0
    %8600 = vmatpush1.bf16.msra.mxu0 0
    %8601 = vmatprep.subr.bf16.mxu0 0
    %8602 = vmatpush1.bf16.msra.mxu0 0
    %8603 = vmatprep.subr.bf16.mxu0 0
    %8604 = vmatpush1.bf16.msra.mxu0 %v8585
    %8605 = vmatprep.subr.bf16.mxu0 0
    %8606 = vmatpush1.bf16.msra.mxu0 %v8584
    %8607 = vmatprep.subr.bf16.mxu0 0
    %8608 = vmatpush2.bf16.msra.mxu0 0
    %8609 = vmatprep.subr.bf16.mxu0 0
    %8610 = vmatpush2.bf16.msra.mxu0 0
    %8611 = vmatprep.subr.bf16.mxu0 0
    %8612 = vmatpush2.bf16.msra.mxu0 0
    %8613 = vmatprep.subr.bf16.mxu0 0
    %8614 = vmatpush2.bf16.msra.mxu0 0
    %8615 = vmatprep.subr.bf16.mxu0 0
    %8616 = vmatpush2.bf16.msra.mxu0 0
    %8617 = vmatprep.subr.bf16.mxu0 0
    %8618 = vmatpush2.bf16.msra.mxu0 0
    %8619 = vmatprep.subr.bf16.mxu0 0
    %8620 = vmatpush2.bf16.msra.mxu0 0
    %8621 = vmatprep.subr.bf16.mxu0 0
    %8622 = vmatpush2.bf16.msra.mxu0 0
    %8623 = vmatprep.mubr.bf16.mxu0 0
    %8624 = vmatmul.mubr.bf16.gmra.mxu0 %v8589
    %v8625 = vpop.f32.mrf.mxu0
    %v8626 = vadd.f32 0.0, %v8625
    %v8627 = vpop.f32.mrf.mxu0
    %v8628 = vpop.f32.mrf.mxu0
    %v8629 = vadd.f32 0.0, %v8628
    %v8630 = vpop.f32.mrf.mxu0
    %8631 = vdwg.mxu0
    %v8632 = vadd.f32 %v8351, %v8626
    %v8633 = vadd.f32 %v8352, %v8629
    %vm8634 = vcmask 31744
    %v8635 = vsel %vm8634, %v8632, 0.0
    %v8636 = vrot.slane %v8635, 4
    %v8637 = vadd.f32 %v8635, %v8636
    %v8638 = vrot.slane %v8637, 2
    %v8639 = vadd.f32 %v8637, %v8638
    %v8640 = vrot.slane %v8639, 1
    %v8641 = vadd.f32 %v8639, %v8640
    %v8642 = vsel %vm8634, %v8633, 0.0
    %v8643 = vrot.slane %v8642, 4
    %v8644 = vadd.f32 %v8642, %v8643
    %v8645 = vrot.slane %v8644, 2
    %v8646 = vadd.f32 %v8644, %v8645
    %v8647 = vrot.slane %v8646, 1
    %v8648 = vadd.f32 %v8646, %v8647
    %v8649 = vrcp.pop 8.0
    %v8650 = vmul.f32 %v8641, %v8649
    %v8651 = vmul.f32 %v8648, %v8649
    %v8652 = vld [vmem:[#allocation16] sm:$0x1]
    %v8654 = vlaneseq
    %v8655 = vshrl.u32 %v8654, 7
    %v8656 = vsub.s32 0, %v8655
    %v8657 = vrot.slane %v8652, %v8656
    %v8659 = vadd.f32 %v8650, %v8657
    %v8660 = vadd.f32 %v8651, %v8657
    %v8663 = vrot.slane %v8660, 7
    %v8664 = vsel %vm1017, %v8663, %v8659
    %vm8666 = vcmask 25600
    %v8667 = vsel %vm8666, %v8664, 0.0
    %8668 = vadd.xlane.f32.xlu0 %v8667
    %v8669 = vpop.xlane.xlu0 %8668
    %v8670 = vrcp.pop 4.0
    %v8671 = vmul.f32 %v8669, %v8670
    %v8672 = vld [vmem:[#allocation17] sm:$0x1]
    %v8673 = vld [vmem:[%s16] sm:$0xf]
    %v8674 = vld [vmem:[%s16 + $0x4] sm:$0xf]
    %v8675 = vld [vmem:[%s16 + $0x8] sm:$0xf]
    %v8676 = vld [vmem:[%s16 + $0xc] sm:$0xf]
    %v8677 = vld [vmem:[%s16 + $0x10] sm:$0xf]
    %v8678 = vld [vmem:[%s16 + $0x14] sm:$0xf]
    %v8679 = vld [vmem:[%s16 + $0x18] sm:$0xf]
    %v8680 = vld [vmem:[%s16 + $0x1c] sm:$0xf]
    %v8681 = vld [vmem:[%s16 + $0x20] sm:$0xf]
    %v8682 = vld [vmem:[%s16 + $0x24] sm:$0xf]
    %v8683 = vld [vmem:[%s16 + $0x28] sm:$0xf]
    %v8684 = vld [vmem:[%s16 + $0x2c] sm:$0xf]
    %v8685 = vld [vmem:[%s16 + $0x30] sm:$0xf]
    %v8686 = vld [vmem:[%s16 + $0x34] sm:$0xf]
    %v8687 = vld [vmem:[%s16 + $0x38] sm:$0xf]
    %v8688 = vld [vmem:[%s16 + $0x3c] sm:$0xf]
    %v8705 = vunpack.c.l.b16 %v8673
    %v8706 = vunpack.c.l.b16 %v8674
    %v8707 = vunpack.c.l.b16 %v8675
    %v8708 = vunpack.c.l.b16 %v8676
    %v8709 = vunpack.c.l.b16 %v8677
    %v8710 = vunpack.c.l.b16 %v8678
    %v8711 = vunpack.c.l.b16 %v8679
    %v8712 = vunpack.c.l.b16 %v8680
    %v8713 = vunpack.c.l.b16 %v8681
    %v8714 = vunpack.c.l.b16 %v8682
    %v8715 = vunpack.c.l.b16 %v8683
    %v8716 = vunpack.c.l.b16 %v8684
    %v8717 = vunpack.c.l.b16 %v8685
    %v8718 = vunpack.c.l.b16 %v8686
    %v8719 = vunpack.c.l.b16 %v8687
    %v8720 = vunpack.c.l.b16 %v8688
    %v8721 = vpack.c.b16 %v8706, %v8705
    %v8722 = vpack.c.b16 %v8708, %v8707
    %v8723 = vpack.c.b16 %v8710, %v8709
    %v8724 = vpack.c.b16 %v8712, %v8711
    %v8725 = vpack.c.b16 %v8714, %v8713
    %v8726 = vpack.c.b16 %v8716, %v8715
    %v8727 = vpack.c.b16 %v8718, %v8717
    %v8728 = vpack.c.b16 %v8720, %v8719
    %8737 = vmatprep.subr.bf16.mxu0 0
    %8738 = vmatpush1.bf16.msra.mxu0 %v8728
    %8739 = vmatprep.subr.bf16.mxu0 0
    %8740 = vmatpush1.bf16.msra.mxu0 %v8727
    %8741 = vmatprep.subr.bf16.mxu0 0
    %8742 = vmatpush1.bf16.msra.mxu0 %v8726
    %8743 = vmatprep.subr.bf16.mxu0 0
    %8744 = vmatpush1.bf16.msra.mxu0 %v8725
    %8745 = vmatprep.subr.bf16.mxu0 0
    %8746 = vmatpush1.bf16.msra.mxu0 %v8724
    %8747 = vmatprep.subr.bf16.mxu0 0
    %8748 = vmatpush1.bf16.msra.mxu0 %v8723
    %8749 = vmatprep.subr.bf16.mxu0 0
    %8750 = vmatpush1.bf16.msra.mxu0 %v8722
    %8751 = vmatprep.subr.bf16.mxu0 0
    %8752 = vmatpush1.bf16.msra.mxu0 %v8721
    %8753 = vmatprep.subr.bf16.mxu0 0
    %8754 = vmatpush2.bf16.msra.mxu0 0
    %8755 = vmatprep.subr.bf16.mxu0 0
    %8756 = vmatpush2.bf16.msra.mxu0 0
    %8757 = vmatprep.subr.bf16.mxu0 0
    %8758 = vmatpush2.bf16.msra.mxu0 0
    %8759 = vmatprep.subr.bf16.mxu0 0
    %8760 = vmatpush2.bf16.msra.mxu0 0
    %8761 = vmatprep.subr.bf16.mxu0 0
    %8762 = vmatpush2.bf16.msra.mxu0 0
    %8763 = vmatprep.subr.bf16.mxu0 0
    %8764 = vmatpush2.bf16.msra.mxu0 0
    %8765 = vmatprep.subr.bf16.mxu0 0
    %8766 = vmatpush2.bf16.msra.mxu0 0
    %8767 = vmatprep.subr.bf16.mxu0 0
    %8768 = vmatpush2.bf16.msra.mxu0 0
    %8769 = vmatprep.mubr.bf16.mxu0 0
    %8770 = vmatmul.mubr.bf16.gmra.mxu0 %v7420
    %v8771 = vpop.f32.mrf.mxu0
    %v8772 = vadd.f32 0.0, %v8771
    %v8773 = vpop.f32.mrf.mxu0
    %v8774 = vpop.f32.mrf.mxu0
    %v8775 = vadd.f32 0.0, %v8774
    %v8776 = vpop.f32.mrf.mxu0
    %8777 = vdwg.mxu0
    %s8778 = scalar_lea.vmem %s16, 64
    %v8779 = vld [vmem:[%s8778] sm:$0xf]
    %v8780 = vld [vmem:[%s8778 + $0x4] sm:$0xf]
    %v8781 = vld [vmem:[%s8778 + $0x8] sm:$0xf]
    %v8782 = vld [vmem:[%s8778 + $0xc] sm:$0xf]
    %v8783 = vld [vmem:[%s8778 + $0x10] sm:$0xf]
    %v8784 = vld [vmem:[%s8778 + $0x14] sm:$0xf]
    %v8785 = vld [vmem:[%s8778 + $0x18] sm:$0xf]
    %v8786 = vld [vmem:[%s8778 + $0x1c] sm:$0xf]
    %v8787 = vld [vmem:[%s8778 + $0x20] sm:$0xf]
    %v8788 = vld [vmem:[%s8778 + $0x24] sm:$0xf]
    %v8789 = vld [vmem:[%s8778 + $0x28] sm:$0xf]
    %v8790 = vld [vmem:[%s8778 + $0x2c] sm:$0xf]
    %v8791 = vld [vmem:[%s8778 + $0x30] sm:$0xf]
    %v8792 = vld [vmem:[%s8778 + $0x34] sm:$0xf]
    %v8793 = vld [vmem:[%s8778 + $0x38] sm:$0xf]
    %v8794 = vld [vmem:[%s8778 + $0x3c] sm:$0xf]
    %v8811 = vunpack.c.l.b16 %v8779
    %v8812 = vunpack.c.l.b16 %v8780
    %v8813 = vunpack.c.l.b16 %v8781
    %v8814 = vunpack.c.l.b16 %v8782
    %v8815 = vunpack.c.l.b16 %v8783
    %v8816 = vunpack.c.l.b16 %v8784
    %v8817 = vunpack.c.l.b16 %v8785
    %v8818 = vunpack.c.l.b16 %v8786
    %v8819 = vunpack.c.l.b16 %v8787
    %v8820 = vunpack.c.l.b16 %v8788
    %v8821 = vunpack.c.l.b16 %v8789
    %v8822 = vunpack.c.l.b16 %v8790
    %v8823 = vunpack.c.l.b16 %v8791
    %v8824 = vunpack.c.l.b16 %v8792
    %v8825 = vunpack.c.l.b16 %v8793
    %v8826 = vunpack.c.l.b16 %v8794
    %v8827 = vpack.c.b16 %v8812, %v8811
    %v8828 = vpack.c.b16 %v8814, %v8813
    %v8829 = vpack.c.b16 %v8816, %v8815
    %v8830 = vpack.c.b16 %v8818, %v8817
    %v8831 = vpack.c.b16 %v8820, %v8819
    %v8832 = vpack.c.b16 %v8822, %v8821
    %v8833 = vpack.c.b16 %v8824, %v8823
    %v8834 = vpack.c.b16 %v8826, %v8825
    %8843 = vmatprep.subr.bf16.mxu0 0
    %8844 = vmatpush1.bf16.msra.mxu0 %v8834
    %8845 = vmatprep.subr.bf16.mxu0 0
    %8846 = vmatpush1.bf16.msra.mxu0 %v8833
    %8847 = vmatprep.subr.bf16.mxu0 0
    %8848 = vmatpush1.bf16.msra.mxu0 %v8832
    %8849 = vmatprep.subr.bf16.mxu0 0
    %8850 = vmatpush1.bf16.msra.mxu0 %v8831
    %8851 = vmatprep.subr.bf16.mxu0 0
    %8852 = vmatpush1.bf16.msra.mxu0 %v8830
    %8853 = vmatprep.subr.bf16.mxu0 0
    %8854 = vmatpush1.bf16.msra.mxu0 %v8829
    %8855 = vmatprep.subr.bf16.mxu0 0
    %8856 = vmatpush1.bf16.msra.mxu0 %v8828
    %8857 = vmatprep.subr.bf16.mxu0 0
    %8858 = vmatpush1.bf16.msra.mxu0 %v8827
    %8859 = vmatprep.subr.bf16.mxu0 0
    %8860 = vmatpush2.bf16.msra.mxu0 0
    %8861 = vmatprep.subr.bf16.mxu0 0
    %8862 = vmatpush2.bf16.msra.mxu0 0
    %8863 = vmatprep.subr.bf16.mxu0 0
    %8864 = vmatpush2.bf16.msra.mxu0 0
    %8865 = vmatprep.subr.bf16.mxu0 0
    %8866 = vmatpush2.bf16.msra.mxu0 0
    %8867 = vmatprep.subr.bf16.mxu0 0
    %8868 = vmatpush2.bf16.msra.mxu0 0
    %8869 = vmatprep.subr.bf16.mxu0 0
    %8870 = vmatpush2.bf16.msra.mxu0 0
    %8871 = vmatprep.subr.bf16.mxu0 0
    %8872 = vmatpush2.bf16.msra.mxu0 0
    %8873 = vmatprep.subr.bf16.mxu0 0
    %8874 = vmatpush2.bf16.msra.mxu0 0
    %8875 = vmatprep.mubr.bf16.mxu0 0
    %8876 = vmatmul.mubr.bf16.gmra.mxu0 %v7420
    %v8877 = vpop.f32.mrf.mxu0
    %v8878 = vadd.f32 0.0, %v8877
    %v8879 = vpop.f32.mrf.mxu0
    %v8880 = vpop.f32.mrf.mxu0
    %v8881 = vadd.f32 0.0, %v8880
    %v8882 = vpop.f32.mrf.mxu0
    %8883 = vdwg.mxu0
    %s8884 = scalar_lea.vmem %s16, 128
    %v8885 = vld [vmem:[%s8884] sm:$0xf]
    %v8886 = vld [vmem:[%s8884 + $0x4] sm:$0xf]
    %v8887 = vld [vmem:[%s8884 + $0x8] sm:$0xf]
    %v8888 = vld [vmem:[%s8884 + $0xc] sm:$0xf]
    %v8889 = vld [vmem:[%s8884 + $0x10] sm:$0xf]
    %v8890 = vld [vmem:[%s8884 + $0x14] sm:$0xf]
    %v8891 = vld [vmem:[%s8884 + $0x18] sm:$0xf]
    %v8892 = vld [vmem:[%s8884 + $0x1c] sm:$0xf]
    %v8893 = vld [vmem:[%s8884 + $0x20] sm:$0xf]
    %v8894 = vld [vmem:[%s8884 + $0x24] sm:$0xf]
    %v8895 = vld [vmem:[%s8884 + $0x28] sm:$0xf]
    %v8896 = vld [vmem:[%s8884 + $0x2c] sm:$0xf]
    %v8897 = vld [vmem:[%s8884 + $0x30] sm:$0xf]
    %v8898 = vld [vmem:[%s8884 + $0x34] sm:$0xf]
    %v8899 = vld [vmem:[%s8884 + $0x38] sm:$0xf]
    %v8900 = vld [vmem:[%s8884 + $0x3c] sm:$0xf]
    %v8917 = vunpack.c.l.b16 %v8885
    %v8918 = vunpack.c.l.b16 %v8886
    %v8919 = vunpack.c.l.b16 %v8887
    %v8920 = vunpack.c.l.b16 %v8888
    %v8921 = vunpack.c.l.b16 %v8889
    %v8922 = vunpack.c.l.b16 %v8890
    %v8923 = vunpack.c.l.b16 %v8891
    %v8924 = vunpack.c.l.b16 %v8892
    %v8925 = vunpack.c.l.b16 %v8893
    %v8926 = vunpack.c.l.b16 %v8894
    %v8927 = vunpack.c.l.b16 %v8895
    %v8928 = vunpack.c.l.b16 %v8896
    %v8929 = vunpack.c.l.b16 %v8897
    %v8930 = vunpack.c.l.b16 %v8898
    %v8931 = vunpack.c.l.b16 %v8899
    %v8932 = vunpack.c.l.b16 %v8900
    %v8933 = vpack.c.b16 %v8918, %v8917
    %v8934 = vpack.c.b16 %v8920, %v8919
    %v8935 = vpack.c.b16 %v8922, %v8921
    %v8936 = vpack.c.b16 %v8924, %v8923
    %v8937 = vpack.c.b16 %v8926, %v8925
    %v8938 = vpack.c.b16 %v8928, %v8927
    %v8939 = vpack.c.b16 %v8930, %v8929
    %v8940 = vpack.c.b16 %v8932, %v8931
    %8949 = vmatprep.subr.bf16.mxu0 0
    %8950 = vmatpush1.bf16.msra.mxu0 %v8940
    %8951 = vmatprep.subr.bf16.mxu0 0
    %8952 = vmatpush1.bf16.msra.mxu0 %v8939
    %8953 = vmatprep.subr.bf16.mxu0 0
    %8954 = vmatpush1.bf16.msra.mxu0 %v8938
    %8955 = vmatprep.subr.bf16.mxu0 0
    %8956 = vmatpush1.bf16.msra.mxu0 %v8937
    %8957 = vmatprep.subr.bf16.mxu0 0
    %8958 = vmatpush1.bf16.msra.mxu0 %v8936
    %8959 = vmatprep.subr.bf16.mxu0 0
    %8960 = vmatpush1.bf16.msra.mxu0 %v8935
    %8961 = vmatprep.subr.bf16.mxu0 0
    %8962 = vmatpush1.bf16.msra.mxu0 %v8934
    %8963 = vmatprep.subr.bf16.mxu0 0
    %8964 = vmatpush1.bf16.msra.mxu0 %v8933
    %8965 = vmatprep.subr.bf16.mxu0 0
    %8966 = vmatpush2.bf16.msra.mxu0 0
    %8967 = vmatprep.subr.bf16.mxu0 0
    %8968 = vmatpush2.bf16.msra.mxu0 0
    %8969 = vmatprep.subr.bf16.mxu0 0
    %8970 = vmatpush2.bf16.msra.mxu0 0
    %8971 = vmatprep.subr.bf16.mxu0 0
    %8972 = vmatpush2.bf16.msra.mxu0 0
    %8973 = vmatprep.subr.bf16.mxu0 0
    %8974 = vmatpush2.bf16.msra.mxu0 0
    %8975 = vmatprep.subr.bf16.mxu0 0
    %8976 = vmatpush2.bf16.msra.mxu0 0
    %8977 = vmatprep.subr.bf16.mxu0 0
    %8978 = vmatpush2.bf16.msra.mxu0 0
    %8979 = vmatprep.subr.bf16.mxu0 0
    %8980 = vmatpush2.bf16.msra.mxu0 0
    %8981 = vmatprep.mubr.bf16.mxu0 0
    %8982 = vmatmul.mubr.bf16.gmra.mxu0 %v7420
    %v8983 = vpop.f32.mrf.mxu0
    %v8984 = vadd.f32 0.0, %v8983
    %v8985 = vpop.f32.mrf.mxu0
    %v8986 = vpop.f32.mrf.mxu0
    %v8987 = vadd.f32 0.0, %v8986
    %v8988 = vpop.f32.mrf.mxu0
    %8989 = vdwg.mxu0
    %v8992 = vrot.slane %v8772, 7
    %v8993 = vrot.slane %v8775, 7
    %vm8996 = vcmask 1040384
    %v8997 = vsel %vm8996, 0.0, %v8992
    %v8998 = vsel %vm8996, 0.0, %v8993
    %v8999 = vadd.f32 %v8997, %v8878
    %v9000 = vadd.f32 %v8998, %v8881
    %v9003 = vrot.slane %v8984, 1
    %v9004 = vrot.slane %v8987, 1
    %vm9007 = vcmask 1046528
    %v9008 = vsel %vm9007, %v9003, 0.0
    %v9009 = vsel %vm9007, %v9004, 0.0
    %v9010 = vadd.f32 %v8999, %v9008
    %v9011 = vadd.f32 %v9000, %v9009
    %v9013 = vlaneseq
    %v9014 = vshrl.u32 %v9013, 7
    %v9015 = vsub.s32 0, %v9014
    %v9016 = vrot.slane %v8672, %v9015
    %v9018 = vadd.f32 %v9010, %v9016
    %v9019 = vadd.f32 %v9011, %v9016
    %v9020 = vmax.f32 %v9018, 0.0
    %v9021 = vmax.f32 %v9019, 0.0
    %v9022 = vld [vmem:[#allocation19] sm:$0x1]
    %v9023 = vpack.c.bf16 %v9020, %v9020
    %v9024 = vpack.c.bf16 %v9021, %v9021
    %v9025 = vld [vmem:[%s18] sm:$0xf]
    %v9026 = vld [vmem:[%s18 + $0x4] sm:$0xf]
    %v9027 = vld [vmem:[%s18 + $0x8] sm:$0xf]
    %v9028 = vld [vmem:[%s18 + $0xc] sm:$0xf]
    %v9029 = vld [vmem:[%s18 + $0x10] sm:$0xf]
    %v9030 = vld [vmem:[%s18 + $0x14] sm:$0xf]
    %v9031 = vld [vmem:[%s18 + $0x18] sm:$0xf]
    %v9032 = vld [vmem:[%s18 + $0x1c] sm:$0xf]
    %v9035 = vunpack.c.l.b16 %v9023
    %v9036 = vunpack.c.l.b16 %v9024
    %v9037 = vpack.c.b16 %v9036, %v9035
    %v9046 = vunpack.c.l.b16 %v9025
    %v9047 = vunpack.c.l.b16 %v9026
    %v9048 = vunpack.c.l.b16 %v9027
    %v9049 = vunpack.c.l.b16 %v9028
    %v9050 = vunpack.c.l.b16 %v9029
    %v9051 = vunpack.c.l.b16 %v9030
    %v9052 = vunpack.c.l.b16 %v9031
    %v9053 = vunpack.c.l.b16 %v9032
    %v9054 = vpack.c.b16 %v9047, %v9046
    %v9055 = vpack.c.b16 %v9049, %v9048
    %v9056 = vpack.c.b16 %v9051, %v9050
    %v9057 = vpack.c.b16 %v9053, %v9052
    %vm9062 = vcmask 523264
    %v9064 = vsel %vm9062, %v9037, 0
    %9066 = vmatprep.subr.bf16.mxu0 0
    %9067 = vmatpush1.bf16.msra.mxu0 0
    %9068 = vmatprep.subr.bf16.mxu0 0
    %9069 = vmatpush1.bf16.msra.mxu0 0
    %9070 = vmatprep.subr.bf16.mxu0 0
    %9071 = vmatpush1.bf16.msra.mxu0 0
    %9072 = vmatprep.subr.bf16.mxu0 0
    %9073 = vmatpush1.bf16.msra.mxu0 0
    %9074 = vmatprep.subr.bf16.mxu0 0
    %9075 = vmatpush1.bf16.msra.mxu0 %v9057
    %9076 = vmatprep.subr.bf16.mxu0 0
    %9077 = vmatpush1.bf16.msra.mxu0 %v9056
    %9078 = vmatprep.subr.bf16.mxu0 0
    %9079 = vmatpush1.bf16.msra.mxu0 %v9055
    %9080 = vmatprep.subr.bf16.mxu0 0
    %9081 = vmatpush1.bf16.msra.mxu0 %v9054
    %9082 = vmatprep.subr.bf16.mxu0 0
    %9083 = vmatpush2.bf16.msra.mxu0 0
    %9084 = vmatprep.subr.bf16.mxu0 0
    %9085 = vmatpush2.bf16.msra.mxu0 0
    %9086 = vmatprep.subr.bf16.mxu0 0
    %9087 = vmatpush2.bf16.msra.mxu0 0
    %9088 = vmatprep.subr.bf16.mxu0 0
    %9089 = vmatpush2.bf16.msra.mxu0 0
    %9090 = vmatprep.subr.bf16.mxu0 0
    %9091 = vmatpush2.bf16.msra.mxu0 0
    %9092 = vmatprep.subr.bf16.mxu0 0
    %9093 = vmatpush2.bf16.msra.mxu0 0
    %9094 = vmatprep.subr.bf16.mxu0 0
    %9095 = vmatpush2.bf16.msra.mxu0 0
    %9096 = vmatprep.subr.bf16.mxu0 0
    %9097 = vmatpush2.bf16.msra.mxu0 0
    %9098 = vmatprep.mubr.bf16.mxu0 0
    %9099 = vmatmul.mubr.bf16.gmra.mxu0 %v9064
    %v9100 = vpop.f32.mrf.mxu0
    %v9101 = vadd.f32 0.0, %v9100
    %v9102 = vpop.f32.mrf.mxu0
    %v9103 = vpop.f32.mrf.mxu0
    %v9104 = vadd.f32 0.0, %v9103
    %v9105 = vpop.f32.mrf.mxu0
    %9106 = vdwg.mxu0
    %s9107 = scalar_lea.vmem %s18, 32
    %v9108 = vld [vmem:[%s9107] sm:$0xf]
    %v9109 = vld [vmem:[%s9107 + $0x4] sm:$0xf]
    %v9110 = vld [vmem:[%s9107 + $0x8] sm:$0xf]
    %v9111 = vld [vmem:[%s9107 + $0xc] sm:$0xf]
    %v9112 = vld [vmem:[%s9107 + $0x10] sm:$0xf]
    %v9113 = vld [vmem:[%s9107 + $0x14] sm:$0xf]
    %v9114 = vld [vmem:[%s9107 + $0x18] sm:$0xf]
    %v9115 = vld [vmem:[%s9107 + $0x1c] sm:$0xf]
    %v9124 = vunpack.c.l.b16 %v9108
    %v9125 = vunpack.c.l.b16 %v9109
    %v9126 = vunpack.c.l.b16 %v9110
    %v9127 = vunpack.c.l.b16 %v9111
    %v9128 = vunpack.c.l.b16 %v9112
    %v9129 = vunpack.c.l.b16 %v9113
    %v9130 = vunpack.c.l.b16 %v9114
    %v9131 = vunpack.c.l.b16 %v9115
    %v9132 = vpack.c.b16 %v9125, %v9124
    %v9133 = vpack.c.b16 %v9127, %v9126
    %v9134 = vpack.c.b16 %v9129, %v9128
    %v9135 = vpack.c.b16 %v9131, %v9130
    %9140 = vmatprep.subr.bf16.mxu0 0
    %9141 = vmatpush1.bf16.msra.mxu0 0
    %9142 = vmatprep.subr.bf16.mxu0 0
    %9143 = vmatpush1.bf16.msra.mxu0 0
    %9144 = vmatprep.subr.bf16.mxu0 0
    %9145 = vmatpush1.bf16.msra.mxu0 0
    %9146 = vmatprep.subr.bf16.mxu0 0
    %9147 = vmatpush1.bf16.msra.mxu0 0
    %9148 = vmatprep.subr.bf16.mxu0 0
    %9149 = vmatpush1.bf16.msra.mxu0 %v9135
    %9150 = vmatprep.subr.bf16.mxu0 0
    %9151 = vmatpush1.bf16.msra.mxu0 %v9134
    %9152 = vmatprep.subr.bf16.mxu0 0
    %9153 = vmatpush1.bf16.msra.mxu0 %v9133
    %9154 = vmatprep.subr.bf16.mxu0 0
    %9155 = vmatpush1.bf16.msra.mxu0 %v9132
    %9156 = vmatprep.subr.bf16.mxu0 0
    %9157 = vmatpush2.bf16.msra.mxu0 0
    %9158 = vmatprep.subr.bf16.mxu0 0
    %9159 = vmatpush2.bf16.msra.mxu0 0
    %9160 = vmatprep.subr.bf16.mxu0 0
    %9161 = vmatpush2.bf16.msra.mxu0 0
    %9162 = vmatprep.subr.bf16.mxu0 0
    %9163 = vmatpush2.bf16.msra.mxu0 0
    %9164 = vmatprep.subr.bf16.mxu0 0
    %9165 = vmatpush2.bf16.msra.mxu0 0
    %9166 = vmatprep.subr.bf16.mxu0 0
    %9167 = vmatpush2.bf16.msra.mxu0 0
    %9168 = vmatprep.subr.bf16.mxu0 0
    %9169 = vmatpush2.bf16.msra.mxu0 0
    %9170 = vmatprep.subr.bf16.mxu0 0
    %9171 = vmatpush2.bf16.msra.mxu0 0
    %9172 = vmatprep.mubr.bf16.mxu0 0
    %9173 = vmatmul.mubr.bf16.gmra.mxu0 %v9064
    %v9174 = vpop.f32.mrf.mxu0
    %v9175 = vadd.f32 0.0, %v9174
    %v9176 = vpop.f32.mrf.mxu0
    %v9177 = vpop.f32.mrf.mxu0
    %v9178 = vadd.f32 0.0, %v9177
    %v9179 = vpop.f32.mrf.mxu0
    %9180 = vdwg.mxu0
    %s9181 = scalar_lea.vmem %s18, 64
    %v9182 = vld [vmem:[%s9181] sm:$0xf]
    %v9183 = vld [vmem:[%s9181 + $0x4] sm:$0xf]
    %v9184 = vld [vmem:[%s9181 + $0x8] sm:$0xf]
    %v9185 = vld [vmem:[%s9181 + $0xc] sm:$0xf]
    %v9186 = vld [vmem:[%s9181 + $0x10] sm:$0xf]
    %v9187 = vld [vmem:[%s9181 + $0x14] sm:$0xf]
    %v9188 = vld [vmem:[%s9181 + $0x18] sm:$0xf]
    %v9189 = vld [vmem:[%s9181 + $0x1c] sm:$0xf]
    %v9198 = vunpack.c.l.b16 %v9182
    %v9199 = vunpack.c.l.b16 %v9183
    %v9200 = vunpack.c.l.b16 %v9184
    %v9201 = vunpack.c.l.b16 %v9185
    %v9202 = vunpack.c.l.b16 %v9186
    %v9203 = vunpack.c.l.b16 %v9187
    %v9204 = vunpack.c.l.b16 %v9188
    %v9205 = vunpack.c.l.b16 %v9189
    %v9206 = vpack.c.b16 %v9199, %v9198
    %v9207 = vpack.c.b16 %v9201, %v9200
    %v9208 = vpack.c.b16 %v9203, %v9202
    %v9209 = vpack.c.b16 %v9205, %v9204
    %9214 = vmatprep.subr.bf16.mxu0 0
    %9215 = vmatpush1.bf16.msra.mxu0 0
    %9216 = vmatprep.subr.bf16.mxu0 0
    %9217 = vmatpush1.bf16.msra.mxu0 0
    %9218 = vmatprep.subr.bf16.mxu0 0
    %9219 = vmatpush1.bf16.msra.mxu0 0
    %9220 = vmatprep.subr.bf16.mxu0 0
    %9221 = vmatpush1.bf16.msra.mxu0 0
    %9222 = vmatprep.subr.bf16.mxu0 0
    %9223 = vmatpush1.bf16.msra.mxu0 %v9209
    %9224 = vmatprep.subr.bf16.mxu0 0
    %9225 = vmatpush1.bf16.msra.mxu0 %v9208
    %9226 = vmatprep.subr.bf16.mxu0 0
    %9227 = vmatpush1.bf16.msra.mxu0 %v9207
    %9228 = vmatprep.subr.bf16.mxu0 0
    %9229 = vmatpush1.bf16.msra.mxu0 %v9206
    %9230 = vmatprep.subr.bf16.mxu0 0
    %9231 = vmatpush2.bf16.msra.mxu0 0
    %9232 = vmatprep.subr.bf16.mxu0 0
    %9233 = vmatpush2.bf16.msra.mxu0 0
    %9234 = vmatprep.subr.bf16.mxu0 0
    %9235 = vmatpush2.bf16.msra.mxu0 0
    %9236 = vmatprep.subr.bf16.mxu0 0
    %9237 = vmatpush2.bf16.msra.mxu0 0
    %9238 = vmatprep.subr.bf16.mxu0 0
    %9239 = vmatpush2.bf16.msra.mxu0 0
    %9240 = vmatprep.subr.bf16.mxu0 0
    %9241 = vmatpush2.bf16.msra.mxu0 0
    %9242 = vmatprep.subr.bf16.mxu0 0
    %9243 = vmatpush2.bf16.msra.mxu0 0
    %9244 = vmatprep.subr.bf16.mxu0 0
    %9245 = vmatpush2.bf16.msra.mxu0 0
    %9246 = vmatprep.mubr.bf16.mxu0 0
    %9247 = vmatmul.mubr.bf16.gmra.mxu0 %v9064
    %v9248 = vpop.f32.mrf.mxu0
    %v9249 = vadd.f32 0.0, %v9248
    %v9250 = vpop.f32.mrf.mxu0
    %v9251 = vpop.f32.mrf.mxu0
    %v9252 = vadd.f32 0.0, %v9251
    %v9253 = vpop.f32.mrf.mxu0
    %9254 = vdwg.mxu0
    %v9257 = vrot.slane %v9101, 7
    %v9258 = vrot.slane %v9104, 7
    %v9261 = vsel %vm8996, 0.0, %v9257
    %v9262 = vsel %vm8996, 0.0, %v9258
    %v9263 = vadd.f32 %v9261, %v9175
    %v9264 = vadd.f32 %v9262, %v9178
    %v9267 = vrot.slane %v9249, 1
    %v9268 = vrot.slane %v9252, 1
    %v9271 = vsel %vm9007, %v9267, 0.0
    %v9272 = vsel %vm9007, %v9268, 0.0
    %v9273 = vadd.f32 %v9263, %v9271
    %v9274 = vadd.f32 %v9264, %v9272
    %v9276 = vlaneseq
    %v9277 = vshrl.u32 %v9276, 7
    %v9278 = vsub.s32 0, %v9277
    %v9279 = vrot.slane %v9022, %v9278
    %v9281 = vadd.f32 %v9273, %v9279
    %v9282 = vadd.f32 %v9274, %v9279
    %v9283 = vmax.f32 %v9281, 0.0
    %v9284 = vmax.f32 %v9282, 0.0
    %v9285 = vsel %vm9062, %v9283, 0.0
    %v9286 = vrot.slane %v9285, 4
    %v9287 = vadd.f32 %v9285, %v9286
    %v9288 = vrot.slane %v9287, 2
    %v9289 = vadd.f32 %v9287, %v9288
    %v9290 = vrot.slane %v9289, 1
    %v9291 = vadd.f32 %v9289, %v9290
    %v9292 = vsel %vm9062, %v9284, 0.0
    %v9293 = vrot.slane %v9292, 4
    %v9294 = vadd.f32 %v9292, %v9293
    %v9295 = vrot.slane %v9294, 2
    %v9296 = vadd.f32 %v9294, %v9295
    %v9297 = vrot.slane %v9296, 1
    %v9298 = vadd.f32 %v9296, %v9297
    %v9299 = vmul.f32 %v9291, %v8649
    %v9300 = vmul.f32 %v9298, %v8649
    %v9301 = vpack.c.bf16 %v9299, %v9299
    %v9302 = vpack.c.bf16 %v9300, %v9300
    %v9303 = vld [vmem:[%s20] sm:$0xf]
    %v9304 = vld [vmem:[%s20 + $0x4] sm:$0xf]
    %v9305 = vld [vmem:[%s20 + $0x8] sm:$0xf]
    %v9306 = vld [vmem:[%s20 + $0xc] sm:$0xf]
    %v9307 = vld [vmem:[%s20 + $0x10] sm:$0xf]
    %v9308 = vld [vmem:[%s20 + $0x14] sm:$0xf]
    %v9309 = vld [vmem:[%s20 + $0x18] sm:$0xf]
    %v9310 = vld [vmem:[%s20 + $0x1c] sm:$0xf]
    %v9311 = vld [vmem:[#allocation20] sm:$0x1]
    %v9313 = vlaneseq
    %v9314 = vshrl.u32 %v9313, 7
    %v9315 = vsub.s32 0, %v9314
    %v9316 = vrot.slane %v9311, %v9315
    %v9318 = vmul.f32 %v8671, %v9316
    %v9321 = vunpack.c.l.b16 %v9301
    %v9322 = vunpack.c.l.b16 %v9302
    %v9323 = vsel %vm1017, %v9322, %v9321
    %v9324 = vpack.c.b16 %v9323, %v9323
    %v9333 = vunpack.c.l.b16 %v9303
    %v9334 = vunpack.c.l.b16 %v9304
    %v9335 = vunpack.c.l.b16 %v9305
    %v9336 = vunpack.c.l.b16 %v9306
    %v9337 = vunpack.c.l.b16 %v9307
    %v9338 = vunpack.c.l.b16 %v9308
    %v9339 = vunpack.c.l.b16 %v9309
    %v9340 = vunpack.c.l.b16 %v9310
    %v9341 = vpack.c.b16 %v9334, %v9333
    %v9342 = vpack.c.b16 %v9336, %v9335
    %v9343 = vpack.c.b16 %v9338, %v9337
    %v9344 = vpack.c.b16 %v9340, %v9339
    %v9350 = vsel %vm9062, %v9324, 0
    %9352 = vmatprep.subr.bf16.mxu0 0
    %9353 = vmatpush1.bf16.msra.mxu0 0
    %9354 = vmatprep.subr.bf16.mxu0 0
    %9355 = vmatpush1.bf16.msra.mxu0 0
    %9356 = vmatprep.subr.bf16.mxu0 0
    %9357 = vmatpush1.bf16.msra.mxu0 0
    %9358 = vmatprep.subr.bf16.mxu0 0
    %9359 = vmatpush1.bf16.msra.mxu0 0
    %9360 = vmatprep.subr.bf16.mxu0 0
    %9361 = vmatpush1.bf16.msra.mxu0 %v9344
    %9362 = vmatprep.subr.bf16.mxu0 0
    %9363 = vmatpush1.bf16.msra.mxu0 %v9343
    %9364 = vmatprep.subr.bf16.mxu0 0
    %9365 = vmatpush1.bf16.msra.mxu0 %v9342
    %9366 = vmatprep.subr.bf16.mxu0 0
    %9367 = vmatpush1.bf16.msra.mxu0 %v9341
    %9368 = vmatprep.subr.bf16.mxu0 0
    %9369 = vmatpush2.bf16.msra.mxu0 0
    %9370 = vmatprep.subr.bf16.mxu0 0
    %9371 = vmatpush2.bf16.msra.mxu0 0
    %9372 = vmatprep.subr.bf16.mxu0 0
    %9373 = vmatpush2.bf16.msra.mxu0 0
    %9374 = vmatprep.subr.bf16.mxu0 0
    %9375 = vmatpush2.bf16.msra.mxu0 0
    %9376 = vmatprep.subr.bf16.mxu0 0
    %9377 = vmatpush2.bf16.msra.mxu0 0
    %9378 = vmatprep.subr.bf16.mxu0 0
    %9379 = vmatpush2.bf16.msra.mxu0 0
    %9380 = vmatprep.subr.bf16.mxu0 0
    %9381 = vmatpush2.bf16.msra.mxu0 0
    %9382 = vmatprep.subr.bf16.mxu0 0
    %9383 = vmatpush2.bf16.msra.mxu0 0
    %9384 = vmatprep.mubr.bf16.mxu0 0
    %9385 = vmatmul.mubr.bf16.gmra.mxu0 %v9350
    %v9386 = vpop.f32.mrf.mxu0
    %v9387 = vadd.f32 %v9318, %v9386
    %v9388 = vpop.f32.mrf.mxu0
    %v9389 = vpop.f32.mrf.mxu0
    %v9390 = vpop.f32.mrf.mxu0
    %9391 = vdwg.mxu0
    %v9392 = vld [vmem:[#allocation22] sm:$0x1]
    %v9394 = vlaneseq
    %v9395 = vshrl.u32 %v9394, 7
    %v9396 = vsub.s32 0, %v9395
    %v9397 = vrot.slane %v9392, %v9396
    %v9399 = vadd.f32 %v9387, %v9397
    %9400 = vst.msk [vmem:[#allocation23] sm:$0x3] %vm8666, %v9399
    // Predicated region
    $region146: #{ggn_forward.1} parent=1 // pred_check
      _
    $region147: #{ggn_forward.1} parent=1 // pred_check_branch
      %9402 = sbr.rel (0) target = $region149
    $region148: #{ggn_forward.1} parent=1 // pred_region
      %s9404 = ssub.s32 32, 32
      %9405 = vsyncadd [#allocation4], %s9404
      %s9407 = sshll.u32 [#allocation23], 4
      %s9408 = int_to_ptr.vmem [resolvable:$true] %s9407
      %9410 = dma.vmem_to_hbm [thread:$0]  %s9408, 32, %s23, [#allocation4]
    $region149: #{ggn_forward.1} parent=1 // pred_fallthru
      _
    // Predicated region
    $region150: #{ggn_forward.1} parent=1 // pred_check
      _
    $region151: #{ggn_forward.1} parent=1 // pred_check_branch
      %9412 = sbr.rel (0) target = $region153
    $region152: #{ggn_forward.1} parent=1 // pred_region
      %9413 = dma.done [#allocation4], 32
    $region153: #{ggn_forward.1} parent=1 // pred_fallthru
      _
    %9414 = vsyncpa [#allocation3], 1
    %9415 = vsyncpa [#allocation6], 1
    %9416 = vsyncpa [#allocation9], 1
    %9417 = vsyncpa [#allocation12], 1
    %9418 = vsyncpa [#allocation15], 1
    %9419 = vsyncpa [#allocation18], 1
    %9420 = vsyncpa [#allocation21], 1
    %9421 = vsyncpa [#allocation4], 1

</llo_original>
